<compile_context>
chip_gen: v6e
topology: v6e:2x2x1
jax: 0.10.0
libtpu: 0.0.40
codegen_flags: <defaults>
</compile_context>

<pallas_src>
import numpy as np
import jax
import jax.numpy as jnp
from jax.experimental import pallas as pl
from jax.experimental.pallas import tpu as pltpu


def _ffb_kernel(x0_ref, x1_ref,
                w11_ref, b11_ref, w12_ref, b12_ref,
                w21_ref, b21_ref, w22_ref, b22_ref,
                wout_ref, bout_ref, up_ref,
                out_ref, pad_ref, col_ref):
    # x0_ref/x1_ref : (1, H, W, C)        NHWC inputs (xs[0], xs[1])
    # w**_ref       : (9C, C)             3x3 conv weights, rows ordered (ky, kx, ci)
    # b**_ref       : (1, C)              conv biases (f32)
    # wout_ref      : (C, Co)             1x1 out_conv weight
    # bout_ref      : (1, Co)             1x1 out_conv bias
    # up_ref        : (Ho*Wo, H*W)        bilinear (align_corners=True) interp matrix
    # out_ref       : (1, Ho*Wo, Co)      flattened-spatial output block
    # pad_ref       : (H+2, Wp, C)        VMEM halo-padded activation slab
    # col_ref       : (H*W, 9C)           VMEM im2col slab
    H, W, C = x0_ref.shape[1], x0_ref.shape[2], x0_ref.shape[3]
    Wp = pad_ref.shape[1]
    cdt = pad_ref.dtype                       # MXU operand dtype (f32 or bf16)

    # ---- zero only the 1-px halo border (+ sublane-alignment filler columns) ----
    pad_ref[pl.ds(0, 1), :, :] = jnp.zeros((1, Wp, C), cdt)
    pad_ref[pl.ds(H + 1, 1), :, :] = jnp.zeros((1, Wp, C), cdt)
    pad_ref[:, pl.ds(0, 1), :] = jnp.zeros((H + 2, 1, C), cdt)
    pad_ref[:, pl.ds(W + 1, Wp - W - 1), :] = jnp.zeros((H + 2, Wp - W - 1, C), cdt)

    def conv3x3(v_hwc, w_ref, b_ref):
        """3x3 / pad=1 conv of an already-activated (H, W, C) input -> (H*W, Cout) f32."""
        pad_ref[pl.ds(1, H), pl.ds(1, W), :] = v_hwc.astype(cdt)
        p = pad_ref[...]                                      # (H+2, Wp, C)
        tap = 0
        for dy in range(3):
            for dx in range(3):
                col_ref[:, pl.ds(tap * C, C)] = (
                    p[dy:dy + H, dx:dx + W, :].reshape(H * W, C))
                tap += 1
        return (jnp.dot(col_ref[...], w_ref[...],
                        preferred_element_type=jnp.float32)
                + b_ref[...])                                 # (H*W, Cout) f32

    def rcu(x_hwc, w1_ref, b1_ref, w2_ref, b2_ref):
        """ResidualConvUnit (bn=False, ReLU): relu->conv->relu->conv, + x."""
        h1 = conv3x3(jnp.maximum(x_hwc, 0.0), w1_ref, b1_ref)               # (H*W, C)
        h2 = conv3x3(jnp.maximum(h1, 0.0).reshape(H, W, C), w2_ref, b2_ref)  # (H*W, C)
        return h2 + x_hwc.reshape(H * W, C)

    x0 = x0_ref[0].astype(jnp.float32)        # (H, W, C)
    x1 = x1_ref[0].astype(jnp.float32)

    r1 = rcu(x1, w11_ref, b11_ref, w12_ref, b12_ref)          # resConfUnit1(xs[1])
    s = x0.reshape(H * W, C) + r1                             # skip_add.add(xs[0], res)
    r2 = rcu(s.reshape(H, W, C), w21_ref, b21_ref, w22_ref, b22_ref)

    # 1x1 out_conv BEFORE the upsample (linear ops commute; interp rows sum to 1
    # so the bias commutes too).
    t_co = (jnp.dot(r2.astype(cdt), wout_ref[...],
                    preferred_element_type=jnp.float32)
            + bout_ref[...])                                  # (H*W, Co) f32

    # Bilinear x2, align_corners=True, as a single interpolation matmul.
    up = jnp.dot(up_ref[...], t_co, preferred_element_type=jnp.float32)  # (Ho*Wo, Co)
    out_ref[0] = up.astype(out_ref.dtype)


def _interp_weights_1d(n_in, n_out):
    """(n_out, n_in) 1-D linear interpolation matrix, align_corners=True."""
    if n_in == 1:
        return np.ones((n_out, 1), np.float32)
    src = np.arange(n_out, dtype=np.float64) * (n_in - 1) / (n_out - 1)
    i0 = np.clip(np.floor(src).astype(np.int64), 0, n_in - 2)
    f = (src - i0).astype(np.float32)
    m = np.zeros((n_out, n_in), np.float32)
    m[np.arange(n_out), i0] += 1.0 - f
    m[np.arange(n_out), i0 + 1] += f
    return m


def feature_fusion_block(x0, x1, params, *, out_size=None,
                         compute_dtype=jnp.float32):
    """FeatureFusionBlock forward (two-input path), NHWC in / NHWC out.

    x0, x1 : (N, H, W, C) float32 (channels-last).
    params : PyTorch-layout weights:
        rcu{1,2}_w{1,2}: (C, C, 3, 3), rcu{1,2}_b{1,2}: (C,)
        out_w: (Co, C, 1, 1), out_b: (Co,)
    Returns (N, Ho, Wo, Co) with (Ho, Wo) = out_size or (2H, 2W).
    """
    N, H, W, C = x0.shape
    assert x1.shape == x0.shape
    Ho, Wo = out_size if out_size is not None else (2 * H, 2 * W)
    cdt = compute_dtype

    def conv_mat(w):  # (O, I, 3, 3) -> (9*I, O), rows ordered (ky, kx, i)
        o, i = w.shape[0], w.shape[1]
        return jnp.transpose(w, (2, 3, 1, 0)).reshape(9 * i, o).astype(cdt)

    w11 = conv_mat(params["rcu1_w1"]); b11 = params["rcu1_b1"].reshape(1, -1).astype(jnp.float32)
    w12 = conv_mat(params["rcu1_w2"]); b12 = params["rcu1_b2"].reshape(1, -1).astype(jnp.float32)
    w21 = conv_mat(params["rcu2_w1"]); b21 = params["rcu2_b1"].reshape(1, -1).astype(jnp.float32)
    w22 = conv_mat(params["rcu2_w2"]); b22 = params["rcu2_b2"].reshape(1, -1).astype(jnp.float32)
    wout = jnp.transpose(params["out_w"][:, :, 0, 0], (1, 0)).astype(cdt)    # (C, Co)
    bout = params["out_b"].reshape(1, -1).astype(jnp.float32)
    Co = wout.shape[1]

    # Precomputed separable bilinear (align_corners=True) weights, fused as one
    # (Ho*Wo, H*W) matrix: row (ho*Wo+wo), col (h*W+w) = RH[ho,h]*CW[wo,w].
    rh = _interp_weights_1d(H, Ho)
    cw = _interp_weights_1d(W, Wo)
    upmat = jnp.asarray(np.kron(rh, cw), jnp.float32)                        # (Ho*Wo, H*W)

    Wp = -(-(W + 2) // 8) * 8          # halo-slab width rounded up to the sublane tile

    out_flat = pl.pallas_call(
        _ffb_kernel,
        out_shape=jax.ShapeDtypeStruct((N, Ho * Wo, Co), x0.dtype),
        grid_spec=pltpu.PrefetchScalarGridSpec(
            num_scalar_prefetch=0,
            grid=(N,),
            in_specs=[
                pl.BlockSpec((1, H, W, C), lambda n: (n, 0, 0, 0)),   # x0
                pl.BlockSpec((1, H, W, C), lambda n: (n, 0, 0, 0)),   # x1
                pl.BlockSpec((9 * C, C), lambda n: (0, 0)),           # rcu1 conv1 W
                pl.BlockSpec((1, C), lambda n: (0, 0)),               # rcu1 conv1 b
                pl.BlockSpec((9 * C, C), lambda n: (0, 0)),           # rcu1 conv2 W
                pl.BlockSpec((1, C), lambda n: (0, 0)),               # rcu1 conv2 b
                pl.BlockSpec((9 * C, C), lambda n: (0, 0)),           # rcu2 conv1 W
                pl.BlockSpec((1, C), lambda n: (0, 0)),               # rcu2 conv1 b
                pl.BlockSpec((9 * C, C), lambda n: (0, 0)),           # rcu2 conv2 W
                pl.BlockSpec((1, C), lambda n: (0, 0)),               # rcu2 conv2 b
                pl.BlockSpec((C, Co), lambda n: (0, 0)),              # out_conv W
                pl.BlockSpec((1, Co), lambda n: (0, 0)),              # out_conv b
                pl.BlockSpec((Ho * Wo, H * W), lambda n: (0, 0)),     # interp matrix
            ],
            out_specs=pl.BlockSpec((1, Ho * Wo, Co), lambda n: (n, 0, 0)),
            scratch_shapes=[
                pltpu.VMEM((H + 2, Wp, C), cdt),       # halo-padded activation slab
                pltpu.VMEM((H * W, 9 * C), cdt),       # im2col slab
            ],
        ),
        compiler_params=pltpu.CompilerParams(
            dimension_semantics=("parallel",)),
    )(x0, x1, w11, b11, w12, b12, w21, b21, w22, b22, wout, bout, upmat)

    # free reshape (splits a middle dim of a contiguous array)
    return out_flat.reshape(N, Ho, Wo, Co)


def _reference(x0, x1, params):
    """Pure-JAX NHWC reference for FeatureFusionBlock (bn=False, ReLU,
    expand=False, scale_factor=2, align_corners=True)."""
    def conv3x3(x, w, b):
        wk = jnp.transpose(w, (2, 3, 1, 0))                   # OIHW -> HWIO
        y = jax.lax.conv_general_dilated(
            x, wk, (1, 1), ((1, 1), (1, 1)),
            dimension_numbers=("NHWC", "HWIO", "NHWC"))
        return y + b[None, None, None, :]

    def rcu(x, w1, b1, w2, b2):
        out = jax.nn.relu(x)
        out = conv3x3(out, w1, b1)
        out = jax.nn.relu(out)
        out = conv3x3(out, w2, b2)
        return out + x

    def upsample2x_align_corners(x):
        n, h, w, c = x.shape
        ho, wo = 2 * h, 2 * w
        def idx_frac(n_in, n_out):
            src = jnp.arange(n_out, dtype=jnp.float32) * (n_in - 1) / (n_out - 1)
            i0 = jnp.clip(jnp.floor(src).astype(jnp.int32), 0, n_in - 2)
            return i0, src - i0.astype(jnp.float32)
        h0, fh = idx_frac(h, ho)
        w0, fw = idx_frac(w, wo)
        xr = (jnp.take(x, h0, axis=1) * (1.0 - fh)[None, :, None, None]
              + jnp.take(x, h0 + 1, axis=1) * fh[None, :, None, None])
        return (jnp.take(xr, w0, axis=2) * (1.0 - fw)[None, None, :, None]
                + jnp.take(xr, w0 + 1, axis=2) * fw[None, None, :, None])

    res = rcu(x1, params["rcu1_w1"], params["rcu1_b1"],
              params["rcu1_w2"], params["rcu1_b2"])
    out = x0 + res
    out = rcu(out, params["rcu2_w1"], params["rcu2_b1"],
              params["rcu2_w2"], params["rcu2_b2"])
    out = upsample2x_align_corners(out)
    wout = params["out_w"][:, :, 0, 0]                        # (Co, C)
    out = jnp.einsum("nhwc,oc->nhwo", out, wout,
                     precision=jax.lax.Precision.HIGHEST)
    return out + params["out_b"][None, None, None, :]


if __name__ == "__main__":
    key = jax.random.PRNGKey(0)
    ks = jax.random.split(key, 12)

    N, H, W, C = 2, 16, 16, 8          # features=8, small spatial, NHWC layout

    x0 = jax.random.normal(ks[0], (N, H, W, C), jnp.float32)
    x1 = jax.random.normal(ks[1], (N, H, W, C), jnp.float32)

    s3 = 1.0 / (9 * C) ** 0.5
    s1 = 1.0 / C ** 0.5
    params = {
        "rcu1_w1": jax.random.normal(ks[2], (C, C, 3, 3), jnp.float32) * s3,
        "rcu1_b1": jax.random.normal(ks[3], (C,), jnp.float32) * s3,
        "rcu1_w2": jax.random.normal(ks[4], (C, C, 3, 3), jnp.float32) * s3,
        "rcu1_b2": jax.random.normal(ks[5], (C,), jnp.float32) * s3,
        "rcu2_w1": jax.random.normal(ks[6], (C, C, 3, 3), jnp.float32) * s3,
        "rcu2_b1": jax.random.normal(ks[7], (C,), jnp.float32) * s3,
        "rcu2_w2": jax.random.normal(ks[8], (C, C, 3, 3), jnp.float32) * s3,
        "rcu2_b2": jax.random.normal(ks[9], (C,), jnp.float32) * s3,
        "out_w": jax.random.normal(ks[10], (C, C, 1, 1), jnp.float32) * s1,
        "out_b": jax.random.normal(ks[11], (C,), jnp.float32) * s1,
    }

    out = feature_fusion_block(x0, x1, params)      # f32 MXU path for tight check;
    out = jax.block_until_ready(out)                # pass compute_dtype=jnp.bfloat16
                                                    # for the v6e/v7x fast path.
    ref = _reference(x0, x1, params)
    assert out.shape == (N, 2 * H, 2 * W, C), out.shape
    max_err = float(jnp.max(jnp.abs(out - ref)))
    assert jnp.allclose(out, ref, rtol=1e-2, atol=1e-2), f"max abs err {max_err}"

    print("KERNEL_OK")
</pallas_src>

<mosaic_0001>
module attributes {stable_mosaic.version = 11 : i64} {
  func.func @_ffb_kernel(%arg0: i32, %arg1: memref<1x16x16x8xf32, #tpu.memory_space<vmem>>, %arg2: memref<1x16x16x8xf32, #tpu.memory_space<vmem>>, %arg3: memref<72x8xf32, #tpu.memory_space<vmem>>, %arg4: memref<1x8xf32, #tpu.memory_space<vmem>>, %arg5: memref<72x8xf32, #tpu.memory_space<vmem>>, %arg6: memref<1x8xf32, #tpu.memory_space<vmem>>, %arg7: memref<72x8xf32, #tpu.memory_space<vmem>>, %arg8: memref<1x8xf32, #tpu.memory_space<vmem>>, %arg9: memref<72x8xf32, #tpu.memory_space<vmem>>, %arg10: memref<1x8xf32, #tpu.memory_space<vmem>>, %arg11: memref<8x8xf32, #tpu.memory_space<vmem>>, %arg12: memref<1x8xf32, #tpu.memory_space<vmem>>, %arg13: memref<1024x256xf32, #tpu.memory_space<vmem>>, %arg14: memref<1x1024x8xf32, #tpu.memory_space<vmem>>, %arg15: memref<18x24x8xf32, #tpu.memory_space<vmem>>, %arg16: memref<256x72xf32, #tpu.memory_space<vmem>>) attributes {dimension_semantics = [#tpu.dimension_semantics<parallel>], iteration_bounds = array<i64: 2>, scalar_prefetch = 0 : i64, scratch_operands = 2 : i64, tpu.core_type = #tpu.core_type<tc>, window_params = [{transform_indices = @transform_0, window_bounds = array<i64: 1, 16, 16, 8>}, {transform_indices = @transform_1, window_bounds = array<i64: 1, 16, 16, 8>}, {pipeline_mode = #tpu.pipeline_mode<synchronous>, transform_indices = @transform_2, window_bounds = array<i64: 72, 8>}, {pipeline_mode = #tpu.pipeline_mode<synchronous>, transform_indices = @transform_3, window_bounds = array<i64: 1, 8>}, {pipeline_mode = #tpu.pipeline_mode<synchronous>, transform_indices = @transform_4, window_bounds = array<i64: 72, 8>}, {pipeline_mode = #tpu.pipeline_mode<synchronous>, transform_indices = @transform_5, window_bounds = array<i64: 1, 8>}, {pipeline_mode = #tpu.pipeline_mode<synchronous>, transform_indices = @transform_6, window_bounds = array<i64: 72, 8>}, {pipeline_mode = #tpu.pipeline_mode<synchronous>, transform_indices = @transform_7, window_bounds = array<i64: 1, 8>}, {pipeline_mode = #tpu.pipeline_mode<synchronous>, transform_indices = @transform_8, window_bounds = array<i64: 72, 8>}, {pipeline_mode = #tpu.pipeline_mode<synchronous>, transform_indices = @transform_9, window_bounds = array<i64: 1, 8>}, {pipeline_mode = #tpu.pipeline_mode<synchronous>, transform_indices = @transform_10, window_bounds = array<i64: 8, 8>}, {pipeline_mode = #tpu.pipeline_mode<synchronous>, transform_indices = @transform_11, window_bounds = array<i64: 1, 8>}, {pipeline_mode = #tpu.pipeline_mode<synchronous>, transform_indices = @transform_12, window_bounds = array<i64: 1024, 256>}, {transform_indices = @transform_13, window_bounds = array<i64: 1, 1024, 8>}]} {
    %cst = arith.constant 0.000000e+00 : f32
    %0 = vector.broadcast %cst : f32 to vector<1x24x8xf32>
    %c0 = arith.constant 0 : index
    %c0_0 = arith.constant 0 : index
    %c0_1 = arith.constant 0 : index
    %1 = vector.load %arg15[%c0, %c0_0, %c0_1] : memref<18x24x8xf32, #tpu.memory_space<vmem>>, vector<1x24x8xf32>
    tpu.vector_store %arg15[%c0, %c0_0, %c0_1], %0 {strides = array<i32>} : memref<18x24x8xf32, #tpu.memory_space<vmem>>, vector<1x24x8xf32>,
    %cst_2 = arith.constant 0.000000e+00 : f32
    %2 = vector.broadcast %cst_2 : f32 to vector<1x24x8xf32>
    %c17 = arith.constant 17 : index
    %c0_3 = arith.constant 0 : index
    %c0_4 = arith.constant 0 : index
    %3 = vector.load %arg15[%c17, %c0_3, %c0_4] : memref<18x24x8xf32, #tpu.memory_space<vmem>>, vector<1x24x8xf32>
    tpu.vector_store %arg15[%c17, %c0_3, %c0_4], %2 {strides = array<i32>} : memref<18x24x8xf32, #tpu.memory_space<vmem>>, vector<1x24x8xf32>,
    %cst_5 = arith.constant 0.000000e+00 : f32
    %4 = vector.broadcast %cst_5 : f32 to vector<18x1x8xf32>
    %c0_6 = arith.constant 0 : index
    %c0_7 = arith.constant 0 : index
    %c0_8 = arith.constant 0 : index
    %5 = vector.load %arg15[%c0_6, %c0_7, %c0_8] : memref<18x24x8xf32, #tpu.memory_space<vmem>>, vector<18x1x8xf32>
    tpu.vector_store %arg15[%c0_6, %c0_7, %c0_8], %4 {strides = array<i32>} : memref<18x24x8xf32, #tpu.memory_space<vmem>>, vector<18x1x8xf32>,
    %cst_9 = arith.constant 0.000000e+00 : f32
    %6 = vector.broadcast %cst_9 : f32 to vector<18x7x8xf32>
    %c0_10 = arith.constant 0 : index
    %c17_11 = arith.constant 17 : index
    %c0_12 = arith.constant 0 : index
    %7 = vector.load %arg15[%c0_10, %c17_11, %c0_12] : memref<18x24x8xf32, #tpu.memory_space<vmem>>, vector<18x7x8xf32>
    tpu.vector_store %arg15[%c0_10, %c17_11, %c0_12], %6 {strides = array<i32>} : memref<18x24x8xf32, #tpu.memory_space<vmem>>, vector<18x7x8xf32>,
    %c0_13 = arith.constant 0 : index
    %c0_14 = arith.constant 0 : index
    %c0_15 = arith.constant 0 : index
    %c0_16 = arith.constant 0 : index
    %8 = vector.load %arg1[%c0_13, %c0_14, %c0_15, %c0_16] : memref<1x16x16x8xf32, #tpu.memory_space<vmem>>, vector<1x16x16x8xf32>
    %9 = vector.shape_cast %8 : vector<1x16x16x8xf32> to vector<16x16x8xf32>
    %c0_17 = arith.constant 0 : index
    %c0_18 = arith.constant 0 : index
    %c0_19 = arith.constant 0 : index
    %c0_20 = arith.constant 0 : index
    %10 = vector.load %arg2[%c0_17, %c0_18, %c0_19, %c0_20] : memref<1x16x16x8xf32, #tpu.memory_space<vmem>>, vector<1x16x16x8xf32>
    %11 = vector.shape_cast %10 : vector<1x16x16x8xf32> to vector<16x16x8xf32>
    %cst_21 = arith.constant 0.000000e+00 : f32
    %12 = vector.broadcast %cst_21 : f32 to vector<16x16x8xf32>
    %13 = arith.maximumf %11, %12 : vector<16x16x8xf32>
    %c1 = arith.constant 1 : index
    %c1_22 = arith.constant 1 : index
    %c0_23 = arith.constant 0 : index
    %14 = vector.load %arg15[%c1, %c1_22, %c0_23] : memref<18x24x8xf32, #tpu.memory_space<vmem>>, vector<16x16x8xf32>
    tpu.vector_store %arg15[%c1, %c1_22, %c0_23], %13 {strides = array<i32>} : memref<18x24x8xf32, #tpu.memory_space<vmem>>, vector<16x16x8xf32>,
    %c0_24 = arith.constant 0 : index
    %c0_25 = arith.constant 0 : index
    %c0_26 = arith.constant 0 : index
    %15 = vector.load %arg15[%c0_24, %c0_25, %c0_26] : memref<18x24x8xf32, #tpu.memory_space<vmem>>, vector<18x24x8xf32>
    %16 = vector.extract_strided_slice %15 {offsets = [0, 0, 0], sizes = [16, 16, 8], strides = [1, 1, 1]} : vector<18x24x8xf32> to vector<16x16x8xf32>
    %17 = vector.shape_cast %16 : vector<16x16x8xf32> to vector<256x8xf32>
    %c0_27 = arith.constant 0 : index
    %c0_28 = arith.constant 0 : index
    %18 = vector.load %arg16[%c0_27, %c0_28] : memref<256x72xf32, #tpu.memory_space<vmem>>, vector<256x8xf32>
    tpu.vector_store %arg16[%c0_27, %c0_28], %17 {strides = array<i32>} : memref<256x72xf32, #tpu.memory_space<vmem>>, vector<256x8xf32>,
    %19 = vector.extract_strided_slice %15 {offsets = [0, 1, 0], sizes = [16, 16, 8], strides = [1, 1, 1]} : vector<18x24x8xf32> to vector<16x16x8xf32>
    %20 = vector.shape_cast %19 : vector<16x16x8xf32> to vector<256x8xf32>
    %c0_29 = arith.constant 0 : index
    %c8 = arith.constant 8 : index
    %21 = vector.load %arg16[%c0_29, %c8] : memref<256x72xf32, #tpu.memory_space<vmem>>, vector<256x8xf32>
    tpu.vector_store %arg16[%c0_29, %c8], %20 {strides = array<i32>} : memref<256x72xf32, #tpu.memory_space<vmem>>, vector<256x8xf32>,
    %22 = vector.extract_strided_slice %15 {offsets = [0, 2, 0], sizes = [16, 16, 8], strides = [1, 1, 1]} : vector<18x24x8xf32> to vector<16x16x8xf32>
    %23 = vector.shape_cast %22 : vector<16x16x8xf32> to vector<256x8xf32>
    %c0_30 = arith.constant 0 : index
    %c16 = arith.constant 16 : index
    %24 = vector.load %arg16[%c0_30, %c16] : memref<256x72xf32, #tpu.memory_space<vmem>>, vector<256x8xf32>
    tpu.vector_store %arg16[%c0_30, %c16], %23 {strides = array<i32>} : memref<256x72xf32, #tpu.memory_space<vmem>>, vector<256x8xf32>,
    %25 = vector.extract_strided_slice %15 {offsets = [1, 0, 0], sizes = [16, 16, 8], strides = [1, 1, 1]} : vector<18x24x8xf32> to vector<16x16x8xf32>
    %26 = vector.shape_cast %25 : vector<16x16x8xf32> to vector<256x8xf32>
    %c0_31 = arith.constant 0 : index
    %c24 = arith.constant 24 : index
    %27 = vector.load %arg16[%c0_31, %c24] : memref<256x72xf32, #tpu.memory_space<vmem>>, vector<256x8xf32>
    tpu.vector_store %arg16[%c0_31, %c24], %26 {strides = array<i32>} : memref<256x72xf32, #tpu.memory_space<vmem>>, vector<256x8xf32>,
    %28 = vector.extract_strided_slice %15 {offsets = [1, 1, 0], sizes = [16, 16, 8], strides = [1, 1, 1]} : vector<18x24x8xf32> to vector<16x16x8xf32>
    %29 = vector.shape_cast %28 : vector<16x16x8xf32> to vector<256x8xf32>
    %c0_32 = arith.constant 0 : index
    %c32 = arith.constant 32 : index
    %30 = vector.load %arg16[%c0_32, %c32] : memref<256x72xf32, #tpu.memory_space<vmem>>, vector<256x8xf32>
    tpu.vector_store %arg16[%c0_32, %c32], %29 {strides = array<i32>} : memref<256x72xf32, #tpu.memory_space<vmem>>, vector<256x8xf32>,
    %31 = vector.extract_strided_slice %15 {offsets = [1, 2, 0], sizes = [16, 16, 8], strides = [1, 1, 1]} : vector<18x24x8xf32> to vector<16x16x8xf32>
    %32 = vector.shape_cast %31 : vector<16x16x8xf32> to vector<256x8xf32>
    %c0_33 = arith.constant 0 : index
    %c40 = arith.constant 40 : index
    %33 = vector.load %arg16[%c0_33, %c40] : memref<256x72xf32, #tpu.memory_space<vmem>>, vector<256x8xf32>
    tpu.vector_store %arg16[%c0_33, %c40], %32 {strides = array<i32>} : memref<256x72xf32, #tpu.memory_space<vmem>>, vector<256x8xf32>,
    %34 = vector.extract_strided_slice %15 {offsets = [2, 0, 0], sizes = [16, 16, 8], strides = [1, 1, 1]} : vector<18x24x8xf32> to vector<16x16x8xf32>
    %35 = vector.shape_cast %34 : vector<16x16x8xf32> to vector<256x8xf32>
    %c0_34 = arith.constant 0 : index
    %c48 = arith.constant 48 : index
    %36 = vector.load %arg16[%c0_34, %c48] : memref<256x72xf32, #tpu.memory_space<vmem>>, vector<256x8xf32>
    tpu.vector_store %arg16[%c0_34, %c48], %35 {strides = array<i32>} : memref<256x72xf32, #tpu.memory_space<vmem>>, vector<256x8xf32>,
    %37 = vector.extract_strided_slice %15 {offsets = [2, 1, 0], sizes = [16, 16, 8], strides = [1, 1, 1]} : vector<18x24x8xf32> to vector<16x16x8xf32>
    %38 = vector.shape_cast %37 : vector<16x16x8xf32> to vector<256x8xf32>
    %c0_35 = arith.constant 0 : index
    %c56 = arith.constant 56 : index
    %39 = vector.load %arg16[%c0_35, %c56] : memref<256x72xf32, #tpu.memory_space<vmem>>, vector<256x8xf32>
    tpu.vector_store %arg16[%c0_35, %c56], %38 {strides = array<i32>} : memref<256x72xf32, #tpu.memory_space<vmem>>, vector<256x8xf32>,
    %40 = vector.extract_strided_slice %15 {offsets = [2, 2, 0], sizes = [16, 16, 8], strides = [1, 1, 1]} : vector<18x24x8xf32> to vector<16x16x8xf32>
    %41 = vector.shape_cast %40 : vector<16x16x8xf32> to vector<256x8xf32>
    %c0_36 = arith.constant 0 : index
    %c64 = arith.constant 64 : index
    %42 = vector.load %arg16[%c0_36, %c64] : memref<256x72xf32, #tpu.memory_space<vmem>>, vector<256x8xf32>
    tpu.vector_store %arg16[%c0_36, %c64], %41 {strides = array<i32>} : memref<256x72xf32, #tpu.memory_space<vmem>>, vector<256x8xf32>,
    %c0_37 = arith.constant 0 : index
    %c0_38 = arith.constant 0 : index
    %43 = vector.load %arg16[%c0_37, %c0_38] : memref<256x72xf32, #tpu.memory_space<vmem>>, vector<256x72xf32>
    %c0_39 = arith.constant 0 : index
    %c0_40 = arith.constant 0 : index
    %44 = vector.load %arg3[%c0_39, %c0_40] : memref<72x8xf32, #tpu.memory_space<vmem>>, vector<72x8xf32>
    %cst_41 = arith.constant dense<0.000000e+00> : vector<256x8xf32>
    %45 = tpu.matmul %43, %44, %cst_41 {dimension_numbers = #tpu.dot_dimension_numbers<[1], [0], [0], [1], [0, 0, 1, 1], [], []>} : vector<256x72xf32>, vector<72x8xf32>, vector<256x8xf32> -> vector<256x8xf32>
    %c0_42 = arith.constant 0 : index
    %c0_43 = arith.constant 0 : index
    %46 = vector.load %arg4[%c0_42, %c0_43] : memref<1x8xf32, #tpu.memory_space<vmem>>, vector<1x8xf32>
    %47 = vector.broadcast %46 : vector<1x8xf32> to vector<256x8xf32>
    %48 = arith.addf %45, %47 : vector<256x8xf32>
    %cst_44 = arith.constant 0.000000e+00 : f32
    %49 = vector.broadcast %cst_44 : f32 to vector<256x8xf32>
    %50 = arith.maximumf %48, %49 : vector<256x8xf32>
    %51 = vector.shape_cast %50 : vector<256x8xf32> to vector<16x16x8xf32>
    %c1_45 = arith.constant 1 : index
    %c1_46 = arith.constant 1 : index
    %c0_47 = arith.constant 0 : index
    %52 = vector.load %arg15[%c1_45, %c1_46, %c0_47] : memref<18x24x8xf32, #tpu.memory_space<vmem>>, vector<16x16x8xf32>
    tpu.vector_store %arg15[%c1_45, %c1_46, %c0_47], %51 {strides = array<i32>} : memref<18x24x8xf32, #tpu.memory_space<vmem>>, vector<16x16x8xf32>,
    %c0_48 = arith.constant 0 : index
    %c0_49 = arith.constant 0 : index
    %c0_50 = arith.constant 0 : index
    %53 = vector.load %arg15[%c0_48, %c0_49, %c0_50] : memref<18x24x8xf32, #tpu.memory_space<vmem>>, vector<18x24x8xf32>
    %54 = vector.extract_strided_slice %53 {offsets = [0, 0, 0], sizes = [16, 16, 8], strides = [1, 1, 1]} : vector<18x24x8xf32> to vector<16x16x8xf32>
    %55 = vector.shape_cast %54 : vector<16x16x8xf32> to vector<256x8xf32>
    %c0_51 = arith.constant 0 : index
    %c0_52 = arith.constant 0 : index
    %56 = vector.load %arg16[%c0_51, %c0_52] : memref<256x72xf32, #tpu.memory_space<vmem>>, vector<256x8xf32>
    tpu.vector_store %arg16[%c0_51, %c0_52], %55 {strides = array<i32>} : memref<256x72xf32, #tpu.memory_space<vmem>>, vector<256x8xf32>,
    %57 = vector.extract_strided_slice %53 {offsets = [0, 1, 0], sizes = [16, 16, 8], strides = [1, 1, 1]} : vector<18x24x8xf32> to vector<16x16x8xf32>
    %58 = vector.shape_cast %57 : vector<16x16x8xf32> to vector<256x8xf32>
    %c0_53 = arith.constant 0 : index
    %c8_54 = arith.constant 8 : index
    %59 = vector.load %arg16[%c0_53, %c8_54] : memref<256x72xf32, #tpu.memory_space<vmem>>, vector<256x8xf32>
    tpu.vector_store %arg16[%c0_53, %c8_54], %58 {strides = array<i32>} : memref<256x72xf32, #tpu.memory_space<vmem>>, vector<256x8xf32>,
    %60 = vector.extract_strided_slice %53 {offsets = [0, 2, 0], sizes = [16, 16, 8], strides = [1, 1, 1]} : vector<18x24x8xf32> to vector<16x16x8xf32>
    %61 = vector.shape_cast %60 : vector<16x16x8xf32> to vector<256x8xf32>
    %c0_55 = arith.constant 0 : index
    %c16_56 = arith.constant 16 : index
    %62 = vector.load %arg16[%c0_55, %c16_56] : memref<256x72xf32, #tpu.memory_space<vmem>>, vector<256x8xf32>
    tpu.vector_store %arg16[%c0_55, %c16_56], %61 {strides = array<i32>} : memref<256x72xf32, #tpu.memory_space<vmem>>, vector<256x8xf32>,
    %63 = vector.extract_strided_slice %53 {offsets = [1, 0, 0], sizes = [16, 16, 8], strides = [1, 1, 1]} : vector<18x24x8xf32> to vector<16x16x8xf32>
    %64 = vector.shape_cast %63 : vector<16x16x8xf32> to vector<256x8xf32>
    %c0_57 = arith.constant 0 : index
    %c24_58 = arith.constant 24 : index
    %65 = vector.load %arg16[%c0_57, %c24_58] : memref<256x72xf32, #tpu.memory_space<vmem>>, vector<256x8xf32>
    tpu.vector_store %arg16[%c0_57, %c24_58], %64 {strides = array<i32>} : memref<256x72xf32, #tpu.memory_space<vmem>>, vector<256x8xf32>,
    %66 = vector.extract_strided_slice %53 {offsets = [1, 1, 0], sizes = [16, 16, 8], strides = [1, 1, 1]} : vector<18x24x8xf32> to vector<16x16x8xf32>
    %67 = vector.shape_cast %66 : vector<16x16x8xf32> to vector<256x8xf32>
    %c0_59 = arith.constant 0 : index
    %c32_60 = arith.constant 32 : index
    %68 = vector.load %arg16[%c0_59, %c32_60] : memref<256x72xf32, #tpu.memory_space<vmem>>, vector<256x8xf32>
    tpu.vector_store %arg16[%c0_59, %c32_60], %67 {strides = array<i32>} : memref<256x72xf32, #tpu.memory_space<vmem>>, vector<256x8xf32>,
    %69 = vector.extract_strided_slice %53 {offsets = [1, 2, 0], sizes = [16, 16, 8], strides = [1, 1, 1]} : vector<18x24x8xf32> to vector<16x16x8xf32>
    %70 = vector.shape_cast %69 : vector<16x16x8xf32> to vector<256x8xf32>
    %c0_61 = arith.constant 0 : index
    %c40_62 = arith.constant 40 : index
    %71 = vector.load %arg16[%c0_61, %c40_62] : memref<256x72xf32, #tpu.memory_space<vmem>>, vector<256x8xf32>
    tpu.vector_store %arg16[%c0_61, %c40_62], %70 {strides = array<i32>} : memref<256x72xf32, #tpu.memory_space<vmem>>, vector<256x8xf32>,
    %72 = vector.extract_strided_slice %53 {offsets = [2, 0, 0], sizes = [16, 16, 8], strides = [1, 1, 1]} : vector<18x24x8xf32> to vector<16x16x8xf32>
    %73 = vector.shape_cast %72 : vector<16x16x8xf32> to vector<256x8xf32>
    %c0_63 = arith.constant 0 : index
    %c48_64 = arith.constant 48 : index
    %74 = vector.load %arg16[%c0_63, %c48_64] : memref<256x72xf32, #tpu.memory_space<vmem>>, vector<256x8xf32>
    tpu.vector_store %arg16[%c0_63, %c48_64], %73 {strides = array<i32>} : memref<256x72xf32, #tpu.memory_space<vmem>>, vector<256x8xf32>,
    %75 = vector.extract_strided_slice %53 {offsets = [2, 1, 0], sizes = [16, 16, 8], strides = [1, 1, 1]} : vector<18x24x8xf32> to vector<16x16x8xf32>
    %76 = vector.shape_cast %75 : vector<16x16x8xf32> to vector<256x8xf32>
    %c0_65 = arith.constant 0 : index
    %c56_66 = arith.constant 56 : index
    %77 = vector.load %arg16[%c0_65, %c56_66] : memref<256x72xf32, #tpu.memory_space<vmem>>, vector<256x8xf32>
    tpu.vector_store %arg16[%c0_65, %c56_66], %76 {strides = array<i32>} : memref<256x72xf32, #tpu.memory_space<vmem>>, vector<256x8xf32>,
    %78 = vector.extract_strided_slice %53 {offsets = [2, 2, 0], sizes = [16, 16, 8], strides = [1, 1, 1]} : vector<18x24x8xf32> to vector<16x16x8xf32>
    %79 = vector.shape_cast %78 : vector<16x16x8xf32> to vector<256x8xf32>
    %c0_67 = arith.constant 0 : index
    %c64_68 = arith.constant 64 : index
    %80 = vector.load %arg16[%c0_67, %c64_68] : memref<256x72xf32, #tpu.memory_space<vmem>>, vector<256x8xf32>
    tpu.vector_store %arg16[%c0_67, %c64_68], %79 {strides = array<i32>} : memref<256x72xf32, #tpu.memory_space<vmem>>, vector<256x8xf32>,
    %c0_69 = arith.constant 0 : index
    %c0_70 = arith.constant 0 : index
    %81 = vector.load %arg16[%c0_69, %c0_70] : memref<256x72xf32, #tpu.memory_space<vmem>>, vector<256x72xf32>
    %c0_71 = arith.constant 0 : index
    %c0_72 = arith.constant 0 : index
    %82 = vector.load %arg5[%c0_71, %c0_72] : memref<72x8xf32, #tpu.memory_space<vmem>>, vector<72x8xf32>
    %cst_73 = arith.constant dense<0.000000e+00> : vector<256x8xf32>
    %83 = tpu.matmul %81, %82, %cst_73 {dimension_numbers = #tpu.dot_dimension_numbers<[1], [0], [0], [1], [0, 0, 1, 1], [], []>} : vector<256x72xf32>, vector<72x8xf32>, vector<256x8xf32> -> vector<256x8xf32>
    %c0_74 = arith.constant 0 : index
    %c0_75 = arith.constant 0 : index
    %84 = vector.load %arg6[%c0_74, %c0_75] : memref<1x8xf32, #tpu.memory_space<vmem>>, vector<1x8xf32>
    %85 = vector.broadcast %84 : vector<1x8xf32> to vector<256x8xf32>
    %86 = arith.addf %83, %85 : vector<256x8xf32>
    %87 = vector.shape_cast %11 : vector<16x16x8xf32> to vector<256x8xf32>
    %88 = arith.addf %86, %87 : vector<256x8xf32>
    %89 = vector.shape_cast %9 : vector<16x16x8xf32> to vector<256x8xf32>
    %90 = arith.addf %89, %88 : vector<256x8xf32>
    %91 = vector.shape_cast %90 : vector<256x8xf32> to vector<16x16x8xf32>
    %cst_76 = arith.constant 0.000000e+00 : f32
    %92 = vector.broadcast %cst_76 : f32 to vector<16x16x8xf32>
    %93 = arith.maximumf %91, %92 : vector<16x16x8xf32>
    %c1_77 = arith.constant 1 : index
    %c1_78 = arith.constant 1 : index
    %c0_79 = arith.constant 0 : index
    %94 = vector.load %arg15[%c1_77, %c1_78, %c0_79] : memref<18x24x8xf32, #tpu.memory_space<vmem>>, vector<16x16x8xf32>
    tpu.vector_store %arg15[%c1_77, %c1_78, %c0_79], %93 {strides = array<i32>} : memref<18x24x8xf32, #tpu.memory_space<vmem>>, vector<16x16x8xf32>,
    %c0_80 = arith.constant 0 : index
    %c0_81 = arith.constant 0 : index
    %c0_82 = arith.constant 0 : index
    %95 = vector.load %arg15[%c0_80, %c0_81, %c0_82] : memref<18x24x8xf32, #tpu.memory_space<vmem>>, vector<18x24x8xf32>
    %96 = vector.extract_strided_slice %95 {offsets = [0, 0, 0], sizes = [16, 16, 8], strides = [1, 1, 1]} : vector<18x24x8xf32> to vector<16x16x8xf32>
    %97 = vector.shape_cast %96 : vector<16x16x8xf32> to vector<256x8xf32>
    %c0_83 = arith.constant 0 : index
    %c0_84 = arith.constant 0 : index
    %98 = vector.load %arg16[%c0_83, %c0_84] : memref<256x72xf32, #tpu.memory_space<vmem>>, vector<256x8xf32>
    tpu.vector_store %arg16[%c0_83, %c0_84], %97 {strides = array<i32>} : memref<256x72xf32, #tpu.memory_space<vmem>>, vector<256x8xf32>,
    %99 = vector.extract_strided_slice %95 {offsets = [0, 1, 0], sizes = [16, 16, 8], strides = [1, 1, 1]} : vector<18x24x8xf32> to vector<16x16x8xf32>
    %100 = vector.shape_cast %99 : vector<16x16x8xf32> to vector<256x8xf32>
    %c0_85 = arith.constant 0 : index
    %c8_86 = arith.constant 8 : index
    %101 = vector.load %arg16[%c0_85, %c8_86] : memref<256x72xf32, #tpu.memory_space<vmem>>, vector<256x8xf32>
    tpu.vector_store %arg16[%c0_85, %c8_86], %100 {strides = array<i32>} : memref<256x72xf32, #tpu.memory_space<vmem>>, vector<256x8xf32>,
    %102 = vector.extract_strided_slice %95 {offsets = [0, 2, 0], sizes = [16, 16, 8], strides = [1, 1, 1]} : vector<18x24x8xf32> to vector<16x16x8xf32>
    %103 = vector.shape_cast %102 : vector<16x16x8xf32> to vector<256x8xf32>
    %c0_87 = arith.constant 0 : index
    %c16_88 = arith.constant 16 : index
    %104 = vector.load %arg16[%c0_87, %c16_88] : memref<256x72xf32, #tpu.memory_space<vmem>>, vector<256x8xf32>
    tpu.vector_store %arg16[%c0_87, %c16_88], %103 {strides = array<i32>} : memref<256x72xf32, #tpu.memory_space<vmem>>, vector<256x8xf32>,
    %105 = vector.extract_strided_slice %95 {offsets = [1, 0, 0], sizes = [16, 16, 8], strides = [1, 1, 1]} : vector<18x24x8xf32> to vector<16x16x8xf32>
    %106 = vector.shape_cast %105 : vector<16x16x8xf32> to vector<256x8xf32>
    %c0_89 = arith.constant 0 : index
    %c24_90 = arith.constant 24 : index
    %107 = vector.load %arg16[%c0_89, %c24_90] : memref<256x72xf32, #tpu.memory_space<vmem>>, vector<256x8xf32>
    tpu.vector_store %arg16[%c0_89, %c24_90], %106 {strides = array<i32>} : memref<256x72xf32, #tpu.memory_space<vmem>>, vector<256x8xf32>,
    %108 = vector.extract_strided_slice %95 {offsets = [1, 1, 0], sizes = [16, 16, 8], strides = [1, 1, 1]} : vector<18x24x8xf32> to vector<16x16x8xf32>
    %109 = vector.shape_cast %108 : vector<16x16x8xf32> to vector<256x8xf32>
    %c0_91 = arith.constant 0 : index
    %c32_92 = arith.constant 32 : index
    %110 = vector.load %arg16[%c0_91, %c32_92] : memref<256x72xf32, #tpu.memory_space<vmem>>, vector<256x8xf32>
    tpu.vector_store %arg16[%c0_91, %c32_92], %109 {strides = array<i32>} : memref<256x72xf32, #tpu.memory_space<vmem>>, vector<256x8xf32>,
    %111 = vector.extract_strided_slice %95 {offsets = [1, 2, 0], sizes = [16, 16, 8], strides = [1, 1, 1]} : vector<18x24x8xf32> to vector<16x16x8xf32>
    %112 = vector.shape_cast %111 : vector<16x16x8xf32> to vector<256x8xf32>
    %c0_93 = arith.constant 0 : index
    %c40_94 = arith.constant 40 : index
    %113 = vector.load %arg16[%c0_93, %c40_94] : memref<256x72xf32, #tpu.memory_space<vmem>>, vector<256x8xf32>
    tpu.vector_store %arg16[%c0_93, %c40_94], %112 {strides = array<i32>} : memref<256x72xf32, #tpu.memory_space<vmem>>, vector<256x8xf32>,
    %114 = vector.extract_strided_slice %95 {offsets = [2, 0, 0], sizes = [16, 16, 8], strides = [1, 1, 1]} : vector<18x24x8xf32> to vector<16x16x8xf32>
    %115 = vector.shape_cast %114 : vector<16x16x8xf32> to vector<256x8xf32>
    %c0_95 = arith.constant 0 : index
    %c48_96 = arith.constant 48 : index
    %116 = vector.load %arg16[%c0_95, %c48_96] : memref<256x72xf32, #tpu.memory_space<vmem>>, vector<256x8xf32>
    tpu.vector_store %arg16[%c0_95, %c48_96], %115 {strides = array<i32>} : memref<256x72xf32, #tpu.memory_space<vmem>>, vector<256x8xf32>,
    %117 = vector.extract_strided_slice %95 {offsets = [2, 1, 0], sizes = [16, 16, 8], strides = [1, 1, 1]} : vector<18x24x8xf32> to vector<16x16x8xf32>
    %118 = vector.shape_cast %117 : vector<16x16x8xf32> to vector<256x8xf32>
    %c0_97 = arith.constant 0 : index
    %c56_98 = arith.constant 56 : index
    %119 = vector.load %arg16[%c0_97, %c56_98] : memref<256x72xf32, #tpu.memory_space<vmem>>, vector<256x8xf32>
    tpu.vector_store %arg16[%c0_97, %c56_98], %118 {strides = array<i32>} : memref<256x72xf32, #tpu.memory_space<vmem>>, vector<256x8xf32>,
    %120 = vector.extract_strided_slice %95 {offsets = [2, 2, 0], sizes = [16, 16, 8], strides = [1, 1, 1]} : vector<18x24x8xf32> to vector<16x16x8xf32>
    %121 = vector.shape_cast %120 : vector<16x16x8xf32> to vector<256x8xf32>
    %c0_99 = arith.constant 0 : index
    %c64_100 = arith.constant 64 : index
    %122 = vector.load %arg16[%c0_99, %c64_100] : memref<256x72xf32, #tpu.memory_space<vmem>>, vector<256x8xf32>
    tpu.vector_store %arg16[%c0_99, %c64_100], %121 {strides = array<i32>} : memref<256x72xf32, #tpu.memory_space<vmem>>, vector<256x8xf32>,
    %c0_101 = arith.constant 0 : index
    %c0_102 = arith.constant 0 : index
    %123 = vector.load %arg16[%c0_101, %c0_102] : memref<256x72xf32, #tpu.memory_space<vmem>>, vector<256x72xf32>
    %c0_103 = arith.constant 0 : index
    %c0_104 = arith.constant 0 : index
    %124 = vector.load %arg7[%c0_103, %c0_104] : memref<72x8xf32, #tpu.memory_space<vmem>>, vector<72x8xf32>
    %cst_105 = arith.constant dense<0.000000e+00> : vector<256x8xf32>
    %125 = tpu.matmul %123, %124, %cst_105 {dimension_numbers = #tpu.dot_dimension_numbers<[1], [0], [0], [1], [0, 0, 1, 1], [], []>} : vector<256x72xf32>, vector<72x8xf32>, vector<256x8xf32> -> vector<256x8xf32>
    %c0_106 = arith.constant 0 : index
    %c0_107 = arith.constant 0 : index
    %126 = vector.load %arg8[%c0_106, %c0_107] : memref<1x8xf32, #tpu.memory_space<vmem>>, vector<1x8xf32>
    %127 = vector.broadcast %126 : vector<1x8xf32> to vector<256x8xf32>
    %128 = arith.addf %125, %127 : vector<256x8xf32>
    %cst_108 = arith.constant 0.000000e+00 : f32
    %129 = vector.broadcast %cst_108 : f32 to vector<256x8xf32>
    %130 = arith.maximumf %128, %129 : vector<256x8xf32>
    %131 = vector.shape_cast %130 : vector<256x8xf32> to vector<16x16x8xf32>
    %c1_109 = arith.constant 1 : index
    %c1_110 = arith.constant 1 : index
    %c0_111 = arith.constant 0 : index
    %132 = vector.load %arg15[%c1_109, %c1_110, %c0_111] : memref<18x24x8xf32, #tpu.memory_space<vmem>>, vector<16x16x8xf32>
    tpu.vector_store %arg15[%c1_109, %c1_110, %c0_111], %131 {strides = array<i32>} : memref<18x24x8xf32, #tpu.memory_space<vmem>>, vector<16x16x8xf32>,
    %c0_112 = arith.constant 0 : index
    %c0_113 = arith.constant 0 : index
    %c0_114 = arith.constant 0 : index
    %133 = vector.load %arg15[%c0_112, %c0_113, %c0_114] : memref<18x24x8xf32, #tpu.memory_space<vmem>>, vector<18x24x8xf32>
    %134 = vector.extract_strided_slice %133 {offsets = [0, 0, 0], sizes = [16, 16, 8], strides = [1, 1, 1]} : vector<18x24x8xf32> to vector<16x16x8xf32>
    %135 = vector.shape_cast %134 : vector<16x16x8xf32> to vector<256x8xf32>
    %c0_115 = arith.constant 0 : index
    %c0_116 = arith.constant 0 : index
    %136 = vector.load %arg16[%c0_115, %c0_116] : memref<256x72xf32, #tpu.memory_space<vmem>>, vector<256x8xf32>
    tpu.vector_store %arg16[%c0_115, %c0_116], %135 {strides = array<i32>} : memref<256x72xf32, #tpu.memory_space<vmem>>, vector<256x8xf32>,
    %137 = vector.extract_strided_slice %133 {offsets = [0, 1, 0], sizes = [16, 16, 8], strides = [1, 1, 1]} : vector<18x24x8xf32> to vector<16x16x8xf32>
    %138 = vector.shape_cast %137 : vector<16x16x8xf32> to vector<256x8xf32>
    %c0_117 = arith.constant 0 : index
    %c8_118 = arith.constant 8 : index
    %139 = vector.load %arg16[%c0_117, %c8_118] : memref<256x72xf32, #tpu.memory_space<vmem>>, vector<256x8xf32>
    tpu.vector_store %arg16[%c0_117, %c8_118], %138 {strides = array<i32>} : memref<256x72xf32, #tpu.memory_space<vmem>>, vector<256x8xf32>,
    %140 = vector.extract_strided_slice %133 {offsets = [0, 2, 0], sizes = [16, 16, 8], strides = [1, 1, 1]} : vector<18x24x8xf32> to vector<16x16x8xf32>
    %141 = vector.shape_cast %140 : vector<16x16x8xf32> to vector<256x8xf32>
    %c0_119 = arith.constant 0 : index
    %c16_120 = arith.constant 16 : index
    %142 = vector.load %arg16[%c0_119, %c16_120] : memref<256x72xf32, #tpu.memory_space<vmem>>, vector<256x8xf32>
    tpu.vector_store %arg16[%c0_119, %c16_120], %141 {strides = array<i32>} : memref<256x72xf32, #tpu.memory_space<vmem>>, vector<256x8xf32>,
    %143 = vector.extract_strided_slice %133 {offsets = [1, 0, 0], sizes = [16, 16, 8], strides = [1, 1, 1]} : vector<18x24x8xf32> to vector<16x16x8xf32>
    %144 = vector.shape_cast %143 : vector<16x16x8xf32> to vector<256x8xf32>
    %c0_121 = arith.constant 0 : index
    %c24_122 = arith.constant 24 : index
    %145 = vector.load %arg16[%c0_121, %c24_122] : memref<256x72xf32, #tpu.memory_space<vmem>>, vector<256x8xf32>
    tpu.vector_store %arg16[%c0_121, %c24_122], %144 {strides = array<i32>} : memref<256x72xf32, #tpu.memory_space<vmem>>, vector<256x8xf32>,
    %146 = vector.extract_strided_slice %133 {offsets = [1, 1, 0], sizes = [16, 16, 8], strides = [1, 1, 1]} : vector<18x24x8xf32> to vector<16x16x8xf32>
    %147 = vector.shape_cast %146 : vector<16x16x8xf32> to vector<256x8xf32>
    %c0_123 = arith.constant 0 : index
    %c32_124 = arith.constant 32 : index
    %148 = vector.load %arg16[%c0_123, %c32_124] : memref<256x72xf32, #tpu.memory_space<vmem>>, vector<256x8xf32>
    tpu.vector_store %arg16[%c0_123, %c32_124], %147 {strides = array<i32>} : memref<256x72xf32, #tpu.memory_space<vmem>>, vector<256x8xf32>,
    %149 = vector.extract_strided_slice %133 {offsets = [1, 2, 0], sizes = [16, 16, 8], strides = [1, 1, 1]} : vector<18x24x8xf32> to vector<16x16x8xf32>
    %150 = vector.shape_cast %149 : vector<16x16x8xf32> to vector<256x8xf32>
    %c0_125 = arith.constant 0 : index
    %c40_126 = arith.constant 40 : index
    %151 = vector.load %arg16[%c0_125, %c40_126] : memref<256x72xf32, #tpu.memory_space<vmem>>, vector<256x8xf32>
    tpu.vector_store %arg16[%c0_125, %c40_126], %150 {strides = array<i32>} : memref<256x72xf32, #tpu.memory_space<vmem>>, vector<256x8xf32>,
    %152 = vector.extract_strided_slice %133 {offsets = [2, 0, 0], sizes = [16, 16, 8], strides = [1, 1, 1]} : vector<18x24x8xf32> to vector<16x16x8xf32>
    %153 = vector.shape_cast %152 : vector<16x16x8xf32> to vector<256x8xf32>
    %c0_127 = arith.constant 0 : index
    %c48_128 = arith.constant 48 : index
    %154 = vector.load %arg16[%c0_127, %c48_128] : memref<256x72xf32, #tpu.memory_space<vmem>>, vector<256x8xf32>
    tpu.vector_store %arg16[%c0_127, %c48_128], %153 {strides = array<i32>} : memref<256x72xf32, #tpu.memory_space<vmem>>, vector<256x8xf32>,
    %155 = vector.extract_strided_slice %133 {offsets = [2, 1, 0], sizes = [16, 16, 8], strides = [1, 1, 1]} : vector<18x24x8xf32> to vector<16x16x8xf32>
    %156 = vector.shape_cast %155 : vector<16x16x8xf32> to vector<256x8xf32>
    %c0_129 = arith.constant 0 : index
    %c56_130 = arith.constant 56 : index
    %157 = vector.load %arg16[%c0_129, %c56_130] : memref<256x72xf32, #tpu.memory_space<vmem>>, vector<256x8xf32>
    tpu.vector_store %arg16[%c0_129, %c56_130], %156 {strides = array<i32>} : memref<256x72xf32, #tpu.memory_space<vmem>>, vector<256x8xf32>,
    %158 = vector.extract_strided_slice %133 {offsets = [2, 2, 0], sizes = [16, 16, 8], strides = [1, 1, 1]} : vector<18x24x8xf32> to vector<16x16x8xf32>
    %159 = vector.shape_cast %158 : vector<16x16x8xf32> to vector<256x8xf32>
    %c0_131 = arith.constant 0 : index
    %c64_132 = arith.constant 64 : index
    %160 = vector.load %arg16[%c0_131, %c64_132] : memref<256x72xf32, #tpu.memory_space<vmem>>, vector<256x8xf32>
    tpu.vector_store %arg16[%c0_131, %c64_132], %159 {strides = array<i32>} : memref<256x72xf32, #tpu.memory_space<vmem>>, vector<256x8xf32>,
    %c0_133 = arith.constant 0 : index
    %c0_134 = arith.constant 0 : index
    %161 = vector.load %arg16[%c0_133, %c0_134] : memref<256x72xf32, #tpu.memory_space<vmem>>, vector<256x72xf32>
    %c0_135 = arith.constant 0 : index
    %c0_136 = arith.constant 0 : index
    %162 = vector.load %arg9[%c0_135, %c0_136] : memref<72x8xf32, #tpu.memory_space<vmem>>, vector<72x8xf32>
    %cst_137 = arith.constant dense<0.000000e+00> : vector<256x8xf32>
    %163 = tpu.matmul %161, %162, %cst_137 {dimension_numbers = #tpu.dot_dimension_numbers<[1], [0], [0], [1], [0, 0, 1, 1], [], []>} : vector<256x72xf32>, vector<72x8xf32>, vector<256x8xf32> -> vector<256x8xf32>
    %c0_138 = arith.constant 0 : index
    %c0_139 = arith.constant 0 : index
    %164 = vector.load %arg10[%c0_138, %c0_139] : memref<1x8xf32, #tpu.memory_space<vmem>>, vector<1x8xf32>
    %165 = vector.broadcast %164 : vector<1x8xf32> to vector<256x8xf32>
    %166 = arith.addf %163, %165 : vector<256x8xf32>
    %167 = vector.shape_cast %91 : vector<16x16x8xf32> to vector<256x8xf32>
    %168 = arith.addf %166, %167 : vector<256x8xf32>
    %c0_140 = arith.constant 0 : index
    %c0_141 = arith.constant 0 : index
    %169 = vector.load %arg11[%c0_140, %c0_141] : memref<8x8xf32, #tpu.memory_space<vmem>>, vector<8x8xf32>
    %cst_142 = arith.constant dense<0.000000e+00> : vector<256x8xf32>
    %170 = tpu.matmul %168, %169, %cst_142 {dimension_numbers = #tpu.dot_dimension_numbers<[1], [0], [0], [1], [0, 0, 1, 1], [], []>} : vector<256x8xf32>, vector<8x8xf32>, vector<256x8xf32> -> vector<256x8xf32>
    %c0_143 = arith.constant 0 : index
    %c0_144 = arith.constant 0 : index
    %171 = vector.load %arg12[%c0_143, %c0_144] : memref<1x8xf32, #tpu.memory_space<vmem>>, vector<1x8xf32>
    %172 = vector.broadcast %171 : vector<1x8xf32> to vector<256x8xf32>
    %173 = arith.addf %170, %172 : vector<256x8xf32>
    %c0_145 = arith.constant 0 : index
    %c0_146 = arith.constant 0 : index
    %174 = vector.load %arg13[%c0_145, %c0_146] : memref<1024x256xf32, #tpu.memory_space<vmem>>, vector<1024x256xf32>
    %cst_147 = arith.constant dense<0.000000e+00> : vector<1024x8xf32>
    %175 = tpu.matmul %174, %173, %cst_147 {dimension_numbers = #tpu.dot_dimension_numbers<[1], [0], [0], [1], [0, 0, 1, 1], [], []>} : vector<1024x256xf32>, vector<256x8xf32>, vector<1024x8xf32> -> vector<1024x8xf32>
    %c0_148 = arith.constant 0 : index
    %c0_149 = arith.constant 0 : index
    %c0_150 = arith.constant 0 : index
    %176 = vector.load %arg14[%c0_148, %c0_149, %c0_150] : memref<1x1024x8xf32, #tpu.memory_space<vmem>>, vector<1x1024x8xf32>
    %177 = vector.shape_cast %176 : vector<1x1024x8xf32> to vector<1024x8xf32>
    %178 = vector.shape_cast %175 : vector<1024x8xf32> to vector<1x1024x8xf32>
    tpu.vector_store %arg14[%c0_148, %c0_149, %c0_150], %178 {strides = array<i32>} : memref<1x1024x8xf32, #tpu.memory_space<vmem>>, vector<1x1024x8xf32>,
    return
  }
  func.func @transform_0(%arg0: i32) -> (i32, i32, i32, i32) {
    %c0_i32 = arith.constant 0 : i32
    %c0_i32_0 = arith.constant 0 : i32
    %c0_i32_1 = arith.constant 0 : i32
    %c0_i32_2 = arith.constant 0 : i32
    return %arg0, %c0_i32, %c0_i32_0, %c0_i32_1 : i32, i32, i32, i32
  }
  func.func @transform_1(%arg0: i32) -> (i32, i32, i32, i32) {
    %c0_i32 = arith.constant 0 : i32
    %c0_i32_0 = arith.constant 0 : i32
    %c0_i32_1 = arith.constant 0 : i32
    %c0_i32_2 = arith.constant 0 : i32
    return %arg0, %c0_i32, %c0_i32_0, %c0_i32_1 : i32, i32, i32, i32
  }
  func.func @transform_2(%arg0: i32) -> (i32, i32) {
    %c0_i32 = arith.constant 0 : i32
    %c0_i32_0 = arith.constant 0 : i32
    %c0_i32_1 = arith.constant 0 : i32
    return %c0_i32, %c0_i32_0 : i32, i32
  }
  func.func @transform_3(%arg0: i32) -> (i32, i32) {
    %c0_i32 = arith.constant 0 : i32
    %c0_i32_0 = arith.constant 0 : i32
    %c0_i32_1 = arith.constant 0 : i32
    return %c0_i32, %c0_i32_0 : i32, i32
  }
  func.func @transform_4(%arg0: i32) -> (i32, i32) {
    %c0_i32 = arith.constant 0 : i32
    %c0_i32_0 = arith.constant 0 : i32
    %c0_i32_1 = arith.constant 0 : i32
    return %c0_i32, %c0_i32_0 : i32, i32
  }
  func.func @transform_5(%arg0: i32) -> (i32, i32) {
    %c0_i32 = arith.constant 0 : i32
    %c0_i32_0 = arith.constant 0 : i32
    %c0_i32_1 = arith.constant 0 : i32
    return %c0_i32, %c0_i32_0 : i32, i32
  }
  func.func @transform_6(%arg0: i32) -> (i32, i32) {
    %c0_i32 = arith.constant 0 : i32
    %c0_i32_0 = arith.constant 0 : i32
    %c0_i32_1 = arith.constant 0 : i32
    return %c0_i32, %c0_i32_0 : i32, i32
  }
  func.func @transform_7(%arg0: i32) -> (i32, i32) {
    %c0_i32 = arith.constant 0 : i32
    %c0_i32_0 = arith.constant 0 : i32
    %c0_i32_1 = arith.constant 0 : i32
    return %c0_i32, %c0_i32_0 : i32, i32
  }
  func.func @transform_8(%arg0: i32) -> (i32, i32) {
    %c0_i32 = arith.constant 0 : i32
    %c0_i32_0 = arith.constant 0 : i32
    %c0_i32_1 = arith.constant 0 : i32
    return %c0_i32, %c0_i32_0 : i32, i32
  }
  func.func @transform_9(%arg0: i32) -> (i32, i32) {
    %c0_i32 = arith.constant 0 : i32
    %c0_i32_0 = arith.constant 0 : i32
    %c0_i32_1 = arith.constant 0 : i32
    return %c0_i32, %c0_i32_0 : i32, i32
  }
  func.func @transform_10(%arg0: i32) -> (i32, i32) {
    %c0_i32 = arith.constant 0 : i32
    %c0_i32_0 = arith.constant 0 : i32
    %c0_i32_1 = arith.constant 0 : i32
    return %c0_i32, %c0_i32_0 : i32, i32
  }
  func.func @transform_11(%arg0: i32) -> (i32, i32) {
    %c0_i32 = arith.constant 0 : i32
    %c0_i32_0 = arith.constant 0 : i32
    %c0_i32_1 = arith.constant 0 : i32
    return %c0_i32, %c0_i32_0 : i32, i32
  }
  func.func @transform_12(%arg0: i32) -> (i32, i32) {
    %c0_i32 = arith.constant 0 : i32
    %c0_i32_0 = arith.constant 0 : i32
    %c0_i32_1 = arith.constant 0 : i32
    return %c0_i32, %c0_i32_0 : i32, i32
  }
  func.func @transform_13(%arg0: i32) -> (i32, i32, i32) {
    %c0_i32 = arith.constant 0 : i32
    %c0_i32_0 = arith.constant 0 : i32
    %c0_i32_1 = arith.constant 0 : i32
    return %arg0, %c0_i32, %c0_i32_0 : i32, i32, i32
  }
}

</mosaic_0001>

<llo_original>
// kernel: tpu_custom_call.1
$region0: #{tpu_custom_call.1}
  #allocation0 [shape = 'u32[]', space=smem, size = 0x4, offset = 0x4, fixed_abs, tag = 'smem constant byte address 0x4 - core index']
  #allocation1 [shape = 'u32[144,128]{1,0:T(1,128)}', space=vmem, size = 0x12000, scoped, tag = 'internal scratch']
  #allocation2 [shape = 'f32[18,24,8]{2,1,0:T(8,128)}', space=vmem, size = 0x36000, scoped, tag = 'scratch operand']
  #allocation3 [shape = 'f32[256,72]{1,0:T(8,128)}', space=vmem, size = 0x20000, scoped, tag = 'scratch operand']
  %s0 = inlined_call_operand.vmem [shape: f32[2,16,16,8], index: 0, kind: input, shape index: {}]
  %s1 = inlined_call_operand.vmem [shape: f32[2,16,16,8], index: 1, kind: input, shape index: {}]
  %s2 = inlined_call_operand.vmem [shape: f32[72,8], index: 2, kind: input, shape index: {}]
  %s3 = inlined_call_operand.vmem [shape: f32[1,8], index: 3, kind: input, shape index: {}]
  %s4 = inlined_call_operand.vmem [shape: f32[72,8], index: 4, kind: input, shape index: {}]
  %s5 = inlined_call_operand.vmem [shape: f32[1,8], index: 5, kind: input, shape index: {}]
  %s6 = inlined_call_operand.vmem [shape: f32[72,8], index: 6, kind: input, shape index: {}]
  %s7 = inlined_call_operand.vmem [shape: f32[1,8], index: 7, kind: input, shape index: {}]
  %s8 = inlined_call_operand.vmem [shape: f32[72,8], index: 8, kind: input, shape index: {}]
  %s9 = inlined_call_operand.vmem [shape: f32[1,8], index: 9, kind: input, shape index: {}]
  %s10 = inlined_call_operand.vmem [shape: f32[8,8], index: 10, kind: input, shape index: {}]
  %s11 = inlined_call_operand.vmem [shape: f32[1,8], index: 11, kind: input, shape index: {}]
  %s12 = inlined_call_operand.hbm [shape: f32[1024,256], index: 12, kind: input, shape index: {}]
  %s13 = inlined_call_operand.vmem [shape: f32[2,1024,8], index: 13, kind: output, shape index: {}]
  %s14 = sld [smem:[#allocation0]]
  $region89: #{tpu_custom_call.1} parent=0
    _
  %s16 = ssub.s32 1, %s14
  %s17 = scalar_select 0, %s16, %s14
  $region1: #{tpu_custom_call.1} parent=0
    #allocation4 [shape = 'u8[1048576]{0}', space=vmem, size = 0x100000, scoped, tag = 'input window, operand 12, single buffered']
    #allocation5 [shape = 's32[2]{0}', space=sflag, size = 0x8, scoped, tag = 'scoped memory for tpu_custom_call.1']
    %18 = vsyncpa [#allocation5], 0
    loop: start=0, step=1, limit=4
    $region2: #{tpu_custom_call.1} parent=1 // loop_pre_header
      _
    $region3: #{tpu_custom_call.1} parent=1 // loop_header
      %s20 = sphi 0, %s24
      %p21 = scmp.ge.s32.totalorder %s20, 4
      %s30 = sphi 0, %s32
      %s33 = sphi 0, %s30
      %s34 = sphi 0, %s33
      %s50 = sphi 0, %s34
      %s56 = sphi 0, %s58
      %s59 = sphi 0, %s56
      %s60 = sphi 0, %s59
      %s76 = sphi 0, %s60
      %s80 = sphi 0, %s80
      %s82 = sphi 0, %s80
      %s83 = sphi 0, %s82
      %s97 = sphi 0, %s83
      %s101 = sphi 0, %s101
      %s103 = sphi 0, %s101
      %s104 = sphi 0, %s103
      %s118 = sphi 0, %s104
      %s122 = sphi 0, %s122
      %s124 = sphi 0, %s122
      %s125 = sphi 0, %s124
      %s139 = sphi 0, %s125
      %s143 = sphi 0, %s143
      %s145 = sphi 0, %s143
      %s146 = sphi 0, %s145
      %s160 = sphi 0, %s146
      %s164 = sphi 0, %s164
      %s166 = sphi 0, %s164
      %s167 = sphi 0, %s166
      %s181 = sphi 0, %s167
      %s185 = sphi 0, %s185
      %s187 = sphi 0, %s185
      %s188 = sphi 0, %s187
      %s202 = sphi 0, %s188
      %s206 = sphi 0, %s206
      %s208 = sphi 0, %s206
      %s209 = sphi 0, %s208
      %s223 = sphi 0, %s209
      %s227 = sphi 0, %s227
      %s229 = sphi 0, %s227
      %s230 = sphi 0, %s229
      %s244 = sphi 0, %s230
      %s248 = sphi 0, %s248
      %s250 = sphi 0, %s248
      %s251 = sphi 0, %s250
      %s265 = sphi 0, %s251
      %s269 = sphi 0, %s269
      %s271 = sphi 0, %s269
      %s272 = sphi 0, %s271
      %s286 = sphi 0, %s272
      %s290 = sphi 0, %s290
      %s292 = sphi 0, %s290
      %s293 = sphi 0, %s292
      %s307 = sphi 0, %s293
      %s313 = sphi 0, %s315
      %s316 = sphi 0, %s313
      %s317 = sphi 0, %s316
      %s333 = sphi 0, %s317
    $region4: #{tpu_custom_call.1} parent=1 // loop_header_branch
      %23 = sbr.rel (%p21) target = $region8
    $region5: #{tpu_custom_call.1} parent=1 // loop_body
      %s25 = ssub.s32 %s20, 1
      %s26 = ssub.s32 %s20, 2
      %s27 = sadd.s32 %s20, 1
      %s28 = ssub.s32 %s20, %s27
      %p29 = scmp.eq.s32.totalorder %s28, 0
      %s31 = sadd.s32 %s30, 1
      %s32 = scalar_select %p29, %s30, %s31
      %p35 = pneg %p29
      %p36 = scmp.eq.s32.totalorder %s20, 1
      %p37 = por %p35, %p36
      %p38 = scmp.ne.s32.totalorder %s30, %s33
      %p39 = scmp.eq.s32.totalorder %s20, 0
      %p40 = por %p38, %p39
      %p41 = scmp.ne.s32.totalorder %s30, %s33
      %p42 = scmp.eq.s32.totalorder %s25, 1
      %p43 = por %p41, %p42
      %p44 = scmp.ne.s32.totalorder %s33, %s34
      %p45 = scmp.eq.s32.totalorder %s25, 0
      %p46 = por %p44, %p45
      %p47 = scmp.ne.s32.totalorder %s33, %s34
      %p48 = scmp.eq.s32.totalorder %s26, 1
      %p49 = por %p47, %p48
      %p51 = scmp.ne.s32.totalorder %s34, %s50
      %p52 = scmp.eq.s32.totalorder %s26, 0
      %p53 = por %p51, %p52
      %s54 = ssub.s32 %s20, %s27
      %p55 = scmp.eq.s32.totalorder %s54, 0
      %s57 = sadd.s32 %s56, 1
      %s58 = scalar_select %p55, %s56, %s57
      %p61 = pneg %p55
      %p62 = scmp.eq.s32.totalorder %s20, 1
      %p63 = por %p61, %p62
      %p64 = scmp.ne.s32.totalorder %s56, %s59
      %p65 = scmp.eq.s32.totalorder %s20, 0
      %p66 = por %p64, %p65
      %p67 = scmp.ne.s32.totalorder %s56, %s59
      %p68 = scmp.eq.s32.totalorder %s25, 1
      %p69 = por %p67, %p68
      %p70 = scmp.ne.s32.totalorder %s59, %s60
      %p71 = scmp.eq.s32.totalorder %s25, 0
      %p72 = por %p70, %p71
      %p73 = scmp.ne.s32.totalorder %s59, %s60
      %p74 = scmp.eq.s32.totalorder %s26, 1
      %p75 = por %p73, %p74
      %p77 = scmp.ne.s32.totalorder %s60, %s76
      %p78 = scmp.eq.s32.totalorder %s26, 0
      %p79 = por %p77, %p78
      %s81 = sadd.s32 %s80, 1
      %p84 = scmp.eq.s32.totalorder %s20, 1
      %p85 = scmp.ne.s32.totalorder %s80, %s82
      %p86 = scmp.eq.s32.totalorder %s20, 0
      %p87 = por %p85, %p86
      %p88 = scmp.ne.s32.totalorder %s80, %s82
      %p89 = scmp.eq.s32.totalorder %s25, 1
      %p90 = por %p88, %p89
      %p91 = scmp.ne.s32.totalorder %s82, %s83
      %p92 = scmp.eq.s32.totalorder %s25, 0
      %p93 = por %p91, %p92
      %p94 = scmp.ne.s32.totalorder %s82, %s83
      %p95 = scmp.eq.s32.totalorder %s26, 1
      %p96 = por %p94, %p95
      %p98 = scmp.ne.s32.totalorder %s83, %s97
      %p99 = scmp.eq.s32.totalorder %s26, 0
      %p100 = por %p98, %p99
      %s102 = sadd.s32 %s101, 1
      %p105 = scmp.eq.s32.totalorder %s20, 1
      %p106 = scmp.ne.s32.totalorder %s101, %s103
      %p107 = scmp.eq.s32.totalorder %s20, 0
      %p108 = por %p106, %p107
      %p109 = scmp.ne.s32.totalorder %s101, %s103
      %p110 = scmp.eq.s32.totalorder %s25, 1
      %p111 = por %p109, %p110
      %p112 = scmp.ne.s32.totalorder %s103, %s104
      %p113 = scmp.eq.s32.totalorder %s25, 0
      %p114 = por %p112, %p113
      %p115 = scmp.ne.s32.totalorder %s103, %s104
      %p116 = scmp.eq.s32.totalorder %s26, 1
      %p117 = por %p115, %p116
      %p119 = scmp.ne.s32.totalorder %s104, %s118
      %p120 = scmp.eq.s32.totalorder %s26, 0
      %p121 = por %p119, %p120
      %s123 = sadd.s32 %s122, 1
      %p126 = scmp.eq.s32.totalorder %s20, 1
      %p127 = scmp.ne.s32.totalorder %s122, %s124
      %p128 = scmp.eq.s32.totalorder %s20, 0
      %p129 = por %p127, %p128
      %p130 = scmp.ne.s32.totalorder %s122, %s124
      %p131 = scmp.eq.s32.totalorder %s25, 1
      %p132 = por %p130, %p131
      %p133 = scmp.ne.s32.totalorder %s124, %s125
      %p134 = scmp.eq.s32.totalorder %s25, 0
      %p135 = por %p133, %p134
      %p136 = scmp.ne.s32.totalorder %s124, %s125
      %p137 = scmp.eq.s32.totalorder %s26, 1
      %p138 = por %p136, %p137
      %p140 = scmp.ne.s32.totalorder %s125, %s139
      %p141 = scmp.eq.s32.totalorder %s26, 0
      %p142 = por %p140, %p141
      %s144 = sadd.s32 %s143, 1
      %p147 = scmp.eq.s32.totalorder %s20, 1
      %p148 = scmp.ne.s32.totalorder %s143, %s145
      %p149 = scmp.eq.s32.totalorder %s20, 0
      %p150 = por %p148, %p149
      %p151 = scmp.ne.s32.totalorder %s143, %s145
      %p152 = scmp.eq.s32.totalorder %s25, 1
      %p153 = por %p151, %p152
      %p154 = scmp.ne.s32.totalorder %s145, %s146
      %p155 = scmp.eq.s32.totalorder %s25, 0
      %p156 = por %p154, %p155
      %p157 = scmp.ne.s32.totalorder %s145, %s146
      %p158 = scmp.eq.s32.totalorder %s26, 1
      %p159 = por %p157, %p158
      %p161 = scmp.ne.s32.totalorder %s146, %s160
      %p162 = scmp.eq.s32.totalorder %s26, 0
      %p163 = por %p161, %p162
      %s165 = sadd.s32 %s164, 1
      %p168 = scmp.eq.s32.totalorder %s20, 1
      %p169 = scmp.ne.s32.totalorder %s164, %s166
      %p170 = scmp.eq.s32.totalorder %s20, 0
      %p171 = por %p169, %p170
      %p172 = scmp.ne.s32.totalorder %s164, %s166
      %p173 = scmp.eq.s32.totalorder %s25, 1
      %p174 = por %p172, %p173
      %p175 = scmp.ne.s32.totalorder %s166, %s167
      %p176 = scmp.eq.s32.totalorder %s25, 0
      %p177 = por %p175, %p176
      %p178 = scmp.ne.s32.totalorder %s166, %s167
      %p179 = scmp.eq.s32.totalorder %s26, 1
      %p180 = por %p178, %p179
      %p182 = scmp.ne.s32.totalorder %s167, %s181
      %p183 = scmp.eq.s32.totalorder %s26, 0
      %p184 = por %p182, %p183
      %s186 = sadd.s32 %s185, 1
      %p189 = scmp.eq.s32.totalorder %s20, 1
      %p190 = scmp.ne.s32.totalorder %s185, %s187
      %p191 = scmp.eq.s32.totalorder %s20, 0
      %p192 = por %p190, %p191
      %p193 = scmp.ne.s32.totalorder %s185, %s187
      %p194 = scmp.eq.s32.totalorder %s25, 1
      %p195 = por %p193, %p194
      %p196 = scmp.ne.s32.totalorder %s187, %s188
      %p197 = scmp.eq.s32.totalorder %s25, 0
      %p198 = por %p196, %p197
      %p199 = scmp.ne.s32.totalorder %s187, %s188
      %p200 = scmp.eq.s32.totalorder %s26, 1
      %p201 = por %p199, %p200
      %p203 = scmp.ne.s32.totalorder %s188, %s202
      %p204 = scmp.eq.s32.totalorder %s26, 0
      %p205 = por %p203, %p204
      %s207 = sadd.s32 %s206, 1
      %p210 = scmp.eq.s32.totalorder %s20, 1
      %p211 = scmp.ne.s32.totalorder %s206, %s208
      %p212 = scmp.eq.s32.totalorder %s20, 0
      %p213 = por %p211, %p212
      %p214 = scmp.ne.s32.totalorder %s206, %s208
      %p215 = scmp.eq.s32.totalorder %s25, 1
      %p216 = por %p214, %p215
      %p217 = scmp.ne.s32.totalorder %s208, %s209
      %p218 = scmp.eq.s32.totalorder %s25, 0
      %p219 = por %p217, %p218
      %p220 = scmp.ne.s32.totalorder %s208, %s209
      %p221 = scmp.eq.s32.totalorder %s26, 1
      %p222 = por %p220, %p221
      %p224 = scmp.ne.s32.totalorder %s209, %s223
      %p225 = scmp.eq.s32.totalorder %s26, 0
      %p226 = por %p224, %p225
      %s228 = sadd.s32 %s227, 1
      %p231 = scmp.eq.s32.totalorder %s20, 1
      %p232 = scmp.ne.s32.totalorder %s227, %s229
      %p233 = scmp.eq.s32.totalorder %s20, 0
      %p234 = por %p232, %p233
      %p235 = scmp.ne.s32.totalorder %s227, %s229
      %p236 = scmp.eq.s32.totalorder %s25, 1
      %p237 = por %p235, %p236
      %p238 = scmp.ne.s32.totalorder %s229, %s230
      %p239 = scmp.eq.s32.totalorder %s25, 0
      %p240 = por %p238, %p239
      %p241 = scmp.ne.s32.totalorder %s229, %s230
      %p242 = scmp.eq.s32.totalorder %s26, 1
      %p243 = por %p241, %p242
      %p245 = scmp.ne.s32.totalorder %s230, %s244
      %p246 = scmp.eq.s32.totalorder %s26, 0
      %p247 = por %p245, %p246
      %s249 = sadd.s32 %s248, 1
      %p252 = scmp.eq.s32.totalorder %s20, 1
      %p253 = scmp.ne.s32.totalorder %s248, %s250
      %p254 = scmp.eq.s32.totalorder %s20, 0
      %p255 = por %p253, %p254
      %p256 = scmp.ne.s32.totalorder %s248, %s250
      %p257 = scmp.eq.s32.totalorder %s25, 1
      %p258 = por %p256, %p257
      %p259 = scmp.ne.s32.totalorder %s250, %s251
      %p260 = scmp.eq.s32.totalorder %s25, 0
      %p261 = por %p259, %p260
      %p262 = scmp.ne.s32.totalorder %s250, %s251
      %p263 = scmp.eq.s32.totalorder %s26, 1
      %p264 = por %p262, %p263
      %p266 = scmp.ne.s32.totalorder %s251, %s265
      %p267 = scmp.eq.s32.totalorder %s26, 0
      %p268 = por %p266, %p267
      %s270 = sadd.s32 %s269, 1
      %p273 = scmp.eq.s32.totalorder %s20, 1
      %p274 = scmp.ne.s32.totalorder %s269, %s271
      %p275 = scmp.eq.s32.totalorder %s20, 0
      %p276 = por %p274, %p275
      %p277 = scmp.ne.s32.totalorder %s269, %s271
      %p278 = scmp.eq.s32.totalorder %s25, 1
      %p279 = por %p277, %p278
      %p280 = scmp.ne.s32.totalorder %s271, %s272
      %p281 = scmp.eq.s32.totalorder %s25, 0
      %p282 = por %p280, %p281
      %p283 = scmp.ne.s32.totalorder %s271, %s272
      %p284 = scmp.eq.s32.totalorder %s26, 1
      %p285 = por %p283, %p284
      %p287 = scmp.ne.s32.totalorder %s272, %s286
      %p288 = scmp.eq.s32.totalorder %s26, 0
      %p289 = por %p287, %p288
      %s291 = sadd.s32 %s290, 1
      %p294 = scmp.eq.s32.totalorder %s20, 1
      %p295 = scmp.ne.s32.totalorder %s290, %s292
      %p296 = scmp.eq.s32.totalorder %s20, 0
      %p297 = por %p295, %p296
      %p298 = scmp.ne.s32.totalorder %s290, %s292
      %p299 = scmp.eq.s32.totalorder %s25, 1
      %p300 = por %p298, %p299
      %p301 = scmp.ne.s32.totalorder %s292, %s293
      %p302 = scmp.eq.s32.totalorder %s25, 0
      %p303 = por %p301, %p302
      %p304 = scmp.ne.s32.totalorder %s292, %s293
      %p305 = scmp.eq.s32.totalorder %s26, 1
      %p306 = por %p304, %p305
      %p308 = scmp.ne.s32.totalorder %s293, %s307
      %p309 = scmp.eq.s32.totalorder %s26, 0
      %p310 = por %p308, %p309
      %s311 = ssub.s32 %s20, %s27
      %p312 = scmp.eq.s32.totalorder %s311, 0
      %s314 = sadd.s32 %s313, 1
      %s315 = scalar_select %p312, %s313, %s314
      %p318 = pneg %p312
      %p319 = scmp.eq.s32.totalorder %s20, 1
      %p320 = por %p318, %p319
      %p321 = scmp.ne.s32.totalorder %s313, %s316
      %p322 = scmp.eq.s32.totalorder %s20, 0
      %p323 = por %p321, %p322
      %p324 = scmp.ne.s32.totalorder %s313, %s316
      %p325 = scmp.eq.s32.totalorder %s25, 1
      %p326 = por %p324, %p325
      %p327 = scmp.ne.s32.totalorder %s316, %s317
      %p328 = scmp.eq.s32.totalorder %s25, 0
      %p329 = por %p327, %p328
      %p330 = scmp.ne.s32.totalorder %s316, %s317
      %p331 = scmp.eq.s32.totalorder %s26, 1
      %p332 = por %p330, %p331
      %p334 = scmp.ne.s32.totalorder %s317, %s333
      %p335 = scmp.eq.s32.totalorder %s26, 0
      %p336 = por %p334, %p335
      %p337 = scmp.le.s32.totalorder 1, %s20
      %p338 = scmp.lt.s32.totalorder %s20, 3
      %p339 = pnand %p337, %p338
      %p340 = pneg %p339
      // Predicated region
      $region9: #{tpu_custom_call.1} parent=5 // pred_check
        _
      $region10: #{tpu_custom_call.1} parent=5 // pred_check_branch
        %342 = sbr.rel (%p339) target = $region12
      $region11: #{tpu_custom_call.1} parent=5 // pred_region
        %s343 = ssub.s32 %s20, 1
        // Predicated region
        $region13: #{tpu_custom_call.1} parent=11 // pred_check
          %p344 = pneg %p93
        $region14: #{tpu_custom_call.1} parent=11 // pred_check_branch
          %346 = sbr.rel (%p344) target = $region16
        $region15: #{tpu_custom_call.1} parent=11 // pred_region
          _
        $region16: #{tpu_custom_call.1} parent=11 // pred_fallthru
          _
        // Predicated region
        $region17: #{tpu_custom_call.1} parent=11 // pred_check
          %p347 = pneg %p114
        $region18: #{tpu_custom_call.1} parent=11 // pred_check_branch
          %349 = sbr.rel (%p347) target = $region20
        $region19: #{tpu_custom_call.1} parent=11 // pred_region
          _
        $region20: #{tpu_custom_call.1} parent=11 // pred_fallthru
          _
        // Predicated region
        $region21: #{tpu_custom_call.1} parent=11 // pred_check
          %p350 = pneg %p135
        $region22: #{tpu_custom_call.1} parent=11 // pred_check_branch
          %352 = sbr.rel (%p350) target = $region24
        $region23: #{tpu_custom_call.1} parent=11 // pred_region
          _
        $region24: #{tpu_custom_call.1} parent=11 // pred_fallthru
          _
        // Predicated region
        $region25: #{tpu_custom_call.1} parent=11 // pred_check
          %p353 = pneg %p156
        $region26: #{tpu_custom_call.1} parent=11 // pred_check_branch
          %355 = sbr.rel (%p353) target = $region28
        $region27: #{tpu_custom_call.1} parent=11 // pred_region
          _
        $region28: #{tpu_custom_call.1} parent=11 // pred_fallthru
          _
        // Predicated region
        $region29: #{tpu_custom_call.1} parent=11 // pred_check
          %p356 = pneg %p177
        $region30: #{tpu_custom_call.1} parent=11 // pred_check_branch
          %358 = sbr.rel (%p356) target = $region32
        $region31: #{tpu_custom_call.1} parent=11 // pred_region
          _
        $region32: #{tpu_custom_call.1} parent=11 // pred_fallthru
          _
        // Predicated region
        $region33: #{tpu_custom_call.1} parent=11 // pred_check
          %p359 = pneg %p198
        $region34: #{tpu_custom_call.1} parent=11 // pred_check_branch
          %361 = sbr.rel (%p359) target = $region36
        $region35: #{tpu_custom_call.1} parent=11 // pred_region
          _
        $region36: #{tpu_custom_call.1} parent=11 // pred_fallthru
          _
        // Predicated region
        $region37: #{tpu_custom_call.1} parent=11 // pred_check
          %p362 = pneg %p219
        $region38: #{tpu_custom_call.1} parent=11 // pred_check_branch
          %364 = sbr.rel (%p362) target = $region40
        $region39: #{tpu_custom_call.1} parent=11 // pred_region
          _
        $region40: #{tpu_custom_call.1} parent=11 // pred_fallthru
          _
        // Predicated region
        $region41: #{tpu_custom_call.1} parent=11 // pred_check
          %p365 = pneg %p240
        $region42: #{tpu_custom_call.1} parent=11 // pred_check_branch
          %367 = sbr.rel (%p365) target = $region44
        $region43: #{tpu_custom_call.1} parent=11 // pred_region
          _
        $region44: #{tpu_custom_call.1} parent=11 // pred_fallthru
          _
        // Predicated region
        $region45: #{tpu_custom_call.1} parent=11 // pred_check
          %p368 = pneg %p261
        $region46: #{tpu_custom_call.1} parent=11 // pred_check_branch
          %370 = sbr.rel (%p368) target = $region48
        $region47: #{tpu_custom_call.1} parent=11 // pred_region
          _
        $region48: #{tpu_custom_call.1} parent=11 // pred_fallthru
          _
        // Predicated region
        $region49: #{tpu_custom_call.1} parent=11 // pred_check
          %p371 = pneg %p282
        $region50: #{tpu_custom_call.1} parent=11 // pred_check_branch
          %373 = sbr.rel (%p371) target = $region52
        $region51: #{tpu_custom_call.1} parent=11 // pred_region
          _
        $region52: #{tpu_custom_call.1} parent=11 // pred_fallthru
          _
        // Predicated region
        $region53: #{tpu_custom_call.1} parent=11 // pred_check
          %p374 = pneg %p303
        $region54: #{tpu_custom_call.1} parent=11 // pred_check_branch
          %376 = sbr.rel (%p374) target = $region56
        $region55: #{tpu_custom_call.1} parent=11 // pred_region
          %s378 = ssub.s32 32768, 32768
          %379 = vsyncadd [#allocation5], %s378
          %s380 = sshll.u32 [#allocation4], 4
          %s381 = int_to_ptr.vmem [resolvable:$true] %s380
          %386 = dma.hbm_to_vmem [thread:$0]  %s12, 32768, %s381, [#allocation5], 256, 256, 16
        $region56: #{tpu_custom_call.1} parent=11 // pred_fallthru
          _
      $region12: #{tpu_custom_call.1} parent=5 // pred_fallthru
        _
      %p387 = scmp.lt.s32.totalorder %s20, 2
      // Predicated region
      $region57: #{tpu_custom_call.1} parent=5 // pred_check
        %p388 = pneg %p387
      $region58: #{tpu_custom_call.1} parent=5 // pred_check_branch
        %390 = sbr.rel (%p388) target = $region60
      $region59: #{tpu_custom_call.1} parent=5 // pred_region
        // Predicated region
        $region61: #{tpu_custom_call.1} parent=59 // pred_check
          %p391 = pneg %p40
        $region62: #{tpu_custom_call.1} parent=59 // pred_check_branch
          %393 = sbr.rel (%p391) target = $region64
        $region63: #{tpu_custom_call.1} parent=59 // pred_region
          %p394 = scmp.lt.s32.totalorder %s20, 1
          %s395 = scalar_select %p394, %s20, 1
          %s396 = smul.addr %s395, 32
          %s397 = smul.addr %s396, 8
          %s398 = scalar_lea.vmem %s0, %s397
        $region64: #{tpu_custom_call.1} parent=59 // pred_fallthru
          _
        // Predicated region
        $region65: #{tpu_custom_call.1} parent=59 // pred_check
          %p399 = pneg %p66
        $region66: #{tpu_custom_call.1} parent=59 // pred_check_branch
          %401 = sbr.rel (%p399) target = $region68
        $region67: #{tpu_custom_call.1} parent=59 // pred_region
          %p402 = scmp.lt.s32.totalorder %s20, 1
          %s403 = scalar_select %p402, %s20, 1
          %s404 = smul.addr %s403, 32
          %s405 = smul.addr %s404, 8
          %s406 = scalar_lea.vmem %s1, %s405
        $region68: #{tpu_custom_call.1} parent=59 // pred_fallthru
          _
      $region60: #{tpu_custom_call.1} parent=5 // pred_fallthru
        _
      %p407 = scmp.le.s32.totalorder 1, %s20
      %p408 = scmp.lt.s32.totalorder %s20, 3
      %p409 = pnand %p407, %p408
      %p410 = pneg %p409
      // Predicated region
      $region69: #{tpu_custom_call.1} parent=5 // pred_check
        _
      $region70: #{tpu_custom_call.1} parent=5 // pred_check_branch
        %412 = sbr.rel (%p409) target = $region72
      $region71: #{tpu_custom_call.1} parent=5 // pred_region
        %s413 = ssub.s32 %s20, 1
        // Predicated region
        $region73: #{tpu_custom_call.1} parent=71 // pred_check
          %p414 = pneg %p303
        $region74: #{tpu_custom_call.1} parent=71 // pred_check_branch
          %416 = sbr.rel (%p414) target = $region76
        $region75: #{tpu_custom_call.1} parent=71 // pred_region
          %417 = dma.done [#allocation5], 32768
        $region76: #{tpu_custom_call.1} parent=71 // pred_fallthru
          _
        %p418 = scmp.lt.s32.totalorder %s25, 1
        %s419 = scalar_select %p418, %s25, 1
        %s420 = smul.addr %s419, 32
        %s421 = smul.addr %s420, 8
        %s422 = scalar_lea.vmem %s0, %s421
        %p423 = pneg %p46
        %p424 = pneg %p43
        %p425 = scmp.lt.s32.totalorder %s25, 1
        %s426 = scalar_select %p425, %s25, 1
        %s427 = smul.addr %s426, 32
        %s428 = smul.addr %s427, 8
        %s429 = scalar_lea.vmem %s1, %s428
        %p430 = pneg %p72
        %p431 = pneg %p69
        %p432 = pneg %p93
        %p433 = pneg %p90
        %p434 = pneg %p114
        %p435 = pneg %p111
        %p436 = pneg %p135
        %p437 = pneg %p132
        %p438 = pneg %p156
        %p439 = pneg %p153
        %p440 = pneg %p177
        %p441 = pneg %p174
        %p442 = pneg %p198
        %p443 = pneg %p195
        %p444 = pneg %p219
        %p445 = pneg %p216
        %p446 = pneg %p240
        %p447 = pneg %p237
        %p448 = pneg %p261
        %p449 = pneg %p258
        %p450 = pneg %p282
        %p451 = pneg %p279
        %p452 = pneg %p303
        %p453 = pneg %p300
        %p454 = pneg %p329
        %p455 = pneg %p326
        %p456 = scmp.lt.s32.totalorder %s25, 1
        %s457 = scalar_select %p456, %s25, 1
        %s458 = smul.addr %s457, 128
        %s459 = smul.addr %s458, 8
        %s460 = scalar_lea.vmem %s13, %s459
        %p461 = scmp.lt.s32.totalorder %s25, 1
        %s462 = scalar_select %p461, %s25, 1
        %s463 = smul.addr %s462, 32
        %s464 = smul.addr %s463, 8
        %s465 = scalar_lea.vmem %s0, %s464
        %p466 = scmp.lt.s32.totalorder %s25, 1
        %s467 = scalar_select %p466, %s25, 1
        %s468 = smul.addr %s467, 32
        %s469 = smul.addr %s468, 8
        %s470 = scalar_lea.vmem %s1, %s469
        %p471 = scmp.lt.s32.totalorder %s25, 1
        %s472 = scalar_select %p471, %s25, 1
        %s473 = smul.addr %s472, 128
        %s474 = smul.addr %s473, 8
        %s475 = scalar_lea.vmem %s13, %s474
        %vm476 = vcmask 64512
        %477 = vst.msk [vmem:[#allocation2] sm:$0xff] %vm476, 0.0
        %478 = vst.msk [vmem:[#allocation2 + $0x8] sm:$0xff] %vm476, 0.0
        %479 = vst.msk [vmem:[#allocation2 + $0x10] sm:$0xff] %vm476, 0.0
        %s480 = scalar_lea.vmem [#allocation2], 408
        %481 = vst.msk [vmem:[%s480] sm:$0xff] %vm476, 0.0
        %482 = vst.msk [vmem:[%s480 + $0x8] sm:$0xff] %vm476, 0.0
        %483 = vst.msk [vmem:[%s480 + $0x10] sm:$0xff] %vm476, 0.0
        %vm484 = vcmask 57344
        %485 = vst.msk [vmem:[#allocation2] sm:$0x1] %vm484, 0.0
        %486 = vst.msk [vmem:[#allocation2 + $0x18] sm:$0x1] %vm484, 0.0
        %487 = vst.msk [vmem:[#allocation2 + $0x30] sm:$0x1] %vm484, 0.0
        %488 = vst.msk [vmem:[#allocation2 + $0x48] sm:$0x1] %vm484, 0.0
        %489 = vst.msk [vmem:[#allocation2 + $0x60] sm:$0x1] %vm484, 0.0
        %490 = vst.msk [vmem:[#allocation2 + $0x78] sm:$0x1] %vm484, 0.0
        %491 = vst.msk [vmem:[#allocation2 + $0x90] sm:$0x1] %vm484, 0.0
        %492 = vst.msk [vmem:[#allocation2 + $0xa8] sm:$0x1] %vm484, 0.0
        %493 = vst.msk [vmem:[#allocation2 + $0xc0] sm:$0x1] %vm484, 0.0
        %494 = vst.msk [vmem:[#allocation2 + $0xd8] sm:$0x1] %vm484, 0.0
        %495 = vst.msk [vmem:[#allocation2 + $0xf0] sm:$0x1] %vm484, 0.0
        %496 = vst.msk [vmem:[#allocation2 + $0x108] sm:$0x1] %vm484, 0.0
        %497 = vst.msk [vmem:[#allocation2 + $0x120] sm:$0x1] %vm484, 0.0
        %498 = vst.msk [vmem:[#allocation2 + $0x138] sm:$0x1] %vm484, 0.0
        %499 = vst.msk [vmem:[#allocation2 + $0x150] sm:$0x1] %vm484, 0.0
        %500 = vst.msk [vmem:[#allocation2 + $0x168] sm:$0x1] %vm484, 0.0
        %501 = vst.msk [vmem:[#allocation2 + $0x180] sm:$0x1] %vm484, 0.0
        %502 = vst.msk [vmem:[#allocation2 + $0x198] sm:$0x1] %vm484, 0.0
        %vm503 = vcmask 63488
        %504 = vst.msk [vmem:[#allocation2 + $0x11] sm:$0x7f] %vm503, 0.0
        %505 = vst.msk [vmem:[#allocation2 + $0x29] sm:$0x7f] %vm503, 0.0
        %506 = vst.msk [vmem:[#allocation2 + $0x41] sm:$0x7f] %vm503, 0.0
        %507 = vst.msk [vmem:[#allocation2 + $0x59] sm:$0x7f] %vm503, 0.0
        %508 = vst.msk [vmem:[#allocation2 + $0x71] sm:$0x7f] %vm503, 0.0
        %509 = vst.msk [vmem:[#allocation2 + $0x89] sm:$0x7f] %vm503, 0.0
        %510 = vst.msk [vmem:[#allocation2 + $0xa1] sm:$0x7f] %vm503, 0.0
        %511 = vst.msk [vmem:[#allocation2 + $0xb9] sm:$0x7f] %vm503, 0.0
        %512 = vst.msk [vmem:[#allocation2 + $0xd1] sm:$0x7f] %vm503, 0.0
        %513 = vst.msk [vmem:[#allocation2 + $0xe9] sm:$0x7f] %vm503, 0.0
        %514 = vst.msk [vmem:[#allocation2 + $0x101] sm:$0x7f] %vm503, 0.0
        %515 = vst.msk [vmem:[#allocation2 + $0x119] sm:$0x7f] %vm503, 0.0
        %516 = vst.msk [vmem:[#allocation2 + $0x131] sm:$0x7f] %vm503, 0.0
        %517 = vst.msk [vmem:[#allocation2 + $0x149] sm:$0x7f] %vm503, 0.0
        %518 = vst.msk [vmem:[#allocation2 + $0x161] sm:$0x7f] %vm503, 0.0
        %519 = vst.msk [vmem:[#allocation2 + $0x179] sm:$0x7f] %vm503, 0.0
        %520 = vst.msk [vmem:[#allocation2 + $0x191] sm:$0x7f] %vm503, 0.0
        %521 = vst.msk [vmem:[#allocation2 + $0x1a9] sm:$0x7f] %vm503, 0.0
        %v522 = vld [vmem:[%s465] sm:$0xff]
        %v523 = vld [vmem:[%s465 + $0x8] sm:$0xff]
        %v524 = vld [vmem:[%s465 + $0x10] sm:$0xff]
        %v525 = vld [vmem:[%s465 + $0x18] sm:$0xff]
        %v526 = vld [vmem:[%s465 + $0x20] sm:$0xff]
        %v527 = vld [vmem:[%s465 + $0x28] sm:$0xff]
        %v528 = vld [vmem:[%s465 + $0x30] sm:$0xff]
        %v529 = vld [vmem:[%s465 + $0x38] sm:$0xff]
        %v530 = vld [vmem:[%s465 + $0x40] sm:$0xff]
        %v531 = vld [vmem:[%s465 + $0x48] sm:$0xff]
        %v532 = vld [vmem:[%s465 + $0x50] sm:$0xff]
        %v533 = vld [vmem:[%s465 + $0x58] sm:$0xff]
        %v534 = vld [vmem:[%s465 + $0x60] sm:$0xff]
        %v535 = vld [vmem:[%s465 + $0x68] sm:$0xff]
        %v536 = vld [vmem:[%s465 + $0x70] sm:$0xff]
        %v537 = vld [vmem:[%s465 + $0x78] sm:$0xff]
        %v538 = vld [vmem:[%s465 + $0x80] sm:$0xff]
        %v539 = vld [vmem:[%s465 + $0x88] sm:$0xff]
        %v540 = vld [vmem:[%s465 + $0x90] sm:$0xff]
        %v541 = vld [vmem:[%s465 + $0x98] sm:$0xff]
        %v542 = vld [vmem:[%s465 + $0xa0] sm:$0xff]
        %v543 = vld [vmem:[%s465 + $0xa8] sm:$0xff]
        %v544 = vld [vmem:[%s465 + $0xb0] sm:$0xff]
        %v545 = vld [vmem:[%s465 + $0xb8] sm:$0xff]
        %v546 = vld [vmem:[%s465 + $0xc0] sm:$0xff]
        %v547 = vld [vmem:[%s465 + $0xc8] sm:$0xff]
        %v548 = vld [vmem:[%s465 + $0xd0] sm:$0xff]
        %v549 = vld [vmem:[%s465 + $0xd8] sm:$0xff]
        %v550 = vld [vmem:[%s465 + $0xe0] sm:$0xff]
        %v551 = vld [vmem:[%s465 + $0xe8] sm:$0xff]
        %v552 = vld [vmem:[%s465 + $0xf0] sm:$0xff]
        %v553 = vld [vmem:[%s465 + $0xf8] sm:$0xff]
        %v554 = vld [vmem:[%s470] sm:$0xff]
        %v555 = vld [vmem:[%s470 + $0x8] sm:$0xff]
        %v556 = vld [vmem:[%s470 + $0x10] sm:$0xff]
        %v557 = vld [vmem:[%s470 + $0x18] sm:$0xff]
        %v558 = vld [vmem:[%s470 + $0x20] sm:$0xff]
        %v559 = vld [vmem:[%s470 + $0x28] sm:$0xff]
        %v560 = vld [vmem:[%s470 + $0x30] sm:$0xff]
        %v561 = vld [vmem:[%s470 + $0x38] sm:$0xff]
        %v562 = vld [vmem:[%s470 + $0x40] sm:$0xff]
        %v563 = vld [vmem:[%s470 + $0x48] sm:$0xff]
        %v564 = vld [vmem:[%s470 + $0x50] sm:$0xff]
        %v565 = vld [vmem:[%s470 + $0x58] sm:$0xff]
        %v566 = vld [vmem:[%s470 + $0x60] sm:$0xff]
        %v567 = vld [vmem:[%s470 + $0x68] sm:$0xff]
        %v568 = vld [vmem:[%s470 + $0x70] sm:$0xff]
        %v569 = vld [vmem:[%s470 + $0x78] sm:$0xff]
        %v570 = vld [vmem:[%s470 + $0x80] sm:$0xff]
        %v571 = vld [vmem:[%s470 + $0x88] sm:$0xff]
        %v572 = vld [vmem:[%s470 + $0x90] sm:$0xff]
        %v573 = vld [vmem:[%s470 + $0x98] sm:$0xff]
        %v574 = vld [vmem:[%s470 + $0xa0] sm:$0xff]
        %v575 = vld [vmem:[%s470 + $0xa8] sm:$0xff]
        %v576 = vld [vmem:[%s470 + $0xb0] sm:$0xff]
        %v577 = vld [vmem:[%s470 + $0xb8] sm:$0xff]
        %v578 = vld [vmem:[%s470 + $0xc0] sm:$0xff]
        %v579 = vld [vmem:[%s470 + $0xc8] sm:$0xff]
        %v580 = vld [vmem:[%s470 + $0xd0] sm:$0xff]
        %v581 = vld [vmem:[%s470 + $0xd8] sm:$0xff]
        %v582 = vld [vmem:[%s470 + $0xe0] sm:$0xff]
        %v583 = vld [vmem:[%s470 + $0xe8] sm:$0xff]
        %v584 = vld [vmem:[%s470 + $0xf0] sm:$0xff]
        %v585 = vld [vmem:[%s470 + $0xf8] sm:$0xff]
        %v586 = vmax.f32 %v554, 0.0
        %v587 = vmax.f32 %v555, 0.0
        %v588 = vmax.f32 %v556, 0.0
        %v589 = vmax.f32 %v557, 0.0
        %v590 = vmax.f32 %v558, 0.0
        %v591 = vmax.f32 %v559, 0.0
        %v592 = vmax.f32 %v560, 0.0
        %v593 = vmax.f32 %v561, 0.0
        %v594 = vmax.f32 %v562, 0.0
        %v595 = vmax.f32 %v563, 0.0
        %v596 = vmax.f32 %v564, 0.0
        %v597 = vmax.f32 %v565, 0.0
        %v598 = vmax.f32 %v566, 0.0
        %v599 = vmax.f32 %v567, 0.0
        %v600 = vmax.f32 %v568, 0.0
        %v601 = vmax.f32 %v569, 0.0
        %v602 = vmax.f32 %v570, 0.0
        %v603 = vmax.f32 %v571, 0.0
        %v604 = vmax.f32 %v572, 0.0
        %v605 = vmax.f32 %v573, 0.0
        %v606 = vmax.f32 %v574, 0.0
        %v607 = vmax.f32 %v575, 0.0
        %v608 = vmax.f32 %v576, 0.0
        %v609 = vmax.f32 %v577, 0.0
        %v610 = vmax.f32 %v578, 0.0
        %v611 = vmax.f32 %v579, 0.0
        %v612 = vmax.f32 %v580, 0.0
        %v613 = vmax.f32 %v581, 0.0
        %v614 = vmax.f32 %v582, 0.0
        %v615 = vmax.f32 %v583, 0.0
        %v616 = vmax.f32 %v584, 0.0
        %v617 = vmax.f32 %v585, 0.0
        %s618 = scalar_lea.vmem [#allocation2], 24
        %619 = vst.msk [vmem:[%s618 + $0x1] sm:$0xff] %vm476, %v586
        %620 = vst.msk [vmem:[%s618 + $0x9] sm:$0xff] %vm476, %v587
        %621 = vst.msk [vmem:[%s618 + $0x19] sm:$0xff] %vm476, %v588
        %622 = vst.msk [vmem:[%s618 + $0x21] sm:$0xff] %vm476, %v589
        %623 = vst.msk [vmem:[%s618 + $0x31] sm:$0xff] %vm476, %v590
        %624 = vst.msk [vmem:[%s618 + $0x39] sm:$0xff] %vm476, %v591
        %625 = vst.msk [vmem:[%s618 + $0x49] sm:$0xff] %vm476, %v592
        %626 = vst.msk [vmem:[%s618 + $0x51] sm:$0xff] %vm476, %v593
        %627 = vst.msk [vmem:[%s618 + $0x61] sm:$0xff] %vm476, %v594
        %628 = vst.msk [vmem:[%s618 + $0x69] sm:$0xff] %vm476, %v595
        %629 = vst.msk [vmem:[%s618 + $0x79] sm:$0xff] %vm476, %v596
        %630 = vst.msk [vmem:[%s618 + $0x81] sm:$0xff] %vm476, %v597
        %631 = vst.msk [vmem:[%s618 + $0x91] sm:$0xff] %vm476, %v598
        %632 = vst.msk [vmem:[%s618 + $0x99] sm:$0xff] %vm476, %v599
        %633 = vst.msk [vmem:[%s618 + $0xa9] sm:$0xff] %vm476, %v600
        %634 = vst.msk [vmem:[%s618 + $0xb1] sm:$0xff] %vm476, %v601
        %635 = vst.msk [vmem:[%s618 + $0xc1] sm:$0xff] %vm476, %v602
        %636 = vst.msk [vmem:[%s618 + $0xc9] sm:$0xff] %vm476, %v603
        %637 = vst.msk [vmem:[%s618 + $0xd9] sm:$0xff] %vm476, %v604
        %638 = vst.msk [vmem:[%s618 + $0xe1] sm:$0xff] %vm476, %v605
        %639 = vst.msk [vmem:[%s618 + $0xf1] sm:$0xff] %vm476, %v606
        %640 = vst.msk [vmem:[%s618 + $0xf9] sm:$0xff] %vm476, %v607
        %641 = vst.msk [vmem:[%s618 + $0x109] sm:$0xff] %vm476, %v608
        %642 = vst.msk [vmem:[%s618 + $0x111] sm:$0xff] %vm476, %v609
        %643 = vst.msk [vmem:[%s618 + $0x121] sm:$0xff] %vm476, %v610
        %644 = vst.msk [vmem:[%s618 + $0x129] sm:$0xff] %vm476, %v611
        %645 = vst.msk [vmem:[%s618 + $0x139] sm:$0xff] %vm476, %v612
        %646 = vst.msk [vmem:[%s618 + $0x141] sm:$0xff] %vm476, %v613
        %647 = vst.msk [vmem:[%s618 + $0x151] sm:$0xff] %vm476, %v614
        %648 = vst.msk [vmem:[%s618 + $0x159] sm:$0xff] %vm476, %v615
        %649 = vst.msk [vmem:[%s618 + $0x169] sm:$0xff] %vm476, %v616
        %650 = vst.msk [vmem:[%s618 + $0x171] sm:$0xff] %vm476, %v617
        %v651 = vld [vmem:[#allocation2] sm:$0xff]
        %v652 = vld [vmem:[#allocation2 + $0x8] sm:$0xff]
        %v653 = vld [vmem:[#allocation2 + $0x10] sm:$0xff]
        %v654 = vld [vmem:[#allocation2 + $0x18] sm:$0xff]
        %v655 = vld [vmem:[#allocation2 + $0x20] sm:$0xff]
        %v656 = vld [vmem:[#allocation2 + $0x28] sm:$0xff]
        %v657 = vld [vmem:[#allocation2 + $0x30] sm:$0xff]
        %v658 = vld [vmem:[#allocation2 + $0x38] sm:$0xff]
        %v659 = vld [vmem:[#allocation2 + $0x40] sm:$0xff]
        %v660 = vld [vmem:[#allocation2 + $0x48] sm:$0xff]
        %v661 = vld [vmem:[#allocation2 + $0x50] sm:$0xff]
        %v662 = vld [vmem:[#allocation2 + $0x58] sm:$0xff]
        %v663 = vld [vmem:[#allocation2 + $0x60] sm:$0xff]
        %v664 = vld [vmem:[#allocation2 + $0x68] sm:$0xff]
        %v665 = vld [vmem:[#allocation2 + $0x70] sm:$0xff]
        %v666 = vld [vmem:[#allocation2 + $0x78] sm:$0xff]
        %v667 = vld [vmem:[#allocation2 + $0x80] sm:$0xff]
        %v668 = vld [vmem:[#allocation2 + $0x88] sm:$0xff]
        %v669 = vld [vmem:[#allocation2 + $0x90] sm:$0xff]
        %v670 = vld [vmem:[#allocation2 + $0x98] sm:$0xff]
        %v671 = vld [vmem:[#allocation2 + $0xa0] sm:$0xff]
        %v672 = vld [vmem:[#allocation2 + $0xa8] sm:$0xff]
        %v673 = vld [vmem:[#allocation2 + $0xb0] sm:$0xff]
        %v674 = vld [vmem:[#allocation2 + $0xb8] sm:$0xff]
        %v675 = vld [vmem:[#allocation2 + $0xc0] sm:$0xff]
        %v676 = vld [vmem:[#allocation2 + $0xc8] sm:$0xff]
        %v677 = vld [vmem:[#allocation2 + $0xd0] sm:$0xff]
        %v678 = vld [vmem:[#allocation2 + $0xd8] sm:$0xff]
        %v679 = vld [vmem:[#allocation2 + $0xe0] sm:$0xff]
        %v680 = vld [vmem:[#allocation2 + $0xe8] sm:$0xff]
        %v681 = vld [vmem:[#allocation2 + $0xf0] sm:$0xff]
        %v682 = vld [vmem:[#allocation2 + $0xf8] sm:$0xff]
        %v683 = vld [vmem:[#allocation2 + $0x100] sm:$0xff]
        %v684 = vld [vmem:[#allocation2 + $0x108] sm:$0xff]
        %v685 = vld [vmem:[#allocation2 + $0x110] sm:$0xff]
        %v686 = vld [vmem:[#allocation2 + $0x118] sm:$0xff]
        %v687 = vld [vmem:[#allocation2 + $0x120] sm:$0xff]
        %v688 = vld [vmem:[#allocation2 + $0x128] sm:$0xff]
        %v689 = vld [vmem:[#allocation2 + $0x130] sm:$0xff]
        %v690 = vld [vmem:[#allocation2 + $0x138] sm:$0xff]
        %v691 = vld [vmem:[#allocation2 + $0x140] sm:$0xff]
        %v692 = vld [vmem:[#allocation2 + $0x148] sm:$0xff]
        %v693 = vld [vmem:[#allocation2 + $0x150] sm:$0xff]
        %v694 = vld [vmem:[#allocation2 + $0x158] sm:$0xff]
        %v695 = vld [vmem:[#allocation2 + $0x160] sm:$0xff]
        %v696 = vld [vmem:[#allocation2 + $0x168] sm:$0xff]
        %v697 = vld [vmem:[#allocation2 + $0x170] sm:$0xff]
        %v698 = vld [vmem:[#allocation2 + $0x178] sm:$0xff]
        %v699 = vld [vmem:[#allocation2 + $0x180] sm:$0xff]
        %v700 = vld [vmem:[#allocation2 + $0x188] sm:$0xff]
        %v701 = vld [vmem:[#allocation2 + $0x190] sm:$0xff]
        %v702 = vld [vmem:[#allocation2 + $0x198] sm:$0xff]
        %v703 = vld [vmem:[#allocation2 + $0x1a0] sm:$0xff]
        %v704 = vld [vmem:[#allocation2 + $0x1a8] sm:$0xff]
        %705 = vst.msk [vmem:[#allocation3] sm:$0xff] %vm476, %v651
        %706 = vst.msk [vmem:[#allocation3 + $0x8] sm:$0xff] %vm476, %v652
        %707 = vst.msk [vmem:[#allocation3 + $0x10] sm:$0xff] %vm476, %v654
        %708 = vst.msk [vmem:[#allocation3 + $0x18] sm:$0xff] %vm476, %v655
        %709 = vst.msk [vmem:[#allocation3 + $0x20] sm:$0xff] %vm476, %v657
        %710 = vst.msk [vmem:[#allocation3 + $0x28] sm:$0xff] %vm476, %v658
        %711 = vst.msk [vmem:[#allocation3 + $0x30] sm:$0xff] %vm476, %v660
        %712 = vst.msk [vmem:[#allocation3 + $0x38] sm:$0xff] %vm476, %v661
        %713 = vst.msk [vmem:[#allocation3 + $0x40] sm:$0xff] %vm476, %v663
        %714 = vst.msk [vmem:[#allocation3 + $0x48] sm:$0xff] %vm476, %v664
        %715 = vst.msk [vmem:[#allocation3 + $0x50] sm:$0xff] %vm476, %v666
        %716 = vst.msk [vmem:[#allocation3 + $0x58] sm:$0xff] %vm476, %v667
        %717 = vst.msk [vmem:[#allocation3 + $0x60] sm:$0xff] %vm476, %v669
        %718 = vst.msk [vmem:[#allocation3 + $0x68] sm:$0xff] %vm476, %v670
        %719 = vst.msk [vmem:[#allocation3 + $0x70] sm:$0xff] %vm476, %v672
        %720 = vst.msk [vmem:[#allocation3 + $0x78] sm:$0xff] %vm476, %v673
        %721 = vst.msk [vmem:[#allocation3 + $0x80] sm:$0xff] %vm476, %v675
        %722 = vst.msk [vmem:[#allocation3 + $0x88] sm:$0xff] %vm476, %v676
        %723 = vst.msk [vmem:[#allocation3 + $0x90] sm:$0xff] %vm476, %v678
        %724 = vst.msk [vmem:[#allocation3 + $0x98] sm:$0xff] %vm476, %v679
        %725 = vst.msk [vmem:[#allocation3 + $0xa0] sm:$0xff] %vm476, %v681
        %726 = vst.msk [vmem:[#allocation3 + $0xa8] sm:$0xff] %vm476, %v682
        %727 = vst.msk [vmem:[#allocation3 + $0xb0] sm:$0xff] %vm476, %v684
        %728 = vst.msk [vmem:[#allocation3 + $0xb8] sm:$0xff] %vm476, %v685
        %729 = vst.msk [vmem:[#allocation3 + $0xc0] sm:$0xff] %vm476, %v687
        %730 = vst.msk [vmem:[#allocation3 + $0xc8] sm:$0xff] %vm476, %v688
        %731 = vst.msk [vmem:[#allocation3 + $0xd0] sm:$0xff] %vm476, %v690
        %732 = vst.msk [vmem:[#allocation3 + $0xd8] sm:$0xff] %vm476, %v691
        %733 = vst.msk [vmem:[#allocation3 + $0xe0] sm:$0xff] %vm476, %v693
        %734 = vst.msk [vmem:[#allocation3 + $0xe8] sm:$0xff] %vm476, %v694
        %735 = vst.msk [vmem:[#allocation3 + $0xf0] sm:$0xff] %vm476, %v696
        %736 = vst.msk [vmem:[#allocation3 + $0xf8] sm:$0xff] %vm476, %v697
        %vm785 = vcmask 1046528
        %v786 = vrot.slane %v651, 1
        %v787 = vrot.slane %v652, 1
        %v788 = vsel %vm785, %v786, %v787
        %v789 = vrot.slane %v653, 1
        %v790 = vsel %vm785, %v787, %v789
        %v791 = vrot.slane %v654, 1
        %v792 = vrot.slane %v655, 1
        %v793 = vsel %vm785, %v791, %v792
        %v794 = vrot.slane %v656, 1
        %v795 = vsel %vm785, %v792, %v794
        %v796 = vrot.slane %v657, 1
        %v797 = vrot.slane %v658, 1
        %v798 = vsel %vm785, %v796, %v797
        %v799 = vrot.slane %v659, 1
        %v800 = vsel %vm785, %v797, %v799
        %v801 = vrot.slane %v660, 1
        %v802 = vrot.slane %v661, 1
        %v803 = vsel %vm785, %v801, %v802
        %v804 = vrot.slane %v662, 1
        %v805 = vsel %vm785, %v802, %v804
        %v806 = vrot.slane %v663, 1
        %v807 = vrot.slane %v664, 1
        %v808 = vsel %vm785, %v806, %v807
        %v809 = vrot.slane %v665, 1
        %v810 = vsel %vm785, %v807, %v809
        %v811 = vrot.slane %v666, 1
        %v812 = vrot.slane %v667, 1
        %v813 = vsel %vm785, %v811, %v812
        %v814 = vrot.slane %v668, 1
        %v815 = vsel %vm785, %v812, %v814
        %v816 = vrot.slane %v669, 1
        %v817 = vrot.slane %v670, 1
        %v818 = vsel %vm785, %v816, %v817
        %v819 = vrot.slane %v671, 1
        %v820 = vsel %vm785, %v817, %v819
        %v821 = vrot.slane %v672, 1
        %v822 = vrot.slane %v673, 1
        %v823 = vsel %vm785, %v821, %v822
        %v824 = vrot.slane %v674, 1
        %v825 = vsel %vm785, %v822, %v824
        %v826 = vrot.slane %v675, 1
        %v827 = vrot.slane %v676, 1
        %v828 = vsel %vm785, %v826, %v827
        %v829 = vrot.slane %v677, 1
        %v830 = vsel %vm785, %v827, %v829
        %v831 = vrot.slane %v678, 1
        %v832 = vrot.slane %v679, 1
        %v833 = vsel %vm785, %v831, %v832
        %v834 = vrot.slane %v680, 1
        %v835 = vsel %vm785, %v832, %v834
        %v836 = vrot.slane %v681, 1
        %v837 = vrot.slane %v682, 1
        %v838 = vsel %vm785, %v836, %v837
        %v839 = vrot.slane %v683, 1
        %v840 = vsel %vm785, %v837, %v839
        %v841 = vrot.slane %v684, 1
        %v842 = vrot.slane %v685, 1
        %v843 = vsel %vm785, %v841, %v842
        %v844 = vrot.slane %v686, 1
        %v845 = vsel %vm785, %v842, %v844
        %v846 = vrot.slane %v687, 1
        %v847 = vrot.slane %v688, 1
        %v848 = vsel %vm785, %v846, %v847
        %v849 = vrot.slane %v689, 1
        %v850 = vsel %vm785, %v847, %v849
        %v851 = vrot.slane %v690, 1
        %v852 = vrot.slane %v691, 1
        %v853 = vsel %vm785, %v851, %v852
        %v854 = vrot.slane %v692, 1
        %v855 = vsel %vm785, %v852, %v854
        %v856 = vrot.slane %v693, 1
        %v857 = vrot.slane %v694, 1
        %v858 = vsel %vm785, %v856, %v857
        %v859 = vrot.slane %v695, 1
        %v860 = vsel %vm785, %v857, %v859
        %v861 = vrot.slane %v696, 1
        %v862 = vrot.slane %v697, 1
        %v863 = vsel %vm785, %v861, %v862
        %v864 = vrot.slane %v698, 1
        %v865 = vsel %vm785, %v862, %v864
        %866 = vrot.lane.b32.xlu0 %v788, 8
        %v867 = vpop.permute.xlu0 %866
        %868 = vrot.lane.b32.xlu0 %v790, 8
        %v869 = vpop.permute.xlu0 %868
        %870 = vrot.lane.b32.xlu0 %v793, 8
        %v871 = vpop.permute.xlu0 %870
        %872 = vrot.lane.b32.xlu0 %v795, 8
        %v873 = vpop.permute.xlu0 %872
        %874 = vrot.lane.b32.xlu0 %v798, 8
        %v875 = vpop.permute.xlu0 %874
        %876 = vrot.lane.b32.xlu0 %v800, 8
        %v877 = vpop.permute.xlu0 %876
        %878 = vrot.lane.b32.xlu0 %v803, 8
        %v879 = vpop.permute.xlu0 %878
        %880 = vrot.lane.b32.xlu0 %v805, 8
        %v881 = vpop.permute.xlu0 %880
        %882 = vrot.lane.b32.xlu0 %v808, 8
        %v883 = vpop.permute.xlu0 %882
        %884 = vrot.lane.b32.xlu0 %v810, 8
        %v885 = vpop.permute.xlu0 %884
        %886 = vrot.lane.b32.xlu0 %v813, 8
        %v887 = vpop.permute.xlu0 %886
        %888 = vrot.lane.b32.xlu0 %v815, 8
        %v889 = vpop.permute.xlu0 %888
        %890 = vrot.lane.b32.xlu0 %v818, 8
        %v891 = vpop.permute.xlu0 %890
        %892 = vrot.lane.b32.xlu0 %v820, 8
        %v893 = vpop.permute.xlu0 %892
        %894 = vrot.lane.b32.xlu0 %v823, 8
        %v895 = vpop.permute.xlu0 %894
        %896 = vrot.lane.b32.xlu0 %v825, 8
        %v897 = vpop.permute.xlu0 %896
        %898 = vrot.lane.b32.xlu0 %v828, 8
        %v899 = vpop.permute.xlu0 %898
        %900 = vrot.lane.b32.xlu0 %v830, 8
        %v901 = vpop.permute.xlu0 %900
        %902 = vrot.lane.b32.xlu0 %v833, 8
        %v903 = vpop.permute.xlu0 %902
        %904 = vrot.lane.b32.xlu0 %v835, 8
        %v905 = vpop.permute.xlu0 %904
        %906 = vrot.lane.b32.xlu0 %v838, 8
        %v907 = vpop.permute.xlu0 %906
        %908 = vrot.lane.b32.xlu0 %v840, 8
        %v909 = vpop.permute.xlu0 %908
        %910 = vrot.lane.b32.xlu0 %v843, 8
        %v911 = vpop.permute.xlu0 %910
        %912 = vrot.lane.b32.xlu0 %v845, 8
        %v913 = vpop.permute.xlu0 %912
        %914 = vrot.lane.b32.xlu0 %v848, 8
        %v915 = vpop.permute.xlu0 %914
        %916 = vrot.lane.b32.xlu0 %v850, 8
        %v917 = vpop.permute.xlu0 %916
        %918 = vrot.lane.b32.xlu0 %v853, 8
        %v919 = vpop.permute.xlu0 %918
        %920 = vrot.lane.b32.xlu0 %v855, 8
        %v921 = vpop.permute.xlu0 %920
        %922 = vrot.lane.b32.xlu0 %v858, 8
        %v923 = vpop.permute.xlu0 %922
        %924 = vrot.lane.b32.xlu0 %v860, 8
        %v925 = vpop.permute.xlu0 %924
        %926 = vrot.lane.b32.xlu0 %v863, 8
        %v927 = vpop.permute.xlu0 %926
        %928 = vrot.lane.b32.xlu0 %v865, 8
        %v929 = vpop.permute.xlu0 %928
        %vm962 = vcmask 130112
        %963 = vst.msk [vmem:[#allocation3] sm:$0xff] %vm962, %v867
        %964 = vst.msk [vmem:[#allocation3 + $0x8] sm:$0xff] %vm962, %v869
        %965 = vst.msk [vmem:[#allocation3 + $0x10] sm:$0xff] %vm962, %v871
        %966 = vst.msk [vmem:[#allocation3 + $0x18] sm:$0xff] %vm962, %v873
        %967 = vst.msk [vmem:[#allocation3 + $0x20] sm:$0xff] %vm962, %v875
        %968 = vst.msk [vmem:[#allocation3 + $0x28] sm:$0xff] %vm962, %v877
        %969 = vst.msk [vmem:[#allocation3 + $0x30] sm:$0xff] %vm962, %v879
        %970 = vst.msk [vmem:[#allocation3 + $0x38] sm:$0xff] %vm962, %v881
        %971 = vst.msk [vmem:[#allocation3 + $0x40] sm:$0xff] %vm962, %v883
        %972 = vst.msk [vmem:[#allocation3 + $0x48] sm:$0xff] %vm962, %v885
        %973 = vst.msk [vmem:[#allocation3 + $0x50] sm:$0xff] %vm962, %v887
        %974 = vst.msk [vmem:[#allocation3 + $0x58] sm:$0xff] %vm962, %v889
        %975 = vst.msk [vmem:[#allocation3 + $0x60] sm:$0xff] %vm962, %v891
        %976 = vst.msk [vmem:[#allocation3 + $0x68] sm:$0xff] %vm962, %v893
        %977 = vst.msk [vmem:[#allocation3 + $0x70] sm:$0xff] %vm962, %v895
        %978 = vst.msk [vmem:[#allocation3 + $0x78] sm:$0xff] %vm962, %v897
        %979 = vst.msk [vmem:[#allocation3 + $0x80] sm:$0xff] %vm962, %v899
        %980 = vst.msk [vmem:[#allocation3 + $0x88] sm:$0xff] %vm962, %v901
        %981 = vst.msk [vmem:[#allocation3 + $0x90] sm:$0xff] %vm962, %v903
        %982 = vst.msk [vmem:[#allocation3 + $0x98] sm:$0xff] %vm962, %v905
        %983 = vst.msk [vmem:[#allocation3 + $0xa0] sm:$0xff] %vm962, %v907
        %984 = vst.msk [vmem:[#allocation3 + $0xa8] sm:$0xff] %vm962, %v909
        %985 = vst.msk [vmem:[#allocation3 + $0xb0] sm:$0xff] %vm962, %v911
        %986 = vst.msk [vmem:[#allocation3 + $0xb8] sm:$0xff] %vm962, %v913
        %987 = vst.msk [vmem:[#allocation3 + $0xc0] sm:$0xff] %vm962, %v915
        %988 = vst.msk [vmem:[#allocation3 + $0xc8] sm:$0xff] %vm962, %v917
        %989 = vst.msk [vmem:[#allocation3 + $0xd0] sm:$0xff] %vm962, %v919
        %990 = vst.msk [vmem:[#allocation3 + $0xd8] sm:$0xff] %vm962, %v921
        %991 = vst.msk [vmem:[#allocation3 + $0xe0] sm:$0xff] %vm962, %v923
        %992 = vst.msk [vmem:[#allocation3 + $0xe8] sm:$0xff] %vm962, %v925
        %993 = vst.msk [vmem:[#allocation3 + $0xf0] sm:$0xff] %vm962, %v927
        %994 = vst.msk [vmem:[#allocation3 + $0xf8] sm:$0xff] %vm962, %v929
        %vm995 = vcmask 1045504
        %v996 = vrot.slane %v651, 2
        %v997 = vrot.slane %v652, 2
        %v998 = vsel %vm995, %v996, %v997
        %v999 = vrot.slane %v653, 2
        %v1000 = vsel %vm995, %v997, %v999
        %v1001 = vrot.slane %v654, 2
        %v1002 = vrot.slane %v655, 2
        %v1003 = vsel %vm995, %v1001, %v1002
        %v1004 = vrot.slane %v656, 2
        %v1005 = vsel %vm995, %v1002, %v1004
        %v1006 = vrot.slane %v657, 2
        %v1007 = vrot.slane %v658, 2
        %v1008 = vsel %vm995, %v1006, %v1007
        %v1009 = vrot.slane %v659, 2
        %v1010 = vsel %vm995, %v1007, %v1009
        %v1011 = vrot.slane %v660, 2
        %v1012 = vrot.slane %v661, 2
        %v1013 = vsel %vm995, %v1011, %v1012
        %v1014 = vrot.slane %v662, 2
        %v1015 = vsel %vm995, %v1012, %v1014
        %v1016 = vrot.slane %v663, 2
        %v1017 = vrot.slane %v664, 2
        %v1018 = vsel %vm995, %v1016, %v1017
        %v1019 = vrot.slane %v665, 2
        %v1020 = vsel %vm995, %v1017, %v1019
        %v1021 = vrot.slane %v666, 2
        %v1022 = vrot.slane %v667, 2
        %v1023 = vsel %vm995, %v1021, %v1022
        %v1024 = vrot.slane %v668, 2
        %v1025 = vsel %vm995, %v1022, %v1024
        %v1026 = vrot.slane %v669, 2
        %v1027 = vrot.slane %v670, 2
        %v1028 = vsel %vm995, %v1026, %v1027
        %v1029 = vrot.slane %v671, 2
        %v1030 = vsel %vm995, %v1027, %v1029
        %v1031 = vrot.slane %v672, 2
        %v1032 = vrot.slane %v673, 2
        %v1033 = vsel %vm995, %v1031, %v1032
        %v1034 = vrot.slane %v674, 2
        %v1035 = vsel %vm995, %v1032, %v1034
        %v1036 = vrot.slane %v675, 2
        %v1037 = vrot.slane %v676, 2
        %v1038 = vsel %vm995, %v1036, %v1037
        %v1039 = vrot.slane %v677, 2
        %v1040 = vsel %vm995, %v1037, %v1039
        %v1041 = vrot.slane %v678, 2
        %v1042 = vrot.slane %v679, 2
        %v1043 = vsel %vm995, %v1041, %v1042
        %v1044 = vrot.slane %v680, 2
        %v1045 = vsel %vm995, %v1042, %v1044
        %v1046 = vrot.slane %v681, 2
        %v1047 = vrot.slane %v682, 2
        %v1048 = vsel %vm995, %v1046, %v1047
        %v1049 = vrot.slane %v683, 2
        %v1050 = vsel %vm995, %v1047, %v1049
        %v1051 = vrot.slane %v684, 2
        %v1052 = vrot.slane %v685, 2
        %v1053 = vsel %vm995, %v1051, %v1052
        %v1054 = vrot.slane %v686, 2
        %v1055 = vsel %vm995, %v1052, %v1054
        %v1056 = vrot.slane %v687, 2
        %v1057 = vrot.slane %v688, 2
        %v1058 = vsel %vm995, %v1056, %v1057
        %v1059 = vrot.slane %v689, 2
        %v1060 = vsel %vm995, %v1057, %v1059
        %v1061 = vrot.slane %v690, 2
        %v1062 = vrot.slane %v691, 2
        %v1063 = vsel %vm995, %v1061, %v1062
        %v1064 = vrot.slane %v692, 2
        %v1065 = vsel %vm995, %v1062, %v1064
        %v1066 = vrot.slane %v693, 2
        %v1067 = vrot.slane %v694, 2
        %v1068 = vsel %vm995, %v1066, %v1067
        %v1069 = vrot.slane %v695, 2
        %v1070 = vsel %vm995, %v1067, %v1069
        %v1071 = vrot.slane %v696, 2
        %v1072 = vrot.slane %v697, 2
        %v1073 = vsel %vm995, %v1071, %v1072
        %v1074 = vrot.slane %v698, 2
        %v1075 = vsel %vm995, %v1072, %v1074
        %1076 = vrot.lane.b32.xlu0 %v998, 16
        %v1077 = vpop.permute.xlu0 %1076
        %1078 = vrot.lane.b32.xlu0 %v1000, 16
        %v1079 = vpop.permute.xlu0 %1078
        %1080 = vrot.lane.b32.xlu0 %v1003, 16
        %v1081 = vpop.permute.xlu0 %1080
        %1082 = vrot.lane.b32.xlu0 %v1005, 16
        %v1083 = vpop.permute.xlu0 %1082
        %1084 = vrot.lane.b32.xlu0 %v1008, 16
        %v1085 = vpop.permute.xlu0 %1084
        %1086 = vrot.lane.b32.xlu0 %v1010, 16
        %v1087 = vpop.permute.xlu0 %1086
        %1088 = vrot.lane.b32.xlu0 %v1013, 16
        %v1089 = vpop.permute.xlu0 %1088
        %1090 = vrot.lane.b32.xlu0 %v1015, 16
        %v1091 = vpop.permute.xlu0 %1090
        %1092 = vrot.lane.b32.xlu0 %v1018, 16
        %v1093 = vpop.permute.xlu0 %1092
        %1094 = vrot.lane.b32.xlu0 %v1020, 16
        %v1095 = vpop.permute.xlu0 %1094
        %1096 = vrot.lane.b32.xlu0 %v1023, 16
        %v1097 = vpop.permute.xlu0 %1096
        %1098 = vrot.lane.b32.xlu0 %v1025, 16
        %v1099 = vpop.permute.xlu0 %1098
        %1100 = vrot.lane.b32.xlu0 %v1028, 16
        %v1101 = vpop.permute.xlu0 %1100
        %1102 = vrot.lane.b32.xlu0 %v1030, 16
        %v1103 = vpop.permute.xlu0 %1102
        %1104 = vrot.lane.b32.xlu0 %v1033, 16
        %v1105 = vpop.permute.xlu0 %1104
        %1106 = vrot.lane.b32.xlu0 %v1035, 16
        %v1107 = vpop.permute.xlu0 %1106
        %1108 = vrot.lane.b32.xlu0 %v1038, 16
        %v1109 = vpop.permute.xlu0 %1108
        %1110 = vrot.lane.b32.xlu0 %v1040, 16
        %v1111 = vpop.permute.xlu0 %1110
        %1112 = vrot.lane.b32.xlu0 %v1043, 16
        %v1113 = vpop.permute.xlu0 %1112
        %1114 = vrot.lane.b32.xlu0 %v1045, 16
        %v1115 = vpop.permute.xlu0 %1114
        %1116 = vrot.lane.b32.xlu0 %v1048, 16
        %v1117 = vpop.permute.xlu0 %1116
        %1118 = vrot.lane.b32.xlu0 %v1050, 16
        %v1119 = vpop.permute.xlu0 %1118
        %1120 = vrot.lane.b32.xlu0 %v1053, 16
        %v1121 = vpop.permute.xlu0 %1120
        %1122 = vrot.lane.b32.xlu0 %v1055, 16
        %v1123 = vpop.permute.xlu0 %1122
        %1124 = vrot.lane.b32.xlu0 %v1058, 16
        %v1125 = vpop.permute.xlu0 %1124
        %1126 = vrot.lane.b32.xlu0 %v1060, 16
        %v1127 = vpop.permute.xlu0 %1126
        %1128 = vrot.lane.b32.xlu0 %v1063, 16
        %v1129 = vpop.permute.xlu0 %1128
        %1130 = vrot.lane.b32.xlu0 %v1065, 16
        %v1131 = vpop.permute.xlu0 %1130
        %1132 = vrot.lane.b32.xlu0 %v1068, 16
        %v1133 = vpop.permute.xlu0 %1132
        %1134 = vrot.lane.b32.xlu0 %v1070, 16
        %v1135 = vpop.permute.xlu0 %1134
        %1136 = vrot.lane.b32.xlu0 %v1073, 16
        %v1137 = vpop.permute.xlu0 %1136
        %1138 = vrot.lane.b32.xlu0 %v1075, 16
        %v1139 = vpop.permute.xlu0 %1138
        %vm1172 = vcmask 195712
        %1173 = vst.msk [vmem:[#allocation3] sm:$0xff] %vm1172, %v1077
        %1174 = vst.msk [vmem:[#allocation3 + $0x8] sm:$0xff] %vm1172, %v1079
        %1175 = vst.msk [vmem:[#allocation3 + $0x10] sm:$0xff] %vm1172, %v1081
        %1176 = vst.msk [vmem:[#allocation3 + $0x18] sm:$0xff] %vm1172, %v1083
        %1177 = vst.msk [vmem:[#allocation3 + $0x20] sm:$0xff] %vm1172, %v1085
        %1178 = vst.msk [vmem:[#allocation3 + $0x28] sm:$0xff] %vm1172, %v1087
        %1179 = vst.msk [vmem:[#allocation3 + $0x30] sm:$0xff] %vm1172, %v1089
        %1180 = vst.msk [vmem:[#allocation3 + $0x38] sm:$0xff] %vm1172, %v1091
        %1181 = vst.msk [vmem:[#allocation3 + $0x40] sm:$0xff] %vm1172, %v1093
        %1182 = vst.msk [vmem:[#allocation3 + $0x48] sm:$0xff] %vm1172, %v1095
        %1183 = vst.msk [vmem:[#allocation3 + $0x50] sm:$0xff] %vm1172, %v1097
        %1184 = vst.msk [vmem:[#allocation3 + $0x58] sm:$0xff] %vm1172, %v1099
        %1185 = vst.msk [vmem:[#allocation3 + $0x60] sm:$0xff] %vm1172, %v1101
        %1186 = vst.msk [vmem:[#allocation3 + $0x68] sm:$0xff] %vm1172, %v1103
        %1187 = vst.msk [vmem:[#allocation3 + $0x70] sm:$0xff] %vm1172, %v1105
        %1188 = vst.msk [vmem:[#allocation3 + $0x78] sm:$0xff] %vm1172, %v1107
        %1189 = vst.msk [vmem:[#allocation3 + $0x80] sm:$0xff] %vm1172, %v1109
        %1190 = vst.msk [vmem:[#allocation3 + $0x88] sm:$0xff] %vm1172, %v1111
        %1191 = vst.msk [vmem:[#allocation3 + $0x90] sm:$0xff] %vm1172, %v1113
        %1192 = vst.msk [vmem:[#allocation3 + $0x98] sm:$0xff] %vm1172, %v1115
        %1193 = vst.msk [vmem:[#allocation3 + $0xa0] sm:$0xff] %vm1172, %v1117
        %1194 = vst.msk [vmem:[#allocation3 + $0xa8] sm:$0xff] %vm1172, %v1119
        %1195 = vst.msk [vmem:[#allocation3 + $0xb0] sm:$0xff] %vm1172, %v1121
        %1196 = vst.msk [vmem:[#allocation3 + $0xb8] sm:$0xff] %vm1172, %v1123
        %1197 = vst.msk [vmem:[#allocation3 + $0xc0] sm:$0xff] %vm1172, %v1125
        %1198 = vst.msk [vmem:[#allocation3 + $0xc8] sm:$0xff] %vm1172, %v1127
        %1199 = vst.msk [vmem:[#allocation3 + $0xd0] sm:$0xff] %vm1172, %v1129
        %1200 = vst.msk [vmem:[#allocation3 + $0xd8] sm:$0xff] %vm1172, %v1131
        %1201 = vst.msk [vmem:[#allocation3 + $0xe0] sm:$0xff] %vm1172, %v1133
        %1202 = vst.msk [vmem:[#allocation3 + $0xe8] sm:$0xff] %vm1172, %v1135
        %1203 = vst.msk [vmem:[#allocation3 + $0xf0] sm:$0xff] %vm1172, %v1137
        %1204 = vst.msk [vmem:[#allocation3 + $0xf8] sm:$0xff] %vm1172, %v1139
        %1207 = vrot.lane.b32.xlu0 %v654, 24
        %v1208 = vpop.permute.xlu0 %1207
        %1209 = vrot.lane.b32.xlu0 %v655, 24
        %v1210 = vpop.permute.xlu0 %1209
        %1211 = vrot.lane.b32.xlu0 %v657, 24
        %v1212 = vpop.permute.xlu0 %1211
        %1213 = vrot.lane.b32.xlu0 %v658, 24
        %v1214 = vpop.permute.xlu0 %1213
        %1215 = vrot.lane.b32.xlu0 %v660, 24
        %v1216 = vpop.permute.xlu0 %1215
        %1217 = vrot.lane.b32.xlu0 %v661, 24
        %v1218 = vpop.permute.xlu0 %1217
        %1219 = vrot.lane.b32.xlu0 %v663, 24
        %v1220 = vpop.permute.xlu0 %1219
        %1221 = vrot.lane.b32.xlu0 %v664, 24
        %v1222 = vpop.permute.xlu0 %1221
        %1223 = vrot.lane.b32.xlu0 %v666, 24
        %v1224 = vpop.permute.xlu0 %1223
        %1225 = vrot.lane.b32.xlu0 %v667, 24
        %v1226 = vpop.permute.xlu0 %1225
        %1227 = vrot.lane.b32.xlu0 %v669, 24
        %v1228 = vpop.permute.xlu0 %1227
        %1229 = vrot.lane.b32.xlu0 %v670, 24
        %v1230 = vpop.permute.xlu0 %1229
        %1231 = vrot.lane.b32.xlu0 %v672, 24
        %v1232 = vpop.permute.xlu0 %1231
        %1233 = vrot.lane.b32.xlu0 %v673, 24
        %v1234 = vpop.permute.xlu0 %1233
        %1235 = vrot.lane.b32.xlu0 %v675, 24
        %v1236 = vpop.permute.xlu0 %1235
        %1237 = vrot.lane.b32.xlu0 %v676, 24
        %v1238 = vpop.permute.xlu0 %1237
        %1239 = vrot.lane.b32.xlu0 %v678, 24
        %v1240 = vpop.permute.xlu0 %1239
        %1241 = vrot.lane.b32.xlu0 %v679, 24
        %v1242 = vpop.permute.xlu0 %1241
        %1243 = vrot.lane.b32.xlu0 %v681, 24
        %v1244 = vpop.permute.xlu0 %1243
        %1245 = vrot.lane.b32.xlu0 %v682, 24
        %v1246 = vpop.permute.xlu0 %1245
        %1247 = vrot.lane.b32.xlu0 %v684, 24
        %v1248 = vpop.permute.xlu0 %1247
        %1249 = vrot.lane.b32.xlu0 %v685, 24
        %v1250 = vpop.permute.xlu0 %1249
        %1251 = vrot.lane.b32.xlu0 %v687, 24
        %v1252 = vpop.permute.xlu0 %1251
        %1253 = vrot.lane.b32.xlu0 %v688, 24
        %v1254 = vpop.permute.xlu0 %1253
        %1255 = vrot.lane.b32.xlu0 %v690, 24
        %v1256 = vpop.permute.xlu0 %1255
        %1257 = vrot.lane.b32.xlu0 %v691, 24
        %v1258 = vpop.permute.xlu0 %1257
        %1259 = vrot.lane.b32.xlu0 %v693, 24
        %v1260 = vpop.permute.xlu0 %1259
        %1261 = vrot.lane.b32.xlu0 %v694, 24
        %v1262 = vpop.permute.xlu0 %1261
        %1263 = vrot.lane.b32.xlu0 %v696, 24
        %v1264 = vpop.permute.xlu0 %1263
        %1265 = vrot.lane.b32.xlu0 %v697, 24
        %v1266 = vpop.permute.xlu0 %1265
        %1267 = vrot.lane.b32.xlu0 %v699, 24
        %v1268 = vpop.permute.xlu0 %1267
        %1269 = vrot.lane.b32.xlu0 %v700, 24
        %v1270 = vpop.permute.xlu0 %1269
        %vm1303 = vcmask 261312
        %1304 = vst.msk [vmem:[#allocation3] sm:$0xff] %vm1303, %v1208
        %1305 = vst.msk [vmem:[#allocation3 + $0x8] sm:$0xff] %vm1303, %v1210
        %1306 = vst.msk [vmem:[#allocation3 + $0x10] sm:$0xff] %vm1303, %v1212
        %1307 = vst.msk [vmem:[#allocation3 + $0x18] sm:$0xff] %vm1303, %v1214
        %1308 = vst.msk [vmem:[#allocation3 + $0x20] sm:$0xff] %vm1303, %v1216
        %1309 = vst.msk [vmem:[#allocation3 + $0x28] sm:$0xff] %vm1303, %v1218
        %1310 = vst.msk [vmem:[#allocation3 + $0x30] sm:$0xff] %vm1303, %v1220
        %1311 = vst.msk [vmem:[#allocation3 + $0x38] sm:$0xff] %vm1303, %v1222
        %1312 = vst.msk [vmem:[#allocation3 + $0x40] sm:$0xff] %vm1303, %v1224
        %1313 = vst.msk [vmem:[#allocation3 + $0x48] sm:$0xff] %vm1303, %v1226
        %1314 = vst.msk [vmem:[#allocation3 + $0x50] sm:$0xff] %vm1303, %v1228
        %1315 = vst.msk [vmem:[#allocation3 + $0x58] sm:$0xff] %vm1303, %v1230
        %1316 = vst.msk [vmem:[#allocation3 + $0x60] sm:$0xff] %vm1303, %v1232
        %1317 = vst.msk [vmem:[#allocation3 + $0x68] sm:$0xff] %vm1303, %v1234
        %1318 = vst.msk [vmem:[#allocation3 + $0x70] sm:$0xff] %vm1303, %v1236
        %1319 = vst.msk [vmem:[#allocation3 + $0x78] sm:$0xff] %vm1303, %v1238
        %1320 = vst.msk [vmem:[#allocation3 + $0x80] sm:$0xff] %vm1303, %v1240
        %1321 = vst.msk [vmem:[#allocation3 + $0x88] sm:$0xff] %vm1303, %v1242
        %1322 = vst.msk [vmem:[#allocation3 + $0x90] sm:$0xff] %vm1303, %v1244
        %1323 = vst.msk [vmem:[#allocation3 + $0x98] sm:$0xff] %vm1303, %v1246
        %1324 = vst.msk [vmem:[#allocation3 + $0xa0] sm:$0xff] %vm1303, %v1248
        %1325 = vst.msk [vmem:[#allocation3 + $0xa8] sm:$0xff] %vm1303, %v1250
        %1326 = vst.msk [vmem:[#allocation3 + $0xb0] sm:$0xff] %vm1303, %v1252
        %1327 = vst.msk [vmem:[#allocation3 + $0xb8] sm:$0xff] %vm1303, %v1254
        %1328 = vst.msk [vmem:[#allocation3 + $0xc0] sm:$0xff] %vm1303, %v1256
        %1329 = vst.msk [vmem:[#allocation3 + $0xc8] sm:$0xff] %vm1303, %v1258
        %1330 = vst.msk [vmem:[#allocation3 + $0xd0] sm:$0xff] %vm1303, %v1260
        %1331 = vst.msk [vmem:[#allocation3 + $0xd8] sm:$0xff] %vm1303, %v1262
        %1332 = vst.msk [vmem:[#allocation3 + $0xe0] sm:$0xff] %vm1303, %v1264
        %1333 = vst.msk [vmem:[#allocation3 + $0xe8] sm:$0xff] %vm1303, %v1266
        %1334 = vst.msk [vmem:[#allocation3 + $0xf0] sm:$0xff] %vm1303, %v1268
        %1335 = vst.msk [vmem:[#allocation3 + $0xf8] sm:$0xff] %vm1303, %v1270
        %v1337 = vrot.slane %v699, 1
        %v1338 = vrot.slane %v700, 1
        %v1339 = vsel %vm785, %v1337, %v1338
        %v1340 = vrot.slane %v701, 1
        %v1341 = vsel %vm785, %v1338, %v1340
        %1342 = vrot.lane.b32.xlu0 %v793, 32
        %v1343 = vpop.permute.xlu0 %1342
        %1344 = vrot.lane.b32.xlu0 %v795, 32
        %v1345 = vpop.permute.xlu0 %1344
        %1346 = vrot.lane.b32.xlu0 %v798, 32
        %v1347 = vpop.permute.xlu0 %1346
        %1348 = vrot.lane.b32.xlu0 %v800, 32
        %v1349 = vpop.permute.xlu0 %1348
        %1350 = vrot.lane.b32.xlu0 %v803, 32
        %v1351 = vpop.permute.xlu0 %1350
        %1352 = vrot.lane.b32.xlu0 %v805, 32
        %v1353 = vpop.permute.xlu0 %1352
        %1354 = vrot.lane.b32.xlu0 %v808, 32
        %v1355 = vpop.permute.xlu0 %1354
        %1356 = vrot.lane.b32.xlu0 %v810, 32
        %v1357 = vpop.permute.xlu0 %1356
        %1358 = vrot.lane.b32.xlu0 %v813, 32
        %v1359 = vpop.permute.xlu0 %1358
        %1360 = vrot.lane.b32.xlu0 %v815, 32
        %v1361 = vpop.permute.xlu0 %1360
        %1362 = vrot.lane.b32.xlu0 %v818, 32
        %v1363 = vpop.permute.xlu0 %1362
        %1364 = vrot.lane.b32.xlu0 %v820, 32
        %v1365 = vpop.permute.xlu0 %1364
        %1366 = vrot.lane.b32.xlu0 %v823, 32
        %v1367 = vpop.permute.xlu0 %1366
        %1368 = vrot.lane.b32.xlu0 %v825, 32
        %v1369 = vpop.permute.xlu0 %1368
        %1370 = vrot.lane.b32.xlu0 %v828, 32
        %v1371 = vpop.permute.xlu0 %1370
        %1372 = vrot.lane.b32.xlu0 %v830, 32
        %v1373 = vpop.permute.xlu0 %1372
        %1374 = vrot.lane.b32.xlu0 %v833, 32
        %v1375 = vpop.permute.xlu0 %1374
        %1376 = vrot.lane.b32.xlu0 %v835, 32
        %v1377 = vpop.permute.xlu0 %1376
        %1378 = vrot.lane.b32.xlu0 %v838, 32
        %v1379 = vpop.permute.xlu0 %1378
        %1380 = vrot.lane.b32.xlu0 %v840, 32
        %v1381 = vpop.permute.xlu0 %1380
        %1382 = vrot.lane.b32.xlu0 %v843, 32
        %v1383 = vpop.permute.xlu0 %1382
        %1384 = vrot.lane.b32.xlu0 %v845, 32
        %v1385 = vpop.permute.xlu0 %1384
        %1386 = vrot.lane.b32.xlu0 %v848, 32
        %v1387 = vpop.permute.xlu0 %1386
        %1388 = vrot.lane.b32.xlu0 %v850, 32
        %v1389 = vpop.permute.xlu0 %1388
        %1390 = vrot.lane.b32.xlu0 %v853, 32
        %v1391 = vpop.permute.xlu0 %1390
        %1392 = vrot.lane.b32.xlu0 %v855, 32
        %v1393 = vpop.permute.xlu0 %1392
        %1394 = vrot.lane.b32.xlu0 %v858, 32
        %v1395 = vpop.permute.xlu0 %1394
        %1396 = vrot.lane.b32.xlu0 %v860, 32
        %v1397 = vpop.permute.xlu0 %1396
        %1398 = vrot.lane.b32.xlu0 %v863, 32
        %v1399 = vpop.permute.xlu0 %1398
        %1400 = vrot.lane.b32.xlu0 %v865, 32
        %v1401 = vpop.permute.xlu0 %1400
        %1402 = vrot.lane.b32.xlu0 %v1339, 32
        %v1403 = vpop.permute.xlu0 %1402
        %1404 = vrot.lane.b32.xlu0 %v1341, 32
        %v1405 = vpop.permute.xlu0 %1404
        %vm1438 = vcmask 326912
        %1439 = vst.msk [vmem:[#allocation3] sm:$0xff] %vm1438, %v1343
        %1440 = vst.msk [vmem:[#allocation3 + $0x8] sm:$0xff] %vm1438, %v1345
        %1441 = vst.msk [vmem:[#allocation3 + $0x10] sm:$0xff] %vm1438, %v1347
        %1442 = vst.msk [vmem:[#allocation3 + $0x18] sm:$0xff] %vm1438, %v1349
        %1443 = vst.msk [vmem:[#allocation3 + $0x20] sm:$0xff] %vm1438, %v1351
        %1444 = vst.msk [vmem:[#allocation3 + $0x28] sm:$0xff] %vm1438, %v1353
        %1445 = vst.msk [vmem:[#allocation3 + $0x30] sm:$0xff] %vm1438, %v1355
        %1446 = vst.msk [vmem:[#allocation3 + $0x38] sm:$0xff] %vm1438, %v1357
        %1447 = vst.msk [vmem:[#allocation3 + $0x40] sm:$0xff] %vm1438, %v1359
        %1448 = vst.msk [vmem:[#allocation3 + $0x48] sm:$0xff] %vm1438, %v1361
        %1449 = vst.msk [vmem:[#allocation3 + $0x50] sm:$0xff] %vm1438, %v1363
        %1450 = vst.msk [vmem:[#allocation3 + $0x58] sm:$0xff] %vm1438, %v1365
        %1451 = vst.msk [vmem:[#allocation3 + $0x60] sm:$0xff] %vm1438, %v1367
        %1452 = vst.msk [vmem:[#allocation3 + $0x68] sm:$0xff] %vm1438, %v1369
        %1453 = vst.msk [vmem:[#allocation3 + $0x70] sm:$0xff] %vm1438, %v1371
        %1454 = vst.msk [vmem:[#allocation3 + $0x78] sm:$0xff] %vm1438, %v1373
        %1455 = vst.msk [vmem:[#allocation3 + $0x80] sm:$0xff] %vm1438, %v1375
        %1456 = vst.msk [vmem:[#allocation3 + $0x88] sm:$0xff] %vm1438, %v1377
        %1457 = vst.msk [vmem:[#allocation3 + $0x90] sm:$0xff] %vm1438, %v1379
        %1458 = vst.msk [vmem:[#allocation3 + $0x98] sm:$0xff] %vm1438, %v1381
        %1459 = vst.msk [vmem:[#allocation3 + $0xa0] sm:$0xff] %vm1438, %v1383
        %1460 = vst.msk [vmem:[#allocation3 + $0xa8] sm:$0xff] %vm1438, %v1385
        %1461 = vst.msk [vmem:[#allocation3 + $0xb0] sm:$0xff] %vm1438, %v1387
        %1462 = vst.msk [vmem:[#allocation3 + $0xb8] sm:$0xff] %vm1438, %v1389
        %1463 = vst.msk [vmem:[#allocation3 + $0xc0] sm:$0xff] %vm1438, %v1391
        %1464 = vst.msk [vmem:[#allocation3 + $0xc8] sm:$0xff] %vm1438, %v1393
        %1465 = vst.msk [vmem:[#allocation3 + $0xd0] sm:$0xff] %vm1438, %v1395
        %1466 = vst.msk [vmem:[#allocation3 + $0xd8] sm:$0xff] %vm1438, %v1397
        %1467 = vst.msk [vmem:[#allocation3 + $0xe0] sm:$0xff] %vm1438, %v1399
        %1468 = vst.msk [vmem:[#allocation3 + $0xe8] sm:$0xff] %vm1438, %v1401
        %1469 = vst.msk [vmem:[#allocation3 + $0xf0] sm:$0xff] %vm1438, %v1403
        %1470 = vst.msk [vmem:[#allocation3 + $0xf8] sm:$0xff] %vm1438, %v1405
        %v1471 = vrot.slane %v699, 2
        %v1472 = vrot.slane %v700, 2
        %v1473 = vsel %vm995, %v1471, %v1472
        %v1474 = vrot.slane %v701, 2
        %v1475 = vsel %vm995, %v1472, %v1474
        %1476 = vrot.lane.b32.xlu0 %v1003, 40
        %v1477 = vpop.permute.xlu0 %1476
        %1478 = vrot.lane.b32.xlu0 %v1005, 40
        %v1479 = vpop.permute.xlu0 %1478
        %1480 = vrot.lane.b32.xlu0 %v1008, 40
        %v1481 = vpop.permute.xlu0 %1480
        %1482 = vrot.lane.b32.xlu0 %v1010, 40
        %v1483 = vpop.permute.xlu0 %1482
        %1484 = vrot.lane.b32.xlu0 %v1013, 40
        %v1485 = vpop.permute.xlu0 %1484
        %1486 = vrot.lane.b32.xlu0 %v1015, 40
        %v1487 = vpop.permute.xlu0 %1486
        %1488 = vrot.lane.b32.xlu0 %v1018, 40
        %v1489 = vpop.permute.xlu0 %1488
        %1490 = vrot.lane.b32.xlu0 %v1020, 40
        %v1491 = vpop.permute.xlu0 %1490
        %1492 = vrot.lane.b32.xlu0 %v1023, 40
        %v1493 = vpop.permute.xlu0 %1492
        %1494 = vrot.lane.b32.xlu0 %v1025, 40
        %v1495 = vpop.permute.xlu0 %1494
        %1496 = vrot.lane.b32.xlu0 %v1028, 40
        %v1497 = vpop.permute.xlu0 %1496
        %1498 = vrot.lane.b32.xlu0 %v1030, 40
        %v1499 = vpop.permute.xlu0 %1498
        %1500 = vrot.lane.b32.xlu0 %v1033, 40
        %v1501 = vpop.permute.xlu0 %1500
        %1502 = vrot.lane.b32.xlu0 %v1035, 40
        %v1503 = vpop.permute.xlu0 %1502
        %1504 = vrot.lane.b32.xlu0 %v1038, 40
        %v1505 = vpop.permute.xlu0 %1504
        %1506 = vrot.lane.b32.xlu0 %v1040, 40
        %v1507 = vpop.permute.xlu0 %1506
        %1508 = vrot.lane.b32.xlu0 %v1043, 40
        %v1509 = vpop.permute.xlu0 %1508
        %1510 = vrot.lane.b32.xlu0 %v1045, 40
        %v1511 = vpop.permute.xlu0 %1510
        %1512 = vrot.lane.b32.xlu0 %v1048, 40
        %v1513 = vpop.permute.xlu0 %1512
        %1514 = vrot.lane.b32.xlu0 %v1050, 40
        %v1515 = vpop.permute.xlu0 %1514
        %1516 = vrot.lane.b32.xlu0 %v1053, 40
        %v1517 = vpop.permute.xlu0 %1516
        %1518 = vrot.lane.b32.xlu0 %v1055, 40
        %v1519 = vpop.permute.xlu0 %1518
        %1520 = vrot.lane.b32.xlu0 %v1058, 40
        %v1521 = vpop.permute.xlu0 %1520
        %1522 = vrot.lane.b32.xlu0 %v1060, 40
        %v1523 = vpop.permute.xlu0 %1522
        %1524 = vrot.lane.b32.xlu0 %v1063, 40
        %v1525 = vpop.permute.xlu0 %1524
        %1526 = vrot.lane.b32.xlu0 %v1065, 40
        %v1527 = vpop.permute.xlu0 %1526
        %1528 = vrot.lane.b32.xlu0 %v1068, 40
        %v1529 = vpop.permute.xlu0 %1528
        %1530 = vrot.lane.b32.xlu0 %v1070, 40
        %v1531 = vpop.permute.xlu0 %1530
        %1532 = vrot.lane.b32.xlu0 %v1073, 40
        %v1533 = vpop.permute.xlu0 %1532
        %1534 = vrot.lane.b32.xlu0 %v1075, 40
        %v1535 = vpop.permute.xlu0 %1534
        %1536 = vrot.lane.b32.xlu0 %v1473, 40
        %v1537 = vpop.permute.xlu0 %1536
        %1538 = vrot.lane.b32.xlu0 %v1475, 40
        %v1539 = vpop.permute.xlu0 %1538
        %vm1572 = vcmask 392512
        %1573 = vst.msk [vmem:[#allocation3] sm:$0xff] %vm1572, %v1477
        %1574 = vst.msk [vmem:[#allocation3 + $0x8] sm:$0xff] %vm1572, %v1479
        %1575 = vst.msk [vmem:[#allocation3 + $0x10] sm:$0xff] %vm1572, %v1481
        %1576 = vst.msk [vmem:[#allocation3 + $0x18] sm:$0xff] %vm1572, %v1483
        %1577 = vst.msk [vmem:[#allocation3 + $0x20] sm:$0xff] %vm1572, %v1485
        %1578 = vst.msk [vmem:[#allocation3 + $0x28] sm:$0xff] %vm1572, %v1487
        %1579 = vst.msk [vmem:[#allocation3 + $0x30] sm:$0xff] %vm1572, %v1489
        %1580 = vst.msk [vmem:[#allocation3 + $0x38] sm:$0xff] %vm1572, %v1491
        %1581 = vst.msk [vmem:[#allocation3 + $0x40] sm:$0xff] %vm1572, %v1493
        %1582 = vst.msk [vmem:[#allocation3 + $0x48] sm:$0xff] %vm1572, %v1495
        %1583 = vst.msk [vmem:[#allocation3 + $0x50] sm:$0xff] %vm1572, %v1497
        %1584 = vst.msk [vmem:[#allocation3 + $0x58] sm:$0xff] %vm1572, %v1499
        %1585 = vst.msk [vmem:[#allocation3 + $0x60] sm:$0xff] %vm1572, %v1501
        %1586 = vst.msk [vmem:[#allocation3 + $0x68] sm:$0xff] %vm1572, %v1503
        %1587 = vst.msk [vmem:[#allocation3 + $0x70] sm:$0xff] %vm1572, %v1505
        %1588 = vst.msk [vmem:[#allocation3 + $0x78] sm:$0xff] %vm1572, %v1507
        %1589 = vst.msk [vmem:[#allocation3 + $0x80] sm:$0xff] %vm1572, %v1509
        %1590 = vst.msk [vmem:[#allocation3 + $0x88] sm:$0xff] %vm1572, %v1511
        %1591 = vst.msk [vmem:[#allocation3 + $0x90] sm:$0xff] %vm1572, %v1513
        %1592 = vst.msk [vmem:[#allocation3 + $0x98] sm:$0xff] %vm1572, %v1515
        %1593 = vst.msk [vmem:[#allocation3 + $0xa0] sm:$0xff] %vm1572, %v1517
        %1594 = vst.msk [vmem:[#allocation3 + $0xa8] sm:$0xff] %vm1572, %v1519
        %1595 = vst.msk [vmem:[#allocation3 + $0xb0] sm:$0xff] %vm1572, %v1521
        %1596 = vst.msk [vmem:[#allocation3 + $0xb8] sm:$0xff] %vm1572, %v1523
        %1597 = vst.msk [vmem:[#allocation3 + $0xc0] sm:$0xff] %vm1572, %v1525
        %1598 = vst.msk [vmem:[#allocation3 + $0xc8] sm:$0xff] %vm1572, %v1527
        %1599 = vst.msk [vmem:[#allocation3 + $0xd0] sm:$0xff] %vm1572, %v1529
        %1600 = vst.msk [vmem:[#allocation3 + $0xd8] sm:$0xff] %vm1572, %v1531
        %1601 = vst.msk [vmem:[#allocation3 + $0xe0] sm:$0xff] %vm1572, %v1533
        %1602 = vst.msk [vmem:[#allocation3 + $0xe8] sm:$0xff] %vm1572, %v1535
        %1603 = vst.msk [vmem:[#allocation3 + $0xf0] sm:$0xff] %vm1572, %v1537
        %1604 = vst.msk [vmem:[#allocation3 + $0xf8] sm:$0xff] %vm1572, %v1539
        %1607 = vrot.lane.b32.xlu0 %v657, 48
        %v1608 = vpop.permute.xlu0 %1607
        %1609 = vrot.lane.b32.xlu0 %v658, 48
        %v1610 = vpop.permute.xlu0 %1609
        %1611 = vrot.lane.b32.xlu0 %v660, 48
        %v1612 = vpop.permute.xlu0 %1611
        %1613 = vrot.lane.b32.xlu0 %v661, 48
        %v1614 = vpop.permute.xlu0 %1613
        %1615 = vrot.lane.b32.xlu0 %v663, 48
        %v1616 = vpop.permute.xlu0 %1615
        %1617 = vrot.lane.b32.xlu0 %v664, 48
        %v1618 = vpop.permute.xlu0 %1617
        %1619 = vrot.lane.b32.xlu0 %v666, 48
        %v1620 = vpop.permute.xlu0 %1619
        %1621 = vrot.lane.b32.xlu0 %v667, 48
        %v1622 = vpop.permute.xlu0 %1621
        %1623 = vrot.lane.b32.xlu0 %v669, 48
        %v1624 = vpop.permute.xlu0 %1623
        %1625 = vrot.lane.b32.xlu0 %v670, 48
        %v1626 = vpop.permute.xlu0 %1625
        %1627 = vrot.lane.b32.xlu0 %v672, 48
        %v1628 = vpop.permute.xlu0 %1627
        %1629 = vrot.lane.b32.xlu0 %v673, 48
        %v1630 = vpop.permute.xlu0 %1629
        %1631 = vrot.lane.b32.xlu0 %v675, 48
        %v1632 = vpop.permute.xlu0 %1631
        %1633 = vrot.lane.b32.xlu0 %v676, 48
        %v1634 = vpop.permute.xlu0 %1633
        %1635 = vrot.lane.b32.xlu0 %v678, 48
        %v1636 = vpop.permute.xlu0 %1635
        %1637 = vrot.lane.b32.xlu0 %v679, 48
        %v1638 = vpop.permute.xlu0 %1637
        %1639 = vrot.lane.b32.xlu0 %v681, 48
        %v1640 = vpop.permute.xlu0 %1639
        %1641 = vrot.lane.b32.xlu0 %v682, 48
        %v1642 = vpop.permute.xlu0 %1641
        %1643 = vrot.lane.b32.xlu0 %v684, 48
        %v1644 = vpop.permute.xlu0 %1643
        %1645 = vrot.lane.b32.xlu0 %v685, 48
        %v1646 = vpop.permute.xlu0 %1645
        %1647 = vrot.lane.b32.xlu0 %v687, 48
        %v1648 = vpop.permute.xlu0 %1647
        %1649 = vrot.lane.b32.xlu0 %v688, 48
        %v1650 = vpop.permute.xlu0 %1649
        %1651 = vrot.lane.b32.xlu0 %v690, 48
        %v1652 = vpop.permute.xlu0 %1651
        %1653 = vrot.lane.b32.xlu0 %v691, 48
        %v1654 = vpop.permute.xlu0 %1653
        %1655 = vrot.lane.b32.xlu0 %v693, 48
        %v1656 = vpop.permute.xlu0 %1655
        %1657 = vrot.lane.b32.xlu0 %v694, 48
        %v1658 = vpop.permute.xlu0 %1657
        %1659 = vrot.lane.b32.xlu0 %v696, 48
        %v1660 = vpop.permute.xlu0 %1659
        %1661 = vrot.lane.b32.xlu0 %v697, 48
        %v1662 = vpop.permute.xlu0 %1661
        %1663 = vrot.lane.b32.xlu0 %v699, 48
        %v1664 = vpop.permute.xlu0 %1663
        %1665 = vrot.lane.b32.xlu0 %v700, 48
        %v1666 = vpop.permute.xlu0 %1665
        %1667 = vrot.lane.b32.xlu0 %v702, 48
        %v1668 = vpop.permute.xlu0 %1667
        %1669 = vrot.lane.b32.xlu0 %v703, 48
        %v1670 = vpop.permute.xlu0 %1669
        %vm1703 = vcmask 458112
        %1704 = vst.msk [vmem:[#allocation3] sm:$0xff] %vm1703, %v1608
        %1705 = vst.msk [vmem:[#allocation3 + $0x8] sm:$0xff] %vm1703, %v1610
        %1706 = vst.msk [vmem:[#allocation3 + $0x10] sm:$0xff] %vm1703, %v1612
        %1707 = vst.msk [vmem:[#allocation3 + $0x18] sm:$0xff] %vm1703, %v1614
        %1708 = vst.msk [vmem:[#allocation3 + $0x20] sm:$0xff] %vm1703, %v1616
        %1709 = vst.msk [vmem:[#allocation3 + $0x28] sm:$0xff] %vm1703, %v1618
        %1710 = vst.msk [vmem:[#allocation3 + $0x30] sm:$0xff] %vm1703, %v1620
        %1711 = vst.msk [vmem:[#allocation3 + $0x38] sm:$0xff] %vm1703, %v1622
        %1712 = vst.msk [vmem:[#allocation3 + $0x40] sm:$0xff] %vm1703, %v1624
        %1713 = vst.msk [vmem:[#allocation3 + $0x48] sm:$0xff] %vm1703, %v1626
        %1714 = vst.msk [vmem:[#allocation3 + $0x50] sm:$0xff] %vm1703, %v1628
        %1715 = vst.msk [vmem:[#allocation3 + $0x58] sm:$0xff] %vm1703, %v1630
        %1716 = vst.msk [vmem:[#allocation3 + $0x60] sm:$0xff] %vm1703, %v1632
        %1717 = vst.msk [vmem:[#allocation3 + $0x68] sm:$0xff] %vm1703, %v1634
        %1718 = vst.msk [vmem:[#allocation3 + $0x70] sm:$0xff] %vm1703, %v1636
        %1719 = vst.msk [vmem:[#allocation3 + $0x78] sm:$0xff] %vm1703, %v1638
        %1720 = vst.msk [vmem:[#allocation3 + $0x80] sm:$0xff] %vm1703, %v1640
        %1721 = vst.msk [vmem:[#allocation3 + $0x88] sm:$0xff] %vm1703, %v1642
        %1722 = vst.msk [vmem:[#allocation3 + $0x90] sm:$0xff] %vm1703, %v1644
        %1723 = vst.msk [vmem:[#allocation3 + $0x98] sm:$0xff] %vm1703, %v1646
        %1724 = vst.msk [vmem:[#allocation3 + $0xa0] sm:$0xff] %vm1703, %v1648
        %1725 = vst.msk [vmem:[#allocation3 + $0xa8] sm:$0xff] %vm1703, %v1650
        %1726 = vst.msk [vmem:[#allocation3 + $0xb0] sm:$0xff] %vm1703, %v1652
        %1727 = vst.msk [vmem:[#allocation3 + $0xb8] sm:$0xff] %vm1703, %v1654
        %1728 = vst.msk [vmem:[#allocation3 + $0xc0] sm:$0xff] %vm1703, %v1656
        %1729 = vst.msk [vmem:[#allocation3 + $0xc8] sm:$0xff] %vm1703, %v1658
        %1730 = vst.msk [vmem:[#allocation3 + $0xd0] sm:$0xff] %vm1703, %v1660
        %1731 = vst.msk [vmem:[#allocation3 + $0xd8] sm:$0xff] %vm1703, %v1662
        %1732 = vst.msk [vmem:[#allocation3 + $0xe0] sm:$0xff] %vm1703, %v1664
        %1733 = vst.msk [vmem:[#allocation3 + $0xe8] sm:$0xff] %vm1703, %v1666
        %1734 = vst.msk [vmem:[#allocation3 + $0xf0] sm:$0xff] %vm1703, %v1668
        %1735 = vst.msk [vmem:[#allocation3 + $0xf8] sm:$0xff] %vm1703, %v1670
        %v1737 = vrot.slane %v702, 1
        %v1738 = vrot.slane %v703, 1
        %v1739 = vsel %vm785, %v1737, %v1738
        %v1740 = vrot.slane %v704, 1
        %v1741 = vsel %vm785, %v1738, %v1740
        %1742 = vrot.lane.b32.xlu0 %v798, 56
        %v1743 = vpop.permute.xlu0 %1742
        %1744 = vrot.lane.b32.xlu0 %v800, 56
        %v1745 = vpop.permute.xlu0 %1744
        %1746 = vrot.lane.b32.xlu0 %v803, 56
        %v1747 = vpop.permute.xlu0 %1746
        %1748 = vrot.lane.b32.xlu0 %v805, 56
        %v1749 = vpop.permute.xlu0 %1748
        %1750 = vrot.lane.b32.xlu0 %v808, 56
        %v1751 = vpop.permute.xlu0 %1750
        %1752 = vrot.lane.b32.xlu0 %v810, 56
        %v1753 = vpop.permute.xlu0 %1752
        %1754 = vrot.lane.b32.xlu0 %v813, 56
        %v1755 = vpop.permute.xlu0 %1754
        %1756 = vrot.lane.b32.xlu0 %v815, 56
        %v1757 = vpop.permute.xlu0 %1756
        %1758 = vrot.lane.b32.xlu0 %v818, 56
        %v1759 = vpop.permute.xlu0 %1758
        %1760 = vrot.lane.b32.xlu0 %v820, 56
        %v1761 = vpop.permute.xlu0 %1760
        %1762 = vrot.lane.b32.xlu0 %v823, 56
        %v1763 = vpop.permute.xlu0 %1762
        %1764 = vrot.lane.b32.xlu0 %v825, 56
        %v1765 = vpop.permute.xlu0 %1764
        %1766 = vrot.lane.b32.xlu0 %v828, 56
        %v1767 = vpop.permute.xlu0 %1766
        %1768 = vrot.lane.b32.xlu0 %v830, 56
        %v1769 = vpop.permute.xlu0 %1768
        %1770 = vrot.lane.b32.xlu0 %v833, 56
        %v1771 = vpop.permute.xlu0 %1770
        %1772 = vrot.lane.b32.xlu0 %v835, 56
        %v1773 = vpop.permute.xlu0 %1772
        %1774 = vrot.lane.b32.xlu0 %v838, 56
        %v1775 = vpop.permute.xlu0 %1774
        %1776 = vrot.lane.b32.xlu0 %v840, 56
        %v1777 = vpop.permute.xlu0 %1776
        %1778 = vrot.lane.b32.xlu0 %v843, 56
        %v1779 = vpop.permute.xlu0 %1778
        %1780 = vrot.lane.b32.xlu0 %v845, 56
        %v1781 = vpop.permute.xlu0 %1780
        %1782 = vrot.lane.b32.xlu0 %v848, 56
        %v1783 = vpop.permute.xlu0 %1782
        %1784 = vrot.lane.b32.xlu0 %v850, 56
        %v1785 = vpop.permute.xlu0 %1784
        %1786 = vrot.lane.b32.xlu0 %v853, 56
        %v1787 = vpop.permute.xlu0 %1786
        %1788 = vrot.lane.b32.xlu0 %v855, 56
        %v1789 = vpop.permute.xlu0 %1788
        %1790 = vrot.lane.b32.xlu0 %v858, 56
        %v1791 = vpop.permute.xlu0 %1790
        %1792 = vrot.lane.b32.xlu0 %v860, 56
        %v1793 = vpop.permute.xlu0 %1792
        %1794 = vrot.lane.b32.xlu0 %v863, 56
        %v1795 = vpop.permute.xlu0 %1794
        %1796 = vrot.lane.b32.xlu0 %v865, 56
        %v1797 = vpop.permute.xlu0 %1796
        %1798 = vrot.lane.b32.xlu0 %v1339, 56
        %v1799 = vpop.permute.xlu0 %1798
        %1800 = vrot.lane.b32.xlu0 %v1341, 56
        %v1801 = vpop.permute.xlu0 %1800
        %1802 = vrot.lane.b32.xlu0 %v1739, 56
        %v1803 = vpop.permute.xlu0 %1802
        %1804 = vrot.lane.b32.xlu0 %v1741, 56
        %v1805 = vpop.permute.xlu0 %1804
        %vm1838 = vcmask 523712
        %1839 = vst.msk [vmem:[#allocation3] sm:$0xff] %vm1838, %v1743
        %1840 = vst.msk [vmem:[#allocation3 + $0x8] sm:$0xff] %vm1838, %v1745
        %1841 = vst.msk [vmem:[#allocation3 + $0x10] sm:$0xff] %vm1838, %v1747
        %1842 = vst.msk [vmem:[#allocation3 + $0x18] sm:$0xff] %vm1838, %v1749
        %1843 = vst.msk [vmem:[#allocation3 + $0x20] sm:$0xff] %vm1838, %v1751
        %1844 = vst.msk [vmem:[#allocation3 + $0x28] sm:$0xff] %vm1838, %v1753
        %1845 = vst.msk [vmem:[#allocation3 + $0x30] sm:$0xff] %vm1838, %v1755
        %1846 = vst.msk [vmem:[#allocation3 + $0x38] sm:$0xff] %vm1838, %v1757
        %1847 = vst.msk [vmem:[#allocation3 + $0x40] sm:$0xff] %vm1838, %v1759
        %1848 = vst.msk [vmem:[#allocation3 + $0x48] sm:$0xff] %vm1838, %v1761
        %1849 = vst.msk [vmem:[#allocation3 + $0x50] sm:$0xff] %vm1838, %v1763
        %1850 = vst.msk [vmem:[#allocation3 + $0x58] sm:$0xff] %vm1838, %v1765
        %1851 = vst.msk [vmem:[#allocation3 + $0x60] sm:$0xff] %vm1838, %v1767
        %1852 = vst.msk [vmem:[#allocation3 + $0x68] sm:$0xff] %vm1838, %v1769
        %1853 = vst.msk [vmem:[#allocation3 + $0x70] sm:$0xff] %vm1838, %v1771
        %1854 = vst.msk [vmem:[#allocation3 + $0x78] sm:$0xff] %vm1838, %v1773
        %1855 = vst.msk [vmem:[#allocation3 + $0x80] sm:$0xff] %vm1838, %v1775
        %1856 = vst.msk [vmem:[#allocation3 + $0x88] sm:$0xff] %vm1838, %v1777
        %1857 = vst.msk [vmem:[#allocation3 + $0x90] sm:$0xff] %vm1838, %v1779
        %1858 = vst.msk [vmem:[#allocation3 + $0x98] sm:$0xff] %vm1838, %v1781
        %1859 = vst.msk [vmem:[#allocation3 + $0xa0] sm:$0xff] %vm1838, %v1783
        %1860 = vst.msk [vmem:[#allocation3 + $0xa8] sm:$0xff] %vm1838, %v1785
        %1861 = vst.msk [vmem:[#allocation3 + $0xb0] sm:$0xff] %vm1838, %v1787
        %1862 = vst.msk [vmem:[#allocation3 + $0xb8] sm:$0xff] %vm1838, %v1789
        %1863 = vst.msk [vmem:[#allocation3 + $0xc0] sm:$0xff] %vm1838, %v1791
        %1864 = vst.msk [vmem:[#allocation3 + $0xc8] sm:$0xff] %vm1838, %v1793
        %1865 = vst.msk [vmem:[#allocation3 + $0xd0] sm:$0xff] %vm1838, %v1795
        %1866 = vst.msk [vmem:[#allocation3 + $0xd8] sm:$0xff] %vm1838, %v1797
        %1867 = vst.msk [vmem:[#allocation3 + $0xe0] sm:$0xff] %vm1838, %v1799
        %1868 = vst.msk [vmem:[#allocation3 + $0xe8] sm:$0xff] %vm1838, %v1801
        %1869 = vst.msk [vmem:[#allocation3 + $0xf0] sm:$0xff] %vm1838, %v1803
        %1870 = vst.msk [vmem:[#allocation3 + $0xf8] sm:$0xff] %vm1838, %v1805
        %v1871 = vrot.slane %v702, 2
        %v1872 = vrot.slane %v703, 2
        %v1873 = vsel %vm995, %v1871, %v1872
        %v1874 = vrot.slane %v704, 2
        %v1875 = vsel %vm995, %v1872, %v1874
        %1876 = vrot.lane.b32.xlu0 %v1008, 64
        %v1877 = vpop.permute.xlu0 %1876
        %1878 = vrot.lane.b32.xlu0 %v1010, 64
        %v1879 = vpop.permute.xlu0 %1878
        %1880 = vrot.lane.b32.xlu0 %v1013, 64
        %v1881 = vpop.permute.xlu0 %1880
        %1882 = vrot.lane.b32.xlu0 %v1015, 64
        %v1883 = vpop.permute.xlu0 %1882
        %1884 = vrot.lane.b32.xlu0 %v1018, 64
        %v1885 = vpop.permute.xlu0 %1884
        %1886 = vrot.lane.b32.xlu0 %v1020, 64
        %v1887 = vpop.permute.xlu0 %1886
        %1888 = vrot.lane.b32.xlu0 %v1023, 64
        %v1889 = vpop.permute.xlu0 %1888
        %1890 = vrot.lane.b32.xlu0 %v1025, 64
        %v1891 = vpop.permute.xlu0 %1890
        %1892 = vrot.lane.b32.xlu0 %v1028, 64
        %v1893 = vpop.permute.xlu0 %1892
        %1894 = vrot.lane.b32.xlu0 %v1030, 64
        %v1895 = vpop.permute.xlu0 %1894
        %1896 = vrot.lane.b32.xlu0 %v1033, 64
        %v1897 = vpop.permute.xlu0 %1896
        %1898 = vrot.lane.b32.xlu0 %v1035, 64
        %v1899 = vpop.permute.xlu0 %1898
        %1900 = vrot.lane.b32.xlu0 %v1038, 64
        %v1901 = vpop.permute.xlu0 %1900
        %1902 = vrot.lane.b32.xlu0 %v1040, 64
        %v1903 = vpop.permute.xlu0 %1902
        %1904 = vrot.lane.b32.xlu0 %v1043, 64
        %v1905 = vpop.permute.xlu0 %1904
        %1906 = vrot.lane.b32.xlu0 %v1045, 64
        %v1907 = vpop.permute.xlu0 %1906
        %1908 = vrot.lane.b32.xlu0 %v1048, 64
        %v1909 = vpop.permute.xlu0 %1908
        %1910 = vrot.lane.b32.xlu0 %v1050, 64
        %v1911 = vpop.permute.xlu0 %1910
        %1912 = vrot.lane.b32.xlu0 %v1053, 64
        %v1913 = vpop.permute.xlu0 %1912
        %1914 = vrot.lane.b32.xlu0 %v1055, 64
        %v1915 = vpop.permute.xlu0 %1914
        %1916 = vrot.lane.b32.xlu0 %v1058, 64
        %v1917 = vpop.permute.xlu0 %1916
        %1918 = vrot.lane.b32.xlu0 %v1060, 64
        %v1919 = vpop.permute.xlu0 %1918
        %1920 = vrot.lane.b32.xlu0 %v1063, 64
        %v1921 = vpop.permute.xlu0 %1920
        %1922 = vrot.lane.b32.xlu0 %v1065, 64
        %v1923 = vpop.permute.xlu0 %1922
        %1924 = vrot.lane.b32.xlu0 %v1068, 64
        %v1925 = vpop.permute.xlu0 %1924
        %1926 = vrot.lane.b32.xlu0 %v1070, 64
        %v1927 = vpop.permute.xlu0 %1926
        %1928 = vrot.lane.b32.xlu0 %v1073, 64
        %v1929 = vpop.permute.xlu0 %1928
        %1930 = vrot.lane.b32.xlu0 %v1075, 64
        %v1931 = vpop.permute.xlu0 %1930
        %1932 = vrot.lane.b32.xlu0 %v1473, 64
        %v1933 = vpop.permute.xlu0 %1932
        %1934 = vrot.lane.b32.xlu0 %v1475, 64
        %v1935 = vpop.permute.xlu0 %1934
        %1936 = vrot.lane.b32.xlu0 %v1873, 64
        %v1937 = vpop.permute.xlu0 %1936
        %1938 = vrot.lane.b32.xlu0 %v1875, 64
        %v1939 = vpop.permute.xlu0 %1938
        %vm1972 = vcmask 589312
        %1973 = vst.msk [vmem:[#allocation3] sm:$0xff] %vm1972, %v1877
        %1974 = vst.msk [vmem:[#allocation3 + $0x8] sm:$0xff] %vm1972, %v1879
        %1975 = vst.msk [vmem:[#allocation3 + $0x10] sm:$0xff] %vm1972, %v1881
        %1976 = vst.msk [vmem:[#allocation3 + $0x18] sm:$0xff] %vm1972, %v1883
        %1977 = vst.msk [vmem:[#allocation3 + $0x20] sm:$0xff] %vm1972, %v1885
        %1978 = vst.msk [vmem:[#allocation3 + $0x28] sm:$0xff] %vm1972, %v1887
        %1979 = vst.msk [vmem:[#allocation3 + $0x30] sm:$0xff] %vm1972, %v1889
        %1980 = vst.msk [vmem:[#allocation3 + $0x38] sm:$0xff] %vm1972, %v1891
        %1981 = vst.msk [vmem:[#allocation3 + $0x40] sm:$0xff] %vm1972, %v1893
        %1982 = vst.msk [vmem:[#allocation3 + $0x48] sm:$0xff] %vm1972, %v1895
        %1983 = vst.msk [vmem:[#allocation3 + $0x50] sm:$0xff] %vm1972, %v1897
        %1984 = vst.msk [vmem:[#allocation3 + $0x58] sm:$0xff] %vm1972, %v1899
        %1985 = vst.msk [vmem:[#allocation3 + $0x60] sm:$0xff] %vm1972, %v1901
        %1986 = vst.msk [vmem:[#allocation3 + $0x68] sm:$0xff] %vm1972, %v1903
        %1987 = vst.msk [vmem:[#allocation3 + $0x70] sm:$0xff] %vm1972, %v1905
        %1988 = vst.msk [vmem:[#allocation3 + $0x78] sm:$0xff] %vm1972, %v1907
        %1989 = vst.msk [vmem:[#allocation3 + $0x80] sm:$0xff] %vm1972, %v1909
        %1990 = vst.msk [vmem:[#allocation3 + $0x88] sm:$0xff] %vm1972, %v1911
        %1991 = vst.msk [vmem:[#allocation3 + $0x90] sm:$0xff] %vm1972, %v1913
        %1992 = vst.msk [vmem:[#allocation3 + $0x98] sm:$0xff] %vm1972, %v1915
        %1993 = vst.msk [vmem:[#allocation3 + $0xa0] sm:$0xff] %vm1972, %v1917
        %1994 = vst.msk [vmem:[#allocation3 + $0xa8] sm:$0xff] %vm1972, %v1919
        %1995 = vst.msk [vmem:[#allocation3 + $0xb0] sm:$0xff] %vm1972, %v1921
        %1996 = vst.msk [vmem:[#allocation3 + $0xb8] sm:$0xff] %vm1972, %v1923
        %1997 = vst.msk [vmem:[#allocation3 + $0xc0] sm:$0xff] %vm1972, %v1925
        %1998 = vst.msk [vmem:[#allocation3 + $0xc8] sm:$0xff] %vm1972, %v1927
        %1999 = vst.msk [vmem:[#allocation3 + $0xd0] sm:$0xff] %vm1972, %v1929
        %2000 = vst.msk [vmem:[#allocation3 + $0xd8] sm:$0xff] %vm1972, %v1931
        %2001 = vst.msk [vmem:[#allocation3 + $0xe0] sm:$0xff] %vm1972, %v1933
        %2002 = vst.msk [vmem:[#allocation3 + $0xe8] sm:$0xff] %vm1972, %v1935
        %2003 = vst.msk [vmem:[#allocation3 + $0xf0] sm:$0xff] %vm1972, %v1937
        %2004 = vst.msk [vmem:[#allocation3 + $0xf8] sm:$0xff] %vm1972, %v1939
        %v2005 = vld [vmem:[#allocation3] sm:$0xff]
        %v2006 = vld [vmem:[#allocation3 + $0x8] sm:$0xff]
        %v2007 = vld [vmem:[#allocation3 + $0x10] sm:$0xff]
        %v2008 = vld [vmem:[#allocation3 + $0x18] sm:$0xff]
        %v2009 = vld [vmem:[#allocation3 + $0x20] sm:$0xff]
        %v2010 = vld [vmem:[#allocation3 + $0x28] sm:$0xff]
        %v2011 = vld [vmem:[#allocation3 + $0x30] sm:$0xff]
        %v2012 = vld [vmem:[#allocation3 + $0x38] sm:$0xff]
        %v2013 = vld [vmem:[#allocation3 + $0x40] sm:$0xff]
        %v2014 = vld [vmem:[#allocation3 + $0x48] sm:$0xff]
        %v2015 = vld [vmem:[#allocation3 + $0x50] sm:$0xff]
        %v2016 = vld [vmem:[#allocation3 + $0x58] sm:$0xff]
        %v2017 = vld [vmem:[#allocation3 + $0x60] sm:$0xff]
        %v2018 = vld [vmem:[#allocation3 + $0x68] sm:$0xff]
        %v2019 = vld [vmem:[#allocation3 + $0x70] sm:$0xff]
        %v2020 = vld [vmem:[#allocation3 + $0x78] sm:$0xff]
        %v2021 = vld [vmem:[#allocation3 + $0x80] sm:$0xff]
        %v2022 = vld [vmem:[#allocation3 + $0x88] sm:$0xff]
        %v2023 = vld [vmem:[#allocation3 + $0x90] sm:$0xff]
        %v2024 = vld [vmem:[#allocation3 + $0x98] sm:$0xff]
        %v2025 = vld [vmem:[#allocation3 + $0xa0] sm:$0xff]
        %v2026 = vld [vmem:[#allocation3 + $0xa8] sm:$0xff]
        %v2027 = vld [vmem:[#allocation3 + $0xb0] sm:$0xff]
        %v2028 = vld [vmem:[#allocation3 + $0xb8] sm:$0xff]
        %v2029 = vld [vmem:[#allocation3 + $0xc0] sm:$0xff]
        %v2030 = vld [vmem:[#allocation3 + $0xc8] sm:$0xff]
        %v2031 = vld [vmem:[#allocation3 + $0xd0] sm:$0xff]
        %v2032 = vld [vmem:[#allocation3 + $0xd8] sm:$0xff]
        %v2033 = vld [vmem:[#allocation3 + $0xe0] sm:$0xff]
        %v2034 = vld [vmem:[#allocation3 + $0xe8] sm:$0xff]
        %v2035 = vld [vmem:[#allocation3 + $0xf0] sm:$0xff]
        %v2036 = vld [vmem:[#allocation3 + $0xf8] sm:$0xff]
        %v2037 = vld [vmem:[%s2] sm:$0xff]
        %v2038 = vld [vmem:[%s2 + $0x8] sm:$0xff]
        %v2039 = vld [vmem:[%s2 + $0x10] sm:$0xff]
        %v2040 = vld [vmem:[%s2 + $0x18] sm:$0xff]
        %v2041 = vld [vmem:[%s2 + $0x20] sm:$0xff]
        %v2042 = vld [vmem:[%s2 + $0x28] sm:$0xff]
        %v2043 = vld [vmem:[%s2 + $0x30] sm:$0xff]
        %v2044 = vld [vmem:[%s2 + $0x38] sm:$0xff]
        %v2045 = vld [vmem:[%s2 + $0x40] sm:$0xff]
        %v2046 = vld [vmem:[%s3] sm:$0x1]
        %v2048 = vlaneseq
        %v2049 = vshrl.u32 %v2048, 7
        %v2050 = vsub.s32 0, %v2049
        %v2051 = vrot.slane %v2046, %v2050
        %vm2053 = vcmask 588800
        %v2055 = vsel %vm2053, %v2005, 0
        %v2058 = vsel %vm2053, %v2006, 0
        %v2061 = vsel %vm2053, %v2007, 0
        %v2064 = vsel %vm2053, %v2008, 0
        %v2067 = vsel %vm2053, %v2009, 0
        %v2070 = vsel %vm2053, %v2010, 0
        %v2073 = vsel %vm2053, %v2011, 0
        %v2076 = vsel %vm2053, %v2012, 0
        %v2079 = vsel %vm2053, %v2013, 0
        %v2082 = vsel %vm2053, %v2014, 0
        %v2085 = vsel %vm2053, %v2015, 0
        %v2088 = vsel %vm2053, %v2016, 0
        %v2091 = vsel %vm2053, %v2017, 0
        %v2094 = vsel %vm2053, %v2018, 0
        %v2097 = vsel %vm2053, %v2019, 0
        %v2100 = vsel %vm2053, %v2020, 0
        %v2103 = vsel %vm2053, %v2021, 0
        %v2106 = vsel %vm2053, %v2022, 0
        %v2109 = vsel %vm2053, %v2023, 0
        %v2112 = vsel %vm2053, %v2024, 0
        %v2115 = vsel %vm2053, %v2025, 0
        %v2118 = vsel %vm2053, %v2026, 0
        %v2121 = vsel %vm2053, %v2027, 0
        %v2124 = vsel %vm2053, %v2028, 0
        %v2127 = vsel %vm2053, %v2029, 0
        %v2130 = vsel %vm2053, %v2030, 0
        %v2133 = vsel %vm2053, %v2031, 0
        %v2136 = vsel %vm2053, %v2032, 0
        %v2139 = vsel %vm2053, %v2033, 0
        %v2142 = vsel %vm2053, %v2034, 0
        %v2145 = vsel %vm2053, %v2035, 0
        %v2148 = vsel %vm2053, %v2036, 0
        %2150 = vmatprep.subr.mxu0 0.0
        %2151 = vmatpush1.msra.mxu0 0.0
        %2152 = vmatprep.subr.mxu0 0.0
        %2153 = vmatpush1.msra.mxu0 0.0
        %2154 = vmatprep.subr.mxu0 0.0
        %2155 = vmatpush1.msra.mxu0 0.0
        %2156 = vmatprep.subr.mxu0 0.0
        %2157 = vmatpush1.msra.mxu0 0.0
        %2158 = vmatprep.subr.mxu0 0.0
        %2159 = vmatpush1.msra.mxu0 0.0
        %2160 = vmatprep.subr.mxu0 0.0
        %2161 = vmatpush1.msra.mxu0 0.0
        %2162 = vmatprep.subr.mxu0 0.0
        %2163 = vmatpush1.msra.mxu0 0.0
        %2164 = vmatprep.subr.mxu0 0.0
        %2165 = vmatpush1.msra.mxu0 %v2045
        %2166 = vmatprep.subr.mxu0 0.0
        %2167 = vmatpush1.msra.mxu0 %v2044
        %2168 = vmatprep.subr.mxu0 0.0
        %2169 = vmatpush1.msra.mxu0 %v2043
        %2170 = vmatprep.subr.mxu0 0.0
        %2171 = vmatpush1.msra.mxu0 %v2042
        %2172 = vmatprep.subr.mxu0 0.0
        %2173 = vmatpush1.msra.mxu0 %v2041
        %2174 = vmatprep.subr.mxu0 0.0
        %2175 = vmatpush1.msra.mxu0 %v2040
        %2176 = vmatprep.subr.mxu0 0.0
        %2177 = vmatpush1.msra.mxu0 %v2039
        %2178 = vmatprep.subr.mxu0 0.0
        %2179 = vmatpush1.msra.mxu0 %v2038
        %2180 = vmatprep.subr.mxu0 0.0
        %2181 = vmatpush1.msra.mxu0 %v2037
        %2182 = vmatprep.subr.mxu0 0.0
        %2183 = vmatpush2.msra.mxu0 0.0
        %2184 = vmatprep.subr.mxu0 0.0
        %2185 = vmatpush2.msra.mxu0 0.0
        %2186 = vmatprep.subr.mxu0 0.0
        %2187 = vmatpush2.msra.mxu0 0.0
        %2188 = vmatprep.subr.mxu0 0.0
        %2189 = vmatpush2.msra.mxu0 0.0
        %2190 = vmatprep.subr.mxu0 0.0
        %2191 = vmatpush2.msra.mxu0 0.0
        %2192 = vmatprep.subr.mxu0 0.0
        %2193 = vmatpush2.msra.mxu0 0.0
        %2194 = vmatprep.subr.mxu0 0.0
        %2195 = vmatpush2.msra.mxu0 0.0
        %2196 = vmatprep.subr.mxu0 0.0
        %2197 = vmatpush2.msra.mxu0 0.0
        %2198 = vmatprep.subr.mxu0 0.0
        %2199 = vmatpush2.msra.mxu0 0.0
        %2200 = vmatprep.subr.mxu0 0.0
        %2201 = vmatpush2.msra.mxu0 0.0
        %2202 = vmatprep.subr.mxu0 0.0
        %2203 = vmatpush2.msra.mxu0 0.0
        %2204 = vmatprep.subr.mxu0 0.0
        %2205 = vmatpush2.msra.mxu0 0.0
        %2206 = vmatprep.subr.mxu0 0.0
        %2207 = vmatpush2.msra.mxu0 0.0
        %2208 = vmatprep.subr.mxu0 0.0
        %2209 = vmatpush2.msra.mxu0 0.0
        %2210 = vmatprep.subr.mxu0 0.0
        %2211 = vmatpush2.msra.mxu0 0.0
        %2212 = vmatprep.subr.mxu0 0.0
        %2213 = vmatpush2.msra.mxu0 0.0
        %2214 = vmatprep.mubr.f32.mxu0 0.0
        %2215 = vmatmul.mubr.f32.gmra.mxu0 %v2055
        %v2216 = vpop.f32.mrf.mxu0
        %v2217 = vadd.f32 %v2051, %v2216
        %v2218 = vpop.f32.mrf.mxu0
        %2219 = vmatprep.mubr.f32.mxu0 0.0
        %2220 = vmatmul.mubr.f32.gmra.mxu0 %v2058
        %v2221 = vpop.f32.mrf.mxu0
        %v2222 = vadd.f32 %v2051, %v2221
        %v2223 = vpop.f32.mrf.mxu0
        %2224 = vmatprep.mubr.f32.mxu0 0.0
        %2225 = vmatmul.mubr.f32.gmra.mxu0 %v2061
        %v2226 = vpop.f32.mrf.mxu0
        %v2227 = vadd.f32 %v2051, %v2226
        %v2228 = vpop.f32.mrf.mxu0
        %2229 = vmatprep.mubr.f32.mxu0 0.0
        %2230 = vmatmul.mubr.f32.gmra.mxu0 %v2064
        %v2231 = vpop.f32.mrf.mxu0
        %v2232 = vadd.f32 %v2051, %v2231
        %v2233 = vpop.f32.mrf.mxu0
        %2234 = vmatprep.mubr.f32.mxu0 0.0
        %2235 = vmatmul.mubr.f32.gmra.mxu0 %v2067
        %v2236 = vpop.f32.mrf.mxu0
        %v2237 = vadd.f32 %v2051, %v2236
        %v2238 = vpop.f32.mrf.mxu0
        %2239 = vmatprep.mubr.f32.mxu0 0.0
        %2240 = vmatmul.mubr.f32.gmra.mxu0 %v2070
        %v2241 = vpop.f32.mrf.mxu0
        %v2242 = vadd.f32 %v2051, %v2241
        %v2243 = vpop.f32.mrf.mxu0
        %2244 = vmatprep.mubr.f32.mxu0 0.0
        %2245 = vmatmul.mubr.f32.gmra.mxu0 %v2073
        %v2246 = vpop.f32.mrf.mxu0
        %v2247 = vadd.f32 %v2051, %v2246
        %v2248 = vpop.f32.mrf.mxu0
        %2249 = vmatprep.mubr.f32.mxu0 0.0
        %2250 = vmatmul.mubr.f32.gmra.mxu0 %v2076
        %v2251 = vpop.f32.mrf.mxu0
        %v2252 = vadd.f32 %v2051, %v2251
        %v2253 = vpop.f32.mrf.mxu0
        %2254 = vmatprep.mubr.f32.mxu0 0.0
        %2255 = vmatmul.mubr.f32.gmra.mxu0 %v2079
        %v2256 = vpop.f32.mrf.mxu0
        %v2257 = vadd.f32 %v2051, %v2256
        %v2258 = vpop.f32.mrf.mxu0
        %2259 = vmatprep.mubr.f32.mxu0 0.0
        %2260 = vmatmul.mubr.f32.gmra.mxu0 %v2082
        %v2261 = vpop.f32.mrf.mxu0
        %v2262 = vadd.f32 %v2051, %v2261
        %v2263 = vpop.f32.mrf.mxu0
        %2264 = vmatprep.mubr.f32.mxu0 0.0
        %2265 = vmatmul.mubr.f32.gmra.mxu0 %v2085
        %v2266 = vpop.f32.mrf.mxu0
        %v2267 = vadd.f32 %v2051, %v2266
        %v2268 = vpop.f32.mrf.mxu0
        %2269 = vmatprep.mubr.f32.mxu0 0.0
        %2270 = vmatmul.mubr.f32.gmra.mxu0 %v2088
        %v2271 = vpop.f32.mrf.mxu0
        %v2272 = vadd.f32 %v2051, %v2271
        %v2273 = vpop.f32.mrf.mxu0
        %2274 = vmatprep.mubr.f32.mxu0 0.0
        %2275 = vmatmul.mubr.f32.gmra.mxu0 %v2091
        %v2276 = vpop.f32.mrf.mxu0
        %v2277 = vadd.f32 %v2051, %v2276
        %v2278 = vpop.f32.mrf.mxu0
        %2279 = vmatprep.mubr.f32.mxu0 0.0
        %2280 = vmatmul.mubr.f32.gmra.mxu0 %v2094
        %v2281 = vpop.f32.mrf.mxu0
        %v2282 = vadd.f32 %v2051, %v2281
        %v2283 = vpop.f32.mrf.mxu0
        %2284 = vmatprep.mubr.f32.mxu0 0.0
        %2285 = vmatmul.mubr.f32.gmra.mxu0 %v2097
        %v2286 = vpop.f32.mrf.mxu0
        %v2287 = vadd.f32 %v2051, %v2286
        %v2288 = vpop.f32.mrf.mxu0
        %2289 = vmatprep.mubr.f32.mxu0 0.0
        %2290 = vmatmul.mubr.f32.gmra.mxu0 %v2100
        %v2291 = vpop.f32.mrf.mxu0
        %v2292 = vadd.f32 %v2051, %v2291
        %v2293 = vpop.f32.mrf.mxu0
        %2294 = vmatprep.mubr.f32.mxu0 0.0
        %2295 = vmatmul.mubr.f32.gmra.mxu0 %v2103
        %v2296 = vpop.f32.mrf.mxu0
        %v2297 = vadd.f32 %v2051, %v2296
        %v2298 = vpop.f32.mrf.mxu0
        %2299 = vmatprep.mubr.f32.mxu0 0.0
        %2300 = vmatmul.mubr.f32.gmra.mxu0 %v2106
        %v2301 = vpop.f32.mrf.mxu0
        %v2302 = vadd.f32 %v2051, %v2301
        %v2303 = vpop.f32.mrf.mxu0
        %2304 = vmatprep.mubr.f32.mxu0 0.0
        %2305 = vmatmul.mubr.f32.gmra.mxu0 %v2109
        %v2306 = vpop.f32.mrf.mxu0
        %v2307 = vadd.f32 %v2051, %v2306
        %v2308 = vpop.f32.mrf.mxu0
        %2309 = vmatprep.mubr.f32.mxu0 0.0
        %2310 = vmatmul.mubr.f32.gmra.mxu0 %v2112
        %v2311 = vpop.f32.mrf.mxu0
        %v2312 = vadd.f32 %v2051, %v2311
        %v2313 = vpop.f32.mrf.mxu0
        %2314 = vmatprep.mubr.f32.mxu0 0.0
        %2315 = vmatmul.mubr.f32.gmra.mxu0 %v2115
        %v2316 = vpop.f32.mrf.mxu0
        %v2317 = vadd.f32 %v2051, %v2316
        %v2318 = vpop.f32.mrf.mxu0
        %2319 = vmatprep.mubr.f32.mxu0 0.0
        %2320 = vmatmul.mubr.f32.gmra.mxu0 %v2118
        %v2321 = vpop.f32.mrf.mxu0
        %v2322 = vadd.f32 %v2051, %v2321
        %v2323 = vpop.f32.mrf.mxu0
        %2324 = vmatprep.mubr.f32.mxu0 0.0
        %2325 = vmatmul.mubr.f32.gmra.mxu0 %v2121
        %v2326 = vpop.f32.mrf.mxu0
        %v2327 = vadd.f32 %v2051, %v2326
        %v2328 = vpop.f32.mrf.mxu0
        %2329 = vmatprep.mubr.f32.mxu0 0.0
        %2330 = vmatmul.mubr.f32.gmra.mxu0 %v2124
        %v2331 = vpop.f32.mrf.mxu0
        %v2332 = vadd.f32 %v2051, %v2331
        %v2333 = vpop.f32.mrf.mxu0
        %2334 = vmatprep.mubr.f32.mxu0 0.0
        %2335 = vmatmul.mubr.f32.gmra.mxu0 %v2127
        %v2336 = vpop.f32.mrf.mxu0
        %v2337 = vadd.f32 %v2051, %v2336
        %v2338 = vpop.f32.mrf.mxu0
        %2339 = vmatprep.mubr.f32.mxu0 0.0
        %2340 = vmatmul.mubr.f32.gmra.mxu0 %v2130
        %v2341 = vpop.f32.mrf.mxu0
        %v2342 = vadd.f32 %v2051, %v2341
        %v2343 = vpop.f32.mrf.mxu0
        %2344 = vmatprep.mubr.f32.mxu0 0.0
        %2345 = vmatmul.mubr.f32.gmra.mxu0 %v2133
        %v2346 = vpop.f32.mrf.mxu0
        %v2347 = vadd.f32 %v2051, %v2346
        %v2348 = vpop.f32.mrf.mxu0
        %2349 = vmatprep.mubr.f32.mxu0 0.0
        %2350 = vmatmul.mubr.f32.gmra.mxu0 %v2136
        %v2351 = vpop.f32.mrf.mxu0
        %v2352 = vadd.f32 %v2051, %v2351
        %v2353 = vpop.f32.mrf.mxu0
        %2354 = vmatprep.mubr.f32.mxu0 0.0
        %2355 = vmatmul.mubr.f32.gmra.mxu0 %v2139
        %v2356 = vpop.f32.mrf.mxu0
        %v2357 = vadd.f32 %v2051, %v2356
        %v2358 = vpop.f32.mrf.mxu0
        %2359 = vmatprep.mubr.f32.mxu0 0.0
        %2360 = vmatmul.mubr.f32.gmra.mxu0 %v2142
        %v2361 = vpop.f32.mrf.mxu0
        %v2362 = vadd.f32 %v2051, %v2361
        %v2363 = vpop.f32.mrf.mxu0
        %2364 = vmatprep.mubr.f32.mxu0 0.0
        %2365 = vmatmul.mubr.f32.gmra.mxu0 %v2145
        %v2366 = vpop.f32.mrf.mxu0
        %v2367 = vadd.f32 %v2051, %v2366
        %v2368 = vpop.f32.mrf.mxu0
        %2369 = vmatprep.mubr.f32.mxu0 0.0
        %2370 = vmatmul.mubr.f32.gmra.mxu0 %v2148
        %v2371 = vpop.f32.mrf.mxu0
        %v2372 = vadd.f32 %v2051, %v2371
        %v2373 = vpop.f32.mrf.mxu0
        %2374 = vdwg.mxu0
        %v2375 = vmax.f32 %v2217, 0.0
        %v2376 = vmax.f32 %v2222, 0.0
        %v2377 = vmax.f32 %v2227, 0.0
        %v2378 = vmax.f32 %v2232, 0.0
        %v2379 = vmax.f32 %v2237, 0.0
        %v2380 = vmax.f32 %v2242, 0.0
        %v2381 = vmax.f32 %v2247, 0.0
        %v2382 = vmax.f32 %v2252, 0.0
        %v2383 = vmax.f32 %v2257, 0.0
        %v2384 = vmax.f32 %v2262, 0.0
        %v2385 = vmax.f32 %v2267, 0.0
        %v2386 = vmax.f32 %v2272, 0.0
        %v2387 = vmax.f32 %v2277, 0.0
        %v2388 = vmax.f32 %v2282, 0.0
        %v2389 = vmax.f32 %v2287, 0.0
        %v2390 = vmax.f32 %v2292, 0.0
        %v2391 = vmax.f32 %v2297, 0.0
        %v2392 = vmax.f32 %v2302, 0.0
        %v2393 = vmax.f32 %v2307, 0.0
        %v2394 = vmax.f32 %v2312, 0.0
        %v2395 = vmax.f32 %v2317, 0.0
        %v2396 = vmax.f32 %v2322, 0.0
        %v2397 = vmax.f32 %v2327, 0.0
        %v2398 = vmax.f32 %v2332, 0.0
        %v2399 = vmax.f32 %v2337, 0.0
        %v2400 = vmax.f32 %v2342, 0.0
        %v2401 = vmax.f32 %v2347, 0.0
        %v2402 = vmax.f32 %v2352, 0.0
        %v2403 = vmax.f32 %v2357, 0.0
        %v2404 = vmax.f32 %v2362, 0.0
        %v2405 = vmax.f32 %v2367, 0.0
        %v2406 = vmax.f32 %v2372, 0.0
        %2407 = vst.msk [vmem:[%s618 + $0x1] sm:$0xff] %vm476, %v2375
        %2408 = vst.msk [vmem:[%s618 + $0x9] sm:$0xff] %vm476, %v2376
        %2409 = vst.msk [vmem:[%s618 + $0x19] sm:$0xff] %vm476, %v2377
        %2410 = vst.msk [vmem:[%s618 + $0x21] sm:$0xff] %vm476, %v2378
        %2411 = vst.msk [vmem:[%s618 + $0x31] sm:$0xff] %vm476, %v2379
        %2412 = vst.msk [vmem:[%s618 + $0x39] sm:$0xff] %vm476, %v2380
        %2413 = vst.msk [vmem:[%s618 + $0x49] sm:$0xff] %vm476, %v2381
        %2414 = vst.msk [vmem:[%s618 + $0x51] sm:$0xff] %vm476, %v2382
        %2415 = vst.msk [vmem:[%s618 + $0x61] sm:$0xff] %vm476, %v2383
        %2416 = vst.msk [vmem:[%s618 + $0x69] sm:$0xff] %vm476, %v2384
        %2417 = vst.msk [vmem:[%s618 + $0x79] sm:$0xff] %vm476, %v2385
        %2418 = vst.msk [vmem:[%s618 + $0x81] sm:$0xff] %vm476, %v2386
        %2419 = vst.msk [vmem:[%s618 + $0x91] sm:$0xff] %vm476, %v2387
        %2420 = vst.msk [vmem:[%s618 + $0x99] sm:$0xff] %vm476, %v2388
        %2421 = vst.msk [vmem:[%s618 + $0xa9] sm:$0xff] %vm476, %v2389
        %2422 = vst.msk [vmem:[%s618 + $0xb1] sm:$0xff] %vm476, %v2390
        %2423 = vst.msk [vmem:[%s618 + $0xc1] sm:$0xff] %vm476, %v2391
        %2424 = vst.msk [vmem:[%s618 + $0xc9] sm:$0xff] %vm476, %v2392
        %2425 = vst.msk [vmem:[%s618 + $0xd9] sm:$0xff] %vm476, %v2393
        %2426 = vst.msk [vmem:[%s618 + $0xe1] sm:$0xff] %vm476, %v2394
        %2427 = vst.msk [vmem:[%s618 + $0xf1] sm:$0xff] %vm476, %v2395
        %2428 = vst.msk [vmem:[%s618 + $0xf9] sm:$0xff] %vm476, %v2396
        %2429 = vst.msk [vmem:[%s618 + $0x109] sm:$0xff] %vm476, %v2397
        %2430 = vst.msk [vmem:[%s618 + $0x111] sm:$0xff] %vm476, %v2398
        %2431 = vst.msk [vmem:[%s618 + $0x121] sm:$0xff] %vm476, %v2399
        %2432 = vst.msk [vmem:[%s618 + $0x129] sm:$0xff] %vm476, %v2400
        %2433 = vst.msk [vmem:[%s618 + $0x139] sm:$0xff] %vm476, %v2401
        %2434 = vst.msk [vmem:[%s618 + $0x141] sm:$0xff] %vm476, %v2402
        %2435 = vst.msk [vmem:[%s618 + $0x151] sm:$0xff] %vm476, %v2403
        %2436 = vst.msk [vmem:[%s618 + $0x159] sm:$0xff] %vm476, %v2404
        %2437 = vst.msk [vmem:[%s618 + $0x169] sm:$0xff] %vm476, %v2405
        %2438 = vst.msk [vmem:[%s618 + $0x171] sm:$0xff] %vm476, %v2406
        %v2439 = vld [vmem:[#allocation2] sm:$0xff]
        %v2440 = vld [vmem:[#allocation2 + $0x8] sm:$0xff]
        %v2441 = vld [vmem:[#allocation2 + $0x10] sm:$0xff]
        %v2442 = vld [vmem:[#allocation2 + $0x18] sm:$0xff]
        %v2443 = vld [vmem:[#allocation2 + $0x20] sm:$0xff]
        %v2444 = vld [vmem:[#allocation2 + $0x28] sm:$0xff]
        %v2445 = vld [vmem:[#allocation2 + $0x30] sm:$0xff]
        %v2446 = vld [vmem:[#allocation2 + $0x38] sm:$0xff]
        %v2447 = vld [vmem:[#allocation2 + $0x40] sm:$0xff]
        %v2448 = vld [vmem:[#allocation2 + $0x48] sm:$0xff]
        %v2449 = vld [vmem:[#allocation2 + $0x50] sm:$0xff]
        %v2450 = vld [vmem:[#allocation2 + $0x58] sm:$0xff]
        %v2451 = vld [vmem:[#allocation2 + $0x60] sm:$0xff]
        %v2452 = vld [vmem:[#allocation2 + $0x68] sm:$0xff]
        %v2453 = vld [vmem:[#allocation2 + $0x70] sm:$0xff]
        %v2454 = vld [vmem:[#allocation2 + $0x78] sm:$0xff]
        %v2455 = vld [vmem:[#allocation2 + $0x80] sm:$0xff]
        %v2456 = vld [vmem:[#allocation2 + $0x88] sm:$0xff]
        %v2457 = vld [vmem:[#allocation2 + $0x90] sm:$0xff]
        %v2458 = vld [vmem:[#allocation2 + $0x98] sm:$0xff]
        %v2459 = vld [vmem:[#allocation2 + $0xa0] sm:$0xff]
        %v2460 = vld [vmem:[#allocation2 + $0xa8] sm:$0xff]
        %v2461 = vld [vmem:[#allocation2 + $0xb0] sm:$0xff]
        %v2462 = vld [vmem:[#allocation2 + $0xb8] sm:$0xff]
        %v2463 = vld [vmem:[#allocation2 + $0xc0] sm:$0xff]
        %v2464 = vld [vmem:[#allocation2 + $0xc8] sm:$0xff]
        %v2465 = vld [vmem:[#allocation2 + $0xd0] sm:$0xff]
        %v2466 = vld [vmem:[#allocation2 + $0xd8] sm:$0xff]
        %v2467 = vld [vmem:[#allocation2 + $0xe0] sm:$0xff]
        %v2468 = vld [vmem:[#allocation2 + $0xe8] sm:$0xff]
        %v2469 = vld [vmem:[#allocation2 + $0xf0] sm:$0xff]
        %v2470 = vld [vmem:[#allocation2 + $0xf8] sm:$0xff]
        %v2471 = vld [vmem:[#allocation2 + $0x100] sm:$0xff]
        %v2472 = vld [vmem:[#allocation2 + $0x108] sm:$0xff]
        %v2473 = vld [vmem:[#allocation2 + $0x110] sm:$0xff]
        %v2474 = vld [vmem:[#allocation2 + $0x118] sm:$0xff]
        %v2475 = vld [vmem:[#allocation2 + $0x120] sm:$0xff]
        %v2476 = vld [vmem:[#allocation2 + $0x128] sm:$0xff]
        %v2477 = vld [vmem:[#allocation2 + $0x130] sm:$0xff]
        %v2478 = vld [vmem:[#allocation2 + $0x138] sm:$0xff]
        %v2479 = vld [vmem:[#allocation2 + $0x140] sm:$0xff]
        %v2480 = vld [vmem:[#allocation2 + $0x148] sm:$0xff]
        %v2481 = vld [vmem:[#allocation2 + $0x150] sm:$0xff]
        %v2482 = vld [vmem:[#allocation2 + $0x158] sm:$0xff]
        %v2483 = vld [vmem:[#allocation2 + $0x160] sm:$0xff]
        %v2484 = vld [vmem:[#allocation2 + $0x168] sm:$0xff]
        %v2485 = vld [vmem:[#allocation2 + $0x170] sm:$0xff]
        %v2486 = vld [vmem:[#allocation2 + $0x178] sm:$0xff]
        %v2487 = vld [vmem:[#allocation2 + $0x180] sm:$0xff]
        %v2488 = vld [vmem:[#allocation2 + $0x188] sm:$0xff]
        %v2489 = vld [vmem:[#allocation2 + $0x190] sm:$0xff]
        %v2490 = vld [vmem:[#allocation2 + $0x198] sm:$0xff]
        %v2491 = vld [vmem:[#allocation2 + $0x1a0] sm:$0xff]
        %v2492 = vld [vmem:[#allocation2 + $0x1a8] sm:$0xff]
        %2493 = vst.msk [vmem:[#allocation3] sm:$0xff] %vm476, %v2439
        %2494 = vst.msk [vmem:[#allocation3 + $0x8] sm:$0xff] %vm476, %v2440
        %2495 = vst.msk [vmem:[#allocation3 + $0x10] sm:$0xff] %vm476, %v2442
        %2496 = vst.msk [vmem:[#allocation3 + $0x18] sm:$0xff] %vm476, %v2443
        %2497 = vst.msk [vmem:[#allocation3 + $0x20] sm:$0xff] %vm476, %v2445
        %2498 = vst.msk [vmem:[#allocation3 + $0x28] sm:$0xff] %vm476, %v2446
        %2499 = vst.msk [vmem:[#allocation3 + $0x30] sm:$0xff] %vm476, %v2448
        %2500 = vst.msk [vmem:[#allocation3 + $0x38] sm:$0xff] %vm476, %v2449
        %2501 = vst.msk [vmem:[#allocation3 + $0x40] sm:$0xff] %vm476, %v2451
        %2502 = vst.msk [vmem:[#allocation3 + $0x48] sm:$0xff] %vm476, %v2452
        %2503 = vst.msk [vmem:[#allocation3 + $0x50] sm:$0xff] %vm476, %v2454
        %2504 = vst.msk [vmem:[#allocation3 + $0x58] sm:$0xff] %vm476, %v2455
        %2505 = vst.msk [vmem:[#allocation3 + $0x60] sm:$0xff] %vm476, %v2457
        %2506 = vst.msk [vmem:[#allocation3 + $0x68] sm:$0xff] %vm476, %v2458
        %2507 = vst.msk [vmem:[#allocation3 + $0x70] sm:$0xff] %vm476, %v2460
        %2508 = vst.msk [vmem:[#allocation3 + $0x78] sm:$0xff] %vm476, %v2461
        %2509 = vst.msk [vmem:[#allocation3 + $0x80] sm:$0xff] %vm476, %v2463
        %2510 = vst.msk [vmem:[#allocation3 + $0x88] sm:$0xff] %vm476, %v2464
        %2511 = vst.msk [vmem:[#allocation3 + $0x90] sm:$0xff] %vm476, %v2466
        %2512 = vst.msk [vmem:[#allocation3 + $0x98] sm:$0xff] %vm476, %v2467
        %2513 = vst.msk [vmem:[#allocation3 + $0xa0] sm:$0xff] %vm476, %v2469
        %2514 = vst.msk [vmem:[#allocation3 + $0xa8] sm:$0xff] %vm476, %v2470
        %2515 = vst.msk [vmem:[#allocation3 + $0xb0] sm:$0xff] %vm476, %v2472
        %2516 = vst.msk [vmem:[#allocation3 + $0xb8] sm:$0xff] %vm476, %v2473
        %2517 = vst.msk [vmem:[#allocation3 + $0xc0] sm:$0xff] %vm476, %v2475
        %2518 = vst.msk [vmem:[#allocation3 + $0xc8] sm:$0xff] %vm476, %v2476
        %2519 = vst.msk [vmem:[#allocation3 + $0xd0] sm:$0xff] %vm476, %v2478
        %2520 = vst.msk [vmem:[#allocation3 + $0xd8] sm:$0xff] %vm476, %v2479
        %2521 = vst.msk [vmem:[#allocation3 + $0xe0] sm:$0xff] %vm476, %v2481
        %2522 = vst.msk [vmem:[#allocation3 + $0xe8] sm:$0xff] %vm476, %v2482
        %2523 = vst.msk [vmem:[#allocation3 + $0xf0] sm:$0xff] %vm476, %v2484
        %2524 = vst.msk [vmem:[#allocation3 + $0xf8] sm:$0xff] %vm476, %v2485
        %v2573 = vrot.slane %v2439, 1
        %v2574 = vrot.slane %v2440, 1
        %v2575 = vsel %vm785, %v2573, %v2574
        %v2576 = vrot.slane %v2441, 1
        %v2577 = vsel %vm785, %v2574, %v2576
        %v2578 = vrot.slane %v2442, 1
        %v2579 = vrot.slane %v2443, 1
        %v2580 = vsel %vm785, %v2578, %v2579
        %v2581 = vrot.slane %v2444, 1
        %v2582 = vsel %vm785, %v2579, %v2581
        %v2583 = vrot.slane %v2445, 1
        %v2584 = vrot.slane %v2446, 1
        %v2585 = vsel %vm785, %v2583, %v2584
        %v2586 = vrot.slane %v2447, 1
        %v2587 = vsel %vm785, %v2584, %v2586
        %v2588 = vrot.slane %v2448, 1
        %v2589 = vrot.slane %v2449, 1
        %v2590 = vsel %vm785, %v2588, %v2589
        %v2591 = vrot.slane %v2450, 1
        %v2592 = vsel %vm785, %v2589, %v2591
        %v2593 = vrot.slane %v2451, 1
        %v2594 = vrot.slane %v2452, 1
        %v2595 = vsel %vm785, %v2593, %v2594
        %v2596 = vrot.slane %v2453, 1
        %v2597 = vsel %vm785, %v2594, %v2596
        %v2598 = vrot.slane %v2454, 1
        %v2599 = vrot.slane %v2455, 1
        %v2600 = vsel %vm785, %v2598, %v2599
        %v2601 = vrot.slane %v2456, 1
        %v2602 = vsel %vm785, %v2599, %v2601
        %v2603 = vrot.slane %v2457, 1
        %v2604 = vrot.slane %v2458, 1
        %v2605 = vsel %vm785, %v2603, %v2604
        %v2606 = vrot.slane %v2459, 1
        %v2607 = vsel %vm785, %v2604, %v2606
        %v2608 = vrot.slane %v2460, 1
        %v2609 = vrot.slane %v2461, 1
        %v2610 = vsel %vm785, %v2608, %v2609
        %v2611 = vrot.slane %v2462, 1
        %v2612 = vsel %vm785, %v2609, %v2611
        %v2613 = vrot.slane %v2463, 1
        %v2614 = vrot.slane %v2464, 1
        %v2615 = vsel %vm785, %v2613, %v2614
        %v2616 = vrot.slane %v2465, 1
        %v2617 = vsel %vm785, %v2614, %v2616
        %v2618 = vrot.slane %v2466, 1
        %v2619 = vrot.slane %v2467, 1
        %v2620 = vsel %vm785, %v2618, %v2619
        %v2621 = vrot.slane %v2468, 1
        %v2622 = vsel %vm785, %v2619, %v2621
        %v2623 = vrot.slane %v2469, 1
        %v2624 = vrot.slane %v2470, 1
        %v2625 = vsel %vm785, %v2623, %v2624
        %v2626 = vrot.slane %v2471, 1
        %v2627 = vsel %vm785, %v2624, %v2626
        %v2628 = vrot.slane %v2472, 1
        %v2629 = vrot.slane %v2473, 1
        %v2630 = vsel %vm785, %v2628, %v2629
        %v2631 = vrot.slane %v2474, 1
        %v2632 = vsel %vm785, %v2629, %v2631
        %v2633 = vrot.slane %v2475, 1
        %v2634 = vrot.slane %v2476, 1
        %v2635 = vsel %vm785, %v2633, %v2634
        %v2636 = vrot.slane %v2477, 1
        %v2637 = vsel %vm785, %v2634, %v2636
        %v2638 = vrot.slane %v2478, 1
        %v2639 = vrot.slane %v2479, 1
        %v2640 = vsel %vm785, %v2638, %v2639
        %v2641 = vrot.slane %v2480, 1
        %v2642 = vsel %vm785, %v2639, %v2641
        %v2643 = vrot.slane %v2481, 1
        %v2644 = vrot.slane %v2482, 1
        %v2645 = vsel %vm785, %v2643, %v2644
        %v2646 = vrot.slane %v2483, 1
        %v2647 = vsel %vm785, %v2644, %v2646
        %v2648 = vrot.slane %v2484, 1
        %v2649 = vrot.slane %v2485, 1
        %v2650 = vsel %vm785, %v2648, %v2649
        %v2651 = vrot.slane %v2486, 1
        %v2652 = vsel %vm785, %v2649, %v2651
        %2653 = vrot.lane.b32.xlu0 %v2575, 8
        %v2654 = vpop.permute.xlu0 %2653
        %2655 = vrot.lane.b32.xlu0 %v2577, 8
        %v2656 = vpop.permute.xlu0 %2655
        %2657 = vrot.lane.b32.xlu0 %v2580, 8
        %v2658 = vpop.permute.xlu0 %2657
        %2659 = vrot.lane.b32.xlu0 %v2582, 8
        %v2660 = vpop.permute.xlu0 %2659
        %2661 = vrot.lane.b32.xlu0 %v2585, 8
        %v2662 = vpop.permute.xlu0 %2661
        %2663 = vrot.lane.b32.xlu0 %v2587, 8
        %v2664 = vpop.permute.xlu0 %2663
        %2665 = vrot.lane.b32.xlu0 %v2590, 8
        %v2666 = vpop.permute.xlu0 %2665
        %2667 = vrot.lane.b32.xlu0 %v2592, 8
        %v2668 = vpop.permute.xlu0 %2667
        %2669 = vrot.lane.b32.xlu0 %v2595, 8
        %v2670 = vpop.permute.xlu0 %2669
        %2671 = vrot.lane.b32.xlu0 %v2597, 8
        %v2672 = vpop.permute.xlu0 %2671
        %2673 = vrot.lane.b32.xlu0 %v2600, 8
        %v2674 = vpop.permute.xlu0 %2673
        %2675 = vrot.lane.b32.xlu0 %v2602, 8
        %v2676 = vpop.permute.xlu0 %2675
        %2677 = vrot.lane.b32.xlu0 %v2605, 8
        %v2678 = vpop.permute.xlu0 %2677
        %2679 = vrot.lane.b32.xlu0 %v2607, 8
        %v2680 = vpop.permute.xlu0 %2679
        %2681 = vrot.lane.b32.xlu0 %v2610, 8
        %v2682 = vpop.permute.xlu0 %2681
        %2683 = vrot.lane.b32.xlu0 %v2612, 8
        %v2684 = vpop.permute.xlu0 %2683
        %2685 = vrot.lane.b32.xlu0 %v2615, 8
        %v2686 = vpop.permute.xlu0 %2685
        %2687 = vrot.lane.b32.xlu0 %v2617, 8
        %v2688 = vpop.permute.xlu0 %2687
        %2689 = vrot.lane.b32.xlu0 %v2620, 8
        %v2690 = vpop.permute.xlu0 %2689
        %2691 = vrot.lane.b32.xlu0 %v2622, 8
        %v2692 = vpop.permute.xlu0 %2691
        %2693 = vrot.lane.b32.xlu0 %v2625, 8
        %v2694 = vpop.permute.xlu0 %2693
        %2695 = vrot.lane.b32.xlu0 %v2627, 8
        %v2696 = vpop.permute.xlu0 %2695
        %2697 = vrot.lane.b32.xlu0 %v2630, 8
        %v2698 = vpop.permute.xlu0 %2697
        %2699 = vrot.lane.b32.xlu0 %v2632, 8
        %v2700 = vpop.permute.xlu0 %2699
        %2701 = vrot.lane.b32.xlu0 %v2635, 8
        %v2702 = vpop.permute.xlu0 %2701
        %2703 = vrot.lane.b32.xlu0 %v2637, 8
        %v2704 = vpop.permute.xlu0 %2703
        %2705 = vrot.lane.b32.xlu0 %v2640, 8
        %v2706 = vpop.permute.xlu0 %2705
        %2707 = vrot.lane.b32.xlu0 %v2642, 8
        %v2708 = vpop.permute.xlu0 %2707
        %2709 = vrot.lane.b32.xlu0 %v2645, 8
        %v2710 = vpop.permute.xlu0 %2709
        %2711 = vrot.lane.b32.xlu0 %v2647, 8
        %v2712 = vpop.permute.xlu0 %2711
        %2713 = vrot.lane.b32.xlu0 %v2650, 8
        %v2714 = vpop.permute.xlu0 %2713
        %2715 = vrot.lane.b32.xlu0 %v2652, 8
        %v2716 = vpop.permute.xlu0 %2715
        %2749 = vst.msk [vmem:[#allocation3] sm:$0xff] %vm962, %v2654
        %2750 = vst.msk [vmem:[#allocation3 + $0x8] sm:$0xff] %vm962, %v2656
        %2751 = vst.msk [vmem:[#allocation3 + $0x10] sm:$0xff] %vm962, %v2658
        %2752 = vst.msk [vmem:[#allocation3 + $0x18] sm:$0xff] %vm962, %v2660
        %2753 = vst.msk [vmem:[#allocation3 + $0x20] sm:$0xff] %vm962, %v2662
        %2754 = vst.msk [vmem:[#allocation3 + $0x28] sm:$0xff] %vm962, %v2664
        %2755 = vst.msk [vmem:[#allocation3 + $0x30] sm:$0xff] %vm962, %v2666
        %2756 = vst.msk [vmem:[#allocation3 + $0x38] sm:$0xff] %vm962, %v2668
        %2757 = vst.msk [vmem:[#allocation3 + $0x40] sm:$0xff] %vm962, %v2670
        %2758 = vst.msk [vmem:[#allocation3 + $0x48] sm:$0xff] %vm962, %v2672
        %2759 = vst.msk [vmem:[#allocation3 + $0x50] sm:$0xff] %vm962, %v2674
        %2760 = vst.msk [vmem:[#allocation3 + $0x58] sm:$0xff] %vm962, %v2676
        %2761 = vst.msk [vmem:[#allocation3 + $0x60] sm:$0xff] %vm962, %v2678
        %2762 = vst.msk [vmem:[#allocation3 + $0x68] sm:$0xff] %vm962, %v2680
        %2763 = vst.msk [vmem:[#allocation3 + $0x70] sm:$0xff] %vm962, %v2682
        %2764 = vst.msk [vmem:[#allocation3 + $0x78] sm:$0xff] %vm962, %v2684
        %2765 = vst.msk [vmem:[#allocation3 + $0x80] sm:$0xff] %vm962, %v2686
        %2766 = vst.msk [vmem:[#allocation3 + $0x88] sm:$0xff] %vm962, %v2688
        %2767 = vst.msk [vmem:[#allocation3 + $0x90] sm:$0xff] %vm962, %v2690
        %2768 = vst.msk [vmem:[#allocation3 + $0x98] sm:$0xff] %vm962, %v2692
        %2769 = vst.msk [vmem:[#allocation3 + $0xa0] sm:$0xff] %vm962, %v2694
        %2770 = vst.msk [vmem:[#allocation3 + $0xa8] sm:$0xff] %vm962, %v2696
        %2771 = vst.msk [vmem:[#allocation3 + $0xb0] sm:$0xff] %vm962, %v2698
        %2772 = vst.msk [vmem:[#allocation3 + $0xb8] sm:$0xff] %vm962, %v2700
        %2773 = vst.msk [vmem:[#allocation3 + $0xc0] sm:$0xff] %vm962, %v2702
        %2774 = vst.msk [vmem:[#allocation3 + $0xc8] sm:$0xff] %vm962, %v2704
        %2775 = vst.msk [vmem:[#allocation3 + $0xd0] sm:$0xff] %vm962, %v2706
        %2776 = vst.msk [vmem:[#allocation3 + $0xd8] sm:$0xff] %vm962, %v2708
        %2777 = vst.msk [vmem:[#allocation3 + $0xe0] sm:$0xff] %vm962, %v2710
        %2778 = vst.msk [vmem:[#allocation3 + $0xe8] sm:$0xff] %vm962, %v2712
        %2779 = vst.msk [vmem:[#allocation3 + $0xf0] sm:$0xff] %vm962, %v2714
        %2780 = vst.msk [vmem:[#allocation3 + $0xf8] sm:$0xff] %vm962, %v2716
        %v2781 = vrot.slane %v2439, 2
        %v2782 = vrot.slane %v2440, 2
        %v2783 = vsel %vm995, %v2781, %v2782
        %v2784 = vrot.slane %v2441, 2
        %v2785 = vsel %vm995, %v2782, %v2784
        %v2786 = vrot.slane %v2442, 2
        %v2787 = vrot.slane %v2443, 2
        %v2788 = vsel %vm995, %v2786, %v2787
        %v2789 = vrot.slane %v2444, 2
        %v2790 = vsel %vm995, %v2787, %v2789
        %v2791 = vrot.slane %v2445, 2
        %v2792 = vrot.slane %v2446, 2
        %v2793 = vsel %vm995, %v2791, %v2792
        %v2794 = vrot.slane %v2447, 2
        %v2795 = vsel %vm995, %v2792, %v2794
        %v2796 = vrot.slane %v2448, 2
        %v2797 = vrot.slane %v2449, 2
        %v2798 = vsel %vm995, %v2796, %v2797
        %v2799 = vrot.slane %v2450, 2
        %v2800 = vsel %vm995, %v2797, %v2799
        %v2801 = vrot.slane %v2451, 2
        %v2802 = vrot.slane %v2452, 2
        %v2803 = vsel %vm995, %v2801, %v2802
        %v2804 = vrot.slane %v2453, 2
        %v2805 = vsel %vm995, %v2802, %v2804
        %v2806 = vrot.slane %v2454, 2
        %v2807 = vrot.slane %v2455, 2
        %v2808 = vsel %vm995, %v2806, %v2807
        %v2809 = vrot.slane %v2456, 2
        %v2810 = vsel %vm995, %v2807, %v2809
        %v2811 = vrot.slane %v2457, 2
        %v2812 = vrot.slane %v2458, 2
        %v2813 = vsel %vm995, %v2811, %v2812
        %v2814 = vrot.slane %v2459, 2
        %v2815 = vsel %vm995, %v2812, %v2814
        %v2816 = vrot.slane %v2460, 2
        %v2817 = vrot.slane %v2461, 2
        %v2818 = vsel %vm995, %v2816, %v2817
        %v2819 = vrot.slane %v2462, 2
        %v2820 = vsel %vm995, %v2817, %v2819
        %v2821 = vrot.slane %v2463, 2
        %v2822 = vrot.slane %v2464, 2
        %v2823 = vsel %vm995, %v2821, %v2822
        %v2824 = vrot.slane %v2465, 2
        %v2825 = vsel %vm995, %v2822, %v2824
        %v2826 = vrot.slane %v2466, 2
        %v2827 = vrot.slane %v2467, 2
        %v2828 = vsel %vm995, %v2826, %v2827
        %v2829 = vrot.slane %v2468, 2
        %v2830 = vsel %vm995, %v2827, %v2829
        %v2831 = vrot.slane %v2469, 2
        %v2832 = vrot.slane %v2470, 2
        %v2833 = vsel %vm995, %v2831, %v2832
        %v2834 = vrot.slane %v2471, 2
        %v2835 = vsel %vm995, %v2832, %v2834
        %v2836 = vrot.slane %v2472, 2
        %v2837 = vrot.slane %v2473, 2
        %v2838 = vsel %vm995, %v2836, %v2837
        %v2839 = vrot.slane %v2474, 2
        %v2840 = vsel %vm995, %v2837, %v2839
        %v2841 = vrot.slane %v2475, 2
        %v2842 = vrot.slane %v2476, 2
        %v2843 = vsel %vm995, %v2841, %v2842
        %v2844 = vrot.slane %v2477, 2
        %v2845 = vsel %vm995, %v2842, %v2844
        %v2846 = vrot.slane %v2478, 2
        %v2847 = vrot.slane %v2479, 2
        %v2848 = vsel %vm995, %v2846, %v2847
        %v2849 = vrot.slane %v2480, 2
        %v2850 = vsel %vm995, %v2847, %v2849
        %v2851 = vrot.slane %v2481, 2
        %v2852 = vrot.slane %v2482, 2
        %v2853 = vsel %vm995, %v2851, %v2852
        %v2854 = vrot.slane %v2483, 2
        %v2855 = vsel %vm995, %v2852, %v2854
        %v2856 = vrot.slane %v2484, 2
        %v2857 = vrot.slane %v2485, 2
        %v2858 = vsel %vm995, %v2856, %v2857
        %v2859 = vrot.slane %v2486, 2
        %v2860 = vsel %vm995, %v2857, %v2859
        %2861 = vrot.lane.b32.xlu0 %v2783, 16
        %v2862 = vpop.permute.xlu0 %2861
        %2863 = vrot.lane.b32.xlu0 %v2785, 16
        %v2864 = vpop.permute.xlu0 %2863
        %2865 = vrot.lane.b32.xlu0 %v2788, 16
        %v2866 = vpop.permute.xlu0 %2865
        %2867 = vrot.lane.b32.xlu0 %v2790, 16
        %v2868 = vpop.permute.xlu0 %2867
        %2869 = vrot.lane.b32.xlu0 %v2793, 16
        %v2870 = vpop.permute.xlu0 %2869
        %2871 = vrot.lane.b32.xlu0 %v2795, 16
        %v2872 = vpop.permute.xlu0 %2871
        %2873 = vrot.lane.b32.xlu0 %v2798, 16
        %v2874 = vpop.permute.xlu0 %2873
        %2875 = vrot.lane.b32.xlu0 %v2800, 16
        %v2876 = vpop.permute.xlu0 %2875
        %2877 = vrot.lane.b32.xlu0 %v2803, 16
        %v2878 = vpop.permute.xlu0 %2877
        %2879 = vrot.lane.b32.xlu0 %v2805, 16
        %v2880 = vpop.permute.xlu0 %2879
        %2881 = vrot.lane.b32.xlu0 %v2808, 16
        %v2882 = vpop.permute.xlu0 %2881
        %2883 = vrot.lane.b32.xlu0 %v2810, 16
        %v2884 = vpop.permute.xlu0 %2883
        %2885 = vrot.lane.b32.xlu0 %v2813, 16
        %v2886 = vpop.permute.xlu0 %2885
        %2887 = vrot.lane.b32.xlu0 %v2815, 16
        %v2888 = vpop.permute.xlu0 %2887
        %2889 = vrot.lane.b32.xlu0 %v2818, 16
        %v2890 = vpop.permute.xlu0 %2889
        %2891 = vrot.lane.b32.xlu0 %v2820, 16
        %v2892 = vpop.permute.xlu0 %2891
        %2893 = vrot.lane.b32.xlu0 %v2823, 16
        %v2894 = vpop.permute.xlu0 %2893
        %2895 = vrot.lane.b32.xlu0 %v2825, 16
        %v2896 = vpop.permute.xlu0 %2895
        %2897 = vrot.lane.b32.xlu0 %v2828, 16
        %v2898 = vpop.permute.xlu0 %2897
        %2899 = vrot.lane.b32.xlu0 %v2830, 16
        %v2900 = vpop.permute.xlu0 %2899
        %2901 = vrot.lane.b32.xlu0 %v2833, 16
        %v2902 = vpop.permute.xlu0 %2901
        %2903 = vrot.lane.b32.xlu0 %v2835, 16
        %v2904 = vpop.permute.xlu0 %2903
        %2905 = vrot.lane.b32.xlu0 %v2838, 16
        %v2906 = vpop.permute.xlu0 %2905
        %2907 = vrot.lane.b32.xlu0 %v2840, 16
        %v2908 = vpop.permute.xlu0 %2907
        %2909 = vrot.lane.b32.xlu0 %v2843, 16
        %v2910 = vpop.permute.xlu0 %2909
        %2911 = vrot.lane.b32.xlu0 %v2845, 16
        %v2912 = vpop.permute.xlu0 %2911
        %2913 = vrot.lane.b32.xlu0 %v2848, 16
        %v2914 = vpop.permute.xlu0 %2913
        %2915 = vrot.lane.b32.xlu0 %v2850, 16
        %v2916 = vpop.permute.xlu0 %2915
        %2917 = vrot.lane.b32.xlu0 %v2853, 16
        %v2918 = vpop.permute.xlu0 %2917
        %2919 = vrot.lane.b32.xlu0 %v2855, 16
        %v2920 = vpop.permute.xlu0 %2919
        %2921 = vrot.lane.b32.xlu0 %v2858, 16
        %v2922 = vpop.permute.xlu0 %2921
        %2923 = vrot.lane.b32.xlu0 %v2860, 16
        %v2924 = vpop.permute.xlu0 %2923
        %2957 = vst.msk [vmem:[#allocation3] sm:$0xff] %vm1172, %v2862
        %2958 = vst.msk [vmem:[#allocation3 + $0x8] sm:$0xff] %vm1172, %v2864
        %2959 = vst.msk [vmem:[#allocation3 + $0x10] sm:$0xff] %vm1172, %v2866
        %2960 = vst.msk [vmem:[#allocation3 + $0x18] sm:$0xff] %vm1172, %v2868
        %2961 = vst.msk [vmem:[#allocation3 + $0x20] sm:$0xff] %vm1172, %v2870
        %2962 = vst.msk [vmem:[#allocation3 + $0x28] sm:$0xff] %vm1172, %v2872
        %2963 = vst.msk [vmem:[#allocation3 + $0x30] sm:$0xff] %vm1172, %v2874
        %2964 = vst.msk [vmem:[#allocation3 + $0x38] sm:$0xff] %vm1172, %v2876
        %2965 = vst.msk [vmem:[#allocation3 + $0x40] sm:$0xff] %vm1172, %v2878
        %2966 = vst.msk [vmem:[#allocation3 + $0x48] sm:$0xff] %vm1172, %v2880
        %2967 = vst.msk [vmem:[#allocation3 + $0x50] sm:$0xff] %vm1172, %v2882
        %2968 = vst.msk [vmem:[#allocation3 + $0x58] sm:$0xff] %vm1172, %v2884
        %2969 = vst.msk [vmem:[#allocation3 + $0x60] sm:$0xff] %vm1172, %v2886
        %2970 = vst.msk [vmem:[#allocation3 + $0x68] sm:$0xff] %vm1172, %v2888
        %2971 = vst.msk [vmem:[#allocation3 + $0x70] sm:$0xff] %vm1172, %v2890
        %2972 = vst.msk [vmem:[#allocation3 + $0x78] sm:$0xff] %vm1172, %v2892
        %2973 = vst.msk [vmem:[#allocation3 + $0x80] sm:$0xff] %vm1172, %v2894
        %2974 = vst.msk [vmem:[#allocation3 + $0x88] sm:$0xff] %vm1172, %v2896
        %2975 = vst.msk [vmem:[#allocation3 + $0x90] sm:$0xff] %vm1172, %v2898
        %2976 = vst.msk [vmem:[#allocation3 + $0x98] sm:$0xff] %vm1172, %v2900
        %2977 = vst.msk [vmem:[#allocation3 + $0xa0] sm:$0xff] %vm1172, %v2902
        %2978 = vst.msk [vmem:[#allocation3 + $0xa8] sm:$0xff] %vm1172, %v2904
        %2979 = vst.msk [vmem:[#allocation3 + $0xb0] sm:$0xff] %vm1172, %v2906
        %2980 = vst.msk [vmem:[#allocation3 + $0xb8] sm:$0xff] %vm1172, %v2908
        %2981 = vst.msk [vmem:[#allocation3 + $0xc0] sm:$0xff] %vm1172, %v2910
        %2982 = vst.msk [vmem:[#allocation3 + $0xc8] sm:$0xff] %vm1172, %v2912
        %2983 = vst.msk [vmem:[#allocation3 + $0xd0] sm:$0xff] %vm1172, %v2914
        %2984 = vst.msk [vmem:[#allocation3 + $0xd8] sm:$0xff] %vm1172, %v2916
        %2985 = vst.msk [vmem:[#allocation3 + $0xe0] sm:$0xff] %vm1172, %v2918
        %2986 = vst.msk [vmem:[#allocation3 + $0xe8] sm:$0xff] %vm1172, %v2920
        %2987 = vst.msk [vmem:[#allocation3 + $0xf0] sm:$0xff] %vm1172, %v2922
        %2988 = vst.msk [vmem:[#allocation3 + $0xf8] sm:$0xff] %vm1172, %v2924
        %2991 = vrot.lane.b32.xlu0 %v2442, 24
        %v2992 = vpop.permute.xlu0 %2991
        %2993 = vrot.lane.b32.xlu0 %v2443, 24
        %v2994 = vpop.permute.xlu0 %2993
        %2995 = vrot.lane.b32.xlu0 %v2445, 24
        %v2996 = vpop.permute.xlu0 %2995
        %2997 = vrot.lane.b32.xlu0 %v2446, 24
        %v2998 = vpop.permute.xlu0 %2997
        %2999 = vrot.lane.b32.xlu0 %v2448, 24
        %v3000 = vpop.permute.xlu0 %2999
        %3001 = vrot.lane.b32.xlu0 %v2449, 24
        %v3002 = vpop.permute.xlu0 %3001
        %3003 = vrot.lane.b32.xlu0 %v2451, 24
        %v3004 = vpop.permute.xlu0 %3003
        %3005 = vrot.lane.b32.xlu0 %v2452, 24
        %v3006 = vpop.permute.xlu0 %3005
        %3007 = vrot.lane.b32.xlu0 %v2454, 24
        %v3008 = vpop.permute.xlu0 %3007
        %3009 = vrot.lane.b32.xlu0 %v2455, 24
        %v3010 = vpop.permute.xlu0 %3009
        %3011 = vrot.lane.b32.xlu0 %v2457, 24
        %v3012 = vpop.permute.xlu0 %3011
        %3013 = vrot.lane.b32.xlu0 %v2458, 24
        %v3014 = vpop.permute.xlu0 %3013
        %3015 = vrot.lane.b32.xlu0 %v2460, 24
        %v3016 = vpop.permute.xlu0 %3015
        %3017 = vrot.lane.b32.xlu0 %v2461, 24
        %v3018 = vpop.permute.xlu0 %3017
        %3019 = vrot.lane.b32.xlu0 %v2463, 24
        %v3020 = vpop.permute.xlu0 %3019
        %3021 = vrot.lane.b32.xlu0 %v2464, 24
        %v3022 = vpop.permute.xlu0 %3021
        %3023 = vrot.lane.b32.xlu0 %v2466, 24
        %v3024 = vpop.permute.xlu0 %3023
        %3025 = vrot.lane.b32.xlu0 %v2467, 24
        %v3026 = vpop.permute.xlu0 %3025
        %3027 = vrot.lane.b32.xlu0 %v2469, 24
        %v3028 = vpop.permute.xlu0 %3027
        %3029 = vrot.lane.b32.xlu0 %v2470, 24
        %v3030 = vpop.permute.xlu0 %3029
        %3031 = vrot.lane.b32.xlu0 %v2472, 24
        %v3032 = vpop.permute.xlu0 %3031
        %3033 = vrot.lane.b32.xlu0 %v2473, 24
        %v3034 = vpop.permute.xlu0 %3033
        %3035 = vrot.lane.b32.xlu0 %v2475, 24
        %v3036 = vpop.permute.xlu0 %3035
        %3037 = vrot.lane.b32.xlu0 %v2476, 24
        %v3038 = vpop.permute.xlu0 %3037
        %3039 = vrot.lane.b32.xlu0 %v2478, 24
        %v3040 = vpop.permute.xlu0 %3039
        %3041 = vrot.lane.b32.xlu0 %v2479, 24
        %v3042 = vpop.permute.xlu0 %3041
        %3043 = vrot.lane.b32.xlu0 %v2481, 24
        %v3044 = vpop.permute.xlu0 %3043
        %3045 = vrot.lane.b32.xlu0 %v2482, 24
        %v3046 = vpop.permute.xlu0 %3045
        %3047 = vrot.lane.b32.xlu0 %v2484, 24
        %v3048 = vpop.permute.xlu0 %3047
        %3049 = vrot.lane.b32.xlu0 %v2485, 24
        %v3050 = vpop.permute.xlu0 %3049
        %3051 = vrot.lane.b32.xlu0 %v2487, 24
        %v3052 = vpop.permute.xlu0 %3051
        %3053 = vrot.lane.b32.xlu0 %v2488, 24
        %v3054 = vpop.permute.xlu0 %3053
        %3087 = vst.msk [vmem:[#allocation3] sm:$0xff] %vm1303, %v2992
        %3088 = vst.msk [vmem:[#allocation3 + $0x8] sm:$0xff] %vm1303, %v2994
        %3089 = vst.msk [vmem:[#allocation3 + $0x10] sm:$0xff] %vm1303, %v2996
        %3090 = vst.msk [vmem:[#allocation3 + $0x18] sm:$0xff] %vm1303, %v2998
        %3091 = vst.msk [vmem:[#allocation3 + $0x20] sm:$0xff] %vm1303, %v3000
        %3092 = vst.msk [vmem:[#allocation3 + $0x28] sm:$0xff] %vm1303, %v3002
        %3093 = vst.msk [vmem:[#allocation3 + $0x30] sm:$0xff] %vm1303, %v3004
        %3094 = vst.msk [vmem:[#allocation3 + $0x38] sm:$0xff] %vm1303, %v3006
        %3095 = vst.msk [vmem:[#allocation3 + $0x40] sm:$0xff] %vm1303, %v3008
        %3096 = vst.msk [vmem:[#allocation3 + $0x48] sm:$0xff] %vm1303, %v3010
        %3097 = vst.msk [vmem:[#allocation3 + $0x50] sm:$0xff] %vm1303, %v3012
        %3098 = vst.msk [vmem:[#allocation3 + $0x58] sm:$0xff] %vm1303, %v3014
        %3099 = vst.msk [vmem:[#allocation3 + $0x60] sm:$0xff] %vm1303, %v3016
        %3100 = vst.msk [vmem:[#allocation3 + $0x68] sm:$0xff] %vm1303, %v3018
        %3101 = vst.msk [vmem:[#allocation3 + $0x70] sm:$0xff] %vm1303, %v3020
        %3102 = vst.msk [vmem:[#allocation3 + $0x78] sm:$0xff] %vm1303, %v3022
        %3103 = vst.msk [vmem:[#allocation3 + $0x80] sm:$0xff] %vm1303, %v3024
        %3104 = vst.msk [vmem:[#allocation3 + $0x88] sm:$0xff] %vm1303, %v3026
        %3105 = vst.msk [vmem:[#allocation3 + $0x90] sm:$0xff] %vm1303, %v3028
        %3106 = vst.msk [vmem:[#allocation3 + $0x98] sm:$0xff] %vm1303, %v3030
        %3107 = vst.msk [vmem:[#allocation3 + $0xa0] sm:$0xff] %vm1303, %v3032
        %3108 = vst.msk [vmem:[#allocation3 + $0xa8] sm:$0xff] %vm1303, %v3034
        %3109 = vst.msk [vmem:[#allocation3 + $0xb0] sm:$0xff] %vm1303, %v3036
        %3110 = vst.msk [vmem:[#allocation3 + $0xb8] sm:$0xff] %vm1303, %v3038
        %3111 = vst.msk [vmem:[#allocation3 + $0xc0] sm:$0xff] %vm1303, %v3040
        %3112 = vst.msk [vmem:[#allocation3 + $0xc8] sm:$0xff] %vm1303, %v3042
        %3113 = vst.msk [vmem:[#allocation3 + $0xd0] sm:$0xff] %vm1303, %v3044
        %3114 = vst.msk [vmem:[#allocation3 + $0xd8] sm:$0xff] %vm1303, %v3046
        %3115 = vst.msk [vmem:[#allocation3 + $0xe0] sm:$0xff] %vm1303, %v3048
        %3116 = vst.msk [vmem:[#allocation3 + $0xe8] sm:$0xff] %vm1303, %v3050
        %3117 = vst.msk [vmem:[#allocation3 + $0xf0] sm:$0xff] %vm1303, %v3052
        %3118 = vst.msk [vmem:[#allocation3 + $0xf8] sm:$0xff] %vm1303, %v3054
        %v3120 = vrot.slane %v2487, 1
        %v3121 = vrot.slane %v2488, 1
        %v3122 = vsel %vm785, %v3120, %v3121
        %v3123 = vrot.slane %v2489, 1
        %v3124 = vsel %vm785, %v3121, %v3123
        %3125 = vrot.lane.b32.xlu0 %v2580, 32
        %v3126 = vpop.permute.xlu0 %3125
        %3127 = vrot.lane.b32.xlu0 %v2582, 32
        %v3128 = vpop.permute.xlu0 %3127
        %3129 = vrot.lane.b32.xlu0 %v2585, 32
        %v3130 = vpop.permute.xlu0 %3129
        %3131 = vrot.lane.b32.xlu0 %v2587, 32
        %v3132 = vpop.permute.xlu0 %3131
        %3133 = vrot.lane.b32.xlu0 %v2590, 32
        %v3134 = vpop.permute.xlu0 %3133
        %3135 = vrot.lane.b32.xlu0 %v2592, 32
        %v3136 = vpop.permute.xlu0 %3135
        %3137 = vrot.lane.b32.xlu0 %v2595, 32
        %v3138 = vpop.permute.xlu0 %3137
        %3139 = vrot.lane.b32.xlu0 %v2597, 32
        %v3140 = vpop.permute.xlu0 %3139
        %3141 = vrot.lane.b32.xlu0 %v2600, 32
        %v3142 = vpop.permute.xlu0 %3141
        %3143 = vrot.lane.b32.xlu0 %v2602, 32
        %v3144 = vpop.permute.xlu0 %3143
        %3145 = vrot.lane.b32.xlu0 %v2605, 32
        %v3146 = vpop.permute.xlu0 %3145
        %3147 = vrot.lane.b32.xlu0 %v2607, 32
        %v3148 = vpop.permute.xlu0 %3147
        %3149 = vrot.lane.b32.xlu0 %v2610, 32
        %v3150 = vpop.permute.xlu0 %3149
        %3151 = vrot.lane.b32.xlu0 %v2612, 32
        %v3152 = vpop.permute.xlu0 %3151
        %3153 = vrot.lane.b32.xlu0 %v2615, 32
        %v3154 = vpop.permute.xlu0 %3153
        %3155 = vrot.lane.b32.xlu0 %v2617, 32
        %v3156 = vpop.permute.xlu0 %3155
        %3157 = vrot.lane.b32.xlu0 %v2620, 32
        %v3158 = vpop.permute.xlu0 %3157
        %3159 = vrot.lane.b32.xlu0 %v2622, 32
        %v3160 = vpop.permute.xlu0 %3159
        %3161 = vrot.lane.b32.xlu0 %v2625, 32
        %v3162 = vpop.permute.xlu0 %3161
        %3163 = vrot.lane.b32.xlu0 %v2627, 32
        %v3164 = vpop.permute.xlu0 %3163
        %3165 = vrot.lane.b32.xlu0 %v2630, 32
        %v3166 = vpop.permute.xlu0 %3165
        %3167 = vrot.lane.b32.xlu0 %v2632, 32
        %v3168 = vpop.permute.xlu0 %3167
        %3169 = vrot.lane.b32.xlu0 %v2635, 32
        %v3170 = vpop.permute.xlu0 %3169
        %3171 = vrot.lane.b32.xlu0 %v2637, 32
        %v3172 = vpop.permute.xlu0 %3171
        %3173 = vrot.lane.b32.xlu0 %v2640, 32
        %v3174 = vpop.permute.xlu0 %3173
        %3175 = vrot.lane.b32.xlu0 %v2642, 32
        %v3176 = vpop.permute.xlu0 %3175
        %3177 = vrot.lane.b32.xlu0 %v2645, 32
        %v3178 = vpop.permute.xlu0 %3177
        %3179 = vrot.lane.b32.xlu0 %v2647, 32
        %v3180 = vpop.permute.xlu0 %3179
        %3181 = vrot.lane.b32.xlu0 %v2650, 32
        %v3182 = vpop.permute.xlu0 %3181
        %3183 = vrot.lane.b32.xlu0 %v2652, 32
        %v3184 = vpop.permute.xlu0 %3183
        %3185 = vrot.lane.b32.xlu0 %v3122, 32
        %v3186 = vpop.permute.xlu0 %3185
        %3187 = vrot.lane.b32.xlu0 %v3124, 32
        %v3188 = vpop.permute.xlu0 %3187
        %3221 = vst.msk [vmem:[#allocation3] sm:$0xff] %vm1438, %v3126
        %3222 = vst.msk [vmem:[#allocation3 + $0x8] sm:$0xff] %vm1438, %v3128
        %3223 = vst.msk [vmem:[#allocation3 + $0x10] sm:$0xff] %vm1438, %v3130
        %3224 = vst.msk [vmem:[#allocation3 + $0x18] sm:$0xff] %vm1438, %v3132
        %3225 = vst.msk [vmem:[#allocation3 + $0x20] sm:$0xff] %vm1438, %v3134
        %3226 = vst.msk [vmem:[#allocation3 + $0x28] sm:$0xff] %vm1438, %v3136
        %3227 = vst.msk [vmem:[#allocation3 + $0x30] sm:$0xff] %vm1438, %v3138
        %3228 = vst.msk [vmem:[#allocation3 + $0x38] sm:$0xff] %vm1438, %v3140
        %3229 = vst.msk [vmem:[#allocation3 + $0x40] sm:$0xff] %vm1438, %v3142
        %3230 = vst.msk [vmem:[#allocation3 + $0x48] sm:$0xff] %vm1438, %v3144
        %3231 = vst.msk [vmem:[#allocation3 + $0x50] sm:$0xff] %vm1438, %v3146
        %3232 = vst.msk [vmem:[#allocation3 + $0x58] sm:$0xff] %vm1438, %v3148
        %3233 = vst.msk [vmem:[#allocation3 + $0x60] sm:$0xff] %vm1438, %v3150
        %3234 = vst.msk [vmem:[#allocation3 + $0x68] sm:$0xff] %vm1438, %v3152
        %3235 = vst.msk [vmem:[#allocation3 + $0x70] sm:$0xff] %vm1438, %v3154
        %3236 = vst.msk [vmem:[#allocation3 + $0x78] sm:$0xff] %vm1438, %v3156
        %3237 = vst.msk [vmem:[#allocation3 + $0x80] sm:$0xff] %vm1438, %v3158
        %3238 = vst.msk [vmem:[#allocation3 + $0x88] sm:$0xff] %vm1438, %v3160
        %3239 = vst.msk [vmem:[#allocation3 + $0x90] sm:$0xff] %vm1438, %v3162
        %3240 = vst.msk [vmem:[#allocation3 + $0x98] sm:$0xff] %vm1438, %v3164
        %3241 = vst.msk [vmem:[#allocation3 + $0xa0] sm:$0xff] %vm1438, %v3166
        %3242 = vst.msk [vmem:[#allocation3 + $0xa8] sm:$0xff] %vm1438, %v3168
        %3243 = vst.msk [vmem:[#allocation3 + $0xb0] sm:$0xff] %vm1438, %v3170
        %3244 = vst.msk [vmem:[#allocation3 + $0xb8] sm:$0xff] %vm1438, %v3172
        %3245 = vst.msk [vmem:[#allocation3 + $0xc0] sm:$0xff] %vm1438, %v3174
        %3246 = vst.msk [vmem:[#allocation3 + $0xc8] sm:$0xff] %vm1438, %v3176
        %3247 = vst.msk [vmem:[#allocation3 + $0xd0] sm:$0xff] %vm1438, %v3178
        %3248 = vst.msk [vmem:[#allocation3 + $0xd8] sm:$0xff] %vm1438, %v3180
        %3249 = vst.msk [vmem:[#allocation3 + $0xe0] sm:$0xff] %vm1438, %v3182
        %3250 = vst.msk [vmem:[#allocation3 + $0xe8] sm:$0xff] %vm1438, %v3184
        %3251 = vst.msk [vmem:[#allocation3 + $0xf0] sm:$0xff] %vm1438, %v3186
        %3252 = vst.msk [vmem:[#allocation3 + $0xf8] sm:$0xff] %vm1438, %v3188
        %v3253 = vrot.slane %v2487, 2
        %v3254 = vrot.slane %v2488, 2
        %v3255 = vsel %vm995, %v3253, %v3254
        %v3256 = vrot.slane %v2489, 2
        %v3257 = vsel %vm995, %v3254, %v3256
        %3258 = vrot.lane.b32.xlu0 %v2788, 40
        %v3259 = vpop.permute.xlu0 %3258
        %3260 = vrot.lane.b32.xlu0 %v2790, 40
        %v3261 = vpop.permute.xlu0 %3260
        %3262 = vrot.lane.b32.xlu0 %v2793, 40
        %v3263 = vpop.permute.xlu0 %3262
        %3264 = vrot.lane.b32.xlu0 %v2795, 40
        %v3265 = vpop.permute.xlu0 %3264
        %3266 = vrot.lane.b32.xlu0 %v2798, 40
        %v3267 = vpop.permute.xlu0 %3266
        %3268 = vrot.lane.b32.xlu0 %v2800, 40
        %v3269 = vpop.permute.xlu0 %3268
        %3270 = vrot.lane.b32.xlu0 %v2803, 40
        %v3271 = vpop.permute.xlu0 %3270
        %3272 = vrot.lane.b32.xlu0 %v2805, 40
        %v3273 = vpop.permute.xlu0 %3272
        %3274 = vrot.lane.b32.xlu0 %v2808, 40
        %v3275 = vpop.permute.xlu0 %3274
        %3276 = vrot.lane.b32.xlu0 %v2810, 40
        %v3277 = vpop.permute.xlu0 %3276
        %3278 = vrot.lane.b32.xlu0 %v2813, 40
        %v3279 = vpop.permute.xlu0 %3278
        %3280 = vrot.lane.b32.xlu0 %v2815, 40
        %v3281 = vpop.permute.xlu0 %3280
        %3282 = vrot.lane.b32.xlu0 %v2818, 40
        %v3283 = vpop.permute.xlu0 %3282
        %3284 = vrot.lane.b32.xlu0 %v2820, 40
        %v3285 = vpop.permute.xlu0 %3284
        %3286 = vrot.lane.b32.xlu0 %v2823, 40
        %v3287 = vpop.permute.xlu0 %3286
        %3288 = vrot.lane.b32.xlu0 %v2825, 40
        %v3289 = vpop.permute.xlu0 %3288
        %3290 = vrot.lane.b32.xlu0 %v2828, 40
        %v3291 = vpop.permute.xlu0 %3290
        %3292 = vrot.lane.b32.xlu0 %v2830, 40
        %v3293 = vpop.permute.xlu0 %3292
        %3294 = vrot.lane.b32.xlu0 %v2833, 40
        %v3295 = vpop.permute.xlu0 %3294
        %3296 = vrot.lane.b32.xlu0 %v2835, 40
        %v3297 = vpop.permute.xlu0 %3296
        %3298 = vrot.lane.b32.xlu0 %v2838, 40
        %v3299 = vpop.permute.xlu0 %3298
        %3300 = vrot.lane.b32.xlu0 %v2840, 40
        %v3301 = vpop.permute.xlu0 %3300
        %3302 = vrot.lane.b32.xlu0 %v2843, 40
        %v3303 = vpop.permute.xlu0 %3302
        %3304 = vrot.lane.b32.xlu0 %v2845, 40
        %v3305 = vpop.permute.xlu0 %3304
        %3306 = vrot.lane.b32.xlu0 %v2848, 40
        %v3307 = vpop.permute.xlu0 %3306
        %3308 = vrot.lane.b32.xlu0 %v2850, 40
        %v3309 = vpop.permute.xlu0 %3308
        %3310 = vrot.lane.b32.xlu0 %v2853, 40
        %v3311 = vpop.permute.xlu0 %3310
        %3312 = vrot.lane.b32.xlu0 %v2855, 40
        %v3313 = vpop.permute.xlu0 %3312
        %3314 = vrot.lane.b32.xlu0 %v2858, 40
        %v3315 = vpop.permute.xlu0 %3314
        %3316 = vrot.lane.b32.xlu0 %v2860, 40
        %v3317 = vpop.permute.xlu0 %3316
        %3318 = vrot.lane.b32.xlu0 %v3255, 40
        %v3319 = vpop.permute.xlu0 %3318
        %3320 = vrot.lane.b32.xlu0 %v3257, 40
        %v3321 = vpop.permute.xlu0 %3320
        %3354 = vst.msk [vmem:[#allocation3] sm:$0xff] %vm1572, %v3259
        %3355 = vst.msk [vmem:[#allocation3 + $0x8] sm:$0xff] %vm1572, %v3261
        %3356 = vst.msk [vmem:[#allocation3 + $0x10] sm:$0xff] %vm1572, %v3263
        %3357 = vst.msk [vmem:[#allocation3 + $0x18] sm:$0xff] %vm1572, %v3265
        %3358 = vst.msk [vmem:[#allocation3 + $0x20] sm:$0xff] %vm1572, %v3267
        %3359 = vst.msk [vmem:[#allocation3 + $0x28] sm:$0xff] %vm1572, %v3269
        %3360 = vst.msk [vmem:[#allocation3 + $0x30] sm:$0xff] %vm1572, %v3271
        %3361 = vst.msk [vmem:[#allocation3 + $0x38] sm:$0xff] %vm1572, %v3273
        %3362 = vst.msk [vmem:[#allocation3 + $0x40] sm:$0xff] %vm1572, %v3275
        %3363 = vst.msk [vmem:[#allocation3 + $0x48] sm:$0xff] %vm1572, %v3277
        %3364 = vst.msk [vmem:[#allocation3 + $0x50] sm:$0xff] %vm1572, %v3279
        %3365 = vst.msk [vmem:[#allocation3 + $0x58] sm:$0xff] %vm1572, %v3281
        %3366 = vst.msk [vmem:[#allocation3 + $0x60] sm:$0xff] %vm1572, %v3283
        %3367 = vst.msk [vmem:[#allocation3 + $0x68] sm:$0xff] %vm1572, %v3285
        %3368 = vst.msk [vmem:[#allocation3 + $0x70] sm:$0xff] %vm1572, %v3287
        %3369 = vst.msk [vmem:[#allocation3 + $0x78] sm:$0xff] %vm1572, %v3289
        %3370 = vst.msk [vmem:[#allocation3 + $0x80] sm:$0xff] %vm1572, %v3291
        %3371 = vst.msk [vmem:[#allocation3 + $0x88] sm:$0xff] %vm1572, %v3293
        %3372 = vst.msk [vmem:[#allocation3 + $0x90] sm:$0xff] %vm1572, %v3295
        %3373 = vst.msk [vmem:[#allocation3 + $0x98] sm:$0xff] %vm1572, %v3297
        %3374 = vst.msk [vmem:[#allocation3 + $0xa0] sm:$0xff] %vm1572, %v3299
        %3375 = vst.msk [vmem:[#allocation3 + $0xa8] sm:$0xff] %vm1572, %v3301
        %3376 = vst.msk [vmem:[#allocation3 + $0xb0] sm:$0xff] %vm1572, %v3303
        %3377 = vst.msk [vmem:[#allocation3 + $0xb8] sm:$0xff] %vm1572, %v3305
        %3378 = vst.msk [vmem:[#allocation3 + $0xc0] sm:$0xff] %vm1572, %v3307
        %3379 = vst.msk [vmem:[#allocation3 + $0xc8] sm:$0xff] %vm1572, %v3309
        %3380 = vst.msk [vmem:[#allocation3 + $0xd0] sm:$0xff] %vm1572, %v3311
        %3381 = vst.msk [vmem:[#allocation3 + $0xd8] sm:$0xff] %vm1572, %v3313
        %3382 = vst.msk [vmem:[#allocation3 + $0xe0] sm:$0xff] %vm1572, %v3315
        %3383 = vst.msk [vmem:[#allocation3 + $0xe8] sm:$0xff] %vm1572, %v3317
        %3384 = vst.msk [vmem:[#allocation3 + $0xf0] sm:$0xff] %vm1572, %v3319
        %3385 = vst.msk [vmem:[#allocation3 + $0xf8] sm:$0xff] %vm1572, %v3321
        %3388 = vrot.lane.b32.xlu0 %v2445, 48
        %v3389 = vpop.permute.xlu0 %3388
        %3390 = vrot.lane.b32.xlu0 %v2446, 48
        %v3391 = vpop.permute.xlu0 %3390
        %3392 = vrot.lane.b32.xlu0 %v2448, 48
        %v3393 = vpop.permute.xlu0 %3392
        %3394 = vrot.lane.b32.xlu0 %v2449, 48
        %v3395 = vpop.permute.xlu0 %3394
        %3396 = vrot.lane.b32.xlu0 %v2451, 48
        %v3397 = vpop.permute.xlu0 %3396
        %3398 = vrot.lane.b32.xlu0 %v2452, 48
        %v3399 = vpop.permute.xlu0 %3398
        %3400 = vrot.lane.b32.xlu0 %v2454, 48
        %v3401 = vpop.permute.xlu0 %3400
        %3402 = vrot.lane.b32.xlu0 %v2455, 48
        %v3403 = vpop.permute.xlu0 %3402
        %3404 = vrot.lane.b32.xlu0 %v2457, 48
        %v3405 = vpop.permute.xlu0 %3404
        %3406 = vrot.lane.b32.xlu0 %v2458, 48
        %v3407 = vpop.permute.xlu0 %3406
        %3408 = vrot.lane.b32.xlu0 %v2460, 48
        %v3409 = vpop.permute.xlu0 %3408
        %3410 = vrot.lane.b32.xlu0 %v2461, 48
        %v3411 = vpop.permute.xlu0 %3410
        %3412 = vrot.lane.b32.xlu0 %v2463, 48
        %v3413 = vpop.permute.xlu0 %3412
        %3414 = vrot.lane.b32.xlu0 %v2464, 48
        %v3415 = vpop.permute.xlu0 %3414
        %3416 = vrot.lane.b32.xlu0 %v2466, 48
        %v3417 = vpop.permute.xlu0 %3416
        %3418 = vrot.lane.b32.xlu0 %v2467, 48
        %v3419 = vpop.permute.xlu0 %3418
        %3420 = vrot.lane.b32.xlu0 %v2469, 48
        %v3421 = vpop.permute.xlu0 %3420
        %3422 = vrot.lane.b32.xlu0 %v2470, 48
        %v3423 = vpop.permute.xlu0 %3422
        %3424 = vrot.lane.b32.xlu0 %v2472, 48
        %v3425 = vpop.permute.xlu0 %3424
        %3426 = vrot.lane.b32.xlu0 %v2473, 48
        %v3427 = vpop.permute.xlu0 %3426
        %3428 = vrot.lane.b32.xlu0 %v2475, 48
        %v3429 = vpop.permute.xlu0 %3428
        %3430 = vrot.lane.b32.xlu0 %v2476, 48
        %v3431 = vpop.permute.xlu0 %3430
        %3432 = vrot.lane.b32.xlu0 %v2478, 48
        %v3433 = vpop.permute.xlu0 %3432
        %3434 = vrot.lane.b32.xlu0 %v2479, 48
        %v3435 = vpop.permute.xlu0 %3434
        %3436 = vrot.lane.b32.xlu0 %v2481, 48
        %v3437 = vpop.permute.xlu0 %3436
        %3438 = vrot.lane.b32.xlu0 %v2482, 48
        %v3439 = vpop.permute.xlu0 %3438
        %3440 = vrot.lane.b32.xlu0 %v2484, 48
        %v3441 = vpop.permute.xlu0 %3440
        %3442 = vrot.lane.b32.xlu0 %v2485, 48
        %v3443 = vpop.permute.xlu0 %3442
        %3444 = vrot.lane.b32.xlu0 %v2487, 48
        %v3445 = vpop.permute.xlu0 %3444
        %3446 = vrot.lane.b32.xlu0 %v2488, 48
        %v3447 = vpop.permute.xlu0 %3446
        %3448 = vrot.lane.b32.xlu0 %v2490, 48
        %v3449 = vpop.permute.xlu0 %3448
        %3450 = vrot.lane.b32.xlu0 %v2491, 48
        %v3451 = vpop.permute.xlu0 %3450
        %3484 = vst.msk [vmem:[#allocation3] sm:$0xff] %vm1703, %v3389
        %3485 = vst.msk [vmem:[#allocation3 + $0x8] sm:$0xff] %vm1703, %v3391
        %3486 = vst.msk [vmem:[#allocation3 + $0x10] sm:$0xff] %vm1703, %v3393
        %3487 = vst.msk [vmem:[#allocation3 + $0x18] sm:$0xff] %vm1703, %v3395
        %3488 = vst.msk [vmem:[#allocation3 + $0x20] sm:$0xff] %vm1703, %v3397
        %3489 = vst.msk [vmem:[#allocation3 + $0x28] sm:$0xff] %vm1703, %v3399
        %3490 = vst.msk [vmem:[#allocation3 + $0x30] sm:$0xff] %vm1703, %v3401
        %3491 = vst.msk [vmem:[#allocation3 + $0x38] sm:$0xff] %vm1703, %v3403
        %3492 = vst.msk [vmem:[#allocation3 + $0x40] sm:$0xff] %vm1703, %v3405
        %3493 = vst.msk [vmem:[#allocation3 + $0x48] sm:$0xff] %vm1703, %v3407
        %3494 = vst.msk [vmem:[#allocation3 + $0x50] sm:$0xff] %vm1703, %v3409
        %3495 = vst.msk [vmem:[#allocation3 + $0x58] sm:$0xff] %vm1703, %v3411
        %3496 = vst.msk [vmem:[#allocation3 + $0x60] sm:$0xff] %vm1703, %v3413
        %3497 = vst.msk [vmem:[#allocation3 + $0x68] sm:$0xff] %vm1703, %v3415
        %3498 = vst.msk [vmem:[#allocation3 + $0x70] sm:$0xff] %vm1703, %v3417
        %3499 = vst.msk [vmem:[#allocation3 + $0x78] sm:$0xff] %vm1703, %v3419
        %3500 = vst.msk [vmem:[#allocation3 + $0x80] sm:$0xff] %vm1703, %v3421
        %3501 = vst.msk [vmem:[#allocation3 + $0x88] sm:$0xff] %vm1703, %v3423
        %3502 = vst.msk [vmem:[#allocation3 + $0x90] sm:$0xff] %vm1703, %v3425
        %3503 = vst.msk [vmem:[#allocation3 + $0x98] sm:$0xff] %vm1703, %v3427
        %3504 = vst.msk [vmem:[#allocation3 + $0xa0] sm:$0xff] %vm1703, %v3429
        %3505 = vst.msk [vmem:[#allocation3 + $0xa8] sm:$0xff] %vm1703, %v3431
        %3506 = vst.msk [vmem:[#allocation3 + $0xb0] sm:$0xff] %vm1703, %v3433
        %3507 = vst.msk [vmem:[#allocation3 + $0xb8] sm:$0xff] %vm1703, %v3435
        %3508 = vst.msk [vmem:[#allocation3 + $0xc0] sm:$0xff] %vm1703, %v3437
        %3509 = vst.msk [vmem:[#allocation3 + $0xc8] sm:$0xff] %vm1703, %v3439
        %3510 = vst.msk [vmem:[#allocation3 + $0xd0] sm:$0xff] %vm1703, %v3441
        %3511 = vst.msk [vmem:[#allocation3 + $0xd8] sm:$0xff] %vm1703, %v3443
        %3512 = vst.msk [vmem:[#allocation3 + $0xe0] sm:$0xff] %vm1703, %v3445
        %3513 = vst.msk [vmem:[#allocation3 + $0xe8] sm:$0xff] %vm1703, %v3447
        %3514 = vst.msk [vmem:[#allocation3 + $0xf0] sm:$0xff] %vm1703, %v3449
        %3515 = vst.msk [vmem:[#allocation3 + $0xf8] sm:$0xff] %vm1703, %v3451
        %v3517 = vrot.slane %v2490, 1
        %v3518 = vrot.slane %v2491, 1
        %v3519 = vsel %vm785, %v3517, %v3518
        %v3520 = vrot.slane %v2492, 1
        %v3521 = vsel %vm785, %v3518, %v3520
        %3522 = vrot.lane.b32.xlu0 %v2585, 56
        %v3523 = vpop.permute.xlu0 %3522
        %3524 = vrot.lane.b32.xlu0 %v2587, 56
        %v3525 = vpop.permute.xlu0 %3524
        %3526 = vrot.lane.b32.xlu0 %v2590, 56
        %v3527 = vpop.permute.xlu0 %3526
        %3528 = vrot.lane.b32.xlu0 %v2592, 56
        %v3529 = vpop.permute.xlu0 %3528
        %3530 = vrot.lane.b32.xlu0 %v2595, 56
        %v3531 = vpop.permute.xlu0 %3530
        %3532 = vrot.lane.b32.xlu0 %v2597, 56
        %v3533 = vpop.permute.xlu0 %3532
        %3534 = vrot.lane.b32.xlu0 %v2600, 56
        %v3535 = vpop.permute.xlu0 %3534
        %3536 = vrot.lane.b32.xlu0 %v2602, 56
        %v3537 = vpop.permute.xlu0 %3536
        %3538 = vrot.lane.b32.xlu0 %v2605, 56
        %v3539 = vpop.permute.xlu0 %3538
        %3540 = vrot.lane.b32.xlu0 %v2607, 56
        %v3541 = vpop.permute.xlu0 %3540
        %3542 = vrot.lane.b32.xlu0 %v2610, 56
        %v3543 = vpop.permute.xlu0 %3542
        %3544 = vrot.lane.b32.xlu0 %v2612, 56
        %v3545 = vpop.permute.xlu0 %3544
        %3546 = vrot.lane.b32.xlu0 %v2615, 56
        %v3547 = vpop.permute.xlu0 %3546
        %3548 = vrot.lane.b32.xlu0 %v2617, 56
        %v3549 = vpop.permute.xlu0 %3548
        %3550 = vrot.lane.b32.xlu0 %v2620, 56
        %v3551 = vpop.permute.xlu0 %3550
        %3552 = vrot.lane.b32.xlu0 %v2622, 56
        %v3553 = vpop.permute.xlu0 %3552
        %3554 = vrot.lane.b32.xlu0 %v2625, 56
        %v3555 = vpop.permute.xlu0 %3554
        %3556 = vrot.lane.b32.xlu0 %v2627, 56
        %v3557 = vpop.permute.xlu0 %3556
        %3558 = vrot.lane.b32.xlu0 %v2630, 56
        %v3559 = vpop.permute.xlu0 %3558
        %3560 = vrot.lane.b32.xlu0 %v2632, 56
        %v3561 = vpop.permute.xlu0 %3560
        %3562 = vrot.lane.b32.xlu0 %v2635, 56
        %v3563 = vpop.permute.xlu0 %3562
        %3564 = vrot.lane.b32.xlu0 %v2637, 56
        %v3565 = vpop.permute.xlu0 %3564
        %3566 = vrot.lane.b32.xlu0 %v2640, 56
        %v3567 = vpop.permute.xlu0 %3566
        %3568 = vrot.lane.b32.xlu0 %v2642, 56
        %v3569 = vpop.permute.xlu0 %3568
        %3570 = vrot.lane.b32.xlu0 %v2645, 56
        %v3571 = vpop.permute.xlu0 %3570
        %3572 = vrot.lane.b32.xlu0 %v2647, 56
        %v3573 = vpop.permute.xlu0 %3572
        %3574 = vrot.lane.b32.xlu0 %v2650, 56
        %v3575 = vpop.permute.xlu0 %3574
        %3576 = vrot.lane.b32.xlu0 %v2652, 56
        %v3577 = vpop.permute.xlu0 %3576
        %3578 = vrot.lane.b32.xlu0 %v3122, 56
        %v3579 = vpop.permute.xlu0 %3578
        %3580 = vrot.lane.b32.xlu0 %v3124, 56
        %v3581 = vpop.permute.xlu0 %3580
        %3582 = vrot.lane.b32.xlu0 %v3519, 56
        %v3583 = vpop.permute.xlu0 %3582
        %3584 = vrot.lane.b32.xlu0 %v3521, 56
        %v3585 = vpop.permute.xlu0 %3584
        %3618 = vst.msk [vmem:[#allocation3] sm:$0xff] %vm1838, %v3523
        %3619 = vst.msk [vmem:[#allocation3 + $0x8] sm:$0xff] %vm1838, %v3525
        %3620 = vst.msk [vmem:[#allocation3 + $0x10] sm:$0xff] %vm1838, %v3527
        %3621 = vst.msk [vmem:[#allocation3 + $0x18] sm:$0xff] %vm1838, %v3529
        %3622 = vst.msk [vmem:[#allocation3 + $0x20] sm:$0xff] %vm1838, %v3531
        %3623 = vst.msk [vmem:[#allocation3 + $0x28] sm:$0xff] %vm1838, %v3533
        %3624 = vst.msk [vmem:[#allocation3 + $0x30] sm:$0xff] %vm1838, %v3535
        %3625 = vst.msk [vmem:[#allocation3 + $0x38] sm:$0xff] %vm1838, %v3537
        %3626 = vst.msk [vmem:[#allocation3 + $0x40] sm:$0xff] %vm1838, %v3539
        %3627 = vst.msk [vmem:[#allocation3 + $0x48] sm:$0xff] %vm1838, %v3541
        %3628 = vst.msk [vmem:[#allocation3 + $0x50] sm:$0xff] %vm1838, %v3543
        %3629 = vst.msk [vmem:[#allocation3 + $0x58] sm:$0xff] %vm1838, %v3545
        %3630 = vst.msk [vmem:[#allocation3 + $0x60] sm:$0xff] %vm1838, %v3547
        %3631 = vst.msk [vmem:[#allocation3 + $0x68] sm:$0xff] %vm1838, %v3549
        %3632 = vst.msk [vmem:[#allocation3 + $0x70] sm:$0xff] %vm1838, %v3551
        %3633 = vst.msk [vmem:[#allocation3 + $0x78] sm:$0xff] %vm1838, %v3553
        %3634 = vst.msk [vmem:[#allocation3 + $0x80] sm:$0xff] %vm1838, %v3555
        %3635 = vst.msk [vmem:[#allocation3 + $0x88] sm:$0xff] %vm1838, %v3557
        %3636 = vst.msk [vmem:[#allocation3 + $0x90] sm:$0xff] %vm1838, %v3559
        %3637 = vst.msk [vmem:[#allocation3 + $0x98] sm:$0xff] %vm1838, %v3561
        %3638 = vst.msk [vmem:[#allocation3 + $0xa0] sm:$0xff] %vm1838, %v3563
        %3639 = vst.msk [vmem:[#allocation3 + $0xa8] sm:$0xff] %vm1838, %v3565
        %3640 = vst.msk [vmem:[#allocation3 + $0xb0] sm:$0xff] %vm1838, %v3567
        %3641 = vst.msk [vmem:[#allocation3 + $0xb8] sm:$0xff] %vm1838, %v3569
        %3642 = vst.msk [vmem:[#allocation3 + $0xc0] sm:$0xff] %vm1838, %v3571
        %3643 = vst.msk [vmem:[#allocation3 + $0xc8] sm:$0xff] %vm1838, %v3573
        %3644 = vst.msk [vmem:[#allocation3 + $0xd0] sm:$0xff] %vm1838, %v3575
        %3645 = vst.msk [vmem:[#allocation3 + $0xd8] sm:$0xff] %vm1838, %v3577
        %3646 = vst.msk [vmem:[#allocation3 + $0xe0] sm:$0xff] %vm1838, %v3579
        %3647 = vst.msk [vmem:[#allocation3 + $0xe8] sm:$0xff] %vm1838, %v3581
        %3648 = vst.msk [vmem:[#allocation3 + $0xf0] sm:$0xff] %vm1838, %v3583
        %3649 = vst.msk [vmem:[#allocation3 + $0xf8] sm:$0xff] %vm1838, %v3585
        %v3650 = vrot.slane %v2490, 2
        %v3651 = vrot.slane %v2491, 2
        %v3652 = vsel %vm995, %v3650, %v3651
        %v3653 = vrot.slane %v2492, 2
        %v3654 = vsel %vm995, %v3651, %v3653
        %3655 = vrot.lane.b32.xlu0 %v2793, 64
        %v3656 = vpop.permute.xlu0 %3655
        %3657 = vrot.lane.b32.xlu0 %v2795, 64
        %v3658 = vpop.permute.xlu0 %3657
        %3659 = vrot.lane.b32.xlu0 %v2798, 64
        %v3660 = vpop.permute.xlu0 %3659
        %3661 = vrot.lane.b32.xlu0 %v2800, 64
        %v3662 = vpop.permute.xlu0 %3661
        %3663 = vrot.lane.b32.xlu0 %v2803, 64
        %v3664 = vpop.permute.xlu0 %3663
        %3665 = vrot.lane.b32.xlu0 %v2805, 64
        %v3666 = vpop.permute.xlu0 %3665
        %3667 = vrot.lane.b32.xlu0 %v2808, 64
        %v3668 = vpop.permute.xlu0 %3667
        %3669 = vrot.lane.b32.xlu0 %v2810, 64
        %v3670 = vpop.permute.xlu0 %3669
        %3671 = vrot.lane.b32.xlu0 %v2813, 64
        %v3672 = vpop.permute.xlu0 %3671
        %3673 = vrot.lane.b32.xlu0 %v2815, 64
        %v3674 = vpop.permute.xlu0 %3673
        %3675 = vrot.lane.b32.xlu0 %v2818, 64
        %v3676 = vpop.permute.xlu0 %3675
        %3677 = vrot.lane.b32.xlu0 %v2820, 64
        %v3678 = vpop.permute.xlu0 %3677
        %3679 = vrot.lane.b32.xlu0 %v2823, 64
        %v3680 = vpop.permute.xlu0 %3679
        %3681 = vrot.lane.b32.xlu0 %v2825, 64
        %v3682 = vpop.permute.xlu0 %3681
        %3683 = vrot.lane.b32.xlu0 %v2828, 64
        %v3684 = vpop.permute.xlu0 %3683
        %3685 = vrot.lane.b32.xlu0 %v2830, 64
        %v3686 = vpop.permute.xlu0 %3685
        %3687 = vrot.lane.b32.xlu0 %v2833, 64
        %v3688 = vpop.permute.xlu0 %3687
        %3689 = vrot.lane.b32.xlu0 %v2835, 64
        %v3690 = vpop.permute.xlu0 %3689
        %3691 = vrot.lane.b32.xlu0 %v2838, 64
        %v3692 = vpop.permute.xlu0 %3691
        %3693 = vrot.lane.b32.xlu0 %v2840, 64
        %v3694 = vpop.permute.xlu0 %3693
        %3695 = vrot.lane.b32.xlu0 %v2843, 64
        %v3696 = vpop.permute.xlu0 %3695
        %3697 = vrot.lane.b32.xlu0 %v2845, 64
        %v3698 = vpop.permute.xlu0 %3697
        %3699 = vrot.lane.b32.xlu0 %v2848, 64
        %v3700 = vpop.permute.xlu0 %3699
        %3701 = vrot.lane.b32.xlu0 %v2850, 64
        %v3702 = vpop.permute.xlu0 %3701
        %3703 = vrot.lane.b32.xlu0 %v2853, 64
        %v3704 = vpop.permute.xlu0 %3703
        %3705 = vrot.lane.b32.xlu0 %v2855, 64
        %v3706 = vpop.permute.xlu0 %3705
        %3707 = vrot.lane.b32.xlu0 %v2858, 64
        %v3708 = vpop.permute.xlu0 %3707
        %3709 = vrot.lane.b32.xlu0 %v2860, 64
        %v3710 = vpop.permute.xlu0 %3709
        %3711 = vrot.lane.b32.xlu0 %v3255, 64
        %v3712 = vpop.permute.xlu0 %3711
        %3713 = vrot.lane.b32.xlu0 %v3257, 64
        %v3714 = vpop.permute.xlu0 %3713
        %3715 = vrot.lane.b32.xlu0 %v3652, 64
        %v3716 = vpop.permute.xlu0 %3715
        %3717 = vrot.lane.b32.xlu0 %v3654, 64
        %v3718 = vpop.permute.xlu0 %3717
        %3751 = vst.msk [vmem:[#allocation3] sm:$0xff] %vm1972, %v3656
        %3752 = vst.msk [vmem:[#allocation3 + $0x8] sm:$0xff] %vm1972, %v3658
        %3753 = vst.msk [vmem:[#allocation3 + $0x10] sm:$0xff] %vm1972, %v3660
        %3754 = vst.msk [vmem:[#allocation3 + $0x18] sm:$0xff] %vm1972, %v3662
        %3755 = vst.msk [vmem:[#allocation3 + $0x20] sm:$0xff] %vm1972, %v3664
        %3756 = vst.msk [vmem:[#allocation3 + $0x28] sm:$0xff] %vm1972, %v3666
        %3757 = vst.msk [vmem:[#allocation3 + $0x30] sm:$0xff] %vm1972, %v3668
        %3758 = vst.msk [vmem:[#allocation3 + $0x38] sm:$0xff] %vm1972, %v3670
        %3759 = vst.msk [vmem:[#allocation3 + $0x40] sm:$0xff] %vm1972, %v3672
        %3760 = vst.msk [vmem:[#allocation3 + $0x48] sm:$0xff] %vm1972, %v3674
        %3761 = vst.msk [vmem:[#allocation3 + $0x50] sm:$0xff] %vm1972, %v3676
        %3762 = vst.msk [vmem:[#allocation3 + $0x58] sm:$0xff] %vm1972, %v3678
        %3763 = vst.msk [vmem:[#allocation3 + $0x60] sm:$0xff] %vm1972, %v3680
        %3764 = vst.msk [vmem:[#allocation3 + $0x68] sm:$0xff] %vm1972, %v3682
        %3765 = vst.msk [vmem:[#allocation3 + $0x70] sm:$0xff] %vm1972, %v3684
        %3766 = vst.msk [vmem:[#allocation3 + $0x78] sm:$0xff] %vm1972, %v3686
        %3767 = vst.msk [vmem:[#allocation3 + $0x80] sm:$0xff] %vm1972, %v3688
        %3768 = vst.msk [vmem:[#allocation3 + $0x88] sm:$0xff] %vm1972, %v3690
        %3769 = vst.msk [vmem:[#allocation3 + $0x90] sm:$0xff] %vm1972, %v3692
        %3770 = vst.msk [vmem:[#allocation3 + $0x98] sm:$0xff] %vm1972, %v3694
        %3771 = vst.msk [vmem:[#allocation3 + $0xa0] sm:$0xff] %vm1972, %v3696
        %3772 = vst.msk [vmem:[#allocation3 + $0xa8] sm:$0xff] %vm1972, %v3698
        %3773 = vst.msk [vmem:[#allocation3 + $0xb0] sm:$0xff] %vm1972, %v3700
        %3774 = vst.msk [vmem:[#allocation3 + $0xb8] sm:$0xff] %vm1972, %v3702
        %3775 = vst.msk [vmem:[#allocation3 + $0xc0] sm:$0xff] %vm1972, %v3704
        %3776 = vst.msk [vmem:[#allocation3 + $0xc8] sm:$0xff] %vm1972, %v3706
        %3777 = vst.msk [vmem:[#allocation3 + $0xd0] sm:$0xff] %vm1972, %v3708
        %3778 = vst.msk [vmem:[#allocation3 + $0xd8] sm:$0xff] %vm1972, %v3710
        %3779 = vst.msk [vmem:[#allocation3 + $0xe0] sm:$0xff] %vm1972, %v3712
        %3780 = vst.msk [vmem:[#allocation3 + $0xe8] sm:$0xff] %vm1972, %v3714
        %3781 = vst.msk [vmem:[#allocation3 + $0xf0] sm:$0xff] %vm1972, %v3716
        %3782 = vst.msk [vmem:[#allocation3 + $0xf8] sm:$0xff] %vm1972, %v3718
        %v3783 = vld [vmem:[#allocation3] sm:$0xff]
        %v3784 = vld [vmem:[#allocation3 + $0x8] sm:$0xff]
        %v3785 = vld [vmem:[#allocation3 + $0x10] sm:$0xff]
        %v3786 = vld [vmem:[#allocation3 + $0x18] sm:$0xff]
        %v3787 = vld [vmem:[#allocation3 + $0x20] sm:$0xff]
        %v3788 = vld [vmem:[#allocation3 + $0x28] sm:$0xff]
        %v3789 = vld [vmem:[#allocation3 + $0x30] sm:$0xff]
        %v3790 = vld [vmem:[#allocation3 + $0x38] sm:$0xff]
        %v3791 = vld [vmem:[#allocation3 + $0x40] sm:$0xff]
        %v3792 = vld [vmem:[#allocation3 + $0x48] sm:$0xff]
        %v3793 = vld [vmem:[#allocation3 + $0x50] sm:$0xff]
        %v3794 = vld [vmem:[#allocation3 + $0x58] sm:$0xff]
        %v3795 = vld [vmem:[#allocation3 + $0x60] sm:$0xff]
        %v3796 = vld [vmem:[#allocation3 + $0x68] sm:$0xff]
        %v3797 = vld [vmem:[#allocation3 + $0x70] sm:$0xff]
        %v3798 = vld [vmem:[#allocation3 + $0x78] sm:$0xff]
        %v3799 = vld [vmem:[#allocation3 + $0x80] sm:$0xff]
        %v3800 = vld [vmem:[#allocation3 + $0x88] sm:$0xff]
        %v3801 = vld [vmem:[#allocation3 + $0x90] sm:$0xff]
        %v3802 = vld [vmem:[#allocation3 + $0x98] sm:$0xff]
        %v3803 = vld [vmem:[#allocation3 + $0xa0] sm:$0xff]
        %v3804 = vld [vmem:[#allocation3 + $0xa8] sm:$0xff]
        %v3805 = vld [vmem:[#allocation3 + $0xb0] sm:$0xff]
        %v3806 = vld [vmem:[#allocation3 + $0xb8] sm:$0xff]
        %v3807 = vld [vmem:[#allocation3 + $0xc0] sm:$0xff]
        %v3808 = vld [vmem:[#allocation3 + $0xc8] sm:$0xff]
        %v3809 = vld [vmem:[#allocation3 + $0xd0] sm:$0xff]
        %v3810 = vld [vmem:[#allocation3 + $0xd8] sm:$0xff]
        %v3811 = vld [vmem:[#allocation3 + $0xe0] sm:$0xff]
        %v3812 = vld [vmem:[#allocation3 + $0xe8] sm:$0xff]
        %v3813 = vld [vmem:[#allocation3 + $0xf0] sm:$0xff]
        %v3814 = vld [vmem:[#allocation3 + $0xf8] sm:$0xff]
        %v3815 = vld [vmem:[%s4] sm:$0xff]
        %v3816 = vld [vmem:[%s4 + $0x8] sm:$0xff]
        %v3817 = vld [vmem:[%s4 + $0x10] sm:$0xff]
        %v3818 = vld [vmem:[%s4 + $0x18] sm:$0xff]
        %v3819 = vld [vmem:[%s4 + $0x20] sm:$0xff]
        %v3820 = vld [vmem:[%s4 + $0x28] sm:$0xff]
        %v3821 = vld [vmem:[%s4 + $0x30] sm:$0xff]
        %v3822 = vld [vmem:[%s4 + $0x38] sm:$0xff]
        %v3823 = vld [vmem:[%s4 + $0x40] sm:$0xff]
        %v3824 = vld [vmem:[%s5] sm:$0x1]
        %v3826 = vlaneseq
        %v3827 = vshrl.u32 %v3826, 7
        %v3828 = vsub.s32 0, %v3827
        %v3829 = vrot.slane %v3824, %v3828
        %v3832 = vsel %vm2053, %v3783, 0
        %v3835 = vsel %vm2053, %v3784, 0
        %v3838 = vsel %vm2053, %v3785, 0
        %v3841 = vsel %vm2053, %v3786, 0
        %v3844 = vsel %vm2053, %v3787, 0
        %v3847 = vsel %vm2053, %v3788, 0
        %v3850 = vsel %vm2053, %v3789, 0
        %v3853 = vsel %vm2053, %v3790, 0
        %v3856 = vsel %vm2053, %v3791, 0
        %v3859 = vsel %vm2053, %v3792, 0
        %v3862 = vsel %vm2053, %v3793, 0
        %v3865 = vsel %vm2053, %v3794, 0
        %v3868 = vsel %vm2053, %v3795, 0
        %v3871 = vsel %vm2053, %v3796, 0
        %v3874 = vsel %vm2053, %v3797, 0
        %v3877 = vsel %vm2053, %v3798, 0
        %v3880 = vsel %vm2053, %v3799, 0
        %v3883 = vsel %vm2053, %v3800, 0
        %v3886 = vsel %vm2053, %v3801, 0
        %v3889 = vsel %vm2053, %v3802, 0
        %v3892 = vsel %vm2053, %v3803, 0
        %v3895 = vsel %vm2053, %v3804, 0
        %v3898 = vsel %vm2053, %v3805, 0
        %v3901 = vsel %vm2053, %v3806, 0
        %v3904 = vsel %vm2053, %v3807, 0
        %v3907 = vsel %vm2053, %v3808, 0
        %v3910 = vsel %vm2053, %v3809, 0
        %v3913 = vsel %vm2053, %v3810, 0
        %v3916 = vsel %vm2053, %v3811, 0
        %v3919 = vsel %vm2053, %v3812, 0
        %v3922 = vsel %vm2053, %v3813, 0
        %v3925 = vsel %vm2053, %v3814, 0
        %3927 = vmatprep.subr.mxu0 0.0
        %3928 = vmatpush1.msra.mxu0 0.0
        %3929 = vmatprep.subr.mxu0 0.0
        %3930 = vmatpush1.msra.mxu0 0.0
        %3931 = vmatprep.subr.mxu0 0.0
        %3932 = vmatpush1.msra.mxu0 0.0
        %3933 = vmatprep.subr.mxu0 0.0
        %3934 = vmatpush1.msra.mxu0 0.0
        %3935 = vmatprep.subr.mxu0 0.0
        %3936 = vmatpush1.msra.mxu0 0.0
        %3937 = vmatprep.subr.mxu0 0.0
        %3938 = vmatpush1.msra.mxu0 0.0
        %3939 = vmatprep.subr.mxu0 0.0
        %3940 = vmatpush1.msra.mxu0 0.0
        %3941 = vmatprep.subr.mxu0 0.0
        %3942 = vmatpush1.msra.mxu0 %v3823
        %3943 = vmatprep.subr.mxu0 0.0
        %3944 = vmatpush1.msra.mxu0 %v3822
        %3945 = vmatprep.subr.mxu0 0.0
        %3946 = vmatpush1.msra.mxu0 %v3821
        %3947 = vmatprep.subr.mxu0 0.0
        %3948 = vmatpush1.msra.mxu0 %v3820
        %3949 = vmatprep.subr.mxu0 0.0
        %3950 = vmatpush1.msra.mxu0 %v3819
        %3951 = vmatprep.subr.mxu0 0.0
        %3952 = vmatpush1.msra.mxu0 %v3818
        %3953 = vmatprep.subr.mxu0 0.0
        %3954 = vmatpush1.msra.mxu0 %v3817
        %3955 = vmatprep.subr.mxu0 0.0
        %3956 = vmatpush1.msra.mxu0 %v3816
        %3957 = vmatprep.subr.mxu0 0.0
        %3958 = vmatpush1.msra.mxu0 %v3815
        %3959 = vmatprep.subr.mxu0 0.0
        %3960 = vmatpush2.msra.mxu0 0.0
        %3961 = vmatprep.subr.mxu0 0.0
        %3962 = vmatpush2.msra.mxu0 0.0
        %3963 = vmatprep.subr.mxu0 0.0
        %3964 = vmatpush2.msra.mxu0 0.0
        %3965 = vmatprep.subr.mxu0 0.0
        %3966 = vmatpush2.msra.mxu0 0.0
        %3967 = vmatprep.subr.mxu0 0.0
        %3968 = vmatpush2.msra.mxu0 0.0
        %3969 = vmatprep.subr.mxu0 0.0
        %3970 = vmatpush2.msra.mxu0 0.0
        %3971 = vmatprep.subr.mxu0 0.0
        %3972 = vmatpush2.msra.mxu0 0.0
        %3973 = vmatprep.subr.mxu0 0.0
        %3974 = vmatpush2.msra.mxu0 0.0
        %3975 = vmatprep.subr.mxu0 0.0
        %3976 = vmatpush2.msra.mxu0 0.0
        %3977 = vmatprep.subr.mxu0 0.0
        %3978 = vmatpush2.msra.mxu0 0.0
        %3979 = vmatprep.subr.mxu0 0.0
        %3980 = vmatpush2.msra.mxu0 0.0
        %3981 = vmatprep.subr.mxu0 0.0
        %3982 = vmatpush2.msra.mxu0 0.0
        %3983 = vmatprep.subr.mxu0 0.0
        %3984 = vmatpush2.msra.mxu0 0.0
        %3985 = vmatprep.subr.mxu0 0.0
        %3986 = vmatpush2.msra.mxu0 0.0
        %3987 = vmatprep.subr.mxu0 0.0
        %3988 = vmatpush2.msra.mxu0 0.0
        %3989 = vmatprep.subr.mxu0 0.0
        %3990 = vmatpush2.msra.mxu0 0.0
        %3991 = vmatprep.mubr.f32.mxu0 0.0
        %3992 = vmatmul.mubr.f32.gmra.mxu0 %v3832
        %v3993 = vpop.f32.mrf.mxu0
        %v3994 = vadd.f32 %v3829, %v3993
        %v3995 = vpop.f32.mrf.mxu0
        %3996 = vmatprep.mubr.f32.mxu0 0.0
        %3997 = vmatmul.mubr.f32.gmra.mxu0 %v3835
        %v3998 = vpop.f32.mrf.mxu0
        %v3999 = vadd.f32 %v3829, %v3998
        %v4000 = vpop.f32.mrf.mxu0
        %4001 = vmatprep.mubr.f32.mxu0 0.0
        %4002 = vmatmul.mubr.f32.gmra.mxu0 %v3838
        %v4003 = vpop.f32.mrf.mxu0
        %v4004 = vadd.f32 %v3829, %v4003
        %v4005 = vpop.f32.mrf.mxu0
        %4006 = vmatprep.mubr.f32.mxu0 0.0
        %4007 = vmatmul.mubr.f32.gmra.mxu0 %v3841
        %v4008 = vpop.f32.mrf.mxu0
        %v4009 = vadd.f32 %v3829, %v4008
        %v4010 = vpop.f32.mrf.mxu0
        %4011 = vmatprep.mubr.f32.mxu0 0.0
        %4012 = vmatmul.mubr.f32.gmra.mxu0 %v3844
        %v4013 = vpop.f32.mrf.mxu0
        %v4014 = vadd.f32 %v3829, %v4013
        %v4015 = vpop.f32.mrf.mxu0
        %4016 = vmatprep.mubr.f32.mxu0 0.0
        %4017 = vmatmul.mubr.f32.gmra.mxu0 %v3847
        %v4018 = vpop.f32.mrf.mxu0
        %v4019 = vadd.f32 %v3829, %v4018
        %v4020 = vpop.f32.mrf.mxu0
        %4021 = vmatprep.mubr.f32.mxu0 0.0
        %4022 = vmatmul.mubr.f32.gmra.mxu0 %v3850
        %v4023 = vpop.f32.mrf.mxu0
        %v4024 = vadd.f32 %v3829, %v4023
        %v4025 = vpop.f32.mrf.mxu0
        %4026 = vmatprep.mubr.f32.mxu0 0.0
        %4027 = vmatmul.mubr.f32.gmra.mxu0 %v3853
        %v4028 = vpop.f32.mrf.mxu0
        %v4029 = vadd.f32 %v3829, %v4028
        %v4030 = vpop.f32.mrf.mxu0
        %4031 = vmatprep.mubr.f32.mxu0 0.0
        %4032 = vmatmul.mubr.f32.gmra.mxu0 %v3856
        %v4033 = vpop.f32.mrf.mxu0
        %v4034 = vadd.f32 %v3829, %v4033
        %v4035 = vpop.f32.mrf.mxu0
        %4036 = vmatprep.mubr.f32.mxu0 0.0
        %4037 = vmatmul.mubr.f32.gmra.mxu0 %v3859
        %v4038 = vpop.f32.mrf.mxu0
        %v4039 = vadd.f32 %v3829, %v4038
        %v4040 = vpop.f32.mrf.mxu0
        %4041 = vmatprep.mubr.f32.mxu0 0.0
        %4042 = vmatmul.mubr.f32.gmra.mxu0 %v3862
        %v4043 = vpop.f32.mrf.mxu0
        %v4044 = vadd.f32 %v3829, %v4043
        %v4045 = vpop.f32.mrf.mxu0
        %4046 = vmatprep.mubr.f32.mxu0 0.0
        %4047 = vmatmul.mubr.f32.gmra.mxu0 %v3865
        %v4048 = vpop.f32.mrf.mxu0
        %v4049 = vadd.f32 %v3829, %v4048
        %v4050 = vpop.f32.mrf.mxu0
        %4051 = vmatprep.mubr.f32.mxu0 0.0
        %4052 = vmatmul.mubr.f32.gmra.mxu0 %v3868
        %v4053 = vpop.f32.mrf.mxu0
        %v4054 = vadd.f32 %v3829, %v4053
        %v4055 = vpop.f32.mrf.mxu0
        %4056 = vmatprep.mubr.f32.mxu0 0.0
        %4057 = vmatmul.mubr.f32.gmra.mxu0 %v3871
        %v4058 = vpop.f32.mrf.mxu0
        %v4059 = vadd.f32 %v3829, %v4058
        %v4060 = vpop.f32.mrf.mxu0
        %4061 = vmatprep.mubr.f32.mxu0 0.0
        %4062 = vmatmul.mubr.f32.gmra.mxu0 %v3874
        %v4063 = vpop.f32.mrf.mxu0
        %v4064 = vadd.f32 %v3829, %v4063
        %v4065 = vpop.f32.mrf.mxu0
        %4066 = vmatprep.mubr.f32.mxu0 0.0
        %4067 = vmatmul.mubr.f32.gmra.mxu0 %v3877
        %v4068 = vpop.f32.mrf.mxu0
        %v4069 = vadd.f32 %v3829, %v4068
        %v4070 = vpop.f32.mrf.mxu0
        %4071 = vmatprep.mubr.f32.mxu0 0.0
        %4072 = vmatmul.mubr.f32.gmra.mxu0 %v3880
        %v4073 = vpop.f32.mrf.mxu0
        %v4074 = vadd.f32 %v3829, %v4073
        %v4075 = vpop.f32.mrf.mxu0
        %4076 = vmatprep.mubr.f32.mxu0 0.0
        %4077 = vmatmul.mubr.f32.gmra.mxu0 %v3883
        %v4078 = vpop.f32.mrf.mxu0
        %v4079 = vadd.f32 %v3829, %v4078
        %v4080 = vpop.f32.mrf.mxu0
        %4081 = vmatprep.mubr.f32.mxu0 0.0
        %4082 = vmatmul.mubr.f32.gmra.mxu0 %v3886
        %v4083 = vpop.f32.mrf.mxu0
        %v4084 = vadd.f32 %v3829, %v4083
        %v4085 = vpop.f32.mrf.mxu0
        %4086 = vmatprep.mubr.f32.mxu0 0.0
        %4087 = vmatmul.mubr.f32.gmra.mxu0 %v3889
        %v4088 = vpop.f32.mrf.mxu0
        %v4089 = vadd.f32 %v3829, %v4088
        %v4090 = vpop.f32.mrf.mxu0
        %4091 = vmatprep.mubr.f32.mxu0 0.0
        %4092 = vmatmul.mubr.f32.gmra.mxu0 %v3892
        %v4093 = vpop.f32.mrf.mxu0
        %v4094 = vadd.f32 %v3829, %v4093
        %v4095 = vpop.f32.mrf.mxu0
        %4096 = vmatprep.mubr.f32.mxu0 0.0
        %4097 = vmatmul.mubr.f32.gmra.mxu0 %v3895
        %v4098 = vpop.f32.mrf.mxu0
        %v4099 = vadd.f32 %v3829, %v4098
        %v4100 = vpop.f32.mrf.mxu0
        %4101 = vmatprep.mubr.f32.mxu0 0.0
        %4102 = vmatmul.mubr.f32.gmra.mxu0 %v3898
        %v4103 = vpop.f32.mrf.mxu0
        %v4104 = vadd.f32 %v3829, %v4103
        %v4105 = vpop.f32.mrf.mxu0
        %4106 = vmatprep.mubr.f32.mxu0 0.0
        %4107 = vmatmul.mubr.f32.gmra.mxu0 %v3901
        %v4108 = vpop.f32.mrf.mxu0
        %v4109 = vadd.f32 %v3829, %v4108
        %v4110 = vpop.f32.mrf.mxu0
        %4111 = vmatprep.mubr.f32.mxu0 0.0
        %4112 = vmatmul.mubr.f32.gmra.mxu0 %v3904
        %v4113 = vpop.f32.mrf.mxu0
        %v4114 = vadd.f32 %v3829, %v4113
        %v4115 = vpop.f32.mrf.mxu0
        %4116 = vmatprep.mubr.f32.mxu0 0.0
        %4117 = vmatmul.mubr.f32.gmra.mxu0 %v3907
        %v4118 = vpop.f32.mrf.mxu0
        %v4119 = vadd.f32 %v3829, %v4118
        %v4120 = vpop.f32.mrf.mxu0
        %4121 = vmatprep.mubr.f32.mxu0 0.0
        %4122 = vmatmul.mubr.f32.gmra.mxu0 %v3910
        %v4123 = vpop.f32.mrf.mxu0
        %v4124 = vadd.f32 %v3829, %v4123
        %v4125 = vpop.f32.mrf.mxu0
        %4126 = vmatprep.mubr.f32.mxu0 0.0
        %4127 = vmatmul.mubr.f32.gmra.mxu0 %v3913
        %v4128 = vpop.f32.mrf.mxu0
        %v4129 = vadd.f32 %v3829, %v4128
        %v4130 = vpop.f32.mrf.mxu0
        %4131 = vmatprep.mubr.f32.mxu0 0.0
        %4132 = vmatmul.mubr.f32.gmra.mxu0 %v3916
        %v4133 = vpop.f32.mrf.mxu0
        %v4134 = vadd.f32 %v3829, %v4133
        %v4135 = vpop.f32.mrf.mxu0
        %4136 = vmatprep.mubr.f32.mxu0 0.0
        %4137 = vmatmul.mubr.f32.gmra.mxu0 %v3919
        %v4138 = vpop.f32.mrf.mxu0
        %v4139 = vadd.f32 %v3829, %v4138
        %v4140 = vpop.f32.mrf.mxu0
        %4141 = vmatprep.mubr.f32.mxu0 0.0
        %4142 = vmatmul.mubr.f32.gmra.mxu0 %v3922
        %v4143 = vpop.f32.mrf.mxu0
        %v4144 = vadd.f32 %v3829, %v4143
        %v4145 = vpop.f32.mrf.mxu0
        %4146 = vmatprep.mubr.f32.mxu0 0.0
        %4147 = vmatmul.mubr.f32.gmra.mxu0 %v3925
        %v4148 = vpop.f32.mrf.mxu0
        %v4149 = vadd.f32 %v3829, %v4148
        %v4150 = vpop.f32.mrf.mxu0
        %4151 = vdwg.mxu0
        %v4152 = vadd.f32 %v3994, %v554
        %v4153 = vadd.f32 %v3999, %v555
        %v4154 = vadd.f32 %v4004, %v556
        %v4155 = vadd.f32 %v4009, %v557
        %v4156 = vadd.f32 %v4014, %v558
        %v4157 = vadd.f32 %v4019, %v559
        %v4158 = vadd.f32 %v4024, %v560
        %v4159 = vadd.f32 %v4029, %v561
        %v4160 = vadd.f32 %v4034, %v562
        %v4161 = vadd.f32 %v4039, %v563
        %v4162 = vadd.f32 %v4044, %v564
        %v4163 = vadd.f32 %v4049, %v565
        %v4164 = vadd.f32 %v4054, %v566
        %v4165 = vadd.f32 %v4059, %v567
        %v4166 = vadd.f32 %v4064, %v568
        %v4167 = vadd.f32 %v4069, %v569
        %v4168 = vadd.f32 %v4074, %v570
        %v4169 = vadd.f32 %v4079, %v571
        %v4170 = vadd.f32 %v4084, %v572
        %v4171 = vadd.f32 %v4089, %v573
        %v4172 = vadd.f32 %v4094, %v574
        %v4173 = vadd.f32 %v4099, %v575
        %v4174 = vadd.f32 %v4104, %v576
        %v4175 = vadd.f32 %v4109, %v577
        %v4176 = vadd.f32 %v4114, %v578
        %v4177 = vadd.f32 %v4119, %v579
        %v4178 = vadd.f32 %v4124, %v580
        %v4179 = vadd.f32 %v4129, %v581
        %v4180 = vadd.f32 %v4134, %v582
        %v4181 = vadd.f32 %v4139, %v583
        %v4182 = vadd.f32 %v4144, %v584
        %v4183 = vadd.f32 %v4149, %v585
        %v4184 = vadd.f32 %v522, %v4152
        %v4185 = vadd.f32 %v523, %v4153
        %v4186 = vadd.f32 %v524, %v4154
        %v4187 = vadd.f32 %v525, %v4155
        %v4188 = vadd.f32 %v526, %v4156
        %v4189 = vadd.f32 %v527, %v4157
        %v4190 = vadd.f32 %v528, %v4158
        %v4191 = vadd.f32 %v529, %v4159
        %v4192 = vadd.f32 %v530, %v4160
        %v4193 = vadd.f32 %v531, %v4161
        %v4194 = vadd.f32 %v532, %v4162
        %v4195 = vadd.f32 %v533, %v4163
        %v4196 = vadd.f32 %v534, %v4164
        %v4197 = vadd.f32 %v535, %v4165
        %v4198 = vadd.f32 %v536, %v4166
        %v4199 = vadd.f32 %v537, %v4167
        %v4200 = vadd.f32 %v538, %v4168
        %v4201 = vadd.f32 %v539, %v4169
        %v4202 = vadd.f32 %v540, %v4170
        %v4203 = vadd.f32 %v541, %v4171
        %v4204 = vadd.f32 %v542, %v4172
        %v4205 = vadd.f32 %v543, %v4173
        %v4206 = vadd.f32 %v544, %v4174
        %v4207 = vadd.f32 %v545, %v4175
        %v4208 = vadd.f32 %v546, %v4176
        %v4209 = vadd.f32 %v547, %v4177
        %v4210 = vadd.f32 %v548, %v4178
        %v4211 = vadd.f32 %v549, %v4179
        %v4212 = vadd.f32 %v550, %v4180
        %v4213 = vadd.f32 %v551, %v4181
        %v4214 = vadd.f32 %v552, %v4182
        %v4215 = vadd.f32 %v553, %v4183
        %v4216 = vmax.f32 %v4184, 0.0
        %v4217 = vmax.f32 %v4185, 0.0
        %v4218 = vmax.f32 %v4186, 0.0
        %v4219 = vmax.f32 %v4187, 0.0
        %v4220 = vmax.f32 %v4188, 0.0
        %v4221 = vmax.f32 %v4189, 0.0
        %v4222 = vmax.f32 %v4190, 0.0
        %v4223 = vmax.f32 %v4191, 0.0
        %v4224 = vmax.f32 %v4192, 0.0
        %v4225 = vmax.f32 %v4193, 0.0
        %v4226 = vmax.f32 %v4194, 0.0
        %v4227 = vmax.f32 %v4195, 0.0
        %v4228 = vmax.f32 %v4196, 0.0
        %v4229 = vmax.f32 %v4197, 0.0
        %v4230 = vmax.f32 %v4198, 0.0
        %v4231 = vmax.f32 %v4199, 0.0
        %v4232 = vmax.f32 %v4200, 0.0
        %v4233 = vmax.f32 %v4201, 0.0
        %v4234 = vmax.f32 %v4202, 0.0
        %v4235 = vmax.f32 %v4203, 0.0
        %v4236 = vmax.f32 %v4204, 0.0
        %v4237 = vmax.f32 %v4205, 0.0
        %v4238 = vmax.f32 %v4206, 0.0
        %v4239 = vmax.f32 %v4207, 0.0
        %v4240 = vmax.f32 %v4208, 0.0
        %v4241 = vmax.f32 %v4209, 0.0
        %v4242 = vmax.f32 %v4210, 0.0
        %v4243 = vmax.f32 %v4211, 0.0
        %v4244 = vmax.f32 %v4212, 0.0
        %v4245 = vmax.f32 %v4213, 0.0
        %v4246 = vmax.f32 %v4214, 0.0
        %v4247 = vmax.f32 %v4215, 0.0
        %4248 = vst.msk [vmem:[%s618 + $0x1] sm:$0xff] %vm476, %v4216
        %4249 = vst.msk [vmem:[%s618 + $0x9] sm:$0xff] %vm476, %v4217
        %4250 = vst.msk [vmem:[%s618 + $0x19] sm:$0xff] %vm476, %v4218
        %4251 = vst.msk [vmem:[%s618 + $0x21] sm:$0xff] %vm476, %v4219
        %4252 = vst.msk [vmem:[%s618 + $0x31] sm:$0xff] %vm476, %v4220
        %4253 = vst.msk [vmem:[%s618 + $0x39] sm:$0xff] %vm476, %v4221
        %4254 = vst.msk [vmem:[%s618 + $0x49] sm:$0xff] %vm476, %v4222
        %4255 = vst.msk [vmem:[%s618 + $0x51] sm:$0xff] %vm476, %v4223
        %4256 = vst.msk [vmem:[%s618 + $0x61] sm:$0xff] %vm476, %v4224
        %4257 = vst.msk [vmem:[%s618 + $0x69] sm:$0xff] %vm476, %v4225
        %4258 = vst.msk [vmem:[%s618 + $0x79] sm:$0xff] %vm476, %v4226
        %4259 = vst.msk [vmem:[%s618 + $0x81] sm:$0xff] %vm476, %v4227
        %4260 = vst.msk [vmem:[%s618 + $0x91] sm:$0xff] %vm476, %v4228
        %4261 = vst.msk [vmem:[%s618 + $0x99] sm:$0xff] %vm476, %v4229
        %4262 = vst.msk [vmem:[%s618 + $0xa9] sm:$0xff] %vm476, %v4230
        %4263 = vst.msk [vmem:[%s618 + $0xb1] sm:$0xff] %vm476, %v4231
        %4264 = vst.msk [vmem:[%s618 + $0xc1] sm:$0xff] %vm476, %v4232
        %4265 = vst.msk [vmem:[%s618 + $0xc9] sm:$0xff] %vm476, %v4233
        %4266 = vst.msk [vmem:[%s618 + $0xd9] sm:$0xff] %vm476, %v4234
        %4267 = vst.msk [vmem:[%s618 + $0xe1] sm:$0xff] %vm476, %v4235
        %4268 = vst.msk [vmem:[%s618 + $0xf1] sm:$0xff] %vm476, %v4236
        %4269 = vst.msk [vmem:[%s618 + $0xf9] sm:$0xff] %vm476, %v4237
        %4270 = vst.msk [vmem:[%s618 + $0x109] sm:$0xff] %vm476, %v4238
        %4271 = vst.msk [vmem:[%s618 + $0x111] sm:$0xff] %vm476, %v4239
        %4272 = vst.msk [vmem:[%s618 + $0x121] sm:$0xff] %vm476, %v4240
        %4273 = vst.msk [vmem:[%s618 + $0x129] sm:$0xff] %vm476, %v4241
        %4274 = vst.msk [vmem:[%s618 + $0x139] sm:$0xff] %vm476, %v4242
        %4275 = vst.msk [vmem:[%s618 + $0x141] sm:$0xff] %vm476, %v4243
        %4276 = vst.msk [vmem:[%s618 + $0x151] sm:$0xff] %vm476, %v4244
        %4277 = vst.msk [vmem:[%s618 + $0x159] sm:$0xff] %vm476, %v4245
        %4278 = vst.msk [vmem:[%s618 + $0x169] sm:$0xff] %vm476, %v4246
        %4279 = vst.msk [vmem:[%s618 + $0x171] sm:$0xff] %vm476, %v4247
        %v4280 = vld [vmem:[#allocation2] sm:$0xff]
        %v4281 = vld [vmem:[#allocation2 + $0x8] sm:$0xff]
        %v4282 = vld [vmem:[#allocation2 + $0x10] sm:$0xff]
        %v4283 = vld [vmem:[#allocation2 + $0x18] sm:$0xff]
        %v4284 = vld [vmem:[#allocation2 + $0x20] sm:$0xff]
        %v4285 = vld [vmem:[#allocation2 + $0x28] sm:$0xff]
        %v4286 = vld [vmem:[#allocation2 + $0x30] sm:$0xff]
        %v4287 = vld [vmem:[#allocation2 + $0x38] sm:$0xff]
        %v4288 = vld [vmem:[#allocation2 + $0x40] sm:$0xff]
        %v4289 = vld [vmem:[#allocation2 + $0x48] sm:$0xff]
        %v4290 = vld [vmem:[#allocation2 + $0x50] sm:$0xff]
        %v4291 = vld [vmem:[#allocation2 + $0x58] sm:$0xff]
        %v4292 = vld [vmem:[#allocation2 + $0x60] sm:$0xff]
        %v4293 = vld [vmem:[#allocation2 + $0x68] sm:$0xff]
        %v4294 = vld [vmem:[#allocation2 + $0x70] sm:$0xff]
        %v4295 = vld [vmem:[#allocation2 + $0x78] sm:$0xff]
        %v4296 = vld [vmem:[#allocation2 + $0x80] sm:$0xff]
        %v4297 = vld [vmem:[#allocation2 + $0x88] sm:$0xff]
        %v4298 = vld [vmem:[#allocation2 + $0x90] sm:$0xff]
        %v4299 = vld [vmem:[#allocation2 + $0x98] sm:$0xff]
        %v4300 = vld [vmem:[#allocation2 + $0xa0] sm:$0xff]
        %v4301 = vld [vmem:[#allocation2 + $0xa8] sm:$0xff]
        %v4302 = vld [vmem:[#allocation2 + $0xb0] sm:$0xff]
        %v4303 = vld [vmem:[#allocation2 + $0xb8] sm:$0xff]
        %v4304 = vld [vmem:[#allocation2 + $0xc0] sm:$0xff]
        %v4305 = vld [vmem:[#allocation2 + $0xc8] sm:$0xff]
        %v4306 = vld [vmem:[#allocation2 + $0xd0] sm:$0xff]
        %v4307 = vld [vmem:[#allocation2 + $0xd8] sm:$0xff]
        %v4308 = vld [vmem:[#allocation2 + $0xe0] sm:$0xff]
        %v4309 = vld [vmem:[#allocation2 + $0xe8] sm:$0xff]
        %v4310 = vld [vmem:[#allocation2 + $0xf0] sm:$0xff]
        %v4311 = vld [vmem:[#allocation2 + $0xf8] sm:$0xff]
        %v4312 = vld [vmem:[#allocation2 + $0x100] sm:$0xff]
        %v4313 = vld [vmem:[#allocation2 + $0x108] sm:$0xff]
        %v4314 = vld [vmem:[#allocation2 + $0x110] sm:$0xff]
        %v4315 = vld [vmem:[#allocation2 + $0x118] sm:$0xff]
        %v4316 = vld [vmem:[#allocation2 + $0x120] sm:$0xff]
        %v4317 = vld [vmem:[#allocation2 + $0x128] sm:$0xff]
        %v4318 = vld [vmem:[#allocation2 + $0x130] sm:$0xff]
        %v4319 = vld [vmem:[#allocation2 + $0x138] sm:$0xff]
        %v4320 = vld [vmem:[#allocation2 + $0x140] sm:$0xff]
        %v4321 = vld [vmem:[#allocation2 + $0x148] sm:$0xff]
        %v4322 = vld [vmem:[#allocation2 + $0x150] sm:$0xff]
        %v4323 = vld [vmem:[#allocation2 + $0x158] sm:$0xff]
        %v4324 = vld [vmem:[#allocation2 + $0x160] sm:$0xff]
        %v4325 = vld [vmem:[#allocation2 + $0x168] sm:$0xff]
        %v4326 = vld [vmem:[#allocation2 + $0x170] sm:$0xff]
        %v4327 = vld [vmem:[#allocation2 + $0x178] sm:$0xff]
        %v4328 = vld [vmem:[#allocation2 + $0x180] sm:$0xff]
        %v4329 = vld [vmem:[#allocation2 + $0x188] sm:$0xff]
        %v4330 = vld [vmem:[#allocation2 + $0x190] sm:$0xff]
        %v4331 = vld [vmem:[#allocation2 + $0x198] sm:$0xff]
        %v4332 = vld [vmem:[#allocation2 + $0x1a0] sm:$0xff]
        %v4333 = vld [vmem:[#allocation2 + $0x1a8] sm:$0xff]
        %4334 = vst.msk [vmem:[#allocation3] sm:$0xff] %vm476, %v4280
        %4335 = vst.msk [vmem:[#allocation3 + $0x8] sm:$0xff] %vm476, %v4281
        %4336 = vst.msk [vmem:[#allocation3 + $0x10] sm:$0xff] %vm476, %v4283
        %4337 = vst.msk [vmem:[#allocation3 + $0x18] sm:$0xff] %vm476, %v4284
        %4338 = vst.msk [vmem:[#allocation3 + $0x20] sm:$0xff] %vm476, %v4286
        %4339 = vst.msk [vmem:[#allocation3 + $0x28] sm:$0xff] %vm476, %v4287
        %4340 = vst.msk [vmem:[#allocation3 + $0x30] sm:$0xff] %vm476, %v4289
        %4341 = vst.msk [vmem:[#allocation3 + $0x38] sm:$0xff] %vm476, %v4290
        %4342 = vst.msk [vmem:[#allocation3 + $0x40] sm:$0xff] %vm476, %v4292
        %4343 = vst.msk [vmem:[#allocation3 + $0x48] sm:$0xff] %vm476, %v4293
        %4344 = vst.msk [vmem:[#allocation3 + $0x50] sm:$0xff] %vm476, %v4295
        %4345 = vst.msk [vmem:[#allocation3 + $0x58] sm:$0xff] %vm476, %v4296
        %4346 = vst.msk [vmem:[#allocation3 + $0x60] sm:$0xff] %vm476, %v4298
        %4347 = vst.msk [vmem:[#allocation3 + $0x68] sm:$0xff] %vm476, %v4299
        %4348 = vst.msk [vmem:[#allocation3 + $0x70] sm:$0xff] %vm476, %v4301
        %4349 = vst.msk [vmem:[#allocation3 + $0x78] sm:$0xff] %vm476, %v4302
        %4350 = vst.msk [vmem:[#allocation3 + $0x80] sm:$0xff] %vm476, %v4304
        %4351 = vst.msk [vmem:[#allocation3 + $0x88] sm:$0xff] %vm476, %v4305
        %4352 = vst.msk [vmem:[#allocation3 + $0x90] sm:$0xff] %vm476, %v4307
        %4353 = vst.msk [vmem:[#allocation3 + $0x98] sm:$0xff] %vm476, %v4308
        %4354 = vst.msk [vmem:[#allocation3 + $0xa0] sm:$0xff] %vm476, %v4310
        %4355 = vst.msk [vmem:[#allocation3 + $0xa8] sm:$0xff] %vm476, %v4311
        %4356 = vst.msk [vmem:[#allocation3 + $0xb0] sm:$0xff] %vm476, %v4313
        %4357 = vst.msk [vmem:[#allocation3 + $0xb8] sm:$0xff] %vm476, %v4314
        %4358 = vst.msk [vmem:[#allocation3 + $0xc0] sm:$0xff] %vm476, %v4316
        %4359 = vst.msk [vmem:[#allocation3 + $0xc8] sm:$0xff] %vm476, %v4317
        %4360 = vst.msk [vmem:[#allocation3 + $0xd0] sm:$0xff] %vm476, %v4319
        %4361 = vst.msk [vmem:[#allocation3 + $0xd8] sm:$0xff] %vm476, %v4320
        %4362 = vst.msk [vmem:[#allocation3 + $0xe0] sm:$0xff] %vm476, %v4322
        %4363 = vst.msk [vmem:[#allocation3 + $0xe8] sm:$0xff] %vm476, %v4323
        %4364 = vst.msk [vmem:[#allocation3 + $0xf0] sm:$0xff] %vm476, %v4325
        %4365 = vst.msk [vmem:[#allocation3 + $0xf8] sm:$0xff] %vm476, %v4326
        %v4414 = vrot.slane %v4280, 1
        %v4415 = vrot.slane %v4281, 1
        %v4416 = vsel %vm785, %v4414, %v4415
        %v4417 = vrot.slane %v4282, 1
        %v4418 = vsel %vm785, %v4415, %v4417
        %v4419 = vrot.slane %v4283, 1
        %v4420 = vrot.slane %v4284, 1
        %v4421 = vsel %vm785, %v4419, %v4420
        %v4422 = vrot.slane %v4285, 1
        %v4423 = vsel %vm785, %v4420, %v4422
        %v4424 = vrot.slane %v4286, 1
        %v4425 = vrot.slane %v4287, 1
        %v4426 = vsel %vm785, %v4424, %v4425
        %v4427 = vrot.slane %v4288, 1
        %v4428 = vsel %vm785, %v4425, %v4427
        %v4429 = vrot.slane %v4289, 1
        %v4430 = vrot.slane %v4290, 1
        %v4431 = vsel %vm785, %v4429, %v4430
        %v4432 = vrot.slane %v4291, 1
        %v4433 = vsel %vm785, %v4430, %v4432
        %v4434 = vrot.slane %v4292, 1
        %v4435 = vrot.slane %v4293, 1
        %v4436 = vsel %vm785, %v4434, %v4435
        %v4437 = vrot.slane %v4294, 1
        %v4438 = vsel %vm785, %v4435, %v4437
        %v4439 = vrot.slane %v4295, 1
        %v4440 = vrot.slane %v4296, 1
        %v4441 = vsel %vm785, %v4439, %v4440
        %v4442 = vrot.slane %v4297, 1
        %v4443 = vsel %vm785, %v4440, %v4442
        %v4444 = vrot.slane %v4298, 1
        %v4445 = vrot.slane %v4299, 1
        %v4446 = vsel %vm785, %v4444, %v4445
        %v4447 = vrot.slane %v4300, 1
        %v4448 = vsel %vm785, %v4445, %v4447
        %v4449 = vrot.slane %v4301, 1
        %v4450 = vrot.slane %v4302, 1
        %v4451 = vsel %vm785, %v4449, %v4450
        %v4452 = vrot.slane %v4303, 1
        %v4453 = vsel %vm785, %v4450, %v4452
        %v4454 = vrot.slane %v4304, 1
        %v4455 = vrot.slane %v4305, 1
        %v4456 = vsel %vm785, %v4454, %v4455
        %v4457 = vrot.slane %v4306, 1
        %v4458 = vsel %vm785, %v4455, %v4457
        %v4459 = vrot.slane %v4307, 1
        %v4460 = vrot.slane %v4308, 1
        %v4461 = vsel %vm785, %v4459, %v4460
        %v4462 = vrot.slane %v4309, 1
        %v4463 = vsel %vm785, %v4460, %v4462
        %v4464 = vrot.slane %v4310, 1
        %v4465 = vrot.slane %v4311, 1
        %v4466 = vsel %vm785, %v4464, %v4465
        %v4467 = vrot.slane %v4312, 1
        %v4468 = vsel %vm785, %v4465, %v4467
        %v4469 = vrot.slane %v4313, 1
        %v4470 = vrot.slane %v4314, 1
        %v4471 = vsel %vm785, %v4469, %v4470
        %v4472 = vrot.slane %v4315, 1
        %v4473 = vsel %vm785, %v4470, %v4472
        %v4474 = vrot.slane %v4316, 1
        %v4475 = vrot.slane %v4317, 1
        %v4476 = vsel %vm785, %v4474, %v4475
        %v4477 = vrot.slane %v4318, 1
        %v4478 = vsel %vm785, %v4475, %v4477
        %v4479 = vrot.slane %v4319, 1
        %v4480 = vrot.slane %v4320, 1
        %v4481 = vsel %vm785, %v4479, %v4480
        %v4482 = vrot.slane %v4321, 1
        %v4483 = vsel %vm785, %v4480, %v4482
        %v4484 = vrot.slane %v4322, 1
        %v4485 = vrot.slane %v4323, 1
        %v4486 = vsel %vm785, %v4484, %v4485
        %v4487 = vrot.slane %v4324, 1
        %v4488 = vsel %vm785, %v4485, %v4487
        %v4489 = vrot.slane %v4325, 1
        %v4490 = vrot.slane %v4326, 1
        %v4491 = vsel %vm785, %v4489, %v4490
        %v4492 = vrot.slane %v4327, 1
        %v4493 = vsel %vm785, %v4490, %v4492
        %4494 = vrot.lane.b32.xlu0 %v4416, 8
        %v4495 = vpop.permute.xlu0 %4494
        %4496 = vrot.lane.b32.xlu0 %v4418, 8
        %v4497 = vpop.permute.xlu0 %4496
        %4498 = vrot.lane.b32.xlu0 %v4421, 8
        %v4499 = vpop.permute.xlu0 %4498
        %4500 = vrot.lane.b32.xlu0 %v4423, 8
        %v4501 = vpop.permute.xlu0 %4500
        %4502 = vrot.lane.b32.xlu0 %v4426, 8
        %v4503 = vpop.permute.xlu0 %4502
        %4504 = vrot.lane.b32.xlu0 %v4428, 8
        %v4505 = vpop.permute.xlu0 %4504
        %4506 = vrot.lane.b32.xlu0 %v4431, 8
        %v4507 = vpop.permute.xlu0 %4506
        %4508 = vrot.lane.b32.xlu0 %v4433, 8
        %v4509 = vpop.permute.xlu0 %4508
        %4510 = vrot.lane.b32.xlu0 %v4436, 8
        %v4511 = vpop.permute.xlu0 %4510
        %4512 = vrot.lane.b32.xlu0 %v4438, 8
        %v4513 = vpop.permute.xlu0 %4512
        %4514 = vrot.lane.b32.xlu0 %v4441, 8
        %v4515 = vpop.permute.xlu0 %4514
        %4516 = vrot.lane.b32.xlu0 %v4443, 8
        %v4517 = vpop.permute.xlu0 %4516
        %4518 = vrot.lane.b32.xlu0 %v4446, 8
        %v4519 = vpop.permute.xlu0 %4518
        %4520 = vrot.lane.b32.xlu0 %v4448, 8
        %v4521 = vpop.permute.xlu0 %4520
        %4522 = vrot.lane.b32.xlu0 %v4451, 8
        %v4523 = vpop.permute.xlu0 %4522
        %4524 = vrot.lane.b32.xlu0 %v4453, 8
        %v4525 = vpop.permute.xlu0 %4524
        %4526 = vrot.lane.b32.xlu0 %v4456, 8
        %v4527 = vpop.permute.xlu0 %4526
        %4528 = vrot.lane.b32.xlu0 %v4458, 8
        %v4529 = vpop.permute.xlu0 %4528
        %4530 = vrot.lane.b32.xlu0 %v4461, 8
        %v4531 = vpop.permute.xlu0 %4530
        %4532 = vrot.lane.b32.xlu0 %v4463, 8
        %v4533 = vpop.permute.xlu0 %4532
        %4534 = vrot.lane.b32.xlu0 %v4466, 8
        %v4535 = vpop.permute.xlu0 %4534
        %4536 = vrot.lane.b32.xlu0 %v4468, 8
        %v4537 = vpop.permute.xlu0 %4536
        %4538 = vrot.lane.b32.xlu0 %v4471, 8
        %v4539 = vpop.permute.xlu0 %4538
        %4540 = vrot.lane.b32.xlu0 %v4473, 8
        %v4541 = vpop.permute.xlu0 %4540
        %4542 = vrot.lane.b32.xlu0 %v4476, 8
        %v4543 = vpop.permute.xlu0 %4542
        %4544 = vrot.lane.b32.xlu0 %v4478, 8
        %v4545 = vpop.permute.xlu0 %4544
        %4546 = vrot.lane.b32.xlu0 %v4481, 8
        %v4547 = vpop.permute.xlu0 %4546
        %4548 = vrot.lane.b32.xlu0 %v4483, 8
        %v4549 = vpop.permute.xlu0 %4548
        %4550 = vrot.lane.b32.xlu0 %v4486, 8
        %v4551 = vpop.permute.xlu0 %4550
        %4552 = vrot.lane.b32.xlu0 %v4488, 8
        %v4553 = vpop.permute.xlu0 %4552
        %4554 = vrot.lane.b32.xlu0 %v4491, 8
        %v4555 = vpop.permute.xlu0 %4554
        %4556 = vrot.lane.b32.xlu0 %v4493, 8
        %v4557 = vpop.permute.xlu0 %4556
        %4590 = vst.msk [vmem:[#allocation3] sm:$0xff] %vm962, %v4495
        %4591 = vst.msk [vmem:[#allocation3 + $0x8] sm:$0xff] %vm962, %v4497
        %4592 = vst.msk [vmem:[#allocation3 + $0x10] sm:$0xff] %vm962, %v4499
        %4593 = vst.msk [vmem:[#allocation3 + $0x18] sm:$0xff] %vm962, %v4501
        %4594 = vst.msk [vmem:[#allocation3 + $0x20] sm:$0xff] %vm962, %v4503
        %4595 = vst.msk [vmem:[#allocation3 + $0x28] sm:$0xff] %vm962, %v4505
        %4596 = vst.msk [vmem:[#allocation3 + $0x30] sm:$0xff] %vm962, %v4507
        %4597 = vst.msk [vmem:[#allocation3 + $0x38] sm:$0xff] %vm962, %v4509
        %4598 = vst.msk [vmem:[#allocation3 + $0x40] sm:$0xff] %vm962, %v4511
        %4599 = vst.msk [vmem:[#allocation3 + $0x48] sm:$0xff] %vm962, %v4513
        %4600 = vst.msk [vmem:[#allocation3 + $0x50] sm:$0xff] %vm962, %v4515
        %4601 = vst.msk [vmem:[#allocation3 + $0x58] sm:$0xff] %vm962, %v4517
        %4602 = vst.msk [vmem:[#allocation3 + $0x60] sm:$0xff] %vm962, %v4519
        %4603 = vst.msk [vmem:[#allocation3 + $0x68] sm:$0xff] %vm962, %v4521
        %4604 = vst.msk [vmem:[#allocation3 + $0x70] sm:$0xff] %vm962, %v4523
        %4605 = vst.msk [vmem:[#allocation3 + $0x78] sm:$0xff] %vm962, %v4525
        %4606 = vst.msk [vmem:[#allocation3 + $0x80] sm:$0xff] %vm962, %v4527
        %4607 = vst.msk [vmem:[#allocation3 + $0x88] sm:$0xff] %vm962, %v4529
        %4608 = vst.msk [vmem:[#allocation3 + $0x90] sm:$0xff] %vm962, %v4531
        %4609 = vst.msk [vmem:[#allocation3 + $0x98] sm:$0xff] %vm962, %v4533
        %4610 = vst.msk [vmem:[#allocation3 + $0xa0] sm:$0xff] %vm962, %v4535
        %4611 = vst.msk [vmem:[#allocation3 + $0xa8] sm:$0xff] %vm962, %v4537
        %4612 = vst.msk [vmem:[#allocation3 + $0xb0] sm:$0xff] %vm962, %v4539
        %4613 = vst.msk [vmem:[#allocation3 + $0xb8] sm:$0xff] %vm962, %v4541
        %4614 = vst.msk [vmem:[#allocation3 + $0xc0] sm:$0xff] %vm962, %v4543
        %4615 = vst.msk [vmem:[#allocation3 + $0xc8] sm:$0xff] %vm962, %v4545
        %4616 = vst.msk [vmem:[#allocation3 + $0xd0] sm:$0xff] %vm962, %v4547
        %4617 = vst.msk [vmem:[#allocation3 + $0xd8] sm:$0xff] %vm962, %v4549
        %4618 = vst.msk [vmem:[#allocation3 + $0xe0] sm:$0xff] %vm962, %v4551
        %4619 = vst.msk [vmem:[#allocation3 + $0xe8] sm:$0xff] %vm962, %v4553
        %4620 = vst.msk [vmem:[#allocation3 + $0xf0] sm:$0xff] %vm962, %v4555
        %4621 = vst.msk [vmem:[#allocation3 + $0xf8] sm:$0xff] %vm962, %v4557
        %v4622 = vrot.slane %v4280, 2
        %v4623 = vrot.slane %v4281, 2
        %v4624 = vsel %vm995, %v4622, %v4623
        %v4625 = vrot.slane %v4282, 2
        %v4626 = vsel %vm995, %v4623, %v4625
        %v4627 = vrot.slane %v4283, 2
        %v4628 = vrot.slane %v4284, 2
        %v4629 = vsel %vm995, %v4627, %v4628
        %v4630 = vrot.slane %v4285, 2
        %v4631 = vsel %vm995, %v4628, %v4630
        %v4632 = vrot.slane %v4286, 2
        %v4633 = vrot.slane %v4287, 2
        %v4634 = vsel %vm995, %v4632, %v4633
        %v4635 = vrot.slane %v4288, 2
        %v4636 = vsel %vm995, %v4633, %v4635
        %v4637 = vrot.slane %v4289, 2
        %v4638 = vrot.slane %v4290, 2
        %v4639 = vsel %vm995, %v4637, %v4638
        %v4640 = vrot.slane %v4291, 2
        %v4641 = vsel %vm995, %v4638, %v4640
        %v4642 = vrot.slane %v4292, 2
        %v4643 = vrot.slane %v4293, 2
        %v4644 = vsel %vm995, %v4642, %v4643
        %v4645 = vrot.slane %v4294, 2
        %v4646 = vsel %vm995, %v4643, %v4645
        %v4647 = vrot.slane %v4295, 2
        %v4648 = vrot.slane %v4296, 2
        %v4649 = vsel %vm995, %v4647, %v4648
        %v4650 = vrot.slane %v4297, 2
        %v4651 = vsel %vm995, %v4648, %v4650
        %v4652 = vrot.slane %v4298, 2
        %v4653 = vrot.slane %v4299, 2
        %v4654 = vsel %vm995, %v4652, %v4653
        %v4655 = vrot.slane %v4300, 2
        %v4656 = vsel %vm995, %v4653, %v4655
        %v4657 = vrot.slane %v4301, 2
        %v4658 = vrot.slane %v4302, 2
        %v4659 = vsel %vm995, %v4657, %v4658
        %v4660 = vrot.slane %v4303, 2
        %v4661 = vsel %vm995, %v4658, %v4660
        %v4662 = vrot.slane %v4304, 2
        %v4663 = vrot.slane %v4305, 2
        %v4664 = vsel %vm995, %v4662, %v4663
        %v4665 = vrot.slane %v4306, 2
        %v4666 = vsel %vm995, %v4663, %v4665
        %v4667 = vrot.slane %v4307, 2
        %v4668 = vrot.slane %v4308, 2
        %v4669 = vsel %vm995, %v4667, %v4668
        %v4670 = vrot.slane %v4309, 2
        %v4671 = vsel %vm995, %v4668, %v4670
        %v4672 = vrot.slane %v4310, 2
        %v4673 = vrot.slane %v4311, 2
        %v4674 = vsel %vm995, %v4672, %v4673
        %v4675 = vrot.slane %v4312, 2
        %v4676 = vsel %vm995, %v4673, %v4675
        %v4677 = vrot.slane %v4313, 2
        %v4678 = vrot.slane %v4314, 2
        %v4679 = vsel %vm995, %v4677, %v4678
        %v4680 = vrot.slane %v4315, 2
        %v4681 = vsel %vm995, %v4678, %v4680
        %v4682 = vrot.slane %v4316, 2
        %v4683 = vrot.slane %v4317, 2
        %v4684 = vsel %vm995, %v4682, %v4683
        %v4685 = vrot.slane %v4318, 2
        %v4686 = vsel %vm995, %v4683, %v4685
        %v4687 = vrot.slane %v4319, 2
        %v4688 = vrot.slane %v4320, 2
        %v4689 = vsel %vm995, %v4687, %v4688
        %v4690 = vrot.slane %v4321, 2
        %v4691 = vsel %vm995, %v4688, %v4690
        %v4692 = vrot.slane %v4322, 2
        %v4693 = vrot.slane %v4323, 2
        %v4694 = vsel %vm995, %v4692, %v4693
        %v4695 = vrot.slane %v4324, 2
        %v4696 = vsel %vm995, %v4693, %v4695
        %v4697 = vrot.slane %v4325, 2
        %v4698 = vrot.slane %v4326, 2
        %v4699 = vsel %vm995, %v4697, %v4698
        %v4700 = vrot.slane %v4327, 2
        %v4701 = vsel %vm995, %v4698, %v4700
        %4702 = vrot.lane.b32.xlu0 %v4624, 16
        %v4703 = vpop.permute.xlu0 %4702
        %4704 = vrot.lane.b32.xlu0 %v4626, 16
        %v4705 = vpop.permute.xlu0 %4704
        %4706 = vrot.lane.b32.xlu0 %v4629, 16
        %v4707 = vpop.permute.xlu0 %4706
        %4708 = vrot.lane.b32.xlu0 %v4631, 16
        %v4709 = vpop.permute.xlu0 %4708
        %4710 = vrot.lane.b32.xlu0 %v4634, 16
        %v4711 = vpop.permute.xlu0 %4710
        %4712 = vrot.lane.b32.xlu0 %v4636, 16
        %v4713 = vpop.permute.xlu0 %4712
        %4714 = vrot.lane.b32.xlu0 %v4639, 16
        %v4715 = vpop.permute.xlu0 %4714
        %4716 = vrot.lane.b32.xlu0 %v4641, 16
        %v4717 = vpop.permute.xlu0 %4716
        %4718 = vrot.lane.b32.xlu0 %v4644, 16
        %v4719 = vpop.permute.xlu0 %4718
        %4720 = vrot.lane.b32.xlu0 %v4646, 16
        %v4721 = vpop.permute.xlu0 %4720
        %4722 = vrot.lane.b32.xlu0 %v4649, 16
        %v4723 = vpop.permute.xlu0 %4722
        %4724 = vrot.lane.b32.xlu0 %v4651, 16
        %v4725 = vpop.permute.xlu0 %4724
        %4726 = vrot.lane.b32.xlu0 %v4654, 16
        %v4727 = vpop.permute.xlu0 %4726
        %4728 = vrot.lane.b32.xlu0 %v4656, 16
        %v4729 = vpop.permute.xlu0 %4728
        %4730 = vrot.lane.b32.xlu0 %v4659, 16
        %v4731 = vpop.permute.xlu0 %4730
        %4732 = vrot.lane.b32.xlu0 %v4661, 16
        %v4733 = vpop.permute.xlu0 %4732
        %4734 = vrot.lane.b32.xlu0 %v4664, 16
        %v4735 = vpop.permute.xlu0 %4734
        %4736 = vrot.lane.b32.xlu0 %v4666, 16
        %v4737 = vpop.permute.xlu0 %4736
        %4738 = vrot.lane.b32.xlu0 %v4669, 16
        %v4739 = vpop.permute.xlu0 %4738
        %4740 = vrot.lane.b32.xlu0 %v4671, 16
        %v4741 = vpop.permute.xlu0 %4740
        %4742 = vrot.lane.b32.xlu0 %v4674, 16
        %v4743 = vpop.permute.xlu0 %4742
        %4744 = vrot.lane.b32.xlu0 %v4676, 16
        %v4745 = vpop.permute.xlu0 %4744
        %4746 = vrot.lane.b32.xlu0 %v4679, 16
        %v4747 = vpop.permute.xlu0 %4746
        %4748 = vrot.lane.b32.xlu0 %v4681, 16
        %v4749 = vpop.permute.xlu0 %4748
        %4750 = vrot.lane.b32.xlu0 %v4684, 16
        %v4751 = vpop.permute.xlu0 %4750
        %4752 = vrot.lane.b32.xlu0 %v4686, 16
        %v4753 = vpop.permute.xlu0 %4752
        %4754 = vrot.lane.b32.xlu0 %v4689, 16
        %v4755 = vpop.permute.xlu0 %4754
        %4756 = vrot.lane.b32.xlu0 %v4691, 16
        %v4757 = vpop.permute.xlu0 %4756
        %4758 = vrot.lane.b32.xlu0 %v4694, 16
        %v4759 = vpop.permute.xlu0 %4758
        %4760 = vrot.lane.b32.xlu0 %v4696, 16
        %v4761 = vpop.permute.xlu0 %4760
        %4762 = vrot.lane.b32.xlu0 %v4699, 16
        %v4763 = vpop.permute.xlu0 %4762
        %4764 = vrot.lane.b32.xlu0 %v4701, 16
        %v4765 = vpop.permute.xlu0 %4764
        %4798 = vst.msk [vmem:[#allocation3] sm:$0xff] %vm1172, %v4703
        %4799 = vst.msk [vmem:[#allocation3 + $0x8] sm:$0xff] %vm1172, %v4705
        %4800 = vst.msk [vmem:[#allocation3 + $0x10] sm:$0xff] %vm1172, %v4707
        %4801 = vst.msk [vmem:[#allocation3 + $0x18] sm:$0xff] %vm1172, %v4709
        %4802 = vst.msk [vmem:[#allocation3 + $0x20] sm:$0xff] %vm1172, %v4711
        %4803 = vst.msk [vmem:[#allocation3 + $0x28] sm:$0xff] %vm1172, %v4713
        %4804 = vst.msk [vmem:[#allocation3 + $0x30] sm:$0xff] %vm1172, %v4715
        %4805 = vst.msk [vmem:[#allocation3 + $0x38] sm:$0xff] %vm1172, %v4717
        %4806 = vst.msk [vmem:[#allocation3 + $0x40] sm:$0xff] %vm1172, %v4719
        %4807 = vst.msk [vmem:[#allocation3 + $0x48] sm:$0xff] %vm1172, %v4721
        %4808 = vst.msk [vmem:[#allocation3 + $0x50] sm:$0xff] %vm1172, %v4723
        %4809 = vst.msk [vmem:[#allocation3 + $0x58] sm:$0xff] %vm1172, %v4725
        %4810 = vst.msk [vmem:[#allocation3 + $0x60] sm:$0xff] %vm1172, %v4727
        %4811 = vst.msk [vmem:[#allocation3 + $0x68] sm:$0xff] %vm1172, %v4729
        %4812 = vst.msk [vmem:[#allocation3 + $0x70] sm:$0xff] %vm1172, %v4731
        %4813 = vst.msk [vmem:[#allocation3 + $0x78] sm:$0xff] %vm1172, %v4733
        %4814 = vst.msk [vmem:[#allocation3 + $0x80] sm:$0xff] %vm1172, %v4735
        %4815 = vst.msk [vmem:[#allocation3 + $0x88] sm:$0xff] %vm1172, %v4737
        %4816 = vst.msk [vmem:[#allocation3 + $0x90] sm:$0xff] %vm1172, %v4739
        %4817 = vst.msk [vmem:[#allocation3 + $0x98] sm:$0xff] %vm1172, %v4741
        %4818 = vst.msk [vmem:[#allocation3 + $0xa0] sm:$0xff] %vm1172, %v4743
        %4819 = vst.msk [vmem:[#allocation3 + $0xa8] sm:$0xff] %vm1172, %v4745
        %4820 = vst.msk [vmem:[#allocation3 + $0xb0] sm:$0xff] %vm1172, %v4747
        %4821 = vst.msk [vmem:[#allocation3 + $0xb8] sm:$0xff] %vm1172, %v4749
        %4822 = vst.msk [vmem:[#allocation3 + $0xc0] sm:$0xff] %vm1172, %v4751
        %4823 = vst.msk [vmem:[#allocation3 + $0xc8] sm:$0xff] %vm1172, %v4753
        %4824 = vst.msk [vmem:[#allocation3 + $0xd0] sm:$0xff] %vm1172, %v4755
        %4825 = vst.msk [vmem:[#allocation3 + $0xd8] sm:$0xff] %vm1172, %v4757
        %4826 = vst.msk [vmem:[#allocation3 + $0xe0] sm:$0xff] %vm1172, %v4759
        %4827 = vst.msk [vmem:[#allocation3 + $0xe8] sm:$0xff] %vm1172, %v4761
        %4828 = vst.msk [vmem:[#allocation3 + $0xf0] sm:$0xff] %vm1172, %v4763
        %4829 = vst.msk [vmem:[#allocation3 + $0xf8] sm:$0xff] %vm1172, %v4765
        %4832 = vrot.lane.b32.xlu0 %v4283, 24
        %v4833 = vpop.permute.xlu0 %4832
        %4834 = vrot.lane.b32.xlu0 %v4284, 24
        %v4835 = vpop.permute.xlu0 %4834
        %4836 = vrot.lane.b32.xlu0 %v4286, 24
        %v4837 = vpop.permute.xlu0 %4836
        %4838 = vrot.lane.b32.xlu0 %v4287, 24
        %v4839 = vpop.permute.xlu0 %4838
        %4840 = vrot.lane.b32.xlu0 %v4289, 24
        %v4841 = vpop.permute.xlu0 %4840
        %4842 = vrot.lane.b32.xlu0 %v4290, 24
        %v4843 = vpop.permute.xlu0 %4842
        %4844 = vrot.lane.b32.xlu0 %v4292, 24
        %v4845 = vpop.permute.xlu0 %4844
        %4846 = vrot.lane.b32.xlu0 %v4293, 24
        %v4847 = vpop.permute.xlu0 %4846
        %4848 = vrot.lane.b32.xlu0 %v4295, 24
        %v4849 = vpop.permute.xlu0 %4848
        %4850 = vrot.lane.b32.xlu0 %v4296, 24
        %v4851 = vpop.permute.xlu0 %4850
        %4852 = vrot.lane.b32.xlu0 %v4298, 24
        %v4853 = vpop.permute.xlu0 %4852
        %4854 = vrot.lane.b32.xlu0 %v4299, 24
        %v4855 = vpop.permute.xlu0 %4854
        %4856 = vrot.lane.b32.xlu0 %v4301, 24
        %v4857 = vpop.permute.xlu0 %4856
        %4858 = vrot.lane.b32.xlu0 %v4302, 24
        %v4859 = vpop.permute.xlu0 %4858
        %4860 = vrot.lane.b32.xlu0 %v4304, 24
        %v4861 = vpop.permute.xlu0 %4860
        %4862 = vrot.lane.b32.xlu0 %v4305, 24
        %v4863 = vpop.permute.xlu0 %4862
        %4864 = vrot.lane.b32.xlu0 %v4307, 24
        %v4865 = vpop.permute.xlu0 %4864
        %4866 = vrot.lane.b32.xlu0 %v4308, 24
        %v4867 = vpop.permute.xlu0 %4866
        %4868 = vrot.lane.b32.xlu0 %v4310, 24
        %v4869 = vpop.permute.xlu0 %4868
        %4870 = vrot.lane.b32.xlu0 %v4311, 24
        %v4871 = vpop.permute.xlu0 %4870
        %4872 = vrot.lane.b32.xlu0 %v4313, 24
        %v4873 = vpop.permute.xlu0 %4872
        %4874 = vrot.lane.b32.xlu0 %v4314, 24
        %v4875 = vpop.permute.xlu0 %4874
        %4876 = vrot.lane.b32.xlu0 %v4316, 24
        %v4877 = vpop.permute.xlu0 %4876
        %4878 = vrot.lane.b32.xlu0 %v4317, 24
        %v4879 = vpop.permute.xlu0 %4878
        %4880 = vrot.lane.b32.xlu0 %v4319, 24
        %v4881 = vpop.permute.xlu0 %4880
        %4882 = vrot.lane.b32.xlu0 %v4320, 24
        %v4883 = vpop.permute.xlu0 %4882
        %4884 = vrot.lane.b32.xlu0 %v4322, 24
        %v4885 = vpop.permute.xlu0 %4884
        %4886 = vrot.lane.b32.xlu0 %v4323, 24
        %v4887 = vpop.permute.xlu0 %4886
        %4888 = vrot.lane.b32.xlu0 %v4325, 24
        %v4889 = vpop.permute.xlu0 %4888
        %4890 = vrot.lane.b32.xlu0 %v4326, 24
        %v4891 = vpop.permute.xlu0 %4890
        %4892 = vrot.lane.b32.xlu0 %v4328, 24
        %v4893 = vpop.permute.xlu0 %4892
        %4894 = vrot.lane.b32.xlu0 %v4329, 24
        %v4895 = vpop.permute.xlu0 %4894
        %4928 = vst.msk [vmem:[#allocation3] sm:$0xff] %vm1303, %v4833
        %4929 = vst.msk [vmem:[#allocation3 + $0x8] sm:$0xff] %vm1303, %v4835
        %4930 = vst.msk [vmem:[#allocation3 + $0x10] sm:$0xff] %vm1303, %v4837
        %4931 = vst.msk [vmem:[#allocation3 + $0x18] sm:$0xff] %vm1303, %v4839
        %4932 = vst.msk [vmem:[#allocation3 + $0x20] sm:$0xff] %vm1303, %v4841
        %4933 = vst.msk [vmem:[#allocation3 + $0x28] sm:$0xff] %vm1303, %v4843
        %4934 = vst.msk [vmem:[#allocation3 + $0x30] sm:$0xff] %vm1303, %v4845
        %4935 = vst.msk [vmem:[#allocation3 + $0x38] sm:$0xff] %vm1303, %v4847
        %4936 = vst.msk [vmem:[#allocation3 + $0x40] sm:$0xff] %vm1303, %v4849
        %4937 = vst.msk [vmem:[#allocation3 + $0x48] sm:$0xff] %vm1303, %v4851
        %4938 = vst.msk [vmem:[#allocation3 + $0x50] sm:$0xff] %vm1303, %v4853
        %4939 = vst.msk [vmem:[#allocation3 + $0x58] sm:$0xff] %vm1303, %v4855
        %4940 = vst.msk [vmem:[#allocation3 + $0x60] sm:$0xff] %vm1303, %v4857
        %4941 = vst.msk [vmem:[#allocation3 + $0x68] sm:$0xff] %vm1303, %v4859
        %4942 = vst.msk [vmem:[#allocation3 + $0x70] sm:$0xff] %vm1303, %v4861
        %4943 = vst.msk [vmem:[#allocation3 + $0x78] sm:$0xff] %vm1303, %v4863
        %4944 = vst.msk [vmem:[#allocation3 + $0x80] sm:$0xff] %vm1303, %v4865
        %4945 = vst.msk [vmem:[#allocation3 + $0x88] sm:$0xff] %vm1303, %v4867
        %4946 = vst.msk [vmem:[#allocation3 + $0x90] sm:$0xff] %vm1303, %v4869
        %4947 = vst.msk [vmem:[#allocation3 + $0x98] sm:$0xff] %vm1303, %v4871
        %4948 = vst.msk [vmem:[#allocation3 + $0xa0] sm:$0xff] %vm1303, %v4873
        %4949 = vst.msk [vmem:[#allocation3 + $0xa8] sm:$0xff] %vm1303, %v4875
        %4950 = vst.msk [vmem:[#allocation3 + $0xb0] sm:$0xff] %vm1303, %v4877
        %4951 = vst.msk [vmem:[#allocation3 + $0xb8] sm:$0xff] %vm1303, %v4879
        %4952 = vst.msk [vmem:[#allocation3 + $0xc0] sm:$0xff] %vm1303, %v4881
        %4953 = vst.msk [vmem:[#allocation3 + $0xc8] sm:$0xff] %vm1303, %v4883
        %4954 = vst.msk [vmem:[#allocation3 + $0xd0] sm:$0xff] %vm1303, %v4885
        %4955 = vst.msk [vmem:[#allocation3 + $0xd8] sm:$0xff] %vm1303, %v4887
        %4956 = vst.msk [vmem:[#allocation3 + $0xe0] sm:$0xff] %vm1303, %v4889
        %4957 = vst.msk [vmem:[#allocation3 + $0xe8] sm:$0xff] %vm1303, %v4891
        %4958 = vst.msk [vmem:[#allocation3 + $0xf0] sm:$0xff] %vm1303, %v4893
        %4959 = vst.msk [vmem:[#allocation3 + $0xf8] sm:$0xff] %vm1303, %v4895
        %v4961 = vrot.slane %v4328, 1
        %v4962 = vrot.slane %v4329, 1
        %v4963 = vsel %vm785, %v4961, %v4962
        %v4964 = vrot.slane %v4330, 1
        %v4965 = vsel %vm785, %v4962, %v4964
        %4966 = vrot.lane.b32.xlu0 %v4421, 32
        %v4967 = vpop.permute.xlu0 %4966
        %4968 = vrot.lane.b32.xlu0 %v4423, 32
        %v4969 = vpop.permute.xlu0 %4968
        %4970 = vrot.lane.b32.xlu0 %v4426, 32
        %v4971 = vpop.permute.xlu0 %4970
        %4972 = vrot.lane.b32.xlu0 %v4428, 32
        %v4973 = vpop.permute.xlu0 %4972
        %4974 = vrot.lane.b32.xlu0 %v4431, 32
        %v4975 = vpop.permute.xlu0 %4974
        %4976 = vrot.lane.b32.xlu0 %v4433, 32
        %v4977 = vpop.permute.xlu0 %4976
        %4978 = vrot.lane.b32.xlu0 %v4436, 32
        %v4979 = vpop.permute.xlu0 %4978
        %4980 = vrot.lane.b32.xlu0 %v4438, 32
        %v4981 = vpop.permute.xlu0 %4980
        %4982 = vrot.lane.b32.xlu0 %v4441, 32
        %v4983 = vpop.permute.xlu0 %4982
        %4984 = vrot.lane.b32.xlu0 %v4443, 32
        %v4985 = vpop.permute.xlu0 %4984
        %4986 = vrot.lane.b32.xlu0 %v4446, 32
        %v4987 = vpop.permute.xlu0 %4986
        %4988 = vrot.lane.b32.xlu0 %v4448, 32
        %v4989 = vpop.permute.xlu0 %4988
        %4990 = vrot.lane.b32.xlu0 %v4451, 32
        %v4991 = vpop.permute.xlu0 %4990
        %4992 = vrot.lane.b32.xlu0 %v4453, 32
        %v4993 = vpop.permute.xlu0 %4992
        %4994 = vrot.lane.b32.xlu0 %v4456, 32
        %v4995 = vpop.permute.xlu0 %4994
        %4996 = vrot.lane.b32.xlu0 %v4458, 32
        %v4997 = vpop.permute.xlu0 %4996
        %4998 = vrot.lane.b32.xlu0 %v4461, 32
        %v4999 = vpop.permute.xlu0 %4998
        %5000 = vrot.lane.b32.xlu0 %v4463, 32
        %v5001 = vpop.permute.xlu0 %5000
        %5002 = vrot.lane.b32.xlu0 %v4466, 32
        %v5003 = vpop.permute.xlu0 %5002
        %5004 = vrot.lane.b32.xlu0 %v4468, 32
        %v5005 = vpop.permute.xlu0 %5004
        %5006 = vrot.lane.b32.xlu0 %v4471, 32
        %v5007 = vpop.permute.xlu0 %5006
        %5008 = vrot.lane.b32.xlu0 %v4473, 32
        %v5009 = vpop.permute.xlu0 %5008
        %5010 = vrot.lane.b32.xlu0 %v4476, 32
        %v5011 = vpop.permute.xlu0 %5010
        %5012 = vrot.lane.b32.xlu0 %v4478, 32
        %v5013 = vpop.permute.xlu0 %5012
        %5014 = vrot.lane.b32.xlu0 %v4481, 32
        %v5015 = vpop.permute.xlu0 %5014
        %5016 = vrot.lane.b32.xlu0 %v4483, 32
        %v5017 = vpop.permute.xlu0 %5016
        %5018 = vrot.lane.b32.xlu0 %v4486, 32
        %v5019 = vpop.permute.xlu0 %5018
        %5020 = vrot.lane.b32.xlu0 %v4488, 32
        %v5021 = vpop.permute.xlu0 %5020
        %5022 = vrot.lane.b32.xlu0 %v4491, 32
        %v5023 = vpop.permute.xlu0 %5022
        %5024 = vrot.lane.b32.xlu0 %v4493, 32
        %v5025 = vpop.permute.xlu0 %5024
        %5026 = vrot.lane.b32.xlu0 %v4963, 32
        %v5027 = vpop.permute.xlu0 %5026
        %5028 = vrot.lane.b32.xlu0 %v4965, 32
        %v5029 = vpop.permute.xlu0 %5028
        %5062 = vst.msk [vmem:[#allocation3] sm:$0xff] %vm1438, %v4967
        %5063 = vst.msk [vmem:[#allocation3 + $0x8] sm:$0xff] %vm1438, %v4969
        %5064 = vst.msk [vmem:[#allocation3 + $0x10] sm:$0xff] %vm1438, %v4971
        %5065 = vst.msk [vmem:[#allocation3 + $0x18] sm:$0xff] %vm1438, %v4973
        %5066 = vst.msk [vmem:[#allocation3 + $0x20] sm:$0xff] %vm1438, %v4975
        %5067 = vst.msk [vmem:[#allocation3 + $0x28] sm:$0xff] %vm1438, %v4977
        %5068 = vst.msk [vmem:[#allocation3 + $0x30] sm:$0xff] %vm1438, %v4979
        %5069 = vst.msk [vmem:[#allocation3 + $0x38] sm:$0xff] %vm1438, %v4981
        %5070 = vst.msk [vmem:[#allocation3 + $0x40] sm:$0xff] %vm1438, %v4983
        %5071 = vst.msk [vmem:[#allocation3 + $0x48] sm:$0xff] %vm1438, %v4985
        %5072 = vst.msk [vmem:[#allocation3 + $0x50] sm:$0xff] %vm1438, %v4987
        %5073 = vst.msk [vmem:[#allocation3 + $0x58] sm:$0xff] %vm1438, %v4989
        %5074 = vst.msk [vmem:[#allocation3 + $0x60] sm:$0xff] %vm1438, %v4991
        %5075 = vst.msk [vmem:[#allocation3 + $0x68] sm:$0xff] %vm1438, %v4993
        %5076 = vst.msk [vmem:[#allocation3 + $0x70] sm:$0xff] %vm1438, %v4995
        %5077 = vst.msk [vmem:[#allocation3 + $0x78] sm:$0xff] %vm1438, %v4997
        %5078 = vst.msk [vmem:[#allocation3 + $0x80] sm:$0xff] %vm1438, %v4999
        %5079 = vst.msk [vmem:[#allocation3 + $0x88] sm:$0xff] %vm1438, %v5001
        %5080 = vst.msk [vmem:[#allocation3 + $0x90] sm:$0xff] %vm1438, %v5003
        %5081 = vst.msk [vmem:[#allocation3 + $0x98] sm:$0xff] %vm1438, %v5005
        %5082 = vst.msk [vmem:[#allocation3 + $0xa0] sm:$0xff] %vm1438, %v5007
        %5083 = vst.msk [vmem:[#allocation3 + $0xa8] sm:$0xff] %vm1438, %v5009
        %5084 = vst.msk [vmem:[#allocation3 + $0xb0] sm:$0xff] %vm1438, %v5011
        %5085 = vst.msk [vmem:[#allocation3 + $0xb8] sm:$0xff] %vm1438, %v5013
        %5086 = vst.msk [vmem:[#allocation3 + $0xc0] sm:$0xff] %vm1438, %v5015
        %5087 = vst.msk [vmem:[#allocation3 + $0xc8] sm:$0xff] %vm1438, %v5017
        %5088 = vst.msk [vmem:[#allocation3 + $0xd0] sm:$0xff] %vm1438, %v5019
        %5089 = vst.msk [vmem:[#allocation3 + $0xd8] sm:$0xff] %vm1438, %v5021
        %5090 = vst.msk [vmem:[#allocation3 + $0xe0] sm:$0xff] %vm1438, %v5023
        %5091 = vst.msk [vmem:[#allocation3 + $0xe8] sm:$0xff] %vm1438, %v5025
        %5092 = vst.msk [vmem:[#allocation3 + $0xf0] sm:$0xff] %vm1438, %v5027
        %5093 = vst.msk [vmem:[#allocation3 + $0xf8] sm:$0xff] %vm1438, %v5029
        %v5094 = vrot.slane %v4328, 2
        %v5095 = vrot.slane %v4329, 2
        %v5096 = vsel %vm995, %v5094, %v5095
        %v5097 = vrot.slane %v4330, 2
        %v5098 = vsel %vm995, %v5095, %v5097
        %5099 = vrot.lane.b32.xlu0 %v4629, 40
        %v5100 = vpop.permute.xlu0 %5099
        %5101 = vrot.lane.b32.xlu0 %v4631, 40
        %v5102 = vpop.permute.xlu0 %5101
        %5103 = vrot.lane.b32.xlu0 %v4634, 40
        %v5104 = vpop.permute.xlu0 %5103
        %5105 = vrot.lane.b32.xlu0 %v4636, 40
        %v5106 = vpop.permute.xlu0 %5105
        %5107 = vrot.lane.b32.xlu0 %v4639, 40
        %v5108 = vpop.permute.xlu0 %5107
        %5109 = vrot.lane.b32.xlu0 %v4641, 40
        %v5110 = vpop.permute.xlu0 %5109
        %5111 = vrot.lane.b32.xlu0 %v4644, 40
        %v5112 = vpop.permute.xlu0 %5111
        %5113 = vrot.lane.b32.xlu0 %v4646, 40
        %v5114 = vpop.permute.xlu0 %5113
        %5115 = vrot.lane.b32.xlu0 %v4649, 40
        %v5116 = vpop.permute.xlu0 %5115
        %5117 = vrot.lane.b32.xlu0 %v4651, 40
        %v5118 = vpop.permute.xlu0 %5117
        %5119 = vrot.lane.b32.xlu0 %v4654, 40
        %v5120 = vpop.permute.xlu0 %5119
        %5121 = vrot.lane.b32.xlu0 %v4656, 40
        %v5122 = vpop.permute.xlu0 %5121
        %5123 = vrot.lane.b32.xlu0 %v4659, 40
        %v5124 = vpop.permute.xlu0 %5123
        %5125 = vrot.lane.b32.xlu0 %v4661, 40
        %v5126 = vpop.permute.xlu0 %5125
        %5127 = vrot.lane.b32.xlu0 %v4664, 40
        %v5128 = vpop.permute.xlu0 %5127
        %5129 = vrot.lane.b32.xlu0 %v4666, 40
        %v5130 = vpop.permute.xlu0 %5129
        %5131 = vrot.lane.b32.xlu0 %v4669, 40
        %v5132 = vpop.permute.xlu0 %5131
        %5133 = vrot.lane.b32.xlu0 %v4671, 40
        %v5134 = vpop.permute.xlu0 %5133
        %5135 = vrot.lane.b32.xlu0 %v4674, 40
        %v5136 = vpop.permute.xlu0 %5135
        %5137 = vrot.lane.b32.xlu0 %v4676, 40
        %v5138 = vpop.permute.xlu0 %5137
        %5139 = vrot.lane.b32.xlu0 %v4679, 40
        %v5140 = vpop.permute.xlu0 %5139
        %5141 = vrot.lane.b32.xlu0 %v4681, 40
        %v5142 = vpop.permute.xlu0 %5141
        %5143 = vrot.lane.b32.xlu0 %v4684, 40
        %v5144 = vpop.permute.xlu0 %5143
        %5145 = vrot.lane.b32.xlu0 %v4686, 40
        %v5146 = vpop.permute.xlu0 %5145
        %5147 = vrot.lane.b32.xlu0 %v4689, 40
        %v5148 = vpop.permute.xlu0 %5147
        %5149 = vrot.lane.b32.xlu0 %v4691, 40
        %v5150 = vpop.permute.xlu0 %5149
        %5151 = vrot.lane.b32.xlu0 %v4694, 40
        %v5152 = vpop.permute.xlu0 %5151
        %5153 = vrot.lane.b32.xlu0 %v4696, 40
        %v5154 = vpop.permute.xlu0 %5153
        %5155 = vrot.lane.b32.xlu0 %v4699, 40
        %v5156 = vpop.permute.xlu0 %5155
        %5157 = vrot.lane.b32.xlu0 %v4701, 40
        %v5158 = vpop.permute.xlu0 %5157
        %5159 = vrot.lane.b32.xlu0 %v5096, 40
        %v5160 = vpop.permute.xlu0 %5159
        %5161 = vrot.lane.b32.xlu0 %v5098, 40
        %v5162 = vpop.permute.xlu0 %5161
        %5195 = vst.msk [vmem:[#allocation3] sm:$0xff] %vm1572, %v5100
        %5196 = vst.msk [vmem:[#allocation3 + $0x8] sm:$0xff] %vm1572, %v5102
        %5197 = vst.msk [vmem:[#allocation3 + $0x10] sm:$0xff] %vm1572, %v5104
        %5198 = vst.msk [vmem:[#allocation3 + $0x18] sm:$0xff] %vm1572, %v5106
        %5199 = vst.msk [vmem:[#allocation3 + $0x20] sm:$0xff] %vm1572, %v5108
        %5200 = vst.msk [vmem:[#allocation3 + $0x28] sm:$0xff] %vm1572, %v5110
        %5201 = vst.msk [vmem:[#allocation3 + $0x30] sm:$0xff] %vm1572, %v5112
        %5202 = vst.msk [vmem:[#allocation3 + $0x38] sm:$0xff] %vm1572, %v5114
        %5203 = vst.msk [vmem:[#allocation3 + $0x40] sm:$0xff] %vm1572, %v5116
        %5204 = vst.msk [vmem:[#allocation3 + $0x48] sm:$0xff] %vm1572, %v5118
        %5205 = vst.msk [vmem:[#allocation3 + $0x50] sm:$0xff] %vm1572, %v5120
        %5206 = vst.msk [vmem:[#allocation3 + $0x58] sm:$0xff] %vm1572, %v5122
        %5207 = vst.msk [vmem:[#allocation3 + $0x60] sm:$0xff] %vm1572, %v5124
        %5208 = vst.msk [vmem:[#allocation3 + $0x68] sm:$0xff] %vm1572, %v5126
        %5209 = vst.msk [vmem:[#allocation3 + $0x70] sm:$0xff] %vm1572, %v5128
        %5210 = vst.msk [vmem:[#allocation3 + $0x78] sm:$0xff] %vm1572, %v5130
        %5211 = vst.msk [vmem:[#allocation3 + $0x80] sm:$0xff] %vm1572, %v5132
        %5212 = vst.msk [vmem:[#allocation3 + $0x88] sm:$0xff] %vm1572, %v5134
        %5213 = vst.msk [vmem:[#allocation3 + $0x90] sm:$0xff] %vm1572, %v5136
        %5214 = vst.msk [vmem:[#allocation3 + $0x98] sm:$0xff] %vm1572, %v5138
        %5215 = vst.msk [vmem:[#allocation3 + $0xa0] sm:$0xff] %vm1572, %v5140
        %5216 = vst.msk [vmem:[#allocation3 + $0xa8] sm:$0xff] %vm1572, %v5142
        %5217 = vst.msk [vmem:[#allocation3 + $0xb0] sm:$0xff] %vm1572, %v5144
        %5218 = vst.msk [vmem:[#allocation3 + $0xb8] sm:$0xff] %vm1572, %v5146
        %5219 = vst.msk [vmem:[#allocation3 + $0xc0] sm:$0xff] %vm1572, %v5148
        %5220 = vst.msk [vmem:[#allocation3 + $0xc8] sm:$0xff] %vm1572, %v5150
        %5221 = vst.msk [vmem:[#allocation3 + $0xd0] sm:$0xff] %vm1572, %v5152
        %5222 = vst.msk [vmem:[#allocation3 + $0xd8] sm:$0xff] %vm1572, %v5154
        %5223 = vst.msk [vmem:[#allocation3 + $0xe0] sm:$0xff] %vm1572, %v5156
        %5224 = vst.msk [vmem:[#allocation3 + $0xe8] sm:$0xff] %vm1572, %v5158
        %5225 = vst.msk [vmem:[#allocation3 + $0xf0] sm:$0xff] %vm1572, %v5160
        %5226 = vst.msk [vmem:[#allocation3 + $0xf8] sm:$0xff] %vm1572, %v5162
        %5229 = vrot.lane.b32.xlu0 %v4286, 48
        %v5230 = vpop.permute.xlu0 %5229
        %5231 = vrot.lane.b32.xlu0 %v4287, 48
        %v5232 = vpop.permute.xlu0 %5231
        %5233 = vrot.lane.b32.xlu0 %v4289, 48
        %v5234 = vpop.permute.xlu0 %5233
        %5235 = vrot.lane.b32.xlu0 %v4290, 48
        %v5236 = vpop.permute.xlu0 %5235
        %5237 = vrot.lane.b32.xlu0 %v4292, 48
        %v5238 = vpop.permute.xlu0 %5237
        %5239 = vrot.lane.b32.xlu0 %v4293, 48
        %v5240 = vpop.permute.xlu0 %5239
        %5241 = vrot.lane.b32.xlu0 %v4295, 48
        %v5242 = vpop.permute.xlu0 %5241
        %5243 = vrot.lane.b32.xlu0 %v4296, 48
        %v5244 = vpop.permute.xlu0 %5243
        %5245 = vrot.lane.b32.xlu0 %v4298, 48
        %v5246 = vpop.permute.xlu0 %5245
        %5247 = vrot.lane.b32.xlu0 %v4299, 48
        %v5248 = vpop.permute.xlu0 %5247
        %5249 = vrot.lane.b32.xlu0 %v4301, 48
        %v5250 = vpop.permute.xlu0 %5249
        %5251 = vrot.lane.b32.xlu0 %v4302, 48
        %v5252 = vpop.permute.xlu0 %5251
        %5253 = vrot.lane.b32.xlu0 %v4304, 48
        %v5254 = vpop.permute.xlu0 %5253
        %5255 = vrot.lane.b32.xlu0 %v4305, 48
        %v5256 = vpop.permute.xlu0 %5255
        %5257 = vrot.lane.b32.xlu0 %v4307, 48
        %v5258 = vpop.permute.xlu0 %5257
        %5259 = vrot.lane.b32.xlu0 %v4308, 48
        %v5260 = vpop.permute.xlu0 %5259
        %5261 = vrot.lane.b32.xlu0 %v4310, 48
        %v5262 = vpop.permute.xlu0 %5261
        %5263 = vrot.lane.b32.xlu0 %v4311, 48
        %v5264 = vpop.permute.xlu0 %5263
        %5265 = vrot.lane.b32.xlu0 %v4313, 48
        %v5266 = vpop.permute.xlu0 %5265
        %5267 = vrot.lane.b32.xlu0 %v4314, 48
        %v5268 = vpop.permute.xlu0 %5267
        %5269 = vrot.lane.b32.xlu0 %v4316, 48
        %v5270 = vpop.permute.xlu0 %5269
        %5271 = vrot.lane.b32.xlu0 %v4317, 48
        %v5272 = vpop.permute.xlu0 %5271
        %5273 = vrot.lane.b32.xlu0 %v4319, 48
        %v5274 = vpop.permute.xlu0 %5273
        %5275 = vrot.lane.b32.xlu0 %v4320, 48
        %v5276 = vpop.permute.xlu0 %5275
        %5277 = vrot.lane.b32.xlu0 %v4322, 48
        %v5278 = vpop.permute.xlu0 %5277
        %5279 = vrot.lane.b32.xlu0 %v4323, 48
        %v5280 = vpop.permute.xlu0 %5279
        %5281 = vrot.lane.b32.xlu0 %v4325, 48
        %v5282 = vpop.permute.xlu0 %5281
        %5283 = vrot.lane.b32.xlu0 %v4326, 48
        %v5284 = vpop.permute.xlu0 %5283
        %5285 = vrot.lane.b32.xlu0 %v4328, 48
        %v5286 = vpop.permute.xlu0 %5285
        %5287 = vrot.lane.b32.xlu0 %v4329, 48
        %v5288 = vpop.permute.xlu0 %5287
        %5289 = vrot.lane.b32.xlu0 %v4331, 48
        %v5290 = vpop.permute.xlu0 %5289
        %5291 = vrot.lane.b32.xlu0 %v4332, 48
        %v5292 = vpop.permute.xlu0 %5291
        %5325 = vst.msk [vmem:[#allocation3] sm:$0xff] %vm1703, %v5230
        %5326 = vst.msk [vmem:[#allocation3 + $0x8] sm:$0xff] %vm1703, %v5232
        %5327 = vst.msk [vmem:[#allocation3 + $0x10] sm:$0xff] %vm1703, %v5234
        %5328 = vst.msk [vmem:[#allocation3 + $0x18] sm:$0xff] %vm1703, %v5236
        %5329 = vst.msk [vmem:[#allocation3 + $0x20] sm:$0xff] %vm1703, %v5238
        %5330 = vst.msk [vmem:[#allocation3 + $0x28] sm:$0xff] %vm1703, %v5240
        %5331 = vst.msk [vmem:[#allocation3 + $0x30] sm:$0xff] %vm1703, %v5242
        %5332 = vst.msk [vmem:[#allocation3 + $0x38] sm:$0xff] %vm1703, %v5244
        %5333 = vst.msk [vmem:[#allocation3 + $0x40] sm:$0xff] %vm1703, %v5246
        %5334 = vst.msk [vmem:[#allocation3 + $0x48] sm:$0xff] %vm1703, %v5248
        %5335 = vst.msk [vmem:[#allocation3 + $0x50] sm:$0xff] %vm1703, %v5250
        %5336 = vst.msk [vmem:[#allocation3 + $0x58] sm:$0xff] %vm1703, %v5252
        %5337 = vst.msk [vmem:[#allocation3 + $0x60] sm:$0xff] %vm1703, %v5254
        %5338 = vst.msk [vmem:[#allocation3 + $0x68] sm:$0xff] %vm1703, %v5256
        %5339 = vst.msk [vmem:[#allocation3 + $0x70] sm:$0xff] %vm1703, %v5258
        %5340 = vst.msk [vmem:[#allocation3 + $0x78] sm:$0xff] %vm1703, %v5260
        %5341 = vst.msk [vmem:[#allocation3 + $0x80] sm:$0xff] %vm1703, %v5262
        %5342 = vst.msk [vmem:[#allocation3 + $0x88] sm:$0xff] %vm1703, %v5264
        %5343 = vst.msk [vmem:[#allocation3 + $0x90] sm:$0xff] %vm1703, %v5266
        %5344 = vst.msk [vmem:[#allocation3 + $0x98] sm:$0xff] %vm1703, %v5268
        %5345 = vst.msk [vmem:[#allocation3 + $0xa0] sm:$0xff] %vm1703, %v5270
        %5346 = vst.msk [vmem:[#allocation3 + $0xa8] sm:$0xff] %vm1703, %v5272
        %5347 = vst.msk [vmem:[#allocation3 + $0xb0] sm:$0xff] %vm1703, %v5274
        %5348 = vst.msk [vmem:[#allocation3 + $0xb8] sm:$0xff] %vm1703, %v5276
        %5349 = vst.msk [vmem:[#allocation3 + $0xc0] sm:$0xff] %vm1703, %v5278
        %5350 = vst.msk [vmem:[#allocation3 + $0xc8] sm:$0xff] %vm1703, %v5280
        %5351 = vst.msk [vmem:[#allocation3 + $0xd0] sm:$0xff] %vm1703, %v5282
        %5352 = vst.msk [vmem:[#allocation3 + $0xd8] sm:$0xff] %vm1703, %v5284
        %5353 = vst.msk [vmem:[#allocation3 + $0xe0] sm:$0xff] %vm1703, %v5286
        %5354 = vst.msk [vmem:[#allocation3 + $0xe8] sm:$0xff] %vm1703, %v5288
        %5355 = vst.msk [vmem:[#allocation3 + $0xf0] sm:$0xff] %vm1703, %v5290
        %5356 = vst.msk [vmem:[#allocation3 + $0xf8] sm:$0xff] %vm1703, %v5292
        %v5358 = vrot.slane %v4331, 1
        %v5359 = vrot.slane %v4332, 1
        %v5360 = vsel %vm785, %v5358, %v5359
        %v5361 = vrot.slane %v4333, 1
        %v5362 = vsel %vm785, %v5359, %v5361
        %5363 = vrot.lane.b32.xlu0 %v4426, 56
        %v5364 = vpop.permute.xlu0 %5363
        %5365 = vrot.lane.b32.xlu0 %v4428, 56
        %v5366 = vpop.permute.xlu0 %5365
        %5367 = vrot.lane.b32.xlu0 %v4431, 56
        %v5368 = vpop.permute.xlu0 %5367
        %5369 = vrot.lane.b32.xlu0 %v4433, 56
        %v5370 = vpop.permute.xlu0 %5369
        %5371 = vrot.lane.b32.xlu0 %v4436, 56
        %v5372 = vpop.permute.xlu0 %5371
        %5373 = vrot.lane.b32.xlu0 %v4438, 56
        %v5374 = vpop.permute.xlu0 %5373
        %5375 = vrot.lane.b32.xlu0 %v4441, 56
        %v5376 = vpop.permute.xlu0 %5375
        %5377 = vrot.lane.b32.xlu0 %v4443, 56
        %v5378 = vpop.permute.xlu0 %5377
        %5379 = vrot.lane.b32.xlu0 %v4446, 56
        %v5380 = vpop.permute.xlu0 %5379
        %5381 = vrot.lane.b32.xlu0 %v4448, 56
        %v5382 = vpop.permute.xlu0 %5381
        %5383 = vrot.lane.b32.xlu0 %v4451, 56
        %v5384 = vpop.permute.xlu0 %5383
        %5385 = vrot.lane.b32.xlu0 %v4453, 56
        %v5386 = vpop.permute.xlu0 %5385
        %5387 = vrot.lane.b32.xlu0 %v4456, 56
        %v5388 = vpop.permute.xlu0 %5387
        %5389 = vrot.lane.b32.xlu0 %v4458, 56
        %v5390 = vpop.permute.xlu0 %5389
        %5391 = vrot.lane.b32.xlu0 %v4461, 56
        %v5392 = vpop.permute.xlu0 %5391
        %5393 = vrot.lane.b32.xlu0 %v4463, 56
        %v5394 = vpop.permute.xlu0 %5393
        %5395 = vrot.lane.b32.xlu0 %v4466, 56
        %v5396 = vpop.permute.xlu0 %5395
        %5397 = vrot.lane.b32.xlu0 %v4468, 56
        %v5398 = vpop.permute.xlu0 %5397
        %5399 = vrot.lane.b32.xlu0 %v4471, 56
        %v5400 = vpop.permute.xlu0 %5399
        %5401 = vrot.lane.b32.xlu0 %v4473, 56
        %v5402 = vpop.permute.xlu0 %5401
        %5403 = vrot.lane.b32.xlu0 %v4476, 56
        %v5404 = vpop.permute.xlu0 %5403
        %5405 = vrot.lane.b32.xlu0 %v4478, 56
        %v5406 = vpop.permute.xlu0 %5405
        %5407 = vrot.lane.b32.xlu0 %v4481, 56
        %v5408 = vpop.permute.xlu0 %5407
        %5409 = vrot.lane.b32.xlu0 %v4483, 56
        %v5410 = vpop.permute.xlu0 %5409
        %5411 = vrot.lane.b32.xlu0 %v4486, 56
        %v5412 = vpop.permute.xlu0 %5411
        %5413 = vrot.lane.b32.xlu0 %v4488, 56
        %v5414 = vpop.permute.xlu0 %5413
        %5415 = vrot.lane.b32.xlu0 %v4491, 56
        %v5416 = vpop.permute.xlu0 %5415
        %5417 = vrot.lane.b32.xlu0 %v4493, 56
        %v5418 = vpop.permute.xlu0 %5417
        %5419 = vrot.lane.b32.xlu0 %v4963, 56
        %v5420 = vpop.permute.xlu0 %5419
        %5421 = vrot.lane.b32.xlu0 %v4965, 56
        %v5422 = vpop.permute.xlu0 %5421
        %5423 = vrot.lane.b32.xlu0 %v5360, 56
        %v5424 = vpop.permute.xlu0 %5423
        %5425 = vrot.lane.b32.xlu0 %v5362, 56
        %v5426 = vpop.permute.xlu0 %5425
        %5459 = vst.msk [vmem:[#allocation3] sm:$0xff] %vm1838, %v5364
        %5460 = vst.msk [vmem:[#allocation3 + $0x8] sm:$0xff] %vm1838, %v5366
        %5461 = vst.msk [vmem:[#allocation3 + $0x10] sm:$0xff] %vm1838, %v5368
        %5462 = vst.msk [vmem:[#allocation3 + $0x18] sm:$0xff] %vm1838, %v5370
        %5463 = vst.msk [vmem:[#allocation3 + $0x20] sm:$0xff] %vm1838, %v5372
        %5464 = vst.msk [vmem:[#allocation3 + $0x28] sm:$0xff] %vm1838, %v5374
        %5465 = vst.msk [vmem:[#allocation3 + $0x30] sm:$0xff] %vm1838, %v5376
        %5466 = vst.msk [vmem:[#allocation3 + $0x38] sm:$0xff] %vm1838, %v5378
        %5467 = vst.msk [vmem:[#allocation3 + $0x40] sm:$0xff] %vm1838, %v5380
        %5468 = vst.msk [vmem:[#allocation3 + $0x48] sm:$0xff] %vm1838, %v5382
        %5469 = vst.msk [vmem:[#allocation3 + $0x50] sm:$0xff] %vm1838, %v5384
        %5470 = vst.msk [vmem:[#allocation3 + $0x58] sm:$0xff] %vm1838, %v5386
        %5471 = vst.msk [vmem:[#allocation3 + $0x60] sm:$0xff] %vm1838, %v5388
        %5472 = vst.msk [vmem:[#allocation3 + $0x68] sm:$0xff] %vm1838, %v5390
        %5473 = vst.msk [vmem:[#allocation3 + $0x70] sm:$0xff] %vm1838, %v5392
        %5474 = vst.msk [vmem:[#allocation3 + $0x78] sm:$0xff] %vm1838, %v5394
        %5475 = vst.msk [vmem:[#allocation3 + $0x80] sm:$0xff] %vm1838, %v5396
        %5476 = vst.msk [vmem:[#allocation3 + $0x88] sm:$0xff] %vm1838, %v5398
        %5477 = vst.msk [vmem:[#allocation3 + $0x90] sm:$0xff] %vm1838, %v5400
        %5478 = vst.msk [vmem:[#allocation3 + $0x98] sm:$0xff] %vm1838, %v5402
        %5479 = vst.msk [vmem:[#allocation3 + $0xa0] sm:$0xff] %vm1838, %v5404
        %5480 = vst.msk [vmem:[#allocation3 + $0xa8] sm:$0xff] %vm1838, %v5406
        %5481 = vst.msk [vmem:[#allocation3 + $0xb0] sm:$0xff] %vm1838, %v5408
        %5482 = vst.msk [vmem:[#allocation3 + $0xb8] sm:$0xff] %vm1838, %v5410
        %5483 = vst.msk [vmem:[#allocation3 + $0xc0] sm:$0xff] %vm1838, %v5412
        %5484 = vst.msk [vmem:[#allocation3 + $0xc8] sm:$0xff] %vm1838, %v5414
        %5485 = vst.msk [vmem:[#allocation3 + $0xd0] sm:$0xff] %vm1838, %v5416
        %5486 = vst.msk [vmem:[#allocation3 + $0xd8] sm:$0xff] %vm1838, %v5418
        %5487 = vst.msk [vmem:[#allocation3 + $0xe0] sm:$0xff] %vm1838, %v5420
        %5488 = vst.msk [vmem:[#allocation3 + $0xe8] sm:$0xff] %vm1838, %v5422
        %5489 = vst.msk [vmem:[#allocation3 + $0xf0] sm:$0xff] %vm1838, %v5424
        %5490 = vst.msk [vmem:[#allocation3 + $0xf8] sm:$0xff] %vm1838, %v5426
        %v5491 = vrot.slane %v4331, 2
        %v5492 = vrot.slane %v4332, 2
        %v5493 = vsel %vm995, %v5491, %v5492
        %v5494 = vrot.slane %v4333, 2
        %v5495 = vsel %vm995, %v5492, %v5494
        %5496 = vrot.lane.b32.xlu0 %v4634, 64
        %v5497 = vpop.permute.xlu0 %5496
        %5498 = vrot.lane.b32.xlu0 %v4636, 64
        %v5499 = vpop.permute.xlu0 %5498
        %5500 = vrot.lane.b32.xlu0 %v4639, 64
        %v5501 = vpop.permute.xlu0 %5500
        %5502 = vrot.lane.b32.xlu0 %v4641, 64
        %v5503 = vpop.permute.xlu0 %5502
        %5504 = vrot.lane.b32.xlu0 %v4644, 64
        %v5505 = vpop.permute.xlu0 %5504
        %5506 = vrot.lane.b32.xlu0 %v4646, 64
        %v5507 = vpop.permute.xlu0 %5506
        %5508 = vrot.lane.b32.xlu0 %v4649, 64
        %v5509 = vpop.permute.xlu0 %5508
        %5510 = vrot.lane.b32.xlu0 %v4651, 64
        %v5511 = vpop.permute.xlu0 %5510
        %5512 = vrot.lane.b32.xlu0 %v4654, 64
        %v5513 = vpop.permute.xlu0 %5512
        %5514 = vrot.lane.b32.xlu0 %v4656, 64
        %v5515 = vpop.permute.xlu0 %5514
        %5516 = vrot.lane.b32.xlu0 %v4659, 64
        %v5517 = vpop.permute.xlu0 %5516
        %5518 = vrot.lane.b32.xlu0 %v4661, 64
        %v5519 = vpop.permute.xlu0 %5518
        %5520 = vrot.lane.b32.xlu0 %v4664, 64
        %v5521 = vpop.permute.xlu0 %5520
        %5522 = vrot.lane.b32.xlu0 %v4666, 64
        %v5523 = vpop.permute.xlu0 %5522
        %5524 = vrot.lane.b32.xlu0 %v4669, 64
        %v5525 = vpop.permute.xlu0 %5524
        %5526 = vrot.lane.b32.xlu0 %v4671, 64
        %v5527 = vpop.permute.xlu0 %5526
        %5528 = vrot.lane.b32.xlu0 %v4674, 64
        %v5529 = vpop.permute.xlu0 %5528
        %5530 = vrot.lane.b32.xlu0 %v4676, 64
        %v5531 = vpop.permute.xlu0 %5530
        %5532 = vrot.lane.b32.xlu0 %v4679, 64
        %v5533 = vpop.permute.xlu0 %5532
        %5534 = vrot.lane.b32.xlu0 %v4681, 64
        %v5535 = vpop.permute.xlu0 %5534
        %5536 = vrot.lane.b32.xlu0 %v4684, 64
        %v5537 = vpop.permute.xlu0 %5536
        %5538 = vrot.lane.b32.xlu0 %v4686, 64
        %v5539 = vpop.permute.xlu0 %5538
        %5540 = vrot.lane.b32.xlu0 %v4689, 64
        %v5541 = vpop.permute.xlu0 %5540
        %5542 = vrot.lane.b32.xlu0 %v4691, 64
        %v5543 = vpop.permute.xlu0 %5542
        %5544 = vrot.lane.b32.xlu0 %v4694, 64
        %v5545 = vpop.permute.xlu0 %5544
        %5546 = vrot.lane.b32.xlu0 %v4696, 64
        %v5547 = vpop.permute.xlu0 %5546
        %5548 = vrot.lane.b32.xlu0 %v4699, 64
        %v5549 = vpop.permute.xlu0 %5548
        %5550 = vrot.lane.b32.xlu0 %v4701, 64
        %v5551 = vpop.permute.xlu0 %5550
        %5552 = vrot.lane.b32.xlu0 %v5096, 64
        %v5553 = vpop.permute.xlu0 %5552
        %5554 = vrot.lane.b32.xlu0 %v5098, 64
        %v5555 = vpop.permute.xlu0 %5554
        %5556 = vrot.lane.b32.xlu0 %v5493, 64
        %v5557 = vpop.permute.xlu0 %5556
        %5558 = vrot.lane.b32.xlu0 %v5495, 64
        %v5559 = vpop.permute.xlu0 %5558
        %5592 = vst.msk [vmem:[#allocation3] sm:$0xff] %vm1972, %v5497
        %5593 = vst.msk [vmem:[#allocation3 + $0x8] sm:$0xff] %vm1972, %v5499
        %5594 = vst.msk [vmem:[#allocation3 + $0x10] sm:$0xff] %vm1972, %v5501
        %5595 = vst.msk [vmem:[#allocation3 + $0x18] sm:$0xff] %vm1972, %v5503
        %5596 = vst.msk [vmem:[#allocation3 + $0x20] sm:$0xff] %vm1972, %v5505
        %5597 = vst.msk [vmem:[#allocation3 + $0x28] sm:$0xff] %vm1972, %v5507
        %5598 = vst.msk [vmem:[#allocation3 + $0x30] sm:$0xff] %vm1972, %v5509
        %5599 = vst.msk [vmem:[#allocation3 + $0x38] sm:$0xff] %vm1972, %v5511
        %5600 = vst.msk [vmem:[#allocation3 + $0x40] sm:$0xff] %vm1972, %v5513
        %5601 = vst.msk [vmem:[#allocation3 + $0x48] sm:$0xff] %vm1972, %v5515
        %5602 = vst.msk [vmem:[#allocation3 + $0x50] sm:$0xff] %vm1972, %v5517
        %5603 = vst.msk [vmem:[#allocation3 + $0x58] sm:$0xff] %vm1972, %v5519
        %5604 = vst.msk [vmem:[#allocation3 + $0x60] sm:$0xff] %vm1972, %v5521
        %5605 = vst.msk [vmem:[#allocation3 + $0x68] sm:$0xff] %vm1972, %v5523
        %5606 = vst.msk [vmem:[#allocation3 + $0x70] sm:$0xff] %vm1972, %v5525
        %5607 = vst.msk [vmem:[#allocation3 + $0x78] sm:$0xff] %vm1972, %v5527
        %5608 = vst.msk [vmem:[#allocation3 + $0x80] sm:$0xff] %vm1972, %v5529
        %5609 = vst.msk [vmem:[#allocation3 + $0x88] sm:$0xff] %vm1972, %v5531
        %5610 = vst.msk [vmem:[#allocation3 + $0x90] sm:$0xff] %vm1972, %v5533
        %5611 = vst.msk [vmem:[#allocation3 + $0x98] sm:$0xff] %vm1972, %v5535
        %5612 = vst.msk [vmem:[#allocation3 + $0xa0] sm:$0xff] %vm1972, %v5537
        %5613 = vst.msk [vmem:[#allocation3 + $0xa8] sm:$0xff] %vm1972, %v5539
        %5614 = vst.msk [vmem:[#allocation3 + $0xb0] sm:$0xff] %vm1972, %v5541
        %5615 = vst.msk [vmem:[#allocation3 + $0xb8] sm:$0xff] %vm1972, %v5543
        %5616 = vst.msk [vmem:[#allocation3 + $0xc0] sm:$0xff] %vm1972, %v5545
        %5617 = vst.msk [vmem:[#allocation3 + $0xc8] sm:$0xff] %vm1972, %v5547
        %5618 = vst.msk [vmem:[#allocation3 + $0xd0] sm:$0xff] %vm1972, %v5549
        %5619 = vst.msk [vmem:[#allocation3 + $0xd8] sm:$0xff] %vm1972, %v5551
        %5620 = vst.msk [vmem:[#allocation3 + $0xe0] sm:$0xff] %vm1972, %v5553
        %5621 = vst.msk [vmem:[#allocation3 + $0xe8] sm:$0xff] %vm1972, %v5555
        %5622 = vst.msk [vmem:[#allocation3 + $0xf0] sm:$0xff] %vm1972, %v5557
        %5623 = vst.msk [vmem:[#allocation3 + $0xf8] sm:$0xff] %vm1972, %v5559
        %v5624 = vld [vmem:[#allocation3] sm:$0xff]
        %v5625 = vld [vmem:[#allocation3 + $0x8] sm:$0xff]
        %v5626 = vld [vmem:[#allocation3 + $0x10] sm:$0xff]
        %v5627 = vld [vmem:[#allocation3 + $0x18] sm:$0xff]
        %v5628 = vld [vmem:[#allocation3 + $0x20] sm:$0xff]
        %v5629 = vld [vmem:[#allocation3 + $0x28] sm:$0xff]
        %v5630 = vld [vmem:[#allocation3 + $0x30] sm:$0xff]
        %v5631 = vld [vmem:[#allocation3 + $0x38] sm:$0xff]
        %v5632 = vld [vmem:[#allocation3 + $0x40] sm:$0xff]
        %v5633 = vld [vmem:[#allocation3 + $0x48] sm:$0xff]
        %v5634 = vld [vmem:[#allocation3 + $0x50] sm:$0xff]
        %v5635 = vld [vmem:[#allocation3 + $0x58] sm:$0xff]
        %v5636 = vld [vmem:[#allocation3 + $0x60] sm:$0xff]
        %v5637 = vld [vmem:[#allocation3 + $0x68] sm:$0xff]
        %v5638 = vld [vmem:[#allocation3 + $0x70] sm:$0xff]
        %v5639 = vld [vmem:[#allocation3 + $0x78] sm:$0xff]
        %v5640 = vld [vmem:[#allocation3 + $0x80] sm:$0xff]
        %v5641 = vld [vmem:[#allocation3 + $0x88] sm:$0xff]
        %v5642 = vld [vmem:[#allocation3 + $0x90] sm:$0xff]
        %v5643 = vld [vmem:[#allocation3 + $0x98] sm:$0xff]
        %v5644 = vld [vmem:[#allocation3 + $0xa0] sm:$0xff]
        %v5645 = vld [vmem:[#allocation3 + $0xa8] sm:$0xff]
        %v5646 = vld [vmem:[#allocation3 + $0xb0] sm:$0xff]
        %v5647 = vld [vmem:[#allocation3 + $0xb8] sm:$0xff]
        %v5648 = vld [vmem:[#allocation3 + $0xc0] sm:$0xff]
        %v5649 = vld [vmem:[#allocation3 + $0xc8] sm:$0xff]
        %v5650 = vld [vmem:[#allocation3 + $0xd0] sm:$0xff]
        %v5651 = vld [vmem:[#allocation3 + $0xd8] sm:$0xff]
        %v5652 = vld [vmem:[#allocation3 + $0xe0] sm:$0xff]
        %v5653 = vld [vmem:[#allocation3 + $0xe8] sm:$0xff]
        %v5654 = vld [vmem:[#allocation3 + $0xf0] sm:$0xff]
        %v5655 = vld [vmem:[#allocation3 + $0xf8] sm:$0xff]
        %v5656 = vld [vmem:[%s6] sm:$0xff]
        %v5657 = vld [vmem:[%s6 + $0x8] sm:$0xff]
        %v5658 = vld [vmem:[%s6 + $0x10] sm:$0xff]
        %v5659 = vld [vmem:[%s6 + $0x18] sm:$0xff]
        %v5660 = vld [vmem:[%s6 + $0x20] sm:$0xff]
        %v5661 = vld [vmem:[%s6 + $0x28] sm:$0xff]
        %v5662 = vld [vmem:[%s6 + $0x30] sm:$0xff]
        %v5663 = vld [vmem:[%s6 + $0x38] sm:$0xff]
        %v5664 = vld [vmem:[%s6 + $0x40] sm:$0xff]
        %v5665 = vld [vmem:[%s7] sm:$0x1]
        %v5667 = vlaneseq
        %v5668 = vshrl.u32 %v5667, 7
        %v5669 = vsub.s32 0, %v5668
        %v5670 = vrot.slane %v5665, %v5669
        %v5673 = vsel %vm2053, %v5624, 0
        %v5676 = vsel %vm2053, %v5625, 0
        %v5679 = vsel %vm2053, %v5626, 0
        %v5682 = vsel %vm2053, %v5627, 0
        %v5685 = vsel %vm2053, %v5628, 0
        %v5688 = vsel %vm2053, %v5629, 0
        %v5691 = vsel %vm2053, %v5630, 0
        %v5694 = vsel %vm2053, %v5631, 0
        %v5697 = vsel %vm2053, %v5632, 0
        %v5700 = vsel %vm2053, %v5633, 0
        %v5703 = vsel %vm2053, %v5634, 0
        %v5706 = vsel %vm2053, %v5635, 0
        %v5709 = vsel %vm2053, %v5636, 0
        %v5712 = vsel %vm2053, %v5637, 0
        %v5715 = vsel %vm2053, %v5638, 0
        %v5718 = vsel %vm2053, %v5639, 0
        %v5721 = vsel %vm2053, %v5640, 0
        %v5724 = vsel %vm2053, %v5641, 0
        %v5727 = vsel %vm2053, %v5642, 0
        %v5730 = vsel %vm2053, %v5643, 0
        %v5733 = vsel %vm2053, %v5644, 0
        %v5736 = vsel %vm2053, %v5645, 0
        %v5739 = vsel %vm2053, %v5646, 0
        %v5742 = vsel %vm2053, %v5647, 0
        %v5745 = vsel %vm2053, %v5648, 0
        %v5748 = vsel %vm2053, %v5649, 0
        %v5751 = vsel %vm2053, %v5650, 0
        %v5754 = vsel %vm2053, %v5651, 0
        %v5757 = vsel %vm2053, %v5652, 0
        %v5760 = vsel %vm2053, %v5653, 0
        %v5763 = vsel %vm2053, %v5654, 0
        %v5766 = vsel %vm2053, %v5655, 0
        %5768 = vmatprep.subr.mxu0 0.0
        %5769 = vmatpush1.msra.mxu0 0.0
        %5770 = vmatprep.subr.mxu0 0.0
        %5771 = vmatpush1.msra.mxu0 0.0
        %5772 = vmatprep.subr.mxu0 0.0
        %5773 = vmatpush1.msra.mxu0 0.0
        %5774 = vmatprep.subr.mxu0 0.0
        %5775 = vmatpush1.msra.mxu0 0.0
        %5776 = vmatprep.subr.mxu0 0.0
        %5777 = vmatpush1.msra.mxu0 0.0
        %5778 = vmatprep.subr.mxu0 0.0
        %5779 = vmatpush1.msra.mxu0 0.0
        %5780 = vmatprep.subr.mxu0 0.0
        %5781 = vmatpush1.msra.mxu0 0.0
        %5782 = vmatprep.subr.mxu0 0.0
        %5783 = vmatpush1.msra.mxu0 %v5664
        %5784 = vmatprep.subr.mxu0 0.0
        %5785 = vmatpush1.msra.mxu0 %v5663
        %5786 = vmatprep.subr.mxu0 0.0
        %5787 = vmatpush1.msra.mxu0 %v5662
        %5788 = vmatprep.subr.mxu0 0.0
        %5789 = vmatpush1.msra.mxu0 %v5661
        %5790 = vmatprep.subr.mxu0 0.0
        %5791 = vmatpush1.msra.mxu0 %v5660
        %5792 = vmatprep.subr.mxu0 0.0
        %5793 = vmatpush1.msra.mxu0 %v5659
        %5794 = vmatprep.subr.mxu0 0.0
        %5795 = vmatpush1.msra.mxu0 %v5658
        %5796 = vmatprep.subr.mxu0 0.0
        %5797 = vmatpush1.msra.mxu0 %v5657
        %5798 = vmatprep.subr.mxu0 0.0
        %5799 = vmatpush1.msra.mxu0 %v5656
        %5800 = vmatprep.subr.mxu0 0.0
        %5801 = vmatpush2.msra.mxu0 0.0
        %5802 = vmatprep.subr.mxu0 0.0
        %5803 = vmatpush2.msra.mxu0 0.0
        %5804 = vmatprep.subr.mxu0 0.0
        %5805 = vmatpush2.msra.mxu0 0.0
        %5806 = vmatprep.subr.mxu0 0.0
        %5807 = vmatpush2.msra.mxu0 0.0
        %5808 = vmatprep.subr.mxu0 0.0
        %5809 = vmatpush2.msra.mxu0 0.0
        %5810 = vmatprep.subr.mxu0 0.0
        %5811 = vmatpush2.msra.mxu0 0.0
        %5812 = vmatprep.subr.mxu0 0.0
        %5813 = vmatpush2.msra.mxu0 0.0
        %5814 = vmatprep.subr.mxu0 0.0
        %5815 = vmatpush2.msra.mxu0 0.0
        %5816 = vmatprep.subr.mxu0 0.0
        %5817 = vmatpush2.msra.mxu0 0.0
        %5818 = vmatprep.subr.mxu0 0.0
        %5819 = vmatpush2.msra.mxu0 0.0
        %5820 = vmatprep.subr.mxu0 0.0
        %5821 = vmatpush2.msra.mxu0 0.0
        %5822 = vmatprep.subr.mxu0 0.0
        %5823 = vmatpush2.msra.mxu0 0.0
        %5824 = vmatprep.subr.mxu0 0.0
        %5825 = vmatpush2.msra.mxu0 0.0
        %5826 = vmatprep.subr.mxu0 0.0
        %5827 = vmatpush2.msra.mxu0 0.0
        %5828 = vmatprep.subr.mxu0 0.0
        %5829 = vmatpush2.msra.mxu0 0.0
        %5830 = vmatprep.subr.mxu0 0.0
        %5831 = vmatpush2.msra.mxu0 0.0
        %5832 = vmatprep.mubr.f32.mxu0 0.0
        %5833 = vmatmul.mubr.f32.gmra.mxu0 %v5673
        %v5834 = vpop.f32.mrf.mxu0
        %v5835 = vadd.f32 %v5670, %v5834
        %v5836 = vpop.f32.mrf.mxu0
        %5837 = vmatprep.mubr.f32.mxu0 0.0
        %5838 = vmatmul.mubr.f32.gmra.mxu0 %v5676
        %v5839 = vpop.f32.mrf.mxu0
        %v5840 = vadd.f32 %v5670, %v5839
        %v5841 = vpop.f32.mrf.mxu0
        %5842 = vmatprep.mubr.f32.mxu0 0.0
        %5843 = vmatmul.mubr.f32.gmra.mxu0 %v5679
        %v5844 = vpop.f32.mrf.mxu0
        %v5845 = vadd.f32 %v5670, %v5844
        %v5846 = vpop.f32.mrf.mxu0
        %5847 = vmatprep.mubr.f32.mxu0 0.0
        %5848 = vmatmul.mubr.f32.gmra.mxu0 %v5682
        %v5849 = vpop.f32.mrf.mxu0
        %v5850 = vadd.f32 %v5670, %v5849
        %v5851 = vpop.f32.mrf.mxu0
        %5852 = vmatprep.mubr.f32.mxu0 0.0
        %5853 = vmatmul.mubr.f32.gmra.mxu0 %v5685
        %v5854 = vpop.f32.mrf.mxu0
        %v5855 = vadd.f32 %v5670, %v5854
        %v5856 = vpop.f32.mrf.mxu0
        %5857 = vmatprep.mubr.f32.mxu0 0.0
        %5858 = vmatmul.mubr.f32.gmra.mxu0 %v5688
        %v5859 = vpop.f32.mrf.mxu0
        %v5860 = vadd.f32 %v5670, %v5859
        %v5861 = vpop.f32.mrf.mxu0
        %5862 = vmatprep.mubr.f32.mxu0 0.0
        %5863 = vmatmul.mubr.f32.gmra.mxu0 %v5691
        %v5864 = vpop.f32.mrf.mxu0
        %v5865 = vadd.f32 %v5670, %v5864
        %v5866 = vpop.f32.mrf.mxu0
        %5867 = vmatprep.mubr.f32.mxu0 0.0
        %5868 = vmatmul.mubr.f32.gmra.mxu0 %v5694
        %v5869 = vpop.f32.mrf.mxu0
        %v5870 = vadd.f32 %v5670, %v5869
        %v5871 = vpop.f32.mrf.mxu0
        %5872 = vmatprep.mubr.f32.mxu0 0.0
        %5873 = vmatmul.mubr.f32.gmra.mxu0 %v5697
        %v5874 = vpop.f32.mrf.mxu0
        %v5875 = vadd.f32 %v5670, %v5874
        %v5876 = vpop.f32.mrf.mxu0
        %5877 = vmatprep.mubr.f32.mxu0 0.0
        %5878 = vmatmul.mubr.f32.gmra.mxu0 %v5700
        %v5879 = vpop.f32.mrf.mxu0
        %v5880 = vadd.f32 %v5670, %v5879
        %v5881 = vpop.f32.mrf.mxu0
        %5882 = vmatprep.mubr.f32.mxu0 0.0
        %5883 = vmatmul.mubr.f32.gmra.mxu0 %v5703
        %v5884 = vpop.f32.mrf.mxu0
        %v5885 = vadd.f32 %v5670, %v5884
        %v5886 = vpop.f32.mrf.mxu0
        %5887 = vmatprep.mubr.f32.mxu0 0.0
        %5888 = vmatmul.mubr.f32.gmra.mxu0 %v5706
        %v5889 = vpop.f32.mrf.mxu0
        %v5890 = vadd.f32 %v5670, %v5889
        %v5891 = vpop.f32.mrf.mxu0
        %5892 = vmatprep.mubr.f32.mxu0 0.0
        %5893 = vmatmul.mubr.f32.gmra.mxu0 %v5709
        %v5894 = vpop.f32.mrf.mxu0
        %v5895 = vadd.f32 %v5670, %v5894
        %v5896 = vpop.f32.mrf.mxu0
        %5897 = vmatprep.mubr.f32.mxu0 0.0
        %5898 = vmatmul.mubr.f32.gmra.mxu0 %v5712
        %v5899 = vpop.f32.mrf.mxu0
        %v5900 = vadd.f32 %v5670, %v5899
        %v5901 = vpop.f32.mrf.mxu0
        %5902 = vmatprep.mubr.f32.mxu0 0.0
        %5903 = vmatmul.mubr.f32.gmra.mxu0 %v5715
        %v5904 = vpop.f32.mrf.mxu0
        %v5905 = vadd.f32 %v5670, %v5904
        %v5906 = vpop.f32.mrf.mxu0
        %5907 = vmatprep.mubr.f32.mxu0 0.0
        %5908 = vmatmul.mubr.f32.gmra.mxu0 %v5718
        %v5909 = vpop.f32.mrf.mxu0
        %v5910 = vadd.f32 %v5670, %v5909
        %v5911 = vpop.f32.mrf.mxu0
        %5912 = vmatprep.mubr.f32.mxu0 0.0
        %5913 = vmatmul.mubr.f32.gmra.mxu0 %v5721
        %v5914 = vpop.f32.mrf.mxu0
        %v5915 = vadd.f32 %v5670, %v5914
        %v5916 = vpop.f32.mrf.mxu0
        %5917 = vmatprep.mubr.f32.mxu0 0.0
        %5918 = vmatmul.mubr.f32.gmra.mxu0 %v5724
        %v5919 = vpop.f32.mrf.mxu0
        %v5920 = vadd.f32 %v5670, %v5919
        %v5921 = vpop.f32.mrf.mxu0
        %5922 = vmatprep.mubr.f32.mxu0 0.0
        %5923 = vmatmul.mubr.f32.gmra.mxu0 %v5727
        %v5924 = vpop.f32.mrf.mxu0
        %v5925 = vadd.f32 %v5670, %v5924
        %v5926 = vpop.f32.mrf.mxu0
        %5927 = vmatprep.mubr.f32.mxu0 0.0
        %5928 = vmatmul.mubr.f32.gmra.mxu0 %v5730
        %v5929 = vpop.f32.mrf.mxu0
        %v5930 = vadd.f32 %v5670, %v5929
        %v5931 = vpop.f32.mrf.mxu0
        %5932 = vmatprep.mubr.f32.mxu0 0.0
        %5933 = vmatmul.mubr.f32.gmra.mxu0 %v5733
        %v5934 = vpop.f32.mrf.mxu0
        %v5935 = vadd.f32 %v5670, %v5934
        %v5936 = vpop.f32.mrf.mxu0
        %5937 = vmatprep.mubr.f32.mxu0 0.0
        %5938 = vmatmul.mubr.f32.gmra.mxu0 %v5736
        %v5939 = vpop.f32.mrf.mxu0
        %v5940 = vadd.f32 %v5670, %v5939
        %v5941 = vpop.f32.mrf.mxu0
        %5942 = vmatprep.mubr.f32.mxu0 0.0
        %5943 = vmatmul.mubr.f32.gmra.mxu0 %v5739
        %v5944 = vpop.f32.mrf.mxu0
        %v5945 = vadd.f32 %v5670, %v5944
        %v5946 = vpop.f32.mrf.mxu0
        %5947 = vmatprep.mubr.f32.mxu0 0.0
        %5948 = vmatmul.mubr.f32.gmra.mxu0 %v5742
        %v5949 = vpop.f32.mrf.mxu0
        %v5950 = vadd.f32 %v5670, %v5949
        %v5951 = vpop.f32.mrf.mxu0
        %5952 = vmatprep.mubr.f32.mxu0 0.0
        %5953 = vmatmul.mubr.f32.gmra.mxu0 %v5745
        %v5954 = vpop.f32.mrf.mxu0
        %v5955 = vadd.f32 %v5670, %v5954
        %v5956 = vpop.f32.mrf.mxu0
        %5957 = vmatprep.mubr.f32.mxu0 0.0
        %5958 = vmatmul.mubr.f32.gmra.mxu0 %v5748
        %v5959 = vpop.f32.mrf.mxu0
        %v5960 = vadd.f32 %v5670, %v5959
        %v5961 = vpop.f32.mrf.mxu0
        %5962 = vmatprep.mubr.f32.mxu0 0.0
        %5963 = vmatmul.mubr.f32.gmra.mxu0 %v5751
        %v5964 = vpop.f32.mrf.mxu0
        %v5965 = vadd.f32 %v5670, %v5964
        %v5966 = vpop.f32.mrf.mxu0
        %5967 = vmatprep.mubr.f32.mxu0 0.0
        %5968 = vmatmul.mubr.f32.gmra.mxu0 %v5754
        %v5969 = vpop.f32.mrf.mxu0
        %v5970 = vadd.f32 %v5670, %v5969
        %v5971 = vpop.f32.mrf.mxu0
        %5972 = vmatprep.mubr.f32.mxu0 0.0
        %5973 = vmatmul.mubr.f32.gmra.mxu0 %v5757
        %v5974 = vpop.f32.mrf.mxu0
        %v5975 = vadd.f32 %v5670, %v5974
        %v5976 = vpop.f32.mrf.mxu0
        %5977 = vmatprep.mubr.f32.mxu0 0.0
        %5978 = vmatmul.mubr.f32.gmra.mxu0 %v5760
        %v5979 = vpop.f32.mrf.mxu0
        %v5980 = vadd.f32 %v5670, %v5979
        %v5981 = vpop.f32.mrf.mxu0
        %5982 = vmatprep.mubr.f32.mxu0 0.0
        %5983 = vmatmul.mubr.f32.gmra.mxu0 %v5763
        %v5984 = vpop.f32.mrf.mxu0
        %v5985 = vadd.f32 %v5670, %v5984
        %v5986 = vpop.f32.mrf.mxu0
        %5987 = vmatprep.mubr.f32.mxu0 0.0
        %5988 = vmatmul.mubr.f32.gmra.mxu0 %v5766
        %v5989 = vpop.f32.mrf.mxu0
        %v5990 = vadd.f32 %v5670, %v5989
        %v5991 = vpop.f32.mrf.mxu0
        %5992 = vdwg.mxu0
        %v5993 = vmax.f32 %v5835, 0.0
        %v5994 = vmax.f32 %v5840, 0.0
        %v5995 = vmax.f32 %v5845, 0.0
        %v5996 = vmax.f32 %v5850, 0.0
        %v5997 = vmax.f32 %v5855, 0.0
        %v5998 = vmax.f32 %v5860, 0.0
        %v5999 = vmax.f32 %v5865, 0.0
        %v6000 = vmax.f32 %v5870, 0.0
        %v6001 = vmax.f32 %v5875, 0.0
        %v6002 = vmax.f32 %v5880, 0.0
        %v6003 = vmax.f32 %v5885, 0.0
        %v6004 = vmax.f32 %v5890, 0.0
        %v6005 = vmax.f32 %v5895, 0.0
        %v6006 = vmax.f32 %v5900, 0.0
        %v6007 = vmax.f32 %v5905, 0.0
        %v6008 = vmax.f32 %v5910, 0.0
        %v6009 = vmax.f32 %v5915, 0.0
        %v6010 = vmax.f32 %v5920, 0.0
        %v6011 = vmax.f32 %v5925, 0.0
        %v6012 = vmax.f32 %v5930, 0.0
        %v6013 = vmax.f32 %v5935, 0.0
        %v6014 = vmax.f32 %v5940, 0.0
        %v6015 = vmax.f32 %v5945, 0.0
        %v6016 = vmax.f32 %v5950, 0.0
        %v6017 = vmax.f32 %v5955, 0.0
        %v6018 = vmax.f32 %v5960, 0.0
        %v6019 = vmax.f32 %v5965, 0.0
        %v6020 = vmax.f32 %v5970, 0.0
        %v6021 = vmax.f32 %v5975, 0.0
        %v6022 = vmax.f32 %v5980, 0.0
        %v6023 = vmax.f32 %v5985, 0.0
        %v6024 = vmax.f32 %v5990, 0.0
        %6025 = vst.msk [vmem:[%s618 + $0x1] sm:$0xff] %vm476, %v5993
        %6026 = vst.msk [vmem:[%s618 + $0x9] sm:$0xff] %vm476, %v5994
        %6027 = vst.msk [vmem:[%s618 + $0x19] sm:$0xff] %vm476, %v5995
        %6028 = vst.msk [vmem:[%s618 + $0x21] sm:$0xff] %vm476, %v5996
        %6029 = vst.msk [vmem:[%s618 + $0x31] sm:$0xff] %vm476, %v5997
        %6030 = vst.msk [vmem:[%s618 + $0x39] sm:$0xff] %vm476, %v5998
        %6031 = vst.msk [vmem:[%s618 + $0x49] sm:$0xff] %vm476, %v5999
        %6032 = vst.msk [vmem:[%s618 + $0x51] sm:$0xff] %vm476, %v6000
        %6033 = vst.msk [vmem:[%s618 + $0x61] sm:$0xff] %vm476, %v6001
        %6034 = vst.msk [vmem:[%s618 + $0x69] sm:$0xff] %vm476, %v6002
        %6035 = vst.msk [vmem:[%s618 + $0x79] sm:$0xff] %vm476, %v6003
        %6036 = vst.msk [vmem:[%s618 + $0x81] sm:$0xff] %vm476, %v6004
        %6037 = vst.msk [vmem:[%s618 + $0x91] sm:$0xff] %vm476, %v6005
        %6038 = vst.msk [vmem:[%s618 + $0x99] sm:$0xff] %vm476, %v6006
        %6039 = vst.msk [vmem:[%s618 + $0xa9] sm:$0xff] %vm476, %v6007
        %6040 = vst.msk [vmem:[%s618 + $0xb1] sm:$0xff] %vm476, %v6008
        %6041 = vst.msk [vmem:[%s618 + $0xc1] sm:$0xff] %vm476, %v6009
        %6042 = vst.msk [vmem:[%s618 + $0xc9] sm:$0xff] %vm476, %v6010
        %6043 = vst.msk [vmem:[%s618 + $0xd9] sm:$0xff] %vm476, %v6011
        %6044 = vst.msk [vmem:[%s618 + $0xe1] sm:$0xff] %vm476, %v6012
        %6045 = vst.msk [vmem:[%s618 + $0xf1] sm:$0xff] %vm476, %v6013
        %6046 = vst.msk [vmem:[%s618 + $0xf9] sm:$0xff] %vm476, %v6014
        %6047 = vst.msk [vmem:[%s618 + $0x109] sm:$0xff] %vm476, %v6015
        %6048 = vst.msk [vmem:[%s618 + $0x111] sm:$0xff] %vm476, %v6016
        %6049 = vst.msk [vmem:[%s618 + $0x121] sm:$0xff] %vm476, %v6017
        %6050 = vst.msk [vmem:[%s618 + $0x129] sm:$0xff] %vm476, %v6018
        %6051 = vst.msk [vmem:[%s618 + $0x139] sm:$0xff] %vm476, %v6019
        %6052 = vst.msk [vmem:[%s618 + $0x141] sm:$0xff] %vm476, %v6020
        %6053 = vst.msk [vmem:[%s618 + $0x151] sm:$0xff] %vm476, %v6021
        %6054 = vst.msk [vmem:[%s618 + $0x159] sm:$0xff] %vm476, %v6022
        %6055 = vst.msk [vmem:[%s618 + $0x169] sm:$0xff] %vm476, %v6023
        %6056 = vst.msk [vmem:[%s618 + $0x171] sm:$0xff] %vm476, %v6024
        %v6057 = vld [vmem:[#allocation2] sm:$0xff]
        %v6058 = vld [vmem:[#allocation2 + $0x8] sm:$0xff]
        %v6059 = vld [vmem:[#allocation2 + $0x10] sm:$0xff]
        %v6060 = vld [vmem:[#allocation2 + $0x18] sm:$0xff]
        %v6061 = vld [vmem:[#allocation2 + $0x20] sm:$0xff]
        %v6062 = vld [vmem:[#allocation2 + $0x28] sm:$0xff]
        %v6063 = vld [vmem:[#allocation2 + $0x30] sm:$0xff]
        %v6064 = vld [vmem:[#allocation2 + $0x38] sm:$0xff]
        %v6065 = vld [vmem:[#allocation2 + $0x40] sm:$0xff]
        %v6066 = vld [vmem:[#allocation2 + $0x48] sm:$0xff]
        %v6067 = vld [vmem:[#allocation2 + $0x50] sm:$0xff]
        %v6068 = vld [vmem:[#allocation2 + $0x58] sm:$0xff]
        %v6069 = vld [vmem:[#allocation2 + $0x60] sm:$0xff]
        %v6070 = vld [vmem:[#allocation2 + $0x68] sm:$0xff]
        %v6071 = vld [vmem:[#allocation2 + $0x70] sm:$0xff]
        %v6072 = vld [vmem:[#allocation2 + $0x78] sm:$0xff]
        %v6073 = vld [vmem:[#allocation2 + $0x80] sm:$0xff]
        %v6074 = vld [vmem:[#allocation2 + $0x88] sm:$0xff]
        %v6075 = vld [vmem:[#allocation2 + $0x90] sm:$0xff]
        %v6076 = vld [vmem:[#allocation2 + $0x98] sm:$0xff]
        %v6077 = vld [vmem:[#allocation2 + $0xa0] sm:$0xff]
        %v6078 = vld [vmem:[#allocation2 + $0xa8] sm:$0xff]
        %v6079 = vld [vmem:[#allocation2 + $0xb0] sm:$0xff]
        %v6080 = vld [vmem:[#allocation2 + $0xb8] sm:$0xff]
        %v6081 = vld [vmem:[#allocation2 + $0xc0] sm:$0xff]
        %v6082 = vld [vmem:[#allocation2 + $0xc8] sm:$0xff]
        %v6083 = vld [vmem:[#allocation2 + $0xd0] sm:$0xff]
        %v6084 = vld [vmem:[#allocation2 + $0xd8] sm:$0xff]
        %v6085 = vld [vmem:[#allocation2 + $0xe0] sm:$0xff]
        %v6086 = vld [vmem:[#allocation2 + $0xe8] sm:$0xff]
        %v6087 = vld [vmem:[#allocation2 + $0xf0] sm:$0xff]
        %v6088 = vld [vmem:[#allocation2 + $0xf8] sm:$0xff]
        %v6089 = vld [vmem:[#allocation2 + $0x100] sm:$0xff]
        %v6090 = vld [vmem:[#allocation2 + $0x108] sm:$0xff]
        %v6091 = vld [vmem:[#allocation2 + $0x110] sm:$0xff]
        %v6092 = vld [vmem:[#allocation2 + $0x118] sm:$0xff]
        %v6093 = vld [vmem:[#allocation2 + $0x120] sm:$0xff]
        %v6094 = vld [vmem:[#allocation2 + $0x128] sm:$0xff]
        %v6095 = vld [vmem:[#allocation2 + $0x130] sm:$0xff]
        %v6096 = vld [vmem:[#allocation2 + $0x138] sm:$0xff]
        %v6097 = vld [vmem:[#allocation2 + $0x140] sm:$0xff]
        %v6098 = vld [vmem:[#allocation2 + $0x148] sm:$0xff]
        %v6099 = vld [vmem:[#allocation2 + $0x150] sm:$0xff]
        %v6100 = vld [vmem:[#allocation2 + $0x158] sm:$0xff]
        %v6101 = vld [vmem:[#allocation2 + $0x160] sm:$0xff]
        %v6102 = vld [vmem:[#allocation2 + $0x168] sm:$0xff]
        %v6103 = vld [vmem:[#allocation2 + $0x170] sm:$0xff]
        %v6104 = vld [vmem:[#allocation2 + $0x178] sm:$0xff]
        %v6105 = vld [vmem:[#allocation2 + $0x180] sm:$0xff]
        %v6106 = vld [vmem:[#allocation2 + $0x188] sm:$0xff]
        %v6107 = vld [vmem:[#allocation2 + $0x190] sm:$0xff]
        %v6108 = vld [vmem:[#allocation2 + $0x198] sm:$0xff]
        %v6109 = vld [vmem:[#allocation2 + $0x1a0] sm:$0xff]
        %v6110 = vld [vmem:[#allocation2 + $0x1a8] sm:$0xff]
        %6111 = vst.msk [vmem:[#allocation3] sm:$0xff] %vm476, %v6057
        %6112 = vst.msk [vmem:[#allocation3 + $0x8] sm:$0xff] %vm476, %v6058
        %6113 = vst.msk [vmem:[#allocation3 + $0x10] sm:$0xff] %vm476, %v6060
        %6114 = vst.msk [vmem:[#allocation3 + $0x18] sm:$0xff] %vm476, %v6061
        %6115 = vst.msk [vmem:[#allocation3 + $0x20] sm:$0xff] %vm476, %v6063
        %6116 = vst.msk [vmem:[#allocation3 + $0x28] sm:$0xff] %vm476, %v6064
        %6117 = vst.msk [vmem:[#allocation3 + $0x30] sm:$0xff] %vm476, %v6066
        %6118 = vst.msk [vmem:[#allocation3 + $0x38] sm:$0xff] %vm476, %v6067
        %6119 = vst.msk [vmem:[#allocation3 + $0x40] sm:$0xff] %vm476, %v6069
        %6120 = vst.msk [vmem:[#allocation3 + $0x48] sm:$0xff] %vm476, %v6070
        %6121 = vst.msk [vmem:[#allocation3 + $0x50] sm:$0xff] %vm476, %v6072
        %6122 = vst.msk [vmem:[#allocation3 + $0x58] sm:$0xff] %vm476, %v6073
        %6123 = vst.msk [vmem:[#allocation3 + $0x60] sm:$0xff] %vm476, %v6075
        %6124 = vst.msk [vmem:[#allocation3 + $0x68] sm:$0xff] %vm476, %v6076
        %6125 = vst.msk [vmem:[#allocation3 + $0x70] sm:$0xff] %vm476, %v6078
        %6126 = vst.msk [vmem:[#allocation3 + $0x78] sm:$0xff] %vm476, %v6079
        %6127 = vst.msk [vmem:[#allocation3 + $0x80] sm:$0xff] %vm476, %v6081
        %6128 = vst.msk [vmem:[#allocation3 + $0x88] sm:$0xff] %vm476, %v6082
        %6129 = vst.msk [vmem:[#allocation3 + $0x90] sm:$0xff] %vm476, %v6084
        %6130 = vst.msk [vmem:[#allocation3 + $0x98] sm:$0xff] %vm476, %v6085
        %6131 = vst.msk [vmem:[#allocation3 + $0xa0] sm:$0xff] %vm476, %v6087
        %6132 = vst.msk [vmem:[#allocation3 + $0xa8] sm:$0xff] %vm476, %v6088
        %6133 = vst.msk [vmem:[#allocation3 + $0xb0] sm:$0xff] %vm476, %v6090
        %6134 = vst.msk [vmem:[#allocation3 + $0xb8] sm:$0xff] %vm476, %v6091
        %6135 = vst.msk [vmem:[#allocation3 + $0xc0] sm:$0xff] %vm476, %v6093
        %6136 = vst.msk [vmem:[#allocation3 + $0xc8] sm:$0xff] %vm476, %v6094
        %6137 = vst.msk [vmem:[#allocation3 + $0xd0] sm:$0xff] %vm476, %v6096
        %6138 = vst.msk [vmem:[#allocation3 + $0xd8] sm:$0xff] %vm476, %v6097
        %6139 = vst.msk [vmem:[#allocation3 + $0xe0] sm:$0xff] %vm476, %v6099
        %6140 = vst.msk [vmem:[#allocation3 + $0xe8] sm:$0xff] %vm476, %v6100
        %6141 = vst.msk [vmem:[#allocation3 + $0xf0] sm:$0xff] %vm476, %v6102
        %6142 = vst.msk [vmem:[#allocation3 + $0xf8] sm:$0xff] %vm476, %v6103
        %v6191 = vrot.slane %v6057, 1
        %v6192 = vrot.slane %v6058, 1
        %v6193 = vsel %vm785, %v6191, %v6192
        %v6194 = vrot.slane %v6059, 1
        %v6195 = vsel %vm785, %v6192, %v6194
        %v6196 = vrot.slane %v6060, 1
        %v6197 = vrot.slane %v6061, 1
        %v6198 = vsel %vm785, %v6196, %v6197
        %v6199 = vrot.slane %v6062, 1
        %v6200 = vsel %vm785, %v6197, %v6199
        %v6201 = vrot.slane %v6063, 1
        %v6202 = vrot.slane %v6064, 1
        %v6203 = vsel %vm785, %v6201, %v6202
        %v6204 = vrot.slane %v6065, 1
        %v6205 = vsel %vm785, %v6202, %v6204
        %v6206 = vrot.slane %v6066, 1
        %v6207 = vrot.slane %v6067, 1
        %v6208 = vsel %vm785, %v6206, %v6207
        %v6209 = vrot.slane %v6068, 1
        %v6210 = vsel %vm785, %v6207, %v6209
        %v6211 = vrot.slane %v6069, 1
        %v6212 = vrot.slane %v6070, 1
        %v6213 = vsel %vm785, %v6211, %v6212
        %v6214 = vrot.slane %v6071, 1
        %v6215 = vsel %vm785, %v6212, %v6214
        %v6216 = vrot.slane %v6072, 1
        %v6217 = vrot.slane %v6073, 1
        %v6218 = vsel %vm785, %v6216, %v6217
        %v6219 = vrot.slane %v6074, 1
        %v6220 = vsel %vm785, %v6217, %v6219
        %v6221 = vrot.slane %v6075, 1
        %v6222 = vrot.slane %v6076, 1
        %v6223 = vsel %vm785, %v6221, %v6222
        %v6224 = vrot.slane %v6077, 1
        %v6225 = vsel %vm785, %v6222, %v6224
        %v6226 = vrot.slane %v6078, 1
        %v6227 = vrot.slane %v6079, 1
        %v6228 = vsel %vm785, %v6226, %v6227
        %v6229 = vrot.slane %v6080, 1
        %v6230 = vsel %vm785, %v6227, %v6229
        %v6231 = vrot.slane %v6081, 1
        %v6232 = vrot.slane %v6082, 1
        %v6233 = vsel %vm785, %v6231, %v6232
        %v6234 = vrot.slane %v6083, 1
        %v6235 = vsel %vm785, %v6232, %v6234
        %v6236 = vrot.slane %v6084, 1
        %v6237 = vrot.slane %v6085, 1
        %v6238 = vsel %vm785, %v6236, %v6237
        %v6239 = vrot.slane %v6086, 1
        %v6240 = vsel %vm785, %v6237, %v6239
        %v6241 = vrot.slane %v6087, 1
        %v6242 = vrot.slane %v6088, 1
        %v6243 = vsel %vm785, %v6241, %v6242
        %v6244 = vrot.slane %v6089, 1
        %v6245 = vsel %vm785, %v6242, %v6244
        %v6246 = vrot.slane %v6090, 1
        %v6247 = vrot.slane %v6091, 1
        %v6248 = vsel %vm785, %v6246, %v6247
        %v6249 = vrot.slane %v6092, 1
        %v6250 = vsel %vm785, %v6247, %v6249
        %v6251 = vrot.slane %v6093, 1
        %v6252 = vrot.slane %v6094, 1
        %v6253 = vsel %vm785, %v6251, %v6252
        %v6254 = vrot.slane %v6095, 1
        %v6255 = vsel %vm785, %v6252, %v6254
        %v6256 = vrot.slane %v6096, 1
        %v6257 = vrot.slane %v6097, 1
        %v6258 = vsel %vm785, %v6256, %v6257
        %v6259 = vrot.slane %v6098, 1
        %v6260 = vsel %vm785, %v6257, %v6259
        %v6261 = vrot.slane %v6099, 1
        %v6262 = vrot.slane %v6100, 1
        %v6263 = vsel %vm785, %v6261, %v6262
        %v6264 = vrot.slane %v6101, 1
        %v6265 = vsel %vm785, %v6262, %v6264
        %v6266 = vrot.slane %v6102, 1
        %v6267 = vrot.slane %v6103, 1
        %v6268 = vsel %vm785, %v6266, %v6267
        %v6269 = vrot.slane %v6104, 1
        %v6270 = vsel %vm785, %v6267, %v6269
        %6271 = vrot.lane.b32.xlu0 %v6193, 8
        %v6272 = vpop.permute.xlu0 %6271
        %6273 = vrot.lane.b32.xlu0 %v6195, 8
        %v6274 = vpop.permute.xlu0 %6273
        %6275 = vrot.lane.b32.xlu0 %v6198, 8
        %v6276 = vpop.permute.xlu0 %6275
        %6277 = vrot.lane.b32.xlu0 %v6200, 8
        %v6278 = vpop.permute.xlu0 %6277
        %6279 = vrot.lane.b32.xlu0 %v6203, 8
        %v6280 = vpop.permute.xlu0 %6279
        %6281 = vrot.lane.b32.xlu0 %v6205, 8
        %v6282 = vpop.permute.xlu0 %6281
        %6283 = vrot.lane.b32.xlu0 %v6208, 8
        %v6284 = vpop.permute.xlu0 %6283
        %6285 = vrot.lane.b32.xlu0 %v6210, 8
        %v6286 = vpop.permute.xlu0 %6285
        %6287 = vrot.lane.b32.xlu0 %v6213, 8
        %v6288 = vpop.permute.xlu0 %6287
        %6289 = vrot.lane.b32.xlu0 %v6215, 8
        %v6290 = vpop.permute.xlu0 %6289
        %6291 = vrot.lane.b32.xlu0 %v6218, 8
        %v6292 = vpop.permute.xlu0 %6291
        %6293 = vrot.lane.b32.xlu0 %v6220, 8
        %v6294 = vpop.permute.xlu0 %6293
        %6295 = vrot.lane.b32.xlu0 %v6223, 8
        %v6296 = vpop.permute.xlu0 %6295
        %6297 = vrot.lane.b32.xlu0 %v6225, 8
        %v6298 = vpop.permute.xlu0 %6297
        %6299 = vrot.lane.b32.xlu0 %v6228, 8
        %v6300 = vpop.permute.xlu0 %6299
        %6301 = vrot.lane.b32.xlu0 %v6230, 8
        %v6302 = vpop.permute.xlu0 %6301
        %6303 = vrot.lane.b32.xlu0 %v6233, 8
        %v6304 = vpop.permute.xlu0 %6303
        %6305 = vrot.lane.b32.xlu0 %v6235, 8
        %v6306 = vpop.permute.xlu0 %6305
        %6307 = vrot.lane.b32.xlu0 %v6238, 8
        %v6308 = vpop.permute.xlu0 %6307
        %6309 = vrot.lane.b32.xlu0 %v6240, 8
        %v6310 = vpop.permute.xlu0 %6309
        %6311 = vrot.lane.b32.xlu0 %v6243, 8
        %v6312 = vpop.permute.xlu0 %6311
        %6313 = vrot.lane.b32.xlu0 %v6245, 8
        %v6314 = vpop.permute.xlu0 %6313
        %6315 = vrot.lane.b32.xlu0 %v6248, 8
        %v6316 = vpop.permute.xlu0 %6315
        %6317 = vrot.lane.b32.xlu0 %v6250, 8
        %v6318 = vpop.permute.xlu0 %6317
        %6319 = vrot.lane.b32.xlu0 %v6253, 8
        %v6320 = vpop.permute.xlu0 %6319
        %6321 = vrot.lane.b32.xlu0 %v6255, 8
        %v6322 = vpop.permute.xlu0 %6321
        %6323 = vrot.lane.b32.xlu0 %v6258, 8
        %v6324 = vpop.permute.xlu0 %6323
        %6325 = vrot.lane.b32.xlu0 %v6260, 8
        %v6326 = vpop.permute.xlu0 %6325
        %6327 = vrot.lane.b32.xlu0 %v6263, 8
        %v6328 = vpop.permute.xlu0 %6327
        %6329 = vrot.lane.b32.xlu0 %v6265, 8
        %v6330 = vpop.permute.xlu0 %6329
        %6331 = vrot.lane.b32.xlu0 %v6268, 8
        %v6332 = vpop.permute.xlu0 %6331
        %6333 = vrot.lane.b32.xlu0 %v6270, 8
        %v6334 = vpop.permute.xlu0 %6333
        %6367 = vst.msk [vmem:[#allocation3] sm:$0xff] %vm962, %v6272
        %6368 = vst.msk [vmem:[#allocation3 + $0x8] sm:$0xff] %vm962, %v6274
        %6369 = vst.msk [vmem:[#allocation3 + $0x10] sm:$0xff] %vm962, %v6276
        %6370 = vst.msk [vmem:[#allocation3 + $0x18] sm:$0xff] %vm962, %v6278
        %6371 = vst.msk [vmem:[#allocation3 + $0x20] sm:$0xff] %vm962, %v6280
        %6372 = vst.msk [vmem:[#allocation3 + $0x28] sm:$0xff] %vm962, %v6282
        %6373 = vst.msk [vmem:[#allocation3 + $0x30] sm:$0xff] %vm962, %v6284
        %6374 = vst.msk [vmem:[#allocation3 + $0x38] sm:$0xff] %vm962, %v6286
        %6375 = vst.msk [vmem:[#allocation3 + $0x40] sm:$0xff] %vm962, %v6288
        %6376 = vst.msk [vmem:[#allocation3 + $0x48] sm:$0xff] %vm962, %v6290
        %6377 = vst.msk [vmem:[#allocation3 + $0x50] sm:$0xff] %vm962, %v6292
        %6378 = vst.msk [vmem:[#allocation3 + $0x58] sm:$0xff] %vm962, %v6294
        %6379 = vst.msk [vmem:[#allocation3 + $0x60] sm:$0xff] %vm962, %v6296
        %6380 = vst.msk [vmem:[#allocation3 + $0x68] sm:$0xff] %vm962, %v6298
        %6381 = vst.msk [vmem:[#allocation3 + $0x70] sm:$0xff] %vm962, %v6300
        %6382 = vst.msk [vmem:[#allocation3 + $0x78] sm:$0xff] %vm962, %v6302
        %6383 = vst.msk [vmem:[#allocation3 + $0x80] sm:$0xff] %vm962, %v6304
        %6384 = vst.msk [vmem:[#allocation3 + $0x88] sm:$0xff] %vm962, %v6306
        %6385 = vst.msk [vmem:[#allocation3 + $0x90] sm:$0xff] %vm962, %v6308
        %6386 = vst.msk [vmem:[#allocation3 + $0x98] sm:$0xff] %vm962, %v6310
        %6387 = vst.msk [vmem:[#allocation3 + $0xa0] sm:$0xff] %vm962, %v6312
        %6388 = vst.msk [vmem:[#allocation3 + $0xa8] sm:$0xff] %vm962, %v6314
        %6389 = vst.msk [vmem:[#allocation3 + $0xb0] sm:$0xff] %vm962, %v6316
        %6390 = vst.msk [vmem:[#allocation3 + $0xb8] sm:$0xff] %vm962, %v6318
        %6391 = vst.msk [vmem:[#allocation3 + $0xc0] sm:$0xff] %vm962, %v6320
        %6392 = vst.msk [vmem:[#allocation3 + $0xc8] sm:$0xff] %vm962, %v6322
        %6393 = vst.msk [vmem:[#allocation3 + $0xd0] sm:$0xff] %vm962, %v6324
        %6394 = vst.msk [vmem:[#allocation3 + $0xd8] sm:$0xff] %vm962, %v6326
        %6395 = vst.msk [vmem:[#allocation3 + $0xe0] sm:$0xff] %vm962, %v6328
        %6396 = vst.msk [vmem:[#allocation3 + $0xe8] sm:$0xff] %vm962, %v6330
        %6397 = vst.msk [vmem:[#allocation3 + $0xf0] sm:$0xff] %vm962, %v6332
        %6398 = vst.msk [vmem:[#allocation3 + $0xf8] sm:$0xff] %vm962, %v6334
        %v6399 = vrot.slane %v6057, 2
        %v6400 = vrot.slane %v6058, 2
        %v6401 = vsel %vm995, %v6399, %v6400
        %v6402 = vrot.slane %v6059, 2
        %v6403 = vsel %vm995, %v6400, %v6402
        %v6404 = vrot.slane %v6060, 2
        %v6405 = vrot.slane %v6061, 2
        %v6406 = vsel %vm995, %v6404, %v6405
        %v6407 = vrot.slane %v6062, 2
        %v6408 = vsel %vm995, %v6405, %v6407
        %v6409 = vrot.slane %v6063, 2
        %v6410 = vrot.slane %v6064, 2
        %v6411 = vsel %vm995, %v6409, %v6410
        %v6412 = vrot.slane %v6065, 2
        %v6413 = vsel %vm995, %v6410, %v6412
        %v6414 = vrot.slane %v6066, 2
        %v6415 = vrot.slane %v6067, 2
        %v6416 = vsel %vm995, %v6414, %v6415
        %v6417 = vrot.slane %v6068, 2
        %v6418 = vsel %vm995, %v6415, %v6417
        %v6419 = vrot.slane %v6069, 2
        %v6420 = vrot.slane %v6070, 2
        %v6421 = vsel %vm995, %v6419, %v6420
        %v6422 = vrot.slane %v6071, 2
        %v6423 = vsel %vm995, %v6420, %v6422
        %v6424 = vrot.slane %v6072, 2
        %v6425 = vrot.slane %v6073, 2
        %v6426 = vsel %vm995, %v6424, %v6425
        %v6427 = vrot.slane %v6074, 2
        %v6428 = vsel %vm995, %v6425, %v6427
        %v6429 = vrot.slane %v6075, 2
        %v6430 = vrot.slane %v6076, 2
        %v6431 = vsel %vm995, %v6429, %v6430
        %v6432 = vrot.slane %v6077, 2
        %v6433 = vsel %vm995, %v6430, %v6432
        %v6434 = vrot.slane %v6078, 2
        %v6435 = vrot.slane %v6079, 2
        %v6436 = vsel %vm995, %v6434, %v6435
        %v6437 = vrot.slane %v6080, 2
        %v6438 = vsel %vm995, %v6435, %v6437
        %v6439 = vrot.slane %v6081, 2
        %v6440 = vrot.slane %v6082, 2
        %v6441 = vsel %vm995, %v6439, %v6440
        %v6442 = vrot.slane %v6083, 2
        %v6443 = vsel %vm995, %v6440, %v6442
        %v6444 = vrot.slane %v6084, 2
        %v6445 = vrot.slane %v6085, 2
        %v6446 = vsel %vm995, %v6444, %v6445
        %v6447 = vrot.slane %v6086, 2
        %v6448 = vsel %vm995, %v6445, %v6447
        %v6449 = vrot.slane %v6087, 2
        %v6450 = vrot.slane %v6088, 2
        %v6451 = vsel %vm995, %v6449, %v6450
        %v6452 = vrot.slane %v6089, 2
        %v6453 = vsel %vm995, %v6450, %v6452
        %v6454 = vrot.slane %v6090, 2
        %v6455 = vrot.slane %v6091, 2
        %v6456 = vsel %vm995, %v6454, %v6455
        %v6457 = vrot.slane %v6092, 2
        %v6458 = vsel %vm995, %v6455, %v6457
        %v6459 = vrot.slane %v6093, 2
        %v6460 = vrot.slane %v6094, 2
        %v6461 = vsel %vm995, %v6459, %v6460
        %v6462 = vrot.slane %v6095, 2
        %v6463 = vsel %vm995, %v6460, %v6462
        %v6464 = vrot.slane %v6096, 2
        %v6465 = vrot.slane %v6097, 2
        %v6466 = vsel %vm995, %v6464, %v6465
        %v6467 = vrot.slane %v6098, 2
        %v6468 = vsel %vm995, %v6465, %v6467
        %v6469 = vrot.slane %v6099, 2
        %v6470 = vrot.slane %v6100, 2
        %v6471 = vsel %vm995, %v6469, %v6470
        %v6472 = vrot.slane %v6101, 2
        %v6473 = vsel %vm995, %v6470, %v6472
        %v6474 = vrot.slane %v6102, 2
        %v6475 = vrot.slane %v6103, 2
        %v6476 = vsel %vm995, %v6474, %v6475
        %v6477 = vrot.slane %v6104, 2
        %v6478 = vsel %vm995, %v6475, %v6477
        %6479 = vrot.lane.b32.xlu0 %v6401, 16
        %v6480 = vpop.permute.xlu0 %6479
        %6481 = vrot.lane.b32.xlu0 %v6403, 16
        %v6482 = vpop.permute.xlu0 %6481
        %6483 = vrot.lane.b32.xlu0 %v6406, 16
        %v6484 = vpop.permute.xlu0 %6483
        %6485 = vrot.lane.b32.xlu0 %v6408, 16
        %v6486 = vpop.permute.xlu0 %6485
        %6487 = vrot.lane.b32.xlu0 %v6411, 16
        %v6488 = vpop.permute.xlu0 %6487
        %6489 = vrot.lane.b32.xlu0 %v6413, 16
        %v6490 = vpop.permute.xlu0 %6489
        %6491 = vrot.lane.b32.xlu0 %v6416, 16
        %v6492 = vpop.permute.xlu0 %6491
        %6493 = vrot.lane.b32.xlu0 %v6418, 16
        %v6494 = vpop.permute.xlu0 %6493
        %6495 = vrot.lane.b32.xlu0 %v6421, 16
        %v6496 = vpop.permute.xlu0 %6495
        %6497 = vrot.lane.b32.xlu0 %v6423, 16
        %v6498 = vpop.permute.xlu0 %6497
        %6499 = vrot.lane.b32.xlu0 %v6426, 16
        %v6500 = vpop.permute.xlu0 %6499
        %6501 = vrot.lane.b32.xlu0 %v6428, 16
        %v6502 = vpop.permute.xlu0 %6501
        %6503 = vrot.lane.b32.xlu0 %v6431, 16
        %v6504 = vpop.permute.xlu0 %6503
        %6505 = vrot.lane.b32.xlu0 %v6433, 16
        %v6506 = vpop.permute.xlu0 %6505
        %6507 = vrot.lane.b32.xlu0 %v6436, 16
        %v6508 = vpop.permute.xlu0 %6507
        %6509 = vrot.lane.b32.xlu0 %v6438, 16
        %v6510 = vpop.permute.xlu0 %6509
        %6511 = vrot.lane.b32.xlu0 %v6441, 16
        %v6512 = vpop.permute.xlu0 %6511
        %6513 = vrot.lane.b32.xlu0 %v6443, 16
        %v6514 = vpop.permute.xlu0 %6513
        %6515 = vrot.lane.b32.xlu0 %v6446, 16
        %v6516 = vpop.permute.xlu0 %6515
        %6517 = vrot.lane.b32.xlu0 %v6448, 16
        %v6518 = vpop.permute.xlu0 %6517
        %6519 = vrot.lane.b32.xlu0 %v6451, 16
        %v6520 = vpop.permute.xlu0 %6519
        %6521 = vrot.lane.b32.xlu0 %v6453, 16
        %v6522 = vpop.permute.xlu0 %6521
        %6523 = vrot.lane.b32.xlu0 %v6456, 16
        %v6524 = vpop.permute.xlu0 %6523
        %6525 = vrot.lane.b32.xlu0 %v6458, 16
        %v6526 = vpop.permute.xlu0 %6525
        %6527 = vrot.lane.b32.xlu0 %v6461, 16
        %v6528 = vpop.permute.xlu0 %6527
        %6529 = vrot.lane.b32.xlu0 %v6463, 16
        %v6530 = vpop.permute.xlu0 %6529
        %6531 = vrot.lane.b32.xlu0 %v6466, 16
        %v6532 = vpop.permute.xlu0 %6531
        %6533 = vrot.lane.b32.xlu0 %v6468, 16
        %v6534 = vpop.permute.xlu0 %6533
        %6535 = vrot.lane.b32.xlu0 %v6471, 16
        %v6536 = vpop.permute.xlu0 %6535
        %6537 = vrot.lane.b32.xlu0 %v6473, 16
        %v6538 = vpop.permute.xlu0 %6537
        %6539 = vrot.lane.b32.xlu0 %v6476, 16
        %v6540 = vpop.permute.xlu0 %6539
        %6541 = vrot.lane.b32.xlu0 %v6478, 16
        %v6542 = vpop.permute.xlu0 %6541
        %6575 = vst.msk [vmem:[#allocation3] sm:$0xff] %vm1172, %v6480
        %6576 = vst.msk [vmem:[#allocation3 + $0x8] sm:$0xff] %vm1172, %v6482
        %6577 = vst.msk [vmem:[#allocation3 + $0x10] sm:$0xff] %vm1172, %v6484
        %6578 = vst.msk [vmem:[#allocation3 + $0x18] sm:$0xff] %vm1172, %v6486
        %6579 = vst.msk [vmem:[#allocation3 + $0x20] sm:$0xff] %vm1172, %v6488
        %6580 = vst.msk [vmem:[#allocation3 + $0x28] sm:$0xff] %vm1172, %v6490
        %6581 = vst.msk [vmem:[#allocation3 + $0x30] sm:$0xff] %vm1172, %v6492
        %6582 = vst.msk [vmem:[#allocation3 + $0x38] sm:$0xff] %vm1172, %v6494
        %6583 = vst.msk [vmem:[#allocation3 + $0x40] sm:$0xff] %vm1172, %v6496
        %6584 = vst.msk [vmem:[#allocation3 + $0x48] sm:$0xff] %vm1172, %v6498
        %6585 = vst.msk [vmem:[#allocation3 + $0x50] sm:$0xff] %vm1172, %v6500
        %6586 = vst.msk [vmem:[#allocation3 + $0x58] sm:$0xff] %vm1172, %v6502
        %6587 = vst.msk [vmem:[#allocation3 + $0x60] sm:$0xff] %vm1172, %v6504
        %6588 = vst.msk [vmem:[#allocation3 + $0x68] sm:$0xff] %vm1172, %v6506
        %6589 = vst.msk [vmem:[#allocation3 + $0x70] sm:$0xff] %vm1172, %v6508
        %6590 = vst.msk [vmem:[#allocation3 + $0x78] sm:$0xff] %vm1172, %v6510
        %6591 = vst.msk [vmem:[#allocation3 + $0x80] sm:$0xff] %vm1172, %v6512
        %6592 = vst.msk [vmem:[#allocation3 + $0x88] sm:$0xff] %vm1172, %v6514
        %6593 = vst.msk [vmem:[#allocation3 + $0x90] sm:$0xff] %vm1172, %v6516
        %6594 = vst.msk [vmem:[#allocation3 + $0x98] sm:$0xff] %vm1172, %v6518
        %6595 = vst.msk [vmem:[#allocation3 + $0xa0] sm:$0xff] %vm1172, %v6520
        %6596 = vst.msk [vmem:[#allocation3 + $0xa8] sm:$0xff] %vm1172, %v6522
        %6597 = vst.msk [vmem:[#allocation3 + $0xb0] sm:$0xff] %vm1172, %v6524
        %6598 = vst.msk [vmem:[#allocation3 + $0xb8] sm:$0xff] %vm1172, %v6526
        %6599 = vst.msk [vmem:[#allocation3 + $0xc0] sm:$0xff] %vm1172, %v6528
        %6600 = vst.msk [vmem:[#allocation3 + $0xc8] sm:$0xff] %vm1172, %v6530
        %6601 = vst.msk [vmem:[#allocation3 + $0xd0] sm:$0xff] %vm1172, %v6532
        %6602 = vst.msk [vmem:[#allocation3 + $0xd8] sm:$0xff] %vm1172, %v6534
        %6603 = vst.msk [vmem:[#allocation3 + $0xe0] sm:$0xff] %vm1172, %v6536
        %6604 = vst.msk [vmem:[#allocation3 + $0xe8] sm:$0xff] %vm1172, %v6538
        %6605 = vst.msk [vmem:[#allocation3 + $0xf0] sm:$0xff] %vm1172, %v6540
        %6606 = vst.msk [vmem:[#allocation3 + $0xf8] sm:$0xff] %vm1172, %v6542
        %6609 = vrot.lane.b32.xlu0 %v6060, 24
        %v6610 = vpop.permute.xlu0 %6609
        %6611 = vrot.lane.b32.xlu0 %v6061, 24
        %v6612 = vpop.permute.xlu0 %6611
        %6613 = vrot.lane.b32.xlu0 %v6063, 24
        %v6614 = vpop.permute.xlu0 %6613
        %6615 = vrot.lane.b32.xlu0 %v6064, 24
        %v6616 = vpop.permute.xlu0 %6615
        %6617 = vrot.lane.b32.xlu0 %v6066, 24
        %v6618 = vpop.permute.xlu0 %6617
        %6619 = vrot.lane.b32.xlu0 %v6067, 24
        %v6620 = vpop.permute.xlu0 %6619
        %6621 = vrot.lane.b32.xlu0 %v6069, 24
        %v6622 = vpop.permute.xlu0 %6621
        %6623 = vrot.lane.b32.xlu0 %v6070, 24
        %v6624 = vpop.permute.xlu0 %6623
        %6625 = vrot.lane.b32.xlu0 %v6072, 24
        %v6626 = vpop.permute.xlu0 %6625
        %6627 = vrot.lane.b32.xlu0 %v6073, 24
        %v6628 = vpop.permute.xlu0 %6627
        %6629 = vrot.lane.b32.xlu0 %v6075, 24
        %v6630 = vpop.permute.xlu0 %6629
        %6631 = vrot.lane.b32.xlu0 %v6076, 24
        %v6632 = vpop.permute.xlu0 %6631
        %6633 = vrot.lane.b32.xlu0 %v6078, 24
        %v6634 = vpop.permute.xlu0 %6633
        %6635 = vrot.lane.b32.xlu0 %v6079, 24
        %v6636 = vpop.permute.xlu0 %6635
        %6637 = vrot.lane.b32.xlu0 %v6081, 24
        %v6638 = vpop.permute.xlu0 %6637
        %6639 = vrot.lane.b32.xlu0 %v6082, 24
        %v6640 = vpop.permute.xlu0 %6639
        %6641 = vrot.lane.b32.xlu0 %v6084, 24
        %v6642 = vpop.permute.xlu0 %6641
        %6643 = vrot.lane.b32.xlu0 %v6085, 24
        %v6644 = vpop.permute.xlu0 %6643
        %6645 = vrot.lane.b32.xlu0 %v6087, 24
        %v6646 = vpop.permute.xlu0 %6645
        %6647 = vrot.lane.b32.xlu0 %v6088, 24
        %v6648 = vpop.permute.xlu0 %6647
        %6649 = vrot.lane.b32.xlu0 %v6090, 24
        %v6650 = vpop.permute.xlu0 %6649
        %6651 = vrot.lane.b32.xlu0 %v6091, 24
        %v6652 = vpop.permute.xlu0 %6651
        %6653 = vrot.lane.b32.xlu0 %v6093, 24
        %v6654 = vpop.permute.xlu0 %6653
        %6655 = vrot.lane.b32.xlu0 %v6094, 24
        %v6656 = vpop.permute.xlu0 %6655
        %6657 = vrot.lane.b32.xlu0 %v6096, 24
        %v6658 = vpop.permute.xlu0 %6657
        %6659 = vrot.lane.b32.xlu0 %v6097, 24
        %v6660 = vpop.permute.xlu0 %6659
        %6661 = vrot.lane.b32.xlu0 %v6099, 24
        %v6662 = vpop.permute.xlu0 %6661
        %6663 = vrot.lane.b32.xlu0 %v6100, 24
        %v6664 = vpop.permute.xlu0 %6663
        %6665 = vrot.lane.b32.xlu0 %v6102, 24
        %v6666 = vpop.permute.xlu0 %6665
        %6667 = vrot.lane.b32.xlu0 %v6103, 24
        %v6668 = vpop.permute.xlu0 %6667
        %6669 = vrot.lane.b32.xlu0 %v6105, 24
        %v6670 = vpop.permute.xlu0 %6669
        %6671 = vrot.lane.b32.xlu0 %v6106, 24
        %v6672 = vpop.permute.xlu0 %6671
        %6705 = vst.msk [vmem:[#allocation3] sm:$0xff] %vm1303, %v6610
        %6706 = vst.msk [vmem:[#allocation3 + $0x8] sm:$0xff] %vm1303, %v6612
        %6707 = vst.msk [vmem:[#allocation3 + $0x10] sm:$0xff] %vm1303, %v6614
        %6708 = vst.msk [vmem:[#allocation3 + $0x18] sm:$0xff] %vm1303, %v6616
        %6709 = vst.msk [vmem:[#allocation3 + $0x20] sm:$0xff] %vm1303, %v6618
        %6710 = vst.msk [vmem:[#allocation3 + $0x28] sm:$0xff] %vm1303, %v6620
        %6711 = vst.msk [vmem:[#allocation3 + $0x30] sm:$0xff] %vm1303, %v6622
        %6712 = vst.msk [vmem:[#allocation3 + $0x38] sm:$0xff] %vm1303, %v6624
        %6713 = vst.msk [vmem:[#allocation3 + $0x40] sm:$0xff] %vm1303, %v6626
        %6714 = vst.msk [vmem:[#allocation3 + $0x48] sm:$0xff] %vm1303, %v6628
        %6715 = vst.msk [vmem:[#allocation3 + $0x50] sm:$0xff] %vm1303, %v6630
        %6716 = vst.msk [vmem:[#allocation3 + $0x58] sm:$0xff] %vm1303, %v6632
        %6717 = vst.msk [vmem:[#allocation3 + $0x60] sm:$0xff] %vm1303, %v6634
        %6718 = vst.msk [vmem:[#allocation3 + $0x68] sm:$0xff] %vm1303, %v6636
        %6719 = vst.msk [vmem:[#allocation3 + $0x70] sm:$0xff] %vm1303, %v6638
        %6720 = vst.msk [vmem:[#allocation3 + $0x78] sm:$0xff] %vm1303, %v6640
        %6721 = vst.msk [vmem:[#allocation3 + $0x80] sm:$0xff] %vm1303, %v6642
        %6722 = vst.msk [vmem:[#allocation3 + $0x88] sm:$0xff] %vm1303, %v6644
        %6723 = vst.msk [vmem:[#allocation3 + $0x90] sm:$0xff] %vm1303, %v6646
        %6724 = vst.msk [vmem:[#allocation3 + $0x98] sm:$0xff] %vm1303, %v6648
        %6725 = vst.msk [vmem:[#allocation3 + $0xa0] sm:$0xff] %vm1303, %v6650
        %6726 = vst.msk [vmem:[#allocation3 + $0xa8] sm:$0xff] %vm1303, %v6652
        %6727 = vst.msk [vmem:[#allocation3 + $0xb0] sm:$0xff] %vm1303, %v6654
        %6728 = vst.msk [vmem:[#allocation3 + $0xb8] sm:$0xff] %vm1303, %v6656
        %6729 = vst.msk [vmem:[#allocation3 + $0xc0] sm:$0xff] %vm1303, %v6658
        %6730 = vst.msk [vmem:[#allocation3 + $0xc8] sm:$0xff] %vm1303, %v6660
        %6731 = vst.msk [vmem:[#allocation3 + $0xd0] sm:$0xff] %vm1303, %v6662
        %6732 = vst.msk [vmem:[#allocation3 + $0xd8] sm:$0xff] %vm1303, %v6664
        %6733 = vst.msk [vmem:[#allocation3 + $0xe0] sm:$0xff] %vm1303, %v6666
        %6734 = vst.msk [vmem:[#allocation3 + $0xe8] sm:$0xff] %vm1303, %v6668
        %6735 = vst.msk [vmem:[#allocation3 + $0xf0] sm:$0xff] %vm1303, %v6670
        %6736 = vst.msk [vmem:[#allocation3 + $0xf8] sm:$0xff] %vm1303, %v6672
        %v6738 = vrot.slane %v6105, 1
        %v6739 = vrot.slane %v6106, 1
        %v6740 = vsel %vm785, %v6738, %v6739
        %v6741 = vrot.slane %v6107, 1
        %v6742 = vsel %vm785, %v6739, %v6741
        %6743 = vrot.lane.b32.xlu0 %v6198, 32
        %v6744 = vpop.permute.xlu0 %6743
        %6745 = vrot.lane.b32.xlu0 %v6200, 32
        %v6746 = vpop.permute.xlu0 %6745
        %6747 = vrot.lane.b32.xlu0 %v6203, 32
        %v6748 = vpop.permute.xlu0 %6747
        %6749 = vrot.lane.b32.xlu0 %v6205, 32
        %v6750 = vpop.permute.xlu0 %6749
        %6751 = vrot.lane.b32.xlu0 %v6208, 32
        %v6752 = vpop.permute.xlu0 %6751
        %6753 = vrot.lane.b32.xlu0 %v6210, 32
        %v6754 = vpop.permute.xlu0 %6753
        %6755 = vrot.lane.b32.xlu0 %v6213, 32
        %v6756 = vpop.permute.xlu0 %6755
        %6757 = vrot.lane.b32.xlu0 %v6215, 32
        %v6758 = vpop.permute.xlu0 %6757
        %6759 = vrot.lane.b32.xlu0 %v6218, 32
        %v6760 = vpop.permute.xlu0 %6759
        %6761 = vrot.lane.b32.xlu0 %v6220, 32
        %v6762 = vpop.permute.xlu0 %6761
        %6763 = vrot.lane.b32.xlu0 %v6223, 32
        %v6764 = vpop.permute.xlu0 %6763
        %6765 = vrot.lane.b32.xlu0 %v6225, 32
        %v6766 = vpop.permute.xlu0 %6765
        %6767 = vrot.lane.b32.xlu0 %v6228, 32
        %v6768 = vpop.permute.xlu0 %6767
        %6769 = vrot.lane.b32.xlu0 %v6230, 32
        %v6770 = vpop.permute.xlu0 %6769
        %6771 = vrot.lane.b32.xlu0 %v6233, 32
        %v6772 = vpop.permute.xlu0 %6771
        %6773 = vrot.lane.b32.xlu0 %v6235, 32
        %v6774 = vpop.permute.xlu0 %6773
        %6775 = vrot.lane.b32.xlu0 %v6238, 32
        %v6776 = vpop.permute.xlu0 %6775
        %6777 = vrot.lane.b32.xlu0 %v6240, 32
        %v6778 = vpop.permute.xlu0 %6777
        %6779 = vrot.lane.b32.xlu0 %v6243, 32
        %v6780 = vpop.permute.xlu0 %6779
        %6781 = vrot.lane.b32.xlu0 %v6245, 32
        %v6782 = vpop.permute.xlu0 %6781
        %6783 = vrot.lane.b32.xlu0 %v6248, 32
        %v6784 = vpop.permute.xlu0 %6783
        %6785 = vrot.lane.b32.xlu0 %v6250, 32
        %v6786 = vpop.permute.xlu0 %6785
        %6787 = vrot.lane.b32.xlu0 %v6253, 32
        %v6788 = vpop.permute.xlu0 %6787
        %6789 = vrot.lane.b32.xlu0 %v6255, 32
        %v6790 = vpop.permute.xlu0 %6789
        %6791 = vrot.lane.b32.xlu0 %v6258, 32
        %v6792 = vpop.permute.xlu0 %6791
        %6793 = vrot.lane.b32.xlu0 %v6260, 32
        %v6794 = vpop.permute.xlu0 %6793
        %6795 = vrot.lane.b32.xlu0 %v6263, 32
        %v6796 = vpop.permute.xlu0 %6795
        %6797 = vrot.lane.b32.xlu0 %v6265, 32
        %v6798 = vpop.permute.xlu0 %6797
        %6799 = vrot.lane.b32.xlu0 %v6268, 32
        %v6800 = vpop.permute.xlu0 %6799
        %6801 = vrot.lane.b32.xlu0 %v6270, 32
        %v6802 = vpop.permute.xlu0 %6801
        %6803 = vrot.lane.b32.xlu0 %v6740, 32
        %v6804 = vpop.permute.xlu0 %6803
        %6805 = vrot.lane.b32.xlu0 %v6742, 32
        %v6806 = vpop.permute.xlu0 %6805
        %6839 = vst.msk [vmem:[#allocation3] sm:$0xff] %vm1438, %v6744
        %6840 = vst.msk [vmem:[#allocation3 + $0x8] sm:$0xff] %vm1438, %v6746
        %6841 = vst.msk [vmem:[#allocation3 + $0x10] sm:$0xff] %vm1438, %v6748
        %6842 = vst.msk [vmem:[#allocation3 + $0x18] sm:$0xff] %vm1438, %v6750
        %6843 = vst.msk [vmem:[#allocation3 + $0x20] sm:$0xff] %vm1438, %v6752
        %6844 = vst.msk [vmem:[#allocation3 + $0x28] sm:$0xff] %vm1438, %v6754
        %6845 = vst.msk [vmem:[#allocation3 + $0x30] sm:$0xff] %vm1438, %v6756
        %6846 = vst.msk [vmem:[#allocation3 + $0x38] sm:$0xff] %vm1438, %v6758
        %6847 = vst.msk [vmem:[#allocation3 + $0x40] sm:$0xff] %vm1438, %v6760
        %6848 = vst.msk [vmem:[#allocation3 + $0x48] sm:$0xff] %vm1438, %v6762
        %6849 = vst.msk [vmem:[#allocation3 + $0x50] sm:$0xff] %vm1438, %v6764
        %6850 = vst.msk [vmem:[#allocation3 + $0x58] sm:$0xff] %vm1438, %v6766
        %6851 = vst.msk [vmem:[#allocation3 + $0x60] sm:$0xff] %vm1438, %v6768
        %6852 = vst.msk [vmem:[#allocation3 + $0x68] sm:$0xff] %vm1438, %v6770
        %6853 = vst.msk [vmem:[#allocation3 + $0x70] sm:$0xff] %vm1438, %v6772
        %6854 = vst.msk [vmem:[#allocation3 + $0x78] sm:$0xff] %vm1438, %v6774
        %6855 = vst.msk [vmem:[#allocation3 + $0x80] sm:$0xff] %vm1438, %v6776
        %6856 = vst.msk [vmem:[#allocation3 + $0x88] sm:$0xff] %vm1438, %v6778
        %6857 = vst.msk [vmem:[#allocation3 + $0x90] sm:$0xff] %vm1438, %v6780
        %6858 = vst.msk [vmem:[#allocation3 + $0x98] sm:$0xff] %vm1438, %v6782
        %6859 = vst.msk [vmem:[#allocation3 + $0xa0] sm:$0xff] %vm1438, %v6784
        %6860 = vst.msk [vmem:[#allocation3 + $0xa8] sm:$0xff] %vm1438, %v6786
        %6861 = vst.msk [vmem:[#allocation3 + $0xb0] sm:$0xff] %vm1438, %v6788
        %6862 = vst.msk [vmem:[#allocation3 + $0xb8] sm:$0xff] %vm1438, %v6790
        %6863 = vst.msk [vmem:[#allocation3 + $0xc0] sm:$0xff] %vm1438, %v6792
        %6864 = vst.msk [vmem:[#allocation3 + $0xc8] sm:$0xff] %vm1438, %v6794
        %6865 = vst.msk [vmem:[#allocation3 + $0xd0] sm:$0xff] %vm1438, %v6796
        %6866 = vst.msk [vmem:[#allocation3 + $0xd8] sm:$0xff] %vm1438, %v6798
        %6867 = vst.msk [vmem:[#allocation3 + $0xe0] sm:$0xff] %vm1438, %v6800
        %6868 = vst.msk [vmem:[#allocation3 + $0xe8] sm:$0xff] %vm1438, %v6802
        %6869 = vst.msk [vmem:[#allocation3 + $0xf0] sm:$0xff] %vm1438, %v6804
        %6870 = vst.msk [vmem:[#allocation3 + $0xf8] sm:$0xff] %vm1438, %v6806
        %v6871 = vrot.slane %v6105, 2
        %v6872 = vrot.slane %v6106, 2
        %v6873 = vsel %vm995, %v6871, %v6872
        %v6874 = vrot.slane %v6107, 2
        %v6875 = vsel %vm995, %v6872, %v6874
        %6876 = vrot.lane.b32.xlu0 %v6406, 40
        %v6877 = vpop.permute.xlu0 %6876
        %6878 = vrot.lane.b32.xlu0 %v6408, 40
        %v6879 = vpop.permute.xlu0 %6878
        %6880 = vrot.lane.b32.xlu0 %v6411, 40
        %v6881 = vpop.permute.xlu0 %6880
        %6882 = vrot.lane.b32.xlu0 %v6413, 40
        %v6883 = vpop.permute.xlu0 %6882
        %6884 = vrot.lane.b32.xlu0 %v6416, 40
        %v6885 = vpop.permute.xlu0 %6884
        %6886 = vrot.lane.b32.xlu0 %v6418, 40
        %v6887 = vpop.permute.xlu0 %6886
        %6888 = vrot.lane.b32.xlu0 %v6421, 40
        %v6889 = vpop.permute.xlu0 %6888
        %6890 = vrot.lane.b32.xlu0 %v6423, 40
        %v6891 = vpop.permute.xlu0 %6890
        %6892 = vrot.lane.b32.xlu0 %v6426, 40
        %v6893 = vpop.permute.xlu0 %6892
        %6894 = vrot.lane.b32.xlu0 %v6428, 40
        %v6895 = vpop.permute.xlu0 %6894
        %6896 = vrot.lane.b32.xlu0 %v6431, 40
        %v6897 = vpop.permute.xlu0 %6896
        %6898 = vrot.lane.b32.xlu0 %v6433, 40
        %v6899 = vpop.permute.xlu0 %6898
        %6900 = vrot.lane.b32.xlu0 %v6436, 40
        %v6901 = vpop.permute.xlu0 %6900
        %6902 = vrot.lane.b32.xlu0 %v6438, 40
        %v6903 = vpop.permute.xlu0 %6902
        %6904 = vrot.lane.b32.xlu0 %v6441, 40
        %v6905 = vpop.permute.xlu0 %6904
        %6906 = vrot.lane.b32.xlu0 %v6443, 40
        %v6907 = vpop.permute.xlu0 %6906
        %6908 = vrot.lane.b32.xlu0 %v6446, 40
        %v6909 = vpop.permute.xlu0 %6908
        %6910 = vrot.lane.b32.xlu0 %v6448, 40
        %v6911 = vpop.permute.xlu0 %6910
        %6912 = vrot.lane.b32.xlu0 %v6451, 40
        %v6913 = vpop.permute.xlu0 %6912
        %6914 = vrot.lane.b32.xlu0 %v6453, 40
        %v6915 = vpop.permute.xlu0 %6914
        %6916 = vrot.lane.b32.xlu0 %v6456, 40
        %v6917 = vpop.permute.xlu0 %6916
        %6918 = vrot.lane.b32.xlu0 %v6458, 40
        %v6919 = vpop.permute.xlu0 %6918
        %6920 = vrot.lane.b32.xlu0 %v6461, 40
        %v6921 = vpop.permute.xlu0 %6920
        %6922 = vrot.lane.b32.xlu0 %v6463, 40
        %v6923 = vpop.permute.xlu0 %6922
        %6924 = vrot.lane.b32.xlu0 %v6466, 40
        %v6925 = vpop.permute.xlu0 %6924
        %6926 = vrot.lane.b32.xlu0 %v6468, 40
        %v6927 = vpop.permute.xlu0 %6926
        %6928 = vrot.lane.b32.xlu0 %v6471, 40
        %v6929 = vpop.permute.xlu0 %6928
        %6930 = vrot.lane.b32.xlu0 %v6473, 40
        %v6931 = vpop.permute.xlu0 %6930
        %6932 = vrot.lane.b32.xlu0 %v6476, 40
        %v6933 = vpop.permute.xlu0 %6932
        %6934 = vrot.lane.b32.xlu0 %v6478, 40
        %v6935 = vpop.permute.xlu0 %6934
        %6936 = vrot.lane.b32.xlu0 %v6873, 40
        %v6937 = vpop.permute.xlu0 %6936
        %6938 = vrot.lane.b32.xlu0 %v6875, 40
        %v6939 = vpop.permute.xlu0 %6938
        %6972 = vst.msk [vmem:[#allocation3] sm:$0xff] %vm1572, %v6877
        %6973 = vst.msk [vmem:[#allocation3 + $0x8] sm:$0xff] %vm1572, %v6879
        %6974 = vst.msk [vmem:[#allocation3 + $0x10] sm:$0xff] %vm1572, %v6881
        %6975 = vst.msk [vmem:[#allocation3 + $0x18] sm:$0xff] %vm1572, %v6883
        %6976 = vst.msk [vmem:[#allocation3 + $0x20] sm:$0xff] %vm1572, %v6885
        %6977 = vst.msk [vmem:[#allocation3 + $0x28] sm:$0xff] %vm1572, %v6887
        %6978 = vst.msk [vmem:[#allocation3 + $0x30] sm:$0xff] %vm1572, %v6889
        %6979 = vst.msk [vmem:[#allocation3 + $0x38] sm:$0xff] %vm1572, %v6891
        %6980 = vst.msk [vmem:[#allocation3 + $0x40] sm:$0xff] %vm1572, %v6893
        %6981 = vst.msk [vmem:[#allocation3 + $0x48] sm:$0xff] %vm1572, %v6895
        %6982 = vst.msk [vmem:[#allocation3 + $0x50] sm:$0xff] %vm1572, %v6897
        %6983 = vst.msk [vmem:[#allocation3 + $0x58] sm:$0xff] %vm1572, %v6899
        %6984 = vst.msk [vmem:[#allocation3 + $0x60] sm:$0xff] %vm1572, %v6901
        %6985 = vst.msk [vmem:[#allocation3 + $0x68] sm:$0xff] %vm1572, %v6903
        %6986 = vst.msk [vmem:[#allocation3 + $0x70] sm:$0xff] %vm1572, %v6905
        %6987 = vst.msk [vmem:[#allocation3 + $0x78] sm:$0xff] %vm1572, %v6907
        %6988 = vst.msk [vmem:[#allocation3 + $0x80] sm:$0xff] %vm1572, %v6909
        %6989 = vst.msk [vmem:[#allocation3 + $0x88] sm:$0xff] %vm1572, %v6911
        %6990 = vst.msk [vmem:[#allocation3 + $0x90] sm:$0xff] %vm1572, %v6913
        %6991 = vst.msk [vmem:[#allocation3 + $0x98] sm:$0xff] %vm1572, %v6915
        %6992 = vst.msk [vmem:[#allocation3 + $0xa0] sm:$0xff] %vm1572, %v6917
        %6993 = vst.msk [vmem:[#allocation3 + $0xa8] sm:$0xff] %vm1572, %v6919
        %6994 = vst.msk [vmem:[#allocation3 + $0xb0] sm:$0xff] %vm1572, %v6921
        %6995 = vst.msk [vmem:[#allocation3 + $0xb8] sm:$0xff] %vm1572, %v6923
        %6996 = vst.msk [vmem:[#allocation3 + $0xc0] sm:$0xff] %vm1572, %v6925
        %6997 = vst.msk [vmem:[#allocation3 + $0xc8] sm:$0xff] %vm1572, %v6927
        %6998 = vst.msk [vmem:[#allocation3 + $0xd0] sm:$0xff] %vm1572, %v6929
        %6999 = vst.msk [vmem:[#allocation3 + $0xd8] sm:$0xff] %vm1572, %v6931
        %7000 = vst.msk [vmem:[#allocation3 + $0xe0] sm:$0xff] %vm1572, %v6933
        %7001 = vst.msk [vmem:[#allocation3 + $0xe8] sm:$0xff] %vm1572, %v6935
        %7002 = vst.msk [vmem:[#allocation3 + $0xf0] sm:$0xff] %vm1572, %v6937
        %7003 = vst.msk [vmem:[#allocation3 + $0xf8] sm:$0xff] %vm1572, %v6939
        %7006 = vrot.lane.b32.xlu0 %v6063, 48
        %v7007 = vpop.permute.xlu0 %7006
        %7008 = vrot.lane.b32.xlu0 %v6064, 48
        %v7009 = vpop.permute.xlu0 %7008
        %7010 = vrot.lane.b32.xlu0 %v6066, 48
        %v7011 = vpop.permute.xlu0 %7010
        %7012 = vrot.lane.b32.xlu0 %v6067, 48
        %v7013 = vpop.permute.xlu0 %7012
        %7014 = vrot.lane.b32.xlu0 %v6069, 48
        %v7015 = vpop.permute.xlu0 %7014
        %7016 = vrot.lane.b32.xlu0 %v6070, 48
        %v7017 = vpop.permute.xlu0 %7016
        %7018 = vrot.lane.b32.xlu0 %v6072, 48
        %v7019 = vpop.permute.xlu0 %7018
        %7020 = vrot.lane.b32.xlu0 %v6073, 48
        %v7021 = vpop.permute.xlu0 %7020
        %7022 = vrot.lane.b32.xlu0 %v6075, 48
        %v7023 = vpop.permute.xlu0 %7022
        %7024 = vrot.lane.b32.xlu0 %v6076, 48
        %v7025 = vpop.permute.xlu0 %7024
        %7026 = vrot.lane.b32.xlu0 %v6078, 48
        %v7027 = vpop.permute.xlu0 %7026
        %7028 = vrot.lane.b32.xlu0 %v6079, 48
        %v7029 = vpop.permute.xlu0 %7028
        %7030 = vrot.lane.b32.xlu0 %v6081, 48
        %v7031 = vpop.permute.xlu0 %7030
        %7032 = vrot.lane.b32.xlu0 %v6082, 48
        %v7033 = vpop.permute.xlu0 %7032
        %7034 = vrot.lane.b32.xlu0 %v6084, 48
        %v7035 = vpop.permute.xlu0 %7034
        %7036 = vrot.lane.b32.xlu0 %v6085, 48
        %v7037 = vpop.permute.xlu0 %7036
        %7038 = vrot.lane.b32.xlu0 %v6087, 48
        %v7039 = vpop.permute.xlu0 %7038
        %7040 = vrot.lane.b32.xlu0 %v6088, 48
        %v7041 = vpop.permute.xlu0 %7040
        %7042 = vrot.lane.b32.xlu0 %v6090, 48
        %v7043 = vpop.permute.xlu0 %7042
        %7044 = vrot.lane.b32.xlu0 %v6091, 48
        %v7045 = vpop.permute.xlu0 %7044
        %7046 = vrot.lane.b32.xlu0 %v6093, 48
        %v7047 = vpop.permute.xlu0 %7046
        %7048 = vrot.lane.b32.xlu0 %v6094, 48
        %v7049 = vpop.permute.xlu0 %7048
        %7050 = vrot.lane.b32.xlu0 %v6096, 48
        %v7051 = vpop.permute.xlu0 %7050
        %7052 = vrot.lane.b32.xlu0 %v6097, 48
        %v7053 = vpop.permute.xlu0 %7052
        %7054 = vrot.lane.b32.xlu0 %v6099, 48
        %v7055 = vpop.permute.xlu0 %7054
        %7056 = vrot.lane.b32.xlu0 %v6100, 48
        %v7057 = vpop.permute.xlu0 %7056
        %7058 = vrot.lane.b32.xlu0 %v6102, 48
        %v7059 = vpop.permute.xlu0 %7058
        %7060 = vrot.lane.b32.xlu0 %v6103, 48
        %v7061 = vpop.permute.xlu0 %7060
        %7062 = vrot.lane.b32.xlu0 %v6105, 48
        %v7063 = vpop.permute.xlu0 %7062
        %7064 = vrot.lane.b32.xlu0 %v6106, 48
        %v7065 = vpop.permute.xlu0 %7064
        %7066 = vrot.lane.b32.xlu0 %v6108, 48
        %v7067 = vpop.permute.xlu0 %7066
        %7068 = vrot.lane.b32.xlu0 %v6109, 48
        %v7069 = vpop.permute.xlu0 %7068
        %7102 = vst.msk [vmem:[#allocation3] sm:$0xff] %vm1703, %v7007
        %7103 = vst.msk [vmem:[#allocation3 + $0x8] sm:$0xff] %vm1703, %v7009
        %7104 = vst.msk [vmem:[#allocation3 + $0x10] sm:$0xff] %vm1703, %v7011
        %7105 = vst.msk [vmem:[#allocation3 + $0x18] sm:$0xff] %vm1703, %v7013
        %7106 = vst.msk [vmem:[#allocation3 + $0x20] sm:$0xff] %vm1703, %v7015
        %7107 = vst.msk [vmem:[#allocation3 + $0x28] sm:$0xff] %vm1703, %v7017
        %7108 = vst.msk [vmem:[#allocation3 + $0x30] sm:$0xff] %vm1703, %v7019
        %7109 = vst.msk [vmem:[#allocation3 + $0x38] sm:$0xff] %vm1703, %v7021
        %7110 = vst.msk [vmem:[#allocation3 + $0x40] sm:$0xff] %vm1703, %v7023
        %7111 = vst.msk [vmem:[#allocation3 + $0x48] sm:$0xff] %vm1703, %v7025
        %7112 = vst.msk [vmem:[#allocation3 + $0x50] sm:$0xff] %vm1703, %v7027
        %7113 = vst.msk [vmem:[#allocation3 + $0x58] sm:$0xff] %vm1703, %v7029
        %7114 = vst.msk [vmem:[#allocation3 + $0x60] sm:$0xff] %vm1703, %v7031
        %7115 = vst.msk [vmem:[#allocation3 + $0x68] sm:$0xff] %vm1703, %v7033
        %7116 = vst.msk [vmem:[#allocation3 + $0x70] sm:$0xff] %vm1703, %v7035
        %7117 = vst.msk [vmem:[#allocation3 + $0x78] sm:$0xff] %vm1703, %v7037
        %7118 = vst.msk [vmem:[#allocation3 + $0x80] sm:$0xff] %vm1703, %v7039
        %7119 = vst.msk [vmem:[#allocation3 + $0x88] sm:$0xff] %vm1703, %v7041
        %7120 = vst.msk [vmem:[#allocation3 + $0x90] sm:$0xff] %vm1703, %v7043
        %7121 = vst.msk [vmem:[#allocation3 + $0x98] sm:$0xff] %vm1703, %v7045
        %7122 = vst.msk [vmem:[#allocation3 + $0xa0] sm:$0xff] %vm1703, %v7047
        %7123 = vst.msk [vmem:[#allocation3 + $0xa8] sm:$0xff] %vm1703, %v7049
        %7124 = vst.msk [vmem:[#allocation3 + $0xb0] sm:$0xff] %vm1703, %v7051
        %7125 = vst.msk [vmem:[#allocation3 + $0xb8] sm:$0xff] %vm1703, %v7053
        %7126 = vst.msk [vmem:[#allocation3 + $0xc0] sm:$0xff] %vm1703, %v7055
        %7127 = vst.msk [vmem:[#allocation3 + $0xc8] sm:$0xff] %vm1703, %v7057
        %7128 = vst.msk [vmem:[#allocation3 + $0xd0] sm:$0xff] %vm1703, %v7059
        %7129 = vst.msk [vmem:[#allocation3 + $0xd8] sm:$0xff] %vm1703, %v7061
        %7130 = vst.msk [vmem:[#allocation3 + $0xe0] sm:$0xff] %vm1703, %v7063
        %7131 = vst.msk [vmem:[#allocation3 + $0xe8] sm:$0xff] %vm1703, %v7065
        %7132 = vst.msk [vmem:[#allocation3 + $0xf0] sm:$0xff] %vm1703, %v7067
        %7133 = vst.msk [vmem:[#allocation3 + $0xf8] sm:$0xff] %vm1703, %v7069
        %v7135 = vrot.slane %v6108, 1
        %v7136 = vrot.slane %v6109, 1
        %v7137 = vsel %vm785, %v7135, %v7136
        %v7138 = vrot.slane %v6110, 1
        %v7139 = vsel %vm785, %v7136, %v7138
        %7140 = vrot.lane.b32.xlu0 %v6203, 56
        %v7141 = vpop.permute.xlu0 %7140
        %7142 = vrot.lane.b32.xlu0 %v6205, 56
        %v7143 = vpop.permute.xlu0 %7142
        %7144 = vrot.lane.b32.xlu0 %v6208, 56
        %v7145 = vpop.permute.xlu0 %7144
        %7146 = vrot.lane.b32.xlu0 %v6210, 56
        %v7147 = vpop.permute.xlu0 %7146
        %7148 = vrot.lane.b32.xlu0 %v6213, 56
        %v7149 = vpop.permute.xlu0 %7148
        %7150 = vrot.lane.b32.xlu0 %v6215, 56
        %v7151 = vpop.permute.xlu0 %7150
        %7152 = vrot.lane.b32.xlu0 %v6218, 56
        %v7153 = vpop.permute.xlu0 %7152
        %7154 = vrot.lane.b32.xlu0 %v6220, 56
        %v7155 = vpop.permute.xlu0 %7154
        %7156 = vrot.lane.b32.xlu0 %v6223, 56
        %v7157 = vpop.permute.xlu0 %7156
        %7158 = vrot.lane.b32.xlu0 %v6225, 56
        %v7159 = vpop.permute.xlu0 %7158
        %7160 = vrot.lane.b32.xlu0 %v6228, 56
        %v7161 = vpop.permute.xlu0 %7160
        %7162 = vrot.lane.b32.xlu0 %v6230, 56
        %v7163 = vpop.permute.xlu0 %7162
        %7164 = vrot.lane.b32.xlu0 %v6233, 56
        %v7165 = vpop.permute.xlu0 %7164
        %7166 = vrot.lane.b32.xlu0 %v6235, 56
        %v7167 = vpop.permute.xlu0 %7166
        %7168 = vrot.lane.b32.xlu0 %v6238, 56
        %v7169 = vpop.permute.xlu0 %7168
        %7170 = vrot.lane.b32.xlu0 %v6240, 56
        %v7171 = vpop.permute.xlu0 %7170
        %7172 = vrot.lane.b32.xlu0 %v6243, 56
        %v7173 = vpop.permute.xlu0 %7172
        %7174 = vrot.lane.b32.xlu0 %v6245, 56
        %v7175 = vpop.permute.xlu0 %7174
        %7176 = vrot.lane.b32.xlu0 %v6248, 56
        %v7177 = vpop.permute.xlu0 %7176
        %7178 = vrot.lane.b32.xlu0 %v6250, 56
        %v7179 = vpop.permute.xlu0 %7178
        %7180 = vrot.lane.b32.xlu0 %v6253, 56
        %v7181 = vpop.permute.xlu0 %7180
        %7182 = vrot.lane.b32.xlu0 %v6255, 56
        %v7183 = vpop.permute.xlu0 %7182
        %7184 = vrot.lane.b32.xlu0 %v6258, 56
        %v7185 = vpop.permute.xlu0 %7184
        %7186 = vrot.lane.b32.xlu0 %v6260, 56
        %v7187 = vpop.permute.xlu0 %7186
        %7188 = vrot.lane.b32.xlu0 %v6263, 56
        %v7189 = vpop.permute.xlu0 %7188
        %7190 = vrot.lane.b32.xlu0 %v6265, 56
        %v7191 = vpop.permute.xlu0 %7190
        %7192 = vrot.lane.b32.xlu0 %v6268, 56
        %v7193 = vpop.permute.xlu0 %7192
        %7194 = vrot.lane.b32.xlu0 %v6270, 56
        %v7195 = vpop.permute.xlu0 %7194
        %7196 = vrot.lane.b32.xlu0 %v6740, 56
        %v7197 = vpop.permute.xlu0 %7196
        %7198 = vrot.lane.b32.xlu0 %v6742, 56
        %v7199 = vpop.permute.xlu0 %7198
        %7200 = vrot.lane.b32.xlu0 %v7137, 56
        %v7201 = vpop.permute.xlu0 %7200
        %7202 = vrot.lane.b32.xlu0 %v7139, 56
        %v7203 = vpop.permute.xlu0 %7202
        %7236 = vst.msk [vmem:[#allocation3] sm:$0xff] %vm1838, %v7141
        %7237 = vst.msk [vmem:[#allocation3 + $0x8] sm:$0xff] %vm1838, %v7143
        %7238 = vst.msk [vmem:[#allocation3 + $0x10] sm:$0xff] %vm1838, %v7145
        %7239 = vst.msk [vmem:[#allocation3 + $0x18] sm:$0xff] %vm1838, %v7147
        %7240 = vst.msk [vmem:[#allocation3 + $0x20] sm:$0xff] %vm1838, %v7149
        %7241 = vst.msk [vmem:[#allocation3 + $0x28] sm:$0xff] %vm1838, %v7151
        %7242 = vst.msk [vmem:[#allocation3 + $0x30] sm:$0xff] %vm1838, %v7153
        %7243 = vst.msk [vmem:[#allocation3 + $0x38] sm:$0xff] %vm1838, %v7155
        %7244 = vst.msk [vmem:[#allocation3 + $0x40] sm:$0xff] %vm1838, %v7157
        %7245 = vst.msk [vmem:[#allocation3 + $0x48] sm:$0xff] %vm1838, %v7159
        %7246 = vst.msk [vmem:[#allocation3 + $0x50] sm:$0xff] %vm1838, %v7161
        %7247 = vst.msk [vmem:[#allocation3 + $0x58] sm:$0xff] %vm1838, %v7163
        %7248 = vst.msk [vmem:[#allocation3 + $0x60] sm:$0xff] %vm1838, %v7165
        %7249 = vst.msk [vmem:[#allocation3 + $0x68] sm:$0xff] %vm1838, %v7167
        %7250 = vst.msk [vmem:[#allocation3 + $0x70] sm:$0xff] %vm1838, %v7169
        %7251 = vst.msk [vmem:[#allocation3 + $0x78] sm:$0xff] %vm1838, %v7171
        %7252 = vst.msk [vmem:[#allocation3 + $0x80] sm:$0xff] %vm1838, %v7173
        %7253 = vst.msk [vmem:[#allocation3 + $0x88] sm:$0xff] %vm1838, %v7175
        %7254 = vst.msk [vmem:[#allocation3 + $0x90] sm:$0xff] %vm1838, %v7177
        %7255 = vst.msk [vmem:[#allocation3 + $0x98] sm:$0xff] %vm1838, %v7179
        %7256 = vst.msk [vmem:[#allocation3 + $0xa0] sm:$0xff] %vm1838, %v7181
        %7257 = vst.msk [vmem:[#allocation3 + $0xa8] sm:$0xff] %vm1838, %v7183
        %7258 = vst.msk [vmem:[#allocation3 + $0xb0] sm:$0xff] %vm1838, %v7185
        %7259 = vst.msk [vmem:[#allocation3 + $0xb8] sm:$0xff] %vm1838, %v7187
        %7260 = vst.msk [vmem:[#allocation3 + $0xc0] sm:$0xff] %vm1838, %v7189
        %7261 = vst.msk [vmem:[#allocation3 + $0xc8] sm:$0xff] %vm1838, %v7191
        %7262 = vst.msk [vmem:[#allocation3 + $0xd0] sm:$0xff] %vm1838, %v7193
        %7263 = vst.msk [vmem:[#allocation3 + $0xd8] sm:$0xff] %vm1838, %v7195
        %7264 = vst.msk [vmem:[#allocation3 + $0xe0] sm:$0xff] %vm1838, %v7197
        %7265 = vst.msk [vmem:[#allocation3 + $0xe8] sm:$0xff] %vm1838, %v7199
        %7266 = vst.msk [vmem:[#allocation3 + $0xf0] sm:$0xff] %vm1838, %v7201
        %7267 = vst.msk [vmem:[#allocation3 + $0xf8] sm:$0xff] %vm1838, %v7203
        %v7268 = vrot.slane %v6108, 2
        %v7269 = vrot.slane %v6109, 2
        %v7270 = vsel %vm995, %v7268, %v7269
        %v7271 = vrot.slane %v6110, 2
        %v7272 = vsel %vm995, %v7269, %v7271
        %7273 = vrot.lane.b32.xlu0 %v6411, 64
        %v7274 = vpop.permute.xlu0 %7273
        %7275 = vrot.lane.b32.xlu0 %v6413, 64
        %v7276 = vpop.permute.xlu0 %7275
        %7277 = vrot.lane.b32.xlu0 %v6416, 64
        %v7278 = vpop.permute.xlu0 %7277
        %7279 = vrot.lane.b32.xlu0 %v6418, 64
        %v7280 = vpop.permute.xlu0 %7279
        %7281 = vrot.lane.b32.xlu0 %v6421, 64
        %v7282 = vpop.permute.xlu0 %7281
        %7283 = vrot.lane.b32.xlu0 %v6423, 64
        %v7284 = vpop.permute.xlu0 %7283
        %7285 = vrot.lane.b32.xlu0 %v6426, 64
        %v7286 = vpop.permute.xlu0 %7285
        %7287 = vrot.lane.b32.xlu0 %v6428, 64
        %v7288 = vpop.permute.xlu0 %7287
        %7289 = vrot.lane.b32.xlu0 %v6431, 64
        %v7290 = vpop.permute.xlu0 %7289
        %7291 = vrot.lane.b32.xlu0 %v6433, 64
        %v7292 = vpop.permute.xlu0 %7291
        %7293 = vrot.lane.b32.xlu0 %v6436, 64
        %v7294 = vpop.permute.xlu0 %7293
        %7295 = vrot.lane.b32.xlu0 %v6438, 64
        %v7296 = vpop.permute.xlu0 %7295
        %7297 = vrot.lane.b32.xlu0 %v6441, 64
        %v7298 = vpop.permute.xlu0 %7297
        %7299 = vrot.lane.b32.xlu0 %v6443, 64
        %v7300 = vpop.permute.xlu0 %7299
        %7301 = vrot.lane.b32.xlu0 %v6446, 64
        %v7302 = vpop.permute.xlu0 %7301
        %7303 = vrot.lane.b32.xlu0 %v6448, 64
        %v7304 = vpop.permute.xlu0 %7303
        %7305 = vrot.lane.b32.xlu0 %v6451, 64
        %v7306 = vpop.permute.xlu0 %7305
        %7307 = vrot.lane.b32.xlu0 %v6453, 64
        %v7308 = vpop.permute.xlu0 %7307
        %7309 = vrot.lane.b32.xlu0 %v6456, 64
        %v7310 = vpop.permute.xlu0 %7309
        %7311 = vrot.lane.b32.xlu0 %v6458, 64
        %v7312 = vpop.permute.xlu0 %7311
        %7313 = vrot.lane.b32.xlu0 %v6461, 64
        %v7314 = vpop.permute.xlu0 %7313
        %7315 = vrot.lane.b32.xlu0 %v6463, 64
        %v7316 = vpop.permute.xlu0 %7315
        %7317 = vrot.lane.b32.xlu0 %v6466, 64
        %v7318 = vpop.permute.xlu0 %7317
        %7319 = vrot.lane.b32.xlu0 %v6468, 64
        %v7320 = vpop.permute.xlu0 %7319
        %7321 = vrot.lane.b32.xlu0 %v6471, 64
        %v7322 = vpop.permute.xlu0 %7321
        %7323 = vrot.lane.b32.xlu0 %v6473, 64
        %v7324 = vpop.permute.xlu0 %7323
        %7325 = vrot.lane.b32.xlu0 %v6476, 64
        %v7326 = vpop.permute.xlu0 %7325
        %7327 = vrot.lane.b32.xlu0 %v6478, 64
        %v7328 = vpop.permute.xlu0 %7327
        %7329 = vrot.lane.b32.xlu0 %v6873, 64
        %v7330 = vpop.permute.xlu0 %7329
        %7331 = vrot.lane.b32.xlu0 %v6875, 64
        %v7332 = vpop.permute.xlu0 %7331
        %7333 = vrot.lane.b32.xlu0 %v7270, 64
        %v7334 = vpop.permute.xlu0 %7333
        %7335 = vrot.lane.b32.xlu0 %v7272, 64
        %v7336 = vpop.permute.xlu0 %7335
        %7369 = vst.msk [vmem:[#allocation3] sm:$0xff] %vm1972, %v7274
        %7370 = vst.msk [vmem:[#allocation3 + $0x8] sm:$0xff] %vm1972, %v7276
        %7371 = vst.msk [vmem:[#allocation3 + $0x10] sm:$0xff] %vm1972, %v7278
        %7372 = vst.msk [vmem:[#allocation3 + $0x18] sm:$0xff] %vm1972, %v7280
        %7373 = vst.msk [vmem:[#allocation3 + $0x20] sm:$0xff] %vm1972, %v7282
        %7374 = vst.msk [vmem:[#allocation3 + $0x28] sm:$0xff] %vm1972, %v7284
        %7375 = vst.msk [vmem:[#allocation3 + $0x30] sm:$0xff] %vm1972, %v7286
        %7376 = vst.msk [vmem:[#allocation3 + $0x38] sm:$0xff] %vm1972, %v7288
        %7377 = vst.msk [vmem:[#allocation3 + $0x40] sm:$0xff] %vm1972, %v7290
        %7378 = vst.msk [vmem:[#allocation3 + $0x48] sm:$0xff] %vm1972, %v7292
        %7379 = vst.msk [vmem:[#allocation3 + $0x50] sm:$0xff] %vm1972, %v7294
        %7380 = vst.msk [vmem:[#allocation3 + $0x58] sm:$0xff] %vm1972, %v7296
        %7381 = vst.msk [vmem:[#allocation3 + $0x60] sm:$0xff] %vm1972, %v7298
        %7382 = vst.msk [vmem:[#allocation3 + $0x68] sm:$0xff] %vm1972, %v7300
        %7383 = vst.msk [vmem:[#allocation3 + $0x70] sm:$0xff] %vm1972, %v7302
        %7384 = vst.msk [vmem:[#allocation3 + $0x78] sm:$0xff] %vm1972, %v7304
        %7385 = vst.msk [vmem:[#allocation3 + $0x80] sm:$0xff] %vm1972, %v7306
        %7386 = vst.msk [vmem:[#allocation3 + $0x88] sm:$0xff] %vm1972, %v7308
        %7387 = vst.msk [vmem:[#allocation3 + $0x90] sm:$0xff] %vm1972, %v7310
        %7388 = vst.msk [vmem:[#allocation3 + $0x98] sm:$0xff] %vm1972, %v7312
        %7389 = vst.msk [vmem:[#allocation3 + $0xa0] sm:$0xff] %vm1972, %v7314
        %7390 = vst.msk [vmem:[#allocation3 + $0xa8] sm:$0xff] %vm1972, %v7316
        %7391 = vst.msk [vmem:[#allocation3 + $0xb0] sm:$0xff] %vm1972, %v7318
        %7392 = vst.msk [vmem:[#allocation3 + $0xb8] sm:$0xff] %vm1972, %v7320
        %7393 = vst.msk [vmem:[#allocation3 + $0xc0] sm:$0xff] %vm1972, %v7322
        %7394 = vst.msk [vmem:[#allocation3 + $0xc8] sm:$0xff] %vm1972, %v7324
        %7395 = vst.msk [vmem:[#allocation3 + $0xd0] sm:$0xff] %vm1972, %v7326
        %7396 = vst.msk [vmem:[#allocation3 + $0xd8] sm:$0xff] %vm1972, %v7328
        %7397 = vst.msk [vmem:[#allocation3 + $0xe0] sm:$0xff] %vm1972, %v7330
        %7398 = vst.msk [vmem:[#allocation3 + $0xe8] sm:$0xff] %vm1972, %v7332
        %7399 = vst.msk [vmem:[#allocation3 + $0xf0] sm:$0xff] %vm1972, %v7334
        %7400 = vst.msk [vmem:[#allocation3 + $0xf8] sm:$0xff] %vm1972, %v7336
        %v7401 = vld [vmem:[#allocation3] sm:$0xff]
        %v7402 = vld [vmem:[#allocation3 + $0x8] sm:$0xff]
        %v7403 = vld [vmem:[#allocation3 + $0x10] sm:$0xff]
        %v7404 = vld [vmem:[#allocation3 + $0x18] sm:$0xff]
        %v7405 = vld [vmem:[#allocation3 + $0x20] sm:$0xff]
        %v7406 = vld [vmem:[#allocation3 + $0x28] sm:$0xff]
        %v7407 = vld [vmem:[#allocation3 + $0x30] sm:$0xff]
        %v7408 = vld [vmem:[#allocation3 + $0x38] sm:$0xff]
        %v7409 = vld [vmem:[#allocation3 + $0x40] sm:$0xff]
        %v7410 = vld [vmem:[#allocation3 + $0x48] sm:$0xff]
        %v7411 = vld [vmem:[#allocation3 + $0x50] sm:$0xff]
        %v7412 = vld [vmem:[#allocation3 + $0x58] sm:$0xff]
        %v7413 = vld [vmem:[#allocation3 + $0x60] sm:$0xff]
        %v7414 = vld [vmem:[#allocation3 + $0x68] sm:$0xff]
        %v7415 = vld [vmem:[#allocation3 + $0x70] sm:$0xff]
        %v7416 = vld [vmem:[#allocation3 + $0x78] sm:$0xff]
        %v7417 = vld [vmem:[#allocation3 + $0x80] sm:$0xff]
        %v7418 = vld [vmem:[#allocation3 + $0x88] sm:$0xff]
        %v7419 = vld [vmem:[#allocation3 + $0x90] sm:$0xff]
        %v7420 = vld [vmem:[#allocation3 + $0x98] sm:$0xff]
        %v7421 = vld [vmem:[#allocation3 + $0xa0] sm:$0xff]
        %v7422 = vld [vmem:[#allocation3 + $0xa8] sm:$0xff]
        %v7423 = vld [vmem:[#allocation3 + $0xb0] sm:$0xff]
        %v7424 = vld [vmem:[#allocation3 + $0xb8] sm:$0xff]
        %v7425 = vld [vmem:[#allocation3 + $0xc0] sm:$0xff]
        %v7426 = vld [vmem:[#allocation3 + $0xc8] sm:$0xff]
        %v7427 = vld [vmem:[#allocation3 + $0xd0] sm:$0xff]
        %v7428 = vld [vmem:[#allocation3 + $0xd8] sm:$0xff]
        %v7429 = vld [vmem:[#allocation3 + $0xe0] sm:$0xff]
        %v7430 = vld [vmem:[#allocation3 + $0xe8] sm:$0xff]
        %v7431 = vld [vmem:[#allocation3 + $0xf0] sm:$0xff]
        %v7432 = vld [vmem:[#allocation3 + $0xf8] sm:$0xff]
        %v7433 = vld [vmem:[%s8] sm:$0xff]
        %v7434 = vld [vmem:[%s8 + $0x8] sm:$0xff]
        %v7435 = vld [vmem:[%s8 + $0x10] sm:$0xff]
        %v7436 = vld [vmem:[%s8 + $0x18] sm:$0xff]
        %v7437 = vld [vmem:[%s8 + $0x20] sm:$0xff]
        %v7438 = vld [vmem:[%s8 + $0x28] sm:$0xff]
        %v7439 = vld [vmem:[%s8 + $0x30] sm:$0xff]
        %v7440 = vld [vmem:[%s8 + $0x38] sm:$0xff]
        %v7441 = vld [vmem:[%s8 + $0x40] sm:$0xff]
        %v7442 = vld [vmem:[%s9] sm:$0x1]
        %v7444 = vlaneseq
        %v7445 = vshrl.u32 %v7444, 7
        %v7446 = vsub.s32 0, %v7445
        %v7447 = vrot.slane %v7442, %v7446
        %v7450 = vsel %vm2053, %v7401, 0
        %v7453 = vsel %vm2053, %v7402, 0
        %v7456 = vsel %vm2053, %v7403, 0
        %v7459 = vsel %vm2053, %v7404, 0
        %v7462 = vsel %vm2053, %v7405, 0
        %v7465 = vsel %vm2053, %v7406, 0
        %v7468 = vsel %vm2053, %v7407, 0
        %v7471 = vsel %vm2053, %v7408, 0
        %v7474 = vsel %vm2053, %v7409, 0
        %v7477 = vsel %vm2053, %v7410, 0
        %v7480 = vsel %vm2053, %v7411, 0
        %v7483 = vsel %vm2053, %v7412, 0
        %v7486 = vsel %vm2053, %v7413, 0
        %v7489 = vsel %vm2053, %v7414, 0
        %v7492 = vsel %vm2053, %v7415, 0
        %v7495 = vsel %vm2053, %v7416, 0
        %v7498 = vsel %vm2053, %v7417, 0
        %v7501 = vsel %vm2053, %v7418, 0
        %v7504 = vsel %vm2053, %v7419, 0
        %v7507 = vsel %vm2053, %v7420, 0
        %v7510 = vsel %vm2053, %v7421, 0
        %v7513 = vsel %vm2053, %v7422, 0
        %v7516 = vsel %vm2053, %v7423, 0
        %v7519 = vsel %vm2053, %v7424, 0
        %v7522 = vsel %vm2053, %v7425, 0
        %v7525 = vsel %vm2053, %v7426, 0
        %v7528 = vsel %vm2053, %v7427, 0
        %v7531 = vsel %vm2053, %v7428, 0
        %v7534 = vsel %vm2053, %v7429, 0
        %v7537 = vsel %vm2053, %v7430, 0
        %v7540 = vsel %vm2053, %v7431, 0
        %v7543 = vsel %vm2053, %v7432, 0
        %7545 = vmatprep.subr.mxu0 0.0
        %7546 = vmatpush1.msra.mxu0 0.0
        %7547 = vmatprep.subr.mxu0 0.0
        %7548 = vmatpush1.msra.mxu0 0.0
        %7549 = vmatprep.subr.mxu0 0.0
        %7550 = vmatpush1.msra.mxu0 0.0
        %7551 = vmatprep.subr.mxu0 0.0
        %7552 = vmatpush1.msra.mxu0 0.0
        %7553 = vmatprep.subr.mxu0 0.0
        %7554 = vmatpush1.msra.mxu0 0.0
        %7555 = vmatprep.subr.mxu0 0.0
        %7556 = vmatpush1.msra.mxu0 0.0
        %7557 = vmatprep.subr.mxu0 0.0
        %7558 = vmatpush1.msra.mxu0 0.0
        %7559 = vmatprep.subr.mxu0 0.0
        %7560 = vmatpush1.msra.mxu0 %v7441
        %7561 = vmatprep.subr.mxu0 0.0
        %7562 = vmatpush1.msra.mxu0 %v7440
        %7563 = vmatprep.subr.mxu0 0.0
        %7564 = vmatpush1.msra.mxu0 %v7439
        %7565 = vmatprep.subr.mxu0 0.0
        %7566 = vmatpush1.msra.mxu0 %v7438
        %7567 = vmatprep.subr.mxu0 0.0
        %7568 = vmatpush1.msra.mxu0 %v7437
        %7569 = vmatprep.subr.mxu0 0.0
        %7570 = vmatpush1.msra.mxu0 %v7436
        %7571 = vmatprep.subr.mxu0 0.0
        %7572 = vmatpush1.msra.mxu0 %v7435
        %7573 = vmatprep.subr.mxu0 0.0
        %7574 = vmatpush1.msra.mxu0 %v7434
        %7575 = vmatprep.subr.mxu0 0.0
        %7576 = vmatpush1.msra.mxu0 %v7433
        %7577 = vmatprep.subr.mxu0 0.0
        %7578 = vmatpush2.msra.mxu0 0.0
        %7579 = vmatprep.subr.mxu0 0.0
        %7580 = vmatpush2.msra.mxu0 0.0
        %7581 = vmatprep.subr.mxu0 0.0
        %7582 = vmatpush2.msra.mxu0 0.0
        %7583 = vmatprep.subr.mxu0 0.0
        %7584 = vmatpush2.msra.mxu0 0.0
        %7585 = vmatprep.subr.mxu0 0.0
        %7586 = vmatpush2.msra.mxu0 0.0
        %7587 = vmatprep.subr.mxu0 0.0
        %7588 = vmatpush2.msra.mxu0 0.0
        %7589 = vmatprep.subr.mxu0 0.0
        %7590 = vmatpush2.msra.mxu0 0.0
        %7591 = vmatprep.subr.mxu0 0.0
        %7592 = vmatpush2.msra.mxu0 0.0
        %7593 = vmatprep.subr.mxu0 0.0
        %7594 = vmatpush2.msra.mxu0 0.0
        %7595 = vmatprep.subr.mxu0 0.0
        %7596 = vmatpush2.msra.mxu0 0.0
        %7597 = vmatprep.subr.mxu0 0.0
        %7598 = vmatpush2.msra.mxu0 0.0
        %7599 = vmatprep.subr.mxu0 0.0
        %7600 = vmatpush2.msra.mxu0 0.0
        %7601 = vmatprep.subr.mxu0 0.0
        %7602 = vmatpush2.msra.mxu0 0.0
        %7603 = vmatprep.subr.mxu0 0.0
        %7604 = vmatpush2.msra.mxu0 0.0
        %7605 = vmatprep.subr.mxu0 0.0
        %7606 = vmatpush2.msra.mxu0 0.0
        %7607 = vmatprep.subr.mxu0 0.0
        %7608 = vmatpush2.msra.mxu0 0.0
        %7609 = vmatprep.mubr.f32.mxu0 0.0
        %7610 = vmatmul.mubr.f32.gmra.mxu0 %v7450
        %v7611 = vpop.f32.mrf.mxu0
        %v7612 = vadd.f32 %v7447, %v7611
        %v7613 = vpop.f32.mrf.mxu0
        %7614 = vmatprep.mubr.f32.mxu0 0.0
        %7615 = vmatmul.mubr.f32.gmra.mxu0 %v7453
        %v7616 = vpop.f32.mrf.mxu0
        %v7617 = vadd.f32 %v7447, %v7616
        %v7618 = vpop.f32.mrf.mxu0
        %7619 = vmatprep.mubr.f32.mxu0 0.0
        %7620 = vmatmul.mubr.f32.gmra.mxu0 %v7456
        %v7621 = vpop.f32.mrf.mxu0
        %v7622 = vadd.f32 %v7447, %v7621
        %v7623 = vpop.f32.mrf.mxu0
        %7624 = vmatprep.mubr.f32.mxu0 0.0
        %7625 = vmatmul.mubr.f32.gmra.mxu0 %v7459
        %v7626 = vpop.f32.mrf.mxu0
        %v7627 = vadd.f32 %v7447, %v7626
        %v7628 = vpop.f32.mrf.mxu0
        %7629 = vmatprep.mubr.f32.mxu0 0.0
        %7630 = vmatmul.mubr.f32.gmra.mxu0 %v7462
        %v7631 = vpop.f32.mrf.mxu0
        %v7632 = vadd.f32 %v7447, %v7631
        %v7633 = vpop.f32.mrf.mxu0
        %7634 = vmatprep.mubr.f32.mxu0 0.0
        %7635 = vmatmul.mubr.f32.gmra.mxu0 %v7465
        %v7636 = vpop.f32.mrf.mxu0
        %v7637 = vadd.f32 %v7447, %v7636
        %v7638 = vpop.f32.mrf.mxu0
        %7639 = vmatprep.mubr.f32.mxu0 0.0
        %7640 = vmatmul.mubr.f32.gmra.mxu0 %v7468
        %v7641 = vpop.f32.mrf.mxu0
        %v7642 = vadd.f32 %v7447, %v7641
        %v7643 = vpop.f32.mrf.mxu0
        %7644 = vmatprep.mubr.f32.mxu0 0.0
        %7645 = vmatmul.mubr.f32.gmra.mxu0 %v7471
        %v7646 = vpop.f32.mrf.mxu0
        %v7647 = vadd.f32 %v7447, %v7646
        %v7648 = vpop.f32.mrf.mxu0
        %7649 = vmatprep.mubr.f32.mxu0 0.0
        %7650 = vmatmul.mubr.f32.gmra.mxu0 %v7474
        %v7651 = vpop.f32.mrf.mxu0
        %v7652 = vadd.f32 %v7447, %v7651
        %v7653 = vpop.f32.mrf.mxu0
        %7654 = vmatprep.mubr.f32.mxu0 0.0
        %7655 = vmatmul.mubr.f32.gmra.mxu0 %v7477
        %v7656 = vpop.f32.mrf.mxu0
        %v7657 = vadd.f32 %v7447, %v7656
        %v7658 = vpop.f32.mrf.mxu0
        %7659 = vmatprep.mubr.f32.mxu0 0.0
        %7660 = vmatmul.mubr.f32.gmra.mxu0 %v7480
        %v7661 = vpop.f32.mrf.mxu0
        %v7662 = vadd.f32 %v7447, %v7661
        %v7663 = vpop.f32.mrf.mxu0
        %7664 = vmatprep.mubr.f32.mxu0 0.0
        %7665 = vmatmul.mubr.f32.gmra.mxu0 %v7483
        %v7666 = vpop.f32.mrf.mxu0
        %v7667 = vadd.f32 %v7447, %v7666
        %v7668 = vpop.f32.mrf.mxu0
        %7669 = vmatprep.mubr.f32.mxu0 0.0
        %7670 = vmatmul.mubr.f32.gmra.mxu0 %v7486
        %v7671 = vpop.f32.mrf.mxu0
        %v7672 = vadd.f32 %v7447, %v7671
        %v7673 = vpop.f32.mrf.mxu0
        %7674 = vmatprep.mubr.f32.mxu0 0.0
        %7675 = vmatmul.mubr.f32.gmra.mxu0 %v7489
        %v7676 = vpop.f32.mrf.mxu0
        %v7677 = vadd.f32 %v7447, %v7676
        %v7678 = vpop.f32.mrf.mxu0
        %7679 = vmatprep.mubr.f32.mxu0 0.0
        %7680 = vmatmul.mubr.f32.gmra.mxu0 %v7492
        %v7681 = vpop.f32.mrf.mxu0
        %v7682 = vadd.f32 %v7447, %v7681
        %v7683 = vpop.f32.mrf.mxu0
        %7684 = vmatprep.mubr.f32.mxu0 0.0
        %7685 = vmatmul.mubr.f32.gmra.mxu0 %v7495
        %v7686 = vpop.f32.mrf.mxu0
        %v7687 = vadd.f32 %v7447, %v7686
        %v7688 = vpop.f32.mrf.mxu0
        %7689 = vmatprep.mubr.f32.mxu0 0.0
        %7690 = vmatmul.mubr.f32.gmra.mxu0 %v7498
        %v7691 = vpop.f32.mrf.mxu0
        %v7692 = vadd.f32 %v7447, %v7691
        %v7693 = vpop.f32.mrf.mxu0
        %7694 = vmatprep.mubr.f32.mxu0 0.0
        %7695 = vmatmul.mubr.f32.gmra.mxu0 %v7501
        %v7696 = vpop.f32.mrf.mxu0
        %v7697 = vadd.f32 %v7447, %v7696
        %v7698 = vpop.f32.mrf.mxu0
        %7699 = vmatprep.mubr.f32.mxu0 0.0
        %7700 = vmatmul.mubr.f32.gmra.mxu0 %v7504
        %v7701 = vpop.f32.mrf.mxu0
        %v7702 = vadd.f32 %v7447, %v7701
        %v7703 = vpop.f32.mrf.mxu0
        %7704 = vmatprep.mubr.f32.mxu0 0.0
        %7705 = vmatmul.mubr.f32.gmra.mxu0 %v7507
        %v7706 = vpop.f32.mrf.mxu0
        %v7707 = vadd.f32 %v7447, %v7706
        %v7708 = vpop.f32.mrf.mxu0
        %7709 = vmatprep.mubr.f32.mxu0 0.0
        %7710 = vmatmul.mubr.f32.gmra.mxu0 %v7510
        %v7711 = vpop.f32.mrf.mxu0
        %v7712 = vadd.f32 %v7447, %v7711
        %v7713 = vpop.f32.mrf.mxu0
        %7714 = vmatprep.mubr.f32.mxu0 0.0
        %7715 = vmatmul.mubr.f32.gmra.mxu0 %v7513
        %v7716 = vpop.f32.mrf.mxu0
        %v7717 = vadd.f32 %v7447, %v7716
        %v7718 = vpop.f32.mrf.mxu0
        %7719 = vmatprep.mubr.f32.mxu0 0.0
        %7720 = vmatmul.mubr.f32.gmra.mxu0 %v7516
        %v7721 = vpop.f32.mrf.mxu0
        %v7722 = vadd.f32 %v7447, %v7721
        %v7723 = vpop.f32.mrf.mxu0
        %7724 = vmatprep.mubr.f32.mxu0 0.0
        %7725 = vmatmul.mubr.f32.gmra.mxu0 %v7519
        %v7726 = vpop.f32.mrf.mxu0
        %v7727 = vadd.f32 %v7447, %v7726
        %v7728 = vpop.f32.mrf.mxu0
        %7729 = vmatprep.mubr.f32.mxu0 0.0
        %7730 = vmatmul.mubr.f32.gmra.mxu0 %v7522
        %v7731 = vpop.f32.mrf.mxu0
        %v7732 = vadd.f32 %v7447, %v7731
        %v7733 = vpop.f32.mrf.mxu0
        %7734 = vmatprep.mubr.f32.mxu0 0.0
        %7735 = vmatmul.mubr.f32.gmra.mxu0 %v7525
        %v7736 = vpop.f32.mrf.mxu0
        %v7737 = vadd.f32 %v7447, %v7736
        %v7738 = vpop.f32.mrf.mxu0
        %7739 = vmatprep.mubr.f32.mxu0 0.0
        %7740 = vmatmul.mubr.f32.gmra.mxu0 %v7528
        %v7741 = vpop.f32.mrf.mxu0
        %v7742 = vadd.f32 %v7447, %v7741
        %v7743 = vpop.f32.mrf.mxu0
        %7744 = vmatprep.mubr.f32.mxu0 0.0
        %7745 = vmatmul.mubr.f32.gmra.mxu0 %v7531
        %v7746 = vpop.f32.mrf.mxu0
        %v7747 = vadd.f32 %v7447, %v7746
        %v7748 = vpop.f32.mrf.mxu0
        %7749 = vmatprep.mubr.f32.mxu0 0.0
        %7750 = vmatmul.mubr.f32.gmra.mxu0 %v7534
        %v7751 = vpop.f32.mrf.mxu0
        %v7752 = vadd.f32 %v7447, %v7751
        %v7753 = vpop.f32.mrf.mxu0
        %7754 = vmatprep.mubr.f32.mxu0 0.0
        %7755 = vmatmul.mubr.f32.gmra.mxu0 %v7537
        %v7756 = vpop.f32.mrf.mxu0
        %v7757 = vadd.f32 %v7447, %v7756
        %v7758 = vpop.f32.mrf.mxu0
        %7759 = vmatprep.mubr.f32.mxu0 0.0
        %7760 = vmatmul.mubr.f32.gmra.mxu0 %v7540
        %v7761 = vpop.f32.mrf.mxu0
        %v7762 = vadd.f32 %v7447, %v7761
        %v7763 = vpop.f32.mrf.mxu0
        %7764 = vmatprep.mubr.f32.mxu0 0.0
        %7765 = vmatmul.mubr.f32.gmra.mxu0 %v7543
        %v7766 = vpop.f32.mrf.mxu0
        %v7767 = vadd.f32 %v7447, %v7766
        %v7768 = vpop.f32.mrf.mxu0
        %7769 = vdwg.mxu0
        %v7770 = vadd.f32 %v7612, %v4184
        %v7771 = vadd.f32 %v7617, %v4185
        %v7772 = vadd.f32 %v7622, %v4186
        %v7773 = vadd.f32 %v7627, %v4187
        %v7774 = vadd.f32 %v7632, %v4188
        %v7775 = vadd.f32 %v7637, %v4189
        %v7776 = vadd.f32 %v7642, %v4190
        %v7777 = vadd.f32 %v7647, %v4191
        %v7778 = vadd.f32 %v7652, %v4192
        %v7779 = vadd.f32 %v7657, %v4193
        %v7780 = vadd.f32 %v7662, %v4194
        %v7781 = vadd.f32 %v7667, %v4195
        %v7782 = vadd.f32 %v7672, %v4196
        %v7783 = vadd.f32 %v7677, %v4197
        %v7784 = vadd.f32 %v7682, %v4198
        %v7785 = vadd.f32 %v7687, %v4199
        %v7786 = vadd.f32 %v7692, %v4200
        %v7787 = vadd.f32 %v7697, %v4201
        %v7788 = vadd.f32 %v7702, %v4202
        %v7789 = vadd.f32 %v7707, %v4203
        %v7790 = vadd.f32 %v7712, %v4204
        %v7791 = vadd.f32 %v7717, %v4205
        %v7792 = vadd.f32 %v7722, %v4206
        %v7793 = vadd.f32 %v7727, %v4207
        %v7794 = vadd.f32 %v7732, %v4208
        %v7795 = vadd.f32 %v7737, %v4209
        %v7796 = vadd.f32 %v7742, %v4210
        %v7797 = vadd.f32 %v7747, %v4211
        %v7798 = vadd.f32 %v7752, %v4212
        %v7799 = vadd.f32 %v7757, %v4213
        %v7800 = vadd.f32 %v7762, %v4214
        %v7801 = vadd.f32 %v7767, %v4215
        %v7802 = vld [vmem:[%s10] sm:$0xff]
        %v7803 = vld [vmem:[%s11] sm:$0x1]
        %v7805 = vlaneseq
        %v7806 = vshrl.u32 %v7805, 7
        %v7807 = vsub.s32 0, %v7806
        %v7808 = vrot.slane %v7803, %v7807
        %v7811 = vsel %vm476, %v7770, 0
        %v7814 = vsel %vm476, %v7771, 0
        %v7817 = vsel %vm476, %v7772, 0
        %v7820 = vsel %vm476, %v7773, 0
        %v7823 = vsel %vm476, %v7774, 0
        %v7826 = vsel %vm476, %v7775, 0
        %v7829 = vsel %vm476, %v7776, 0
        %v7832 = vsel %vm476, %v7777, 0
        %v7835 = vsel %vm476, %v7778, 0
        %v7838 = vsel %vm476, %v7779, 0
        %v7841 = vsel %vm476, %v7780, 0
        %v7844 = vsel %vm476, %v7781, 0
        %v7847 = vsel %vm476, %v7782, 0
        %v7850 = vsel %vm476, %v7783, 0
        %v7853 = vsel %vm476, %v7784, 0
        %v7856 = vsel %vm476, %v7785, 0
        %v7859 = vsel %vm476, %v7786, 0
        %v7862 = vsel %vm476, %v7787, 0
        %v7865 = vsel %vm476, %v7788, 0
        %v7868 = vsel %vm476, %v7789, 0
        %v7871 = vsel %vm476, %v7790, 0
        %v7874 = vsel %vm476, %v7791, 0
        %v7877 = vsel %vm476, %v7792, 0
        %v7880 = vsel %vm476, %v7793, 0
        %v7883 = vsel %vm476, %v7794, 0
        %v7886 = vsel %vm476, %v7795, 0
        %v7889 = vsel %vm476, %v7796, 0
        %v7892 = vsel %vm476, %v7797, 0
        %v7895 = vsel %vm476, %v7798, 0
        %v7898 = vsel %vm476, %v7799, 0
        %v7901 = vsel %vm476, %v7800, 0
        %v7904 = vsel %vm476, %v7801, 0
        %7906 = vmatprep.subr.mxu0 0.0
        %7907 = vmatpush1.msra.mxu0 0.0
        %7908 = vmatprep.subr.mxu0 0.0
        %7909 = vmatpush1.msra.mxu0 0.0
        %7910 = vmatprep.subr.mxu0 0.0
        %7911 = vmatpush1.msra.mxu0 0.0
        %7912 = vmatprep.subr.mxu0 0.0
        %7913 = vmatpush1.msra.mxu0 0.0
        %7914 = vmatprep.subr.mxu0 0.0
        %7915 = vmatpush1.msra.mxu0 0.0
        %7916 = vmatprep.subr.mxu0 0.0
        %7917 = vmatpush1.msra.mxu0 0.0
        %7918 = vmatprep.subr.mxu0 0.0
        %7919 = vmatpush1.msra.mxu0 0.0
        %7920 = vmatprep.subr.mxu0 0.0
        %7921 = vmatpush1.msra.mxu0 0.0
        %7922 = vmatprep.subr.mxu0 0.0
        %7923 = vmatpush1.msra.mxu0 0.0
        %7924 = vmatprep.subr.mxu0 0.0
        %7925 = vmatpush1.msra.mxu0 0.0
        %7926 = vmatprep.subr.mxu0 0.0
        %7927 = vmatpush1.msra.mxu0 0.0
        %7928 = vmatprep.subr.mxu0 0.0
        %7929 = vmatpush1.msra.mxu0 0.0
        %7930 = vmatprep.subr.mxu0 0.0
        %7931 = vmatpush1.msra.mxu0 0.0
        %7932 = vmatprep.subr.mxu0 0.0
        %7933 = vmatpush1.msra.mxu0 0.0
        %7934 = vmatprep.subr.mxu0 0.0
        %7935 = vmatpush1.msra.mxu0 0.0
        %7936 = vmatprep.subr.mxu0 0.0
        %7937 = vmatpush1.msra.mxu0 %v7802
        %7938 = vmatprep.subr.mxu0 0.0
        %7939 = vmatpush2.msra.mxu0 0.0
        %7940 = vmatprep.subr.mxu0 0.0
        %7941 = vmatpush2.msra.mxu0 0.0
        %7942 = vmatprep.subr.mxu0 0.0
        %7943 = vmatpush2.msra.mxu0 0.0
        %7944 = vmatprep.subr.mxu0 0.0
        %7945 = vmatpush2.msra.mxu0 0.0
        %7946 = vmatprep.subr.mxu0 0.0
        %7947 = vmatpush2.msra.mxu0 0.0
        %7948 = vmatprep.subr.mxu0 0.0
        %7949 = vmatpush2.msra.mxu0 0.0
        %7950 = vmatprep.subr.mxu0 0.0
        %7951 = vmatpush2.msra.mxu0 0.0
        %7952 = vmatprep.subr.mxu0 0.0
        %7953 = vmatpush2.msra.mxu0 0.0
        %7954 = vmatprep.subr.mxu0 0.0
        %7955 = vmatpush2.msra.mxu0 0.0
        %7956 = vmatprep.subr.mxu0 0.0
        %7957 = vmatpush2.msra.mxu0 0.0
        %7958 = vmatprep.subr.mxu0 0.0
        %7959 = vmatpush2.msra.mxu0 0.0
        %7960 = vmatprep.subr.mxu0 0.0
        %7961 = vmatpush2.msra.mxu0 0.0
        %7962 = vmatprep.subr.mxu0 0.0
        %7963 = vmatpush2.msra.mxu0 0.0
        %7964 = vmatprep.subr.mxu0 0.0
        %7965 = vmatpush2.msra.mxu0 0.0
        %7966 = vmatprep.subr.mxu0 0.0
        %7967 = vmatpush2.msra.mxu0 0.0
        %7968 = vmatprep.subr.mxu0 0.0
        %7969 = vmatpush2.msra.mxu0 0.0
        %7970 = vmatprep.mubr.f32.mxu0 0.0
        %7971 = vmatmul.mubr.f32.gmra.mxu0 %v7811
        %v7972 = vpop.f32.mrf.mxu0
        %v7973 = vadd.f32 %v7808, %v7972
        %v7974 = vpop.f32.mrf.mxu0
        %7975 = vmatprep.mubr.f32.mxu0 0.0
        %7976 = vmatmul.mubr.f32.gmra.mxu0 %v7814
        %v7977 = vpop.f32.mrf.mxu0
        %v7978 = vadd.f32 %v7808, %v7977
        %v7979 = vpop.f32.mrf.mxu0
        %7980 = vmatprep.mubr.f32.mxu0 0.0
        %7981 = vmatmul.mubr.f32.gmra.mxu0 %v7817
        %v7982 = vpop.f32.mrf.mxu0
        %v7983 = vadd.f32 %v7808, %v7982
        %v7984 = vpop.f32.mrf.mxu0
        %7985 = vmatprep.mubr.f32.mxu0 0.0
        %7986 = vmatmul.mubr.f32.gmra.mxu0 %v7820
        %v7987 = vpop.f32.mrf.mxu0
        %v7988 = vadd.f32 %v7808, %v7987
        %v7989 = vpop.f32.mrf.mxu0
        %7990 = vmatprep.mubr.f32.mxu0 0.0
        %7991 = vmatmul.mubr.f32.gmra.mxu0 %v7823
        %v7992 = vpop.f32.mrf.mxu0
        %v7993 = vadd.f32 %v7808, %v7992
        %v7994 = vpop.f32.mrf.mxu0
        %7995 = vmatprep.mubr.f32.mxu0 0.0
        %7996 = vmatmul.mubr.f32.gmra.mxu0 %v7826
        %v7997 = vpop.f32.mrf.mxu0
        %v7998 = vadd.f32 %v7808, %v7997
        %v7999 = vpop.f32.mrf.mxu0
        %8000 = vmatprep.mubr.f32.mxu0 0.0
        %8001 = vmatmul.mubr.f32.gmra.mxu0 %v7829
        %v8002 = vpop.f32.mrf.mxu0
        %v8003 = vadd.f32 %v7808, %v8002
        %v8004 = vpop.f32.mrf.mxu0
        %8005 = vmatprep.mubr.f32.mxu0 0.0
        %8006 = vmatmul.mubr.f32.gmra.mxu0 %v7832
        %v8007 = vpop.f32.mrf.mxu0
        %v8008 = vadd.f32 %v7808, %v8007
        %v8009 = vpop.f32.mrf.mxu0
        %8010 = vmatprep.mubr.f32.mxu0 0.0
        %8011 = vmatmul.mubr.f32.gmra.mxu0 %v7835
        %v8012 = vpop.f32.mrf.mxu0
        %v8013 = vadd.f32 %v7808, %v8012
        %v8014 = vpop.f32.mrf.mxu0
        %8015 = vmatprep.mubr.f32.mxu0 0.0
        %8016 = vmatmul.mubr.f32.gmra.mxu0 %v7838
        %v8017 = vpop.f32.mrf.mxu0
        %v8018 = vadd.f32 %v7808, %v8017
        %v8019 = vpop.f32.mrf.mxu0
        %8020 = vmatprep.mubr.f32.mxu0 0.0
        %8021 = vmatmul.mubr.f32.gmra.mxu0 %v7841
        %v8022 = vpop.f32.mrf.mxu0
        %v8023 = vadd.f32 %v7808, %v8022
        %v8024 = vpop.f32.mrf.mxu0
        %8025 = vmatprep.mubr.f32.mxu0 0.0
        %8026 = vmatmul.mubr.f32.gmra.mxu0 %v7844
        %v8027 = vpop.f32.mrf.mxu0
        %v8028 = vadd.f32 %v7808, %v8027
        %v8029 = vpop.f32.mrf.mxu0
        %8030 = vmatprep.mubr.f32.mxu0 0.0
        %8031 = vmatmul.mubr.f32.gmra.mxu0 %v7847
        %v8032 = vpop.f32.mrf.mxu0
        %v8033 = vadd.f32 %v7808, %v8032
        %v8034 = vpop.f32.mrf.mxu0
        %8035 = vmatprep.mubr.f32.mxu0 0.0
        %8036 = vmatmul.mubr.f32.gmra.mxu0 %v7850
        %v8037 = vpop.f32.mrf.mxu0
        %v8038 = vadd.f32 %v7808, %v8037
        %v8039 = vpop.f32.mrf.mxu0
        %8040 = vmatprep.mubr.f32.mxu0 0.0
        %8041 = vmatmul.mubr.f32.gmra.mxu0 %v7853
        %v8042 = vpop.f32.mrf.mxu0
        %v8043 = vadd.f32 %v7808, %v8042
        %v8044 = vpop.f32.mrf.mxu0
        %8045 = vmatprep.mubr.f32.mxu0 0.0
        %8046 = vmatmul.mubr.f32.gmra.mxu0 %v7856
        %v8047 = vpop.f32.mrf.mxu0
        %v8048 = vadd.f32 %v7808, %v8047
        %v8049 = vpop.f32.mrf.mxu0
        %8050 = vmatprep.mubr.f32.mxu0 0.0
        %8051 = vmatmul.mubr.f32.gmra.mxu0 %v7859
        %v8052 = vpop.f32.mrf.mxu0
        %v8053 = vadd.f32 %v7808, %v8052
        %v8054 = vpop.f32.mrf.mxu0
        %8055 = vmatprep.mubr.f32.mxu0 0.0
        %8056 = vmatmul.mubr.f32.gmra.mxu0 %v7862
        %v8057 = vpop.f32.mrf.mxu0
        %v8058 = vadd.f32 %v7808, %v8057
        %v8059 = vpop.f32.mrf.mxu0
        %8060 = vmatprep.mubr.f32.mxu0 0.0
        %8061 = vmatmul.mubr.f32.gmra.mxu0 %v7865
        %v8062 = vpop.f32.mrf.mxu0
        %v8063 = vadd.f32 %v7808, %v8062
        %v8064 = vpop.f32.mrf.mxu0
        %8065 = vmatprep.mubr.f32.mxu0 0.0
        %8066 = vmatmul.mubr.f32.gmra.mxu0 %v7868
        %v8067 = vpop.f32.mrf.mxu0
        %v8068 = vadd.f32 %v7808, %v8067
        %v8069 = vpop.f32.mrf.mxu0
        %8070 = vmatprep.mubr.f32.mxu0 0.0
        %8071 = vmatmul.mubr.f32.gmra.mxu0 %v7871
        %v8072 = vpop.f32.mrf.mxu0
        %v8073 = vadd.f32 %v7808, %v8072
        %v8074 = vpop.f32.mrf.mxu0
        %8075 = vmatprep.mubr.f32.mxu0 0.0
        %8076 = vmatmul.mubr.f32.gmra.mxu0 %v7874
        %v8077 = vpop.f32.mrf.mxu0
        %v8078 = vadd.f32 %v7808, %v8077
        %v8079 = vpop.f32.mrf.mxu0
        %8080 = vmatprep.mubr.f32.mxu0 0.0
        %8081 = vmatmul.mubr.f32.gmra.mxu0 %v7877
        %v8082 = vpop.f32.mrf.mxu0
        %v8083 = vadd.f32 %v7808, %v8082
        %v8084 = vpop.f32.mrf.mxu0
        %8085 = vmatprep.mubr.f32.mxu0 0.0
        %8086 = vmatmul.mubr.f32.gmra.mxu0 %v7880
        %v8087 = vpop.f32.mrf.mxu0
        %v8088 = vadd.f32 %v7808, %v8087
        %v8089 = vpop.f32.mrf.mxu0
        %8090 = vmatprep.mubr.f32.mxu0 0.0
        %8091 = vmatmul.mubr.f32.gmra.mxu0 %v7883
        %v8092 = vpop.f32.mrf.mxu0
        %v8093 = vadd.f32 %v7808, %v8092
        %v8094 = vpop.f32.mrf.mxu0
        %8095 = vmatprep.mubr.f32.mxu0 0.0
        %8096 = vmatmul.mubr.f32.gmra.mxu0 %v7886
        %v8097 = vpop.f32.mrf.mxu0
        %v8098 = vadd.f32 %v7808, %v8097
        %v8099 = vpop.f32.mrf.mxu0
        %8100 = vmatprep.mubr.f32.mxu0 0.0
        %8101 = vmatmul.mubr.f32.gmra.mxu0 %v7889
        %v8102 = vpop.f32.mrf.mxu0
        %v8103 = vadd.f32 %v7808, %v8102
        %v8104 = vpop.f32.mrf.mxu0
        %8105 = vmatprep.mubr.f32.mxu0 0.0
        %8106 = vmatmul.mubr.f32.gmra.mxu0 %v7892
        %v8107 = vpop.f32.mrf.mxu0
        %v8108 = vadd.f32 %v7808, %v8107
        %v8109 = vpop.f32.mrf.mxu0
        %8110 = vmatprep.mubr.f32.mxu0 0.0
        %8111 = vmatmul.mubr.f32.gmra.mxu0 %v7895
        %v8112 = vpop.f32.mrf.mxu0
        %v8113 = vadd.f32 %v7808, %v8112
        %v8114 = vpop.f32.mrf.mxu0
        %8115 = vmatprep.mubr.f32.mxu0 0.0
        %8116 = vmatmul.mubr.f32.gmra.mxu0 %v7898
        %v8117 = vpop.f32.mrf.mxu0
        %v8118 = vadd.f32 %v7808, %v8117
        %v8119 = vpop.f32.mrf.mxu0
        %8120 = vmatprep.mubr.f32.mxu0 0.0
        %8121 = vmatmul.mubr.f32.gmra.mxu0 %v7901
        %v8122 = vpop.f32.mrf.mxu0
        %v8123 = vadd.f32 %v7808, %v8122
        %v8124 = vpop.f32.mrf.mxu0
        %8125 = vmatprep.mubr.f32.mxu0 0.0
        %8126 = vmatmul.mubr.f32.gmra.mxu0 %v7904
        %v8127 = vpop.f32.mrf.mxu0
        %v8128 = vadd.f32 %v7808, %v8127
        %v8129 = vpop.f32.mrf.mxu0
        %8130 = vdwg.mxu0
        %v8131 = vld [vmem:[#allocation4] sm:$0xff]
        %v8132 = vld [vmem:[#allocation4 + $0x8] sm:$0xff]
        %v8133 = vld [vmem:[#allocation4 + $0x10] sm:$0xff]
        %v8134 = vld [vmem:[#allocation4 + $0x18] sm:$0xff]
        %v8135 = vld [vmem:[#allocation4 + $0x20] sm:$0xff]
        %v8136 = vld [vmem:[#allocation4 + $0x28] sm:$0xff]
        %v8137 = vld [vmem:[#allocation4 + $0x30] sm:$0xff]
        %v8138 = vld [vmem:[#allocation4 + $0x38] sm:$0xff]
        %v8139 = vld [vmem:[#allocation4 + $0x40] sm:$0xff]
        %v8140 = vld [vmem:[#allocation4 + $0x48] sm:$0xff]
        %v8141 = vld [vmem:[#allocation4 + $0x50] sm:$0xff]
        %v8142 = vld [vmem:[#allocation4 + $0x58] sm:$0xff]
        %v8143 = vld [vmem:[#allocation4 + $0x60] sm:$0xff]
        %v8144 = vld [vmem:[#allocation4 + $0x68] sm:$0xff]
        %v8145 = vld [vmem:[#allocation4 + $0x70] sm:$0xff]
        %v8146 = vld [vmem:[#allocation4 + $0x78] sm:$0xff]
        %v8147 = vld [vmem:[#allocation4 + $0x80] sm:$0xff]
        %v8148 = vld [vmem:[#allocation4 + $0x88] sm:$0xff]
        %v8149 = vld [vmem:[#allocation4 + $0x90] sm:$0xff]
        %v8150 = vld [vmem:[#allocation4 + $0x98] sm:$0xff]
        %v8151 = vld [vmem:[#allocation4 + $0xa0] sm:$0xff]
        %v8152 = vld [vmem:[#allocation4 + $0xa8] sm:$0xff]
        %v8153 = vld [vmem:[#allocation4 + $0xb0] sm:$0xff]
        %v8154 = vld [vmem:[#allocation4 + $0xb8] sm:$0xff]
        %v8155 = vld [vmem:[#allocation4 + $0xc0] sm:$0xff]
        %v8156 = vld [vmem:[#allocation4 + $0xc8] sm:$0xff]
        %v8157 = vld [vmem:[#allocation4 + $0xd0] sm:$0xff]
        %v8158 = vld [vmem:[#allocation4 + $0xd8] sm:$0xff]
        %v8159 = vld [vmem:[#allocation4 + $0xe0] sm:$0xff]
        %v8160 = vld [vmem:[#allocation4 + $0xe8] sm:$0xff]
        %v8161 = vld [vmem:[#allocation4 + $0xf0] sm:$0xff]
        %v8162 = vld [vmem:[#allocation4 + $0xf8] sm:$0xff]
        %v8163 = vld [vmem:[#allocation4 + $0x100] sm:$0xff]
        %v8164 = vld [vmem:[#allocation4 + $0x108] sm:$0xff]
        %v8165 = vld [vmem:[#allocation4 + $0x110] sm:$0xff]
        %v8166 = vld [vmem:[#allocation4 + $0x118] sm:$0xff]
        %v8167 = vld [vmem:[#allocation4 + $0x120] sm:$0xff]
        %v8168 = vld [vmem:[#allocation4 + $0x128] sm:$0xff]
        %v8169 = vld [vmem:[#allocation4 + $0x130] sm:$0xff]
        %v8170 = vld [vmem:[#allocation4 + $0x138] sm:$0xff]
        %v8171 = vld [vmem:[#allocation4 + $0x140] sm:$0xff]
        %v8172 = vld [vmem:[#allocation4 + $0x148] sm:$0xff]
        %v8173 = vld [vmem:[#allocation4 + $0x150] sm:$0xff]
        %v8174 = vld [vmem:[#allocation4 + $0x158] sm:$0xff]
        %v8175 = vld [vmem:[#allocation4 + $0x160] sm:$0xff]
        %v8176 = vld [vmem:[#allocation4 + $0x168] sm:$0xff]
        %v8177 = vld [vmem:[#allocation4 + $0x170] sm:$0xff]
        %v8178 = vld [vmem:[#allocation4 + $0x178] sm:$0xff]
        %v8179 = vld [vmem:[#allocation4 + $0x180] sm:$0xff]
        %v8180 = vld [vmem:[#allocation4 + $0x188] sm:$0xff]
        %v8181 = vld [vmem:[#allocation4 + $0x190] sm:$0xff]
        %v8182 = vld [vmem:[#allocation4 + $0x198] sm:$0xff]
        %v8183 = vld [vmem:[#allocation4 + $0x1a0] sm:$0xff]
        %v8184 = vld [vmem:[#allocation4 + $0x1a8] sm:$0xff]
        %v8185 = vld [vmem:[#allocation4 + $0x1b0] sm:$0xff]
        %v8186 = vld [vmem:[#allocation4 + $0x1b8] sm:$0xff]
        %v8187 = vld [vmem:[#allocation4 + $0x1c0] sm:$0xff]
        %v8188 = vld [vmem:[#allocation4 + $0x1c8] sm:$0xff]
        %v8189 = vld [vmem:[#allocation4 + $0x1d0] sm:$0xff]
        %v8190 = vld [vmem:[#allocation4 + $0x1d8] sm:$0xff]
        %v8191 = vld [vmem:[#allocation4 + $0x1e0] sm:$0xff]
        %v8192 = vld [vmem:[#allocation4 + $0x1e8] sm:$0xff]
        %v8193 = vld [vmem:[#allocation4 + $0x1f0] sm:$0xff]
        %v8194 = vld [vmem:[#allocation4 + $0x1f8] sm:$0xff]
        %v8195 = vld [vmem:[#allocation4 + $0x200] sm:$0xff]
        %v8196 = vld [vmem:[#allocation4 + $0x208] sm:$0xff]
        %v8197 = vld [vmem:[#allocation4 + $0x210] sm:$0xff]
        %v8198 = vld [vmem:[#allocation4 + $0x218] sm:$0xff]
        %v8199 = vld [vmem:[#allocation4 + $0x220] sm:$0xff]
        %v8200 = vld [vmem:[#allocation4 + $0x228] sm:$0xff]
        %v8201 = vld [vmem:[#allocation4 + $0x230] sm:$0xff]
        %v8202 = vld [vmem:[#allocation4 + $0x238] sm:$0xff]
        %v8203 = vld [vmem:[#allocation4 + $0x240] sm:$0xff]
        %v8204 = vld [vmem:[#allocation4 + $0x248] sm:$0xff]
        %v8205 = vld [vmem:[#allocation4 + $0x250] sm:$0xff]
        %v8206 = vld [vmem:[#allocation4 + $0x258] sm:$0xff]
        %v8207 = vld [vmem:[#allocation4 + $0x260] sm:$0xff]
        %v8208 = vld [vmem:[#allocation4 + $0x268] sm:$0xff]
        %v8209 = vld [vmem:[#allocation4 + $0x270] sm:$0xff]
        %v8210 = vld [vmem:[#allocation4 + $0x278] sm:$0xff]
        %v8211 = vld [vmem:[#allocation4 + $0x280] sm:$0xff]
        %v8212 = vld [vmem:[#allocation4 + $0x288] sm:$0xff]
        %v8213 = vld [vmem:[#allocation4 + $0x290] sm:$0xff]
        %v8214 = vld [vmem:[#allocation4 + $0x298] sm:$0xff]
        %v8215 = vld [vmem:[#allocation4 + $0x2a0] sm:$0xff]
        %v8216 = vld [vmem:[#allocation4 + $0x2a8] sm:$0xff]
        %v8217 = vld [vmem:[#allocation4 + $0x2b0] sm:$0xff]
        %v8218 = vld [vmem:[#allocation4 + $0x2b8] sm:$0xff]
        %v8219 = vld [vmem:[#allocation4 + $0x2c0] sm:$0xff]
        %v8220 = vld [vmem:[#allocation4 + $0x2c8] sm:$0xff]
        %v8221 = vld [vmem:[#allocation4 + $0x2d0] sm:$0xff]
        %v8222 = vld [vmem:[#allocation4 + $0x2d8] sm:$0xff]
        %v8223 = vld [vmem:[#allocation4 + $0x2e0] sm:$0xff]
        %v8224 = vld [vmem:[#allocation4 + $0x2e8] sm:$0xff]
        %v8225 = vld [vmem:[#allocation4 + $0x2f0] sm:$0xff]
        %v8226 = vld [vmem:[#allocation4 + $0x2f8] sm:$0xff]
        %v8227 = vld [vmem:[#allocation4 + $0x300] sm:$0xff]
        %v8228 = vld [vmem:[#allocation4 + $0x308] sm:$0xff]
        %v8229 = vld [vmem:[#allocation4 + $0x310] sm:$0xff]
        %v8230 = vld [vmem:[#allocation4 + $0x318] sm:$0xff]
        %v8231 = vld [vmem:[#allocation4 + $0x320] sm:$0xff]
        %v8232 = vld [vmem:[#allocation4 + $0x328] sm:$0xff]
        %v8233 = vld [vmem:[#allocation4 + $0x330] sm:$0xff]
        %v8234 = vld [vmem:[#allocation4 + $0x338] sm:$0xff]
        %v8235 = vld [vmem:[#allocation4 + $0x340] sm:$0xff]
        %v8236 = vld [vmem:[#allocation4 + $0x348] sm:$0xff]
        %v8237 = vld [vmem:[#allocation4 + $0x350] sm:$0xff]
        %v8238 = vld [vmem:[#allocation4 + $0x358] sm:$0xff]
        %v8239 = vld [vmem:[#allocation4 + $0x360] sm:$0xff]
        %v8240 = vld [vmem:[#allocation4 + $0x368] sm:$0xff]
        %v8241 = vld [vmem:[#allocation4 + $0x370] sm:$0xff]
        %v8242 = vld [vmem:[#allocation4 + $0x378] sm:$0xff]
        %v8243 = vld [vmem:[#allocation4 + $0x380] sm:$0xff]
        %v8244 = vld [vmem:[#allocation4 + $0x388] sm:$0xff]
        %v8245 = vld [vmem:[#allocation4 + $0x390] sm:$0xff]
        %v8246 = vld [vmem:[#allocation4 + $0x398] sm:$0xff]
        %v8247 = vld [vmem:[#allocation4 + $0x3a0] sm:$0xff]
        %v8248 = vld [vmem:[#allocation4 + $0x3a8] sm:$0xff]
        %v8249 = vld [vmem:[#allocation4 + $0x3b0] sm:$0xff]
        %v8250 = vld [vmem:[#allocation4 + $0x3b8] sm:$0xff]
        %v8251 = vld [vmem:[#allocation4 + $0x3c0] sm:$0xff]
        %v8252 = vld [vmem:[#allocation4 + $0x3c8] sm:$0xff]
        %v8253 = vld [vmem:[#allocation4 + $0x3d0] sm:$0xff]
        %v8254 = vld [vmem:[#allocation4 + $0x3d8] sm:$0xff]
        %v8255 = vld [vmem:[#allocation4 + $0x3e0] sm:$0xff]
        %v8256 = vld [vmem:[#allocation4 + $0x3e8] sm:$0xff]
        %v8257 = vld [vmem:[#allocation4 + $0x3f0] sm:$0xff]
        %v8258 = vld [vmem:[#allocation4 + $0x3f8] sm:$0xff]
        %v8259 = vld [vmem:[#allocation4 + $0x400] sm:$0xff]
        %v8260 = vld [vmem:[#allocation4 + $0x408] sm:$0xff]
        %v8261 = vld [vmem:[#allocation4 + $0x410] sm:$0xff]
        %v8262 = vld [vmem:[#allocation4 + $0x418] sm:$0xff]
        %v8263 = vld [vmem:[#allocation4 + $0x420] sm:$0xff]
        %v8264 = vld [vmem:[#allocation4 + $0x428] sm:$0xff]
        %v8265 = vld [vmem:[#allocation4 + $0x430] sm:$0xff]
        %v8266 = vld [vmem:[#allocation4 + $0x438] sm:$0xff]
        %v8267 = vld [vmem:[#allocation4 + $0x440] sm:$0xff]
        %v8268 = vld [vmem:[#allocation4 + $0x448] sm:$0xff]
        %v8269 = vld [vmem:[#allocation4 + $0x450] sm:$0xff]
        %v8270 = vld [vmem:[#allocation4 + $0x458] sm:$0xff]
        %v8271 = vld [vmem:[#allocation4 + $0x460] sm:$0xff]
        %v8272 = vld [vmem:[#allocation4 + $0x468] sm:$0xff]
        %v8273 = vld [vmem:[#allocation4 + $0x470] sm:$0xff]
        %v8274 = vld [vmem:[#allocation4 + $0x478] sm:$0xff]
        %v8275 = vld [vmem:[#allocation4 + $0x480] sm:$0xff]
        %v8276 = vld [vmem:[#allocation4 + $0x488] sm:$0xff]
        %v8277 = vld [vmem:[#allocation4 + $0x490] sm:$0xff]
        %v8278 = vld [vmem:[#allocation4 + $0x498] sm:$0xff]
        %v8279 = vld [vmem:[#allocation4 + $0x4a0] sm:$0xff]
        %v8280 = vld [vmem:[#allocation4 + $0x4a8] sm:$0xff]
        %v8281 = vld [vmem:[#allocation4 + $0x4b0] sm:$0xff]
        %v8282 = vld [vmem:[#allocation4 + $0x4b8] sm:$0xff]
        %v8283 = vld [vmem:[#allocation4 + $0x4c0] sm:$0xff]
        %v8284 = vld [vmem:[#allocation4 + $0x4c8] sm:$0xff]
        %v8285 = vld [vmem:[#allocation4 + $0x4d0] sm:$0xff]
        %v8286 = vld [vmem:[#allocation4 + $0x4d8] sm:$0xff]
        %v8287 = vld [vmem:[#allocation4 + $0x4e0] sm:$0xff]
        %v8288 = vld [vmem:[#allocation4 + $0x4e8] sm:$0xff]
        %v8289 = vld [vmem:[#allocation4 + $0x4f0] sm:$0xff]
        %v8290 = vld [vmem:[#allocation4 + $0x4f8] sm:$0xff]
        %v8291 = vld [vmem:[#allocation4 + $0x500] sm:$0xff]
        %v8292 = vld [vmem:[#allocation4 + $0x508] sm:$0xff]
        %v8293 = vld [vmem:[#allocation4 + $0x510] sm:$0xff]
        %v8294 = vld [vmem:[#allocation4 + $0x518] sm:$0xff]
        %v8295 = vld [vmem:[#allocation4 + $0x520] sm:$0xff]
        %v8296 = vld [vmem:[#allocation4 + $0x528] sm:$0xff]
        %v8297 = vld [vmem:[#allocation4 + $0x530] sm:$0xff]
        %v8298 = vld [vmem:[#allocation4 + $0x538] sm:$0xff]
        %v8299 = vld [vmem:[#allocation4 + $0x540] sm:$0xff]
        %v8300 = vld [vmem:[#allocation4 + $0x548] sm:$0xff]
        %v8301 = vld [vmem:[#allocation4 + $0x550] sm:$0xff]
        %v8302 = vld [vmem:[#allocation4 + $0x558] sm:$0xff]
        %v8303 = vld [vmem:[#allocation4 + $0x560] sm:$0xff]
        %v8304 = vld [vmem:[#allocation4 + $0x568] sm:$0xff]
        %v8305 = vld [vmem:[#allocation4 + $0x570] sm:$0xff]
        %v8306 = vld [vmem:[#allocation4 + $0x578] sm:$0xff]
        %v8307 = vld [vmem:[#allocation4 + $0x580] sm:$0xff]
        %v8308 = vld [vmem:[#allocation4 + $0x588] sm:$0xff]
        %v8309 = vld [vmem:[#allocation4 + $0x590] sm:$0xff]
        %v8310 = vld [vmem:[#allocation4 + $0x598] sm:$0xff]
        %v8311 = vld [vmem:[#allocation4 + $0x5a0] sm:$0xff]
        %v8312 = vld [vmem:[#allocation4 + $0x5a8] sm:$0xff]
        %v8313 = vld [vmem:[#allocation4 + $0x5b0] sm:$0xff]
        %v8314 = vld [vmem:[#allocation4 + $0x5b8] sm:$0xff]
        %v8315 = vld [vmem:[#allocation4 + $0x5c0] sm:$0xff]
        %v8316 = vld [vmem:[#allocation4 + $0x5c8] sm:$0xff]
        %v8317 = vld [vmem:[#allocation4 + $0x5d0] sm:$0xff]
        %v8318 = vld [vmem:[#allocation4 + $0x5d8] sm:$0xff]
        %v8319 = vld [vmem:[#allocation4 + $0x5e0] sm:$0xff]
        %v8320 = vld [vmem:[#allocation4 + $0x5e8] sm:$0xff]
        %v8321 = vld [vmem:[#allocation4 + $0x5f0] sm:$0xff]
        %v8322 = vld [vmem:[#allocation4 + $0x5f8] sm:$0xff]
        %v8323 = vld [vmem:[#allocation4 + $0x600] sm:$0xff]
        %v8324 = vld [vmem:[#allocation4 + $0x608] sm:$0xff]
        %v8325 = vld [vmem:[#allocation4 + $0x610] sm:$0xff]
        %v8326 = vld [vmem:[#allocation4 + $0x618] sm:$0xff]
        %v8327 = vld [vmem:[#allocation4 + $0x620] sm:$0xff]
        %v8328 = vld [vmem:[#allocation4 + $0x628] sm:$0xff]
        %v8329 = vld [vmem:[#allocation4 + $0x630] sm:$0xff]
        %v8330 = vld [vmem:[#allocation4 + $0x638] sm:$0xff]
        %v8331 = vld [vmem:[#allocation4 + $0x640] sm:$0xff]
        %v8332 = vld [vmem:[#allocation4 + $0x648] sm:$0xff]
        %v8333 = vld [vmem:[#allocation4 + $0x650] sm:$0xff]
        %v8334 = vld [vmem:[#allocation4 + $0x658] sm:$0xff]
        %v8335 = vld [vmem:[#allocation4 + $0x660] sm:$0xff]
        %v8336 = vld [vmem:[#allocation4 + $0x668] sm:$0xff]
        %v8337 = vld [vmem:[#allocation4 + $0x670] sm:$0xff]
        %v8338 = vld [vmem:[#allocation4 + $0x678] sm:$0xff]
        %v8339 = vld [vmem:[#allocation4 + $0x680] sm:$0xff]
        %v8340 = vld [vmem:[#allocation4 + $0x688] sm:$0xff]
        %v8341 = vld [vmem:[#allocation4 + $0x690] sm:$0xff]
        %v8342 = vld [vmem:[#allocation4 + $0x698] sm:$0xff]
        %v8343 = vld [vmem:[#allocation4 + $0x6a0] sm:$0xff]
        %v8344 = vld [vmem:[#allocation4 + $0x6a8] sm:$0xff]
        %v8345 = vld [vmem:[#allocation4 + $0x6b0] sm:$0xff]
        %v8346 = vld [vmem:[#allocation4 + $0x6b8] sm:$0xff]
        %v8347 = vld [vmem:[#allocation4 + $0x6c0] sm:$0xff]
        %v8348 = vld [vmem:[#allocation4 + $0x6c8] sm:$0xff]
        %v8349 = vld [vmem:[#allocation4 + $0x6d0] sm:$0xff]
        %v8350 = vld [vmem:[#allocation4 + $0x6d8] sm:$0xff]
        %v8351 = vld [vmem:[#allocation4 + $0x6e0] sm:$0xff]
        %v8352 = vld [vmem:[#allocation4 + $0x6e8] sm:$0xff]
        %v8353 = vld [vmem:[#allocation4 + $0x6f0] sm:$0xff]
        %v8354 = vld [vmem:[#allocation4 + $0x6f8] sm:$0xff]
        %v8355 = vld [vmem:[#allocation4 + $0x700] sm:$0xff]
        %v8356 = vld [vmem:[#allocation4 + $0x708] sm:$0xff]
        %v8357 = vld [vmem:[#allocation4 + $0x710] sm:$0xff]
        %v8358 = vld [vmem:[#allocation4 + $0x718] sm:$0xff]
        %v8359 = vld [vmem:[#allocation4 + $0x720] sm:$0xff]
        %v8360 = vld [vmem:[#allocation4 + $0x728] sm:$0xff]
        %v8361 = vld [vmem:[#allocation4 + $0x730] sm:$0xff]
        %v8362 = vld [vmem:[#allocation4 + $0x738] sm:$0xff]
        %v8363 = vld [vmem:[#allocation4 + $0x740] sm:$0xff]
        %v8364 = vld [vmem:[#allocation4 + $0x748] sm:$0xff]
        %v8365 = vld [vmem:[#allocation4 + $0x750] sm:$0xff]
        %v8366 = vld [vmem:[#allocation4 + $0x758] sm:$0xff]
        %v8367 = vld [vmem:[#allocation4 + $0x760] sm:$0xff]
        %v8368 = vld [vmem:[#allocation4 + $0x768] sm:$0xff]
        %v8369 = vld [vmem:[#allocation4 + $0x770] sm:$0xff]
        %v8370 = vld [vmem:[#allocation4 + $0x778] sm:$0xff]
        %v8371 = vld [vmem:[#allocation4 + $0x780] sm:$0xff]
        %v8372 = vld [vmem:[#allocation4 + $0x788] sm:$0xff]
        %v8373 = vld [vmem:[#allocation4 + $0x790] sm:$0xff]
        %v8374 = vld [vmem:[#allocation4 + $0x798] sm:$0xff]
        %v8375 = vld [vmem:[#allocation4 + $0x7a0] sm:$0xff]
        %v8376 = vld [vmem:[#allocation4 + $0x7a8] sm:$0xff]
        %v8377 = vld [vmem:[#allocation4 + $0x7b0] sm:$0xff]
        %v8378 = vld [vmem:[#allocation4 + $0x7b8] sm:$0xff]
        %v8379 = vld [vmem:[#allocation4 + $0x7c0] sm:$0xff]
        %v8380 = vld [vmem:[#allocation4 + $0x7c8] sm:$0xff]
        %v8381 = vld [vmem:[#allocation4 + $0x7d0] sm:$0xff]
        %v8382 = vld [vmem:[#allocation4 + $0x7d8] sm:$0xff]
        %v8383 = vld [vmem:[#allocation4 + $0x7e0] sm:$0xff]
        %v8384 = vld [vmem:[#allocation4 + $0x7e8] sm:$0xff]
        %v8385 = vld [vmem:[#allocation4 + $0x7f0] sm:$0xff]
        %v8386 = vld [vmem:[#allocation4 + $0x7f8] sm:$0xff]
        %8387 = vmatprep.subr.mxu0 0.0
        %8388 = vmatpush1.msra.mxu0 %v8048
        %8389 = vmatprep.subr.mxu0 0.0
        %8390 = vmatpush1.msra.mxu0 %v8043
        %8391 = vmatprep.subr.mxu0 0.0
        %8392 = vmatpush1.msra.mxu0 %v8038
        %8393 = vmatprep.subr.mxu0 0.0
        %8394 = vmatpush1.msra.mxu0 %v8033
        %8395 = vmatprep.subr.mxu0 0.0
        %8396 = vmatpush1.msra.mxu0 %v8028
        %8397 = vmatprep.subr.mxu0 0.0
        %8398 = vmatpush1.msra.mxu0 %v8023
        %8399 = vmatprep.subr.mxu0 0.0
        %8400 = vmatpush1.msra.mxu0 %v8018
        %8401 = vmatprep.subr.mxu0 0.0
        %8402 = vmatpush1.msra.mxu0 %v8013
        %8403 = vmatprep.subr.mxu0 0.0
        %8404 = vmatpush1.msra.mxu0 %v8008
        %8405 = vmatprep.subr.mxu0 0.0
        %8406 = vmatpush1.msra.mxu0 %v8003
        %8407 = vmatprep.subr.mxu0 0.0
        %8408 = vmatpush1.msra.mxu0 %v7998
        %8409 = vmatprep.subr.mxu0 0.0
        %8410 = vmatpush1.msra.mxu0 %v7993
        %8411 = vmatprep.subr.mxu0 0.0
        %8412 = vmatpush1.msra.mxu0 %v7988
        %8413 = vmatprep.subr.mxu0 0.0
        %8414 = vmatpush1.msra.mxu0 %v7983
        %8415 = vmatprep.subr.mxu0 0.0
        %8416 = vmatpush1.msra.mxu0 %v7978
        %8417 = vmatprep.subr.mxu0 0.0
        %8418 = vmatpush1.msra.mxu0 %v7973
        %8419 = vmatprep.subr.mxu0 0.0
        %8420 = vmatpush2.msra.mxu0 %v8128
        %8421 = vmatprep.subr.mxu0 0.0
        %8422 = vmatpush2.msra.mxu0 %v8123
        %8423 = vmatprep.subr.mxu0 0.0
        %8424 = vmatpush2.msra.mxu0 %v8118
        %8425 = vmatprep.subr.mxu0 0.0
        %8426 = vmatpush2.msra.mxu0 %v8113
        %8427 = vmatprep.subr.mxu0 0.0
        %8428 = vmatpush2.msra.mxu0 %v8108
        %8429 = vmatprep.subr.mxu0 0.0
        %8430 = vmatpush2.msra.mxu0 %v8103
        %8431 = vmatprep.subr.mxu0 0.0
        %8432 = vmatpush2.msra.mxu0 %v8098
        %8433 = vmatprep.subr.mxu0 0.0
        %8434 = vmatpush2.msra.mxu0 %v8093
        %8435 = vmatprep.subr.mxu0 0.0
        %8436 = vmatpush2.msra.mxu0 %v8088
        %8437 = vmatprep.subr.mxu0 0.0
        %8438 = vmatpush2.msra.mxu0 %v8083
        %8439 = vmatprep.subr.mxu0 0.0
        %8440 = vmatpush2.msra.mxu0 %v8078
        %8441 = vmatprep.subr.mxu0 0.0
        %8442 = vmatpush2.msra.mxu0 %v8073
        %8443 = vmatprep.subr.mxu0 0.0
        %8444 = vmatpush2.msra.mxu0 %v8068
        %8445 = vmatprep.subr.mxu0 0.0
        %8446 = vmatpush2.msra.mxu0 %v8063
        %8447 = vmatprep.subr.mxu0 0.0
        %8448 = vmatpush2.msra.mxu0 %v8058
        %8449 = vmatprep.subr.mxu0 0.0
        %8450 = vmatpush2.msra.mxu0 %v8053
        %8451 = vmatprep.mubr.f32.mxu0 %v8132
        %8452 = vmatmul.mubr.f32.gmra.mxu0 %v8131
        %v8453 = vpop.f32.mrf.mxu0
        %v8454 = vadd.f32 0.0, %v8453
        %v8455 = vpop.f32.mrf.mxu0
        %8456 = vmatprep.mubr.f32.mxu0 %v8134
        %8457 = vmatmul.mubr.f32.gmra.mxu0 %v8133
        %v8458 = vpop.f32.mrf.mxu0
        %v8459 = vadd.f32 0.0, %v8458
        %v8460 = vpop.f32.mrf.mxu0
        %8461 = vmatprep.mubr.f32.mxu0 %v8136
        %8462 = vmatmul.mubr.f32.gmra.mxu0 %v8135
        %v8463 = vpop.f32.mrf.mxu0
        %v8464 = vadd.f32 0.0, %v8463
        %v8465 = vpop.f32.mrf.mxu0
        %8466 = vmatprep.mubr.f32.mxu0 %v8138
        %8467 = vmatmul.mubr.f32.gmra.mxu0 %v8137
        %v8468 = vpop.f32.mrf.mxu0
        %v8469 = vadd.f32 0.0, %v8468
        %v8470 = vpop.f32.mrf.mxu0
        %8471 = vmatprep.mubr.f32.mxu0 %v8140
        %8472 = vmatmul.mubr.f32.gmra.mxu0 %v8139
        %v8473 = vpop.f32.mrf.mxu0
        %v8474 = vadd.f32 0.0, %v8473
        %v8475 = vpop.f32.mrf.mxu0
        %8476 = vmatprep.mubr.f32.mxu0 %v8142
        %8477 = vmatmul.mubr.f32.gmra.mxu0 %v8141
        %v8478 = vpop.f32.mrf.mxu0
        %v8479 = vadd.f32 0.0, %v8478
        %v8480 = vpop.f32.mrf.mxu0
        %8481 = vmatprep.mubr.f32.mxu0 %v8144
        %8482 = vmatmul.mubr.f32.gmra.mxu0 %v8143
        %v8483 = vpop.f32.mrf.mxu0
        %v8484 = vadd.f32 0.0, %v8483
        %v8485 = vpop.f32.mrf.mxu0
        %8486 = vmatprep.mubr.f32.mxu0 %v8146
        %8487 = vmatmul.mubr.f32.gmra.mxu0 %v8145
        %v8488 = vpop.f32.mrf.mxu0
        %v8489 = vadd.f32 0.0, %v8488
        %v8490 = vpop.f32.mrf.mxu0
        %8491 = vmatprep.mubr.f32.mxu0 %v8148
        %8492 = vmatmul.mubr.f32.gmra.mxu0 %v8147
        %v8493 = vpop.f32.mrf.mxu0
        %v8494 = vadd.f32 0.0, %v8493
        %v8495 = vpop.f32.mrf.mxu0
        %8496 = vmatprep.mubr.f32.mxu0 %v8150
        %8497 = vmatmul.mubr.f32.gmra.mxu0 %v8149
        %v8498 = vpop.f32.mrf.mxu0
        %v8499 = vadd.f32 0.0, %v8498
        %v8500 = vpop.f32.mrf.mxu0
        %8501 = vmatprep.mubr.f32.mxu0 %v8152
        %8502 = vmatmul.mubr.f32.gmra.mxu0 %v8151
        %v8503 = vpop.f32.mrf.mxu0
        %v8504 = vadd.f32 0.0, %v8503
        %v8505 = vpop.f32.mrf.mxu0
        %8506 = vmatprep.mubr.f32.mxu0 %v8154
        %8507 = vmatmul.mubr.f32.gmra.mxu0 %v8153
        %v8508 = vpop.f32.mrf.mxu0
        %v8509 = vadd.f32 0.0, %v8508
        %v8510 = vpop.f32.mrf.mxu0
        %8511 = vmatprep.mubr.f32.mxu0 %v8156
        %8512 = vmatmul.mubr.f32.gmra.mxu0 %v8155
        %v8513 = vpop.f32.mrf.mxu0
        %v8514 = vadd.f32 0.0, %v8513
        %v8515 = vpop.f32.mrf.mxu0
        %8516 = vmatprep.mubr.f32.mxu0 %v8158
        %8517 = vmatmul.mubr.f32.gmra.mxu0 %v8157
        %v8518 = vpop.f32.mrf.mxu0
        %v8519 = vadd.f32 0.0, %v8518
        %v8520 = vpop.f32.mrf.mxu0
        %8521 = vmatprep.mubr.f32.mxu0 %v8160
        %8522 = vmatmul.mubr.f32.gmra.mxu0 %v8159
        %v8523 = vpop.f32.mrf.mxu0
        %v8524 = vadd.f32 0.0, %v8523
        %v8525 = vpop.f32.mrf.mxu0
        %8526 = vmatprep.mubr.f32.mxu0 %v8162
        %8527 = vmatmul.mubr.f32.gmra.mxu0 %v8161
        %v8528 = vpop.f32.mrf.mxu0
        %v8529 = vadd.f32 0.0, %v8528
        %v8530 = vpop.f32.mrf.mxu0
        %8531 = vmatprep.mubr.f32.mxu0 %v8164
        %8532 = vmatmul.mubr.f32.gmra.mxu0 %v8163
        %v8533 = vpop.f32.mrf.mxu0
        %v8534 = vadd.f32 0.0, %v8533
        %v8535 = vpop.f32.mrf.mxu0
        %8536 = vmatprep.mubr.f32.mxu0 %v8166
        %8537 = vmatmul.mubr.f32.gmra.mxu0 %v8165
        %v8538 = vpop.f32.mrf.mxu0
        %v8539 = vadd.f32 0.0, %v8538
        %v8540 = vpop.f32.mrf.mxu0
        %8541 = vmatprep.mubr.f32.mxu0 %v8168
        %8542 = vmatmul.mubr.f32.gmra.mxu0 %v8167
        %v8543 = vpop.f32.mrf.mxu0
        %v8544 = vadd.f32 0.0, %v8543
        %v8545 = vpop.f32.mrf.mxu0
        %8546 = vmatprep.mubr.f32.mxu0 %v8170
        %8547 = vmatmul.mubr.f32.gmra.mxu0 %v8169
        %v8548 = vpop.f32.mrf.mxu0
        %v8549 = vadd.f32 0.0, %v8548
        %v8550 = vpop.f32.mrf.mxu0
        %8551 = vmatprep.mubr.f32.mxu0 %v8172
        %8552 = vmatmul.mubr.f32.gmra.mxu0 %v8171
        %v8553 = vpop.f32.mrf.mxu0
        %v8554 = vadd.f32 0.0, %v8553
        %v8555 = vpop.f32.mrf.mxu0
        %8556 = vmatprep.mubr.f32.mxu0 %v8174
        %8557 = vmatmul.mubr.f32.gmra.mxu0 %v8173
        %v8558 = vpop.f32.mrf.mxu0
        %v8559 = vadd.f32 0.0, %v8558
        %v8560 = vpop.f32.mrf.mxu0
        %8561 = vmatprep.mubr.f32.mxu0 %v8176
        %8562 = vmatmul.mubr.f32.gmra.mxu0 %v8175
        %v8563 = vpop.f32.mrf.mxu0
        %v8564 = vadd.f32 0.0, %v8563
        %v8565 = vpop.f32.mrf.mxu0
        %8566 = vmatprep.mubr.f32.mxu0 %v8178
        %8567 = vmatmul.mubr.f32.gmra.mxu0 %v8177
        %v8568 = vpop.f32.mrf.mxu0
        %v8569 = vadd.f32 0.0, %v8568
        %v8570 = vpop.f32.mrf.mxu0
        %8571 = vmatprep.mubr.f32.mxu0 %v8180
        %8572 = vmatmul.mubr.f32.gmra.mxu0 %v8179
        %v8573 = vpop.f32.mrf.mxu0
        %v8574 = vadd.f32 0.0, %v8573
        %v8575 = vpop.f32.mrf.mxu0
        %8576 = vmatprep.mubr.f32.mxu0 %v8182
        %8577 = vmatmul.mubr.f32.gmra.mxu0 %v8181
        %v8578 = vpop.f32.mrf.mxu0
        %v8579 = vadd.f32 0.0, %v8578
        %v8580 = vpop.f32.mrf.mxu0
        %8581 = vmatprep.mubr.f32.mxu0 %v8184
        %8582 = vmatmul.mubr.f32.gmra.mxu0 %v8183
        %v8583 = vpop.f32.mrf.mxu0
        %v8584 = vadd.f32 0.0, %v8583
        %v8585 = vpop.f32.mrf.mxu0
        %8586 = vmatprep.mubr.f32.mxu0 %v8186
        %8587 = vmatmul.mubr.f32.gmra.mxu0 %v8185
        %v8588 = vpop.f32.mrf.mxu0
        %v8589 = vadd.f32 0.0, %v8588
        %v8590 = vpop.f32.mrf.mxu0
        %8591 = vmatprep.mubr.f32.mxu0 %v8188
        %8592 = vmatmul.mubr.f32.gmra.mxu0 %v8187
        %v8593 = vpop.f32.mrf.mxu0
        %v8594 = vadd.f32 0.0, %v8593
        %v8595 = vpop.f32.mrf.mxu0
        %8596 = vmatprep.mubr.f32.mxu0 %v8190
        %8597 = vmatmul.mubr.f32.gmra.mxu0 %v8189
        %v8598 = vpop.f32.mrf.mxu0
        %v8599 = vadd.f32 0.0, %v8598
        %v8600 = vpop.f32.mrf.mxu0
        %8601 = vmatprep.mubr.f32.mxu0 %v8192
        %8602 = vmatmul.mubr.f32.gmra.mxu0 %v8191
        %v8603 = vpop.f32.mrf.mxu0
        %v8604 = vadd.f32 0.0, %v8603
        %v8605 = vpop.f32.mrf.mxu0
        %8606 = vmatprep.mubr.f32.mxu0 %v8194
        %8607 = vmatmul.mubr.f32.gmra.mxu0 %v8193
        %v8608 = vpop.f32.mrf.mxu0
        %v8609 = vadd.f32 0.0, %v8608
        %v8610 = vpop.f32.mrf.mxu0
        %8611 = vmatprep.mubr.f32.mxu0 %v8196
        %8612 = vmatmul.mubr.f32.gmra.mxu0 %v8195
        %v8613 = vpop.f32.mrf.mxu0
        %v8614 = vadd.f32 0.0, %v8613
        %v8615 = vpop.f32.mrf.mxu0
        %8616 = vmatprep.mubr.f32.mxu0 %v8198
        %8617 = vmatmul.mubr.f32.gmra.mxu0 %v8197
        %v8618 = vpop.f32.mrf.mxu0
        %v8619 = vadd.f32 0.0, %v8618
        %v8620 = vpop.f32.mrf.mxu0
        %8621 = vmatprep.mubr.f32.mxu0 %v8200
        %8622 = vmatmul.mubr.f32.gmra.mxu0 %v8199
        %v8623 = vpop.f32.mrf.mxu0
        %v8624 = vadd.f32 0.0, %v8623
        %v8625 = vpop.f32.mrf.mxu0
        %8626 = vmatprep.mubr.f32.mxu0 %v8202
        %8627 = vmatmul.mubr.f32.gmra.mxu0 %v8201
        %v8628 = vpop.f32.mrf.mxu0
        %v8629 = vadd.f32 0.0, %v8628
        %v8630 = vpop.f32.mrf.mxu0
        %8631 = vmatprep.mubr.f32.mxu0 %v8204
        %8632 = vmatmul.mubr.f32.gmra.mxu0 %v8203
        %v8633 = vpop.f32.mrf.mxu0
        %v8634 = vadd.f32 0.0, %v8633
        %v8635 = vpop.f32.mrf.mxu0
        %8636 = vmatprep.mubr.f32.mxu0 %v8206
        %8637 = vmatmul.mubr.f32.gmra.mxu0 %v8205
        %v8638 = vpop.f32.mrf.mxu0
        %v8639 = vadd.f32 0.0, %v8638
        %v8640 = vpop.f32.mrf.mxu0
        %8641 = vmatprep.mubr.f32.mxu0 %v8208
        %8642 = vmatmul.mubr.f32.gmra.mxu0 %v8207
        %v8643 = vpop.f32.mrf.mxu0
        %v8644 = vadd.f32 0.0, %v8643
        %v8645 = vpop.f32.mrf.mxu0
        %8646 = vmatprep.mubr.f32.mxu0 %v8210
        %8647 = vmatmul.mubr.f32.gmra.mxu0 %v8209
        %v8648 = vpop.f32.mrf.mxu0
        %v8649 = vadd.f32 0.0, %v8648
        %v8650 = vpop.f32.mrf.mxu0
        %8651 = vmatprep.mubr.f32.mxu0 %v8212
        %8652 = vmatmul.mubr.f32.gmra.mxu0 %v8211
        %v8653 = vpop.f32.mrf.mxu0
        %v8654 = vadd.f32 0.0, %v8653
        %v8655 = vpop.f32.mrf.mxu0
        %8656 = vmatprep.mubr.f32.mxu0 %v8214
        %8657 = vmatmul.mubr.f32.gmra.mxu0 %v8213
        %v8658 = vpop.f32.mrf.mxu0
        %v8659 = vadd.f32 0.0, %v8658
        %v8660 = vpop.f32.mrf.mxu0
        %8661 = vmatprep.mubr.f32.mxu0 %v8216
        %8662 = vmatmul.mubr.f32.gmra.mxu0 %v8215
        %v8663 = vpop.f32.mrf.mxu0
        %v8664 = vadd.f32 0.0, %v8663
        %v8665 = vpop.f32.mrf.mxu0
        %8666 = vmatprep.mubr.f32.mxu0 %v8218
        %8667 = vmatmul.mubr.f32.gmra.mxu0 %v8217
        %v8668 = vpop.f32.mrf.mxu0
        %v8669 = vadd.f32 0.0, %v8668
        %v8670 = vpop.f32.mrf.mxu0
        %8671 = vmatprep.mubr.f32.mxu0 %v8220
        %8672 = vmatmul.mubr.f32.gmra.mxu0 %v8219
        %v8673 = vpop.f32.mrf.mxu0
        %v8674 = vadd.f32 0.0, %v8673
        %v8675 = vpop.f32.mrf.mxu0
        %8676 = vmatprep.mubr.f32.mxu0 %v8222
        %8677 = vmatmul.mubr.f32.gmra.mxu0 %v8221
        %v8678 = vpop.f32.mrf.mxu0
        %v8679 = vadd.f32 0.0, %v8678
        %v8680 = vpop.f32.mrf.mxu0
        %8681 = vmatprep.mubr.f32.mxu0 %v8224
        %8682 = vmatmul.mubr.f32.gmra.mxu0 %v8223
        %v8683 = vpop.f32.mrf.mxu0
        %v8684 = vadd.f32 0.0, %v8683
        %v8685 = vpop.f32.mrf.mxu0
        %8686 = vmatprep.mubr.f32.mxu0 %v8226
        %8687 = vmatmul.mubr.f32.gmra.mxu0 %v8225
        %v8688 = vpop.f32.mrf.mxu0
        %v8689 = vadd.f32 0.0, %v8688
        %v8690 = vpop.f32.mrf.mxu0
        %8691 = vmatprep.mubr.f32.mxu0 %v8228
        %8692 = vmatmul.mubr.f32.gmra.mxu0 %v8227
        %v8693 = vpop.f32.mrf.mxu0
        %v8694 = vadd.f32 0.0, %v8693
        %v8695 = vpop.f32.mrf.mxu0
        %8696 = vmatprep.mubr.f32.mxu0 %v8230
        %8697 = vmatmul.mubr.f32.gmra.mxu0 %v8229
        %v8698 = vpop.f32.mrf.mxu0
        %v8699 = vadd.f32 0.0, %v8698
        %v8700 = vpop.f32.mrf.mxu0
        %8701 = vmatprep.mubr.f32.mxu0 %v8232
        %8702 = vmatmul.mubr.f32.gmra.mxu0 %v8231
        %v8703 = vpop.f32.mrf.mxu0
        %v8704 = vadd.f32 0.0, %v8703
        %v8705 = vpop.f32.mrf.mxu0
        %8706 = vmatprep.mubr.f32.mxu0 %v8234
        %8707 = vmatmul.mubr.f32.gmra.mxu0 %v8233
        %v8708 = vpop.f32.mrf.mxu0
        %v8709 = vadd.f32 0.0, %v8708
        %v8710 = vpop.f32.mrf.mxu0
        %8711 = vmatprep.mubr.f32.mxu0 %v8236
        %8712 = vmatmul.mubr.f32.gmra.mxu0 %v8235
        %v8713 = vpop.f32.mrf.mxu0
        %v8714 = vadd.f32 0.0, %v8713
        %v8715 = vpop.f32.mrf.mxu0
        %8716 = vmatprep.mubr.f32.mxu0 %v8238
        %8717 = vmatmul.mubr.f32.gmra.mxu0 %v8237
        %v8718 = vpop.f32.mrf.mxu0
        %v8719 = vadd.f32 0.0, %v8718
        %v8720 = vpop.f32.mrf.mxu0
        %8721 = vmatprep.mubr.f32.mxu0 %v8240
        %8722 = vmatmul.mubr.f32.gmra.mxu0 %v8239
        %v8723 = vpop.f32.mrf.mxu0
        %v8724 = vadd.f32 0.0, %v8723
        %v8725 = vpop.f32.mrf.mxu0
        %8726 = vmatprep.mubr.f32.mxu0 %v8242
        %8727 = vmatmul.mubr.f32.gmra.mxu0 %v8241
        %v8728 = vpop.f32.mrf.mxu0
        %v8729 = vadd.f32 0.0, %v8728
        %v8730 = vpop.f32.mrf.mxu0
        %8731 = vmatprep.mubr.f32.mxu0 %v8244
        %8732 = vmatmul.mubr.f32.gmra.mxu0 %v8243
        %v8733 = vpop.f32.mrf.mxu0
        %v8734 = vadd.f32 0.0, %v8733
        %v8735 = vpop.f32.mrf.mxu0
        %8736 = vmatprep.mubr.f32.mxu0 %v8246
        %8737 = vmatmul.mubr.f32.gmra.mxu0 %v8245
        %v8738 = vpop.f32.mrf.mxu0
        %v8739 = vadd.f32 0.0, %v8738
        %v8740 = vpop.f32.mrf.mxu0
        %8741 = vmatprep.mubr.f32.mxu0 %v8248
        %8742 = vmatmul.mubr.f32.gmra.mxu0 %v8247
        %v8743 = vpop.f32.mrf.mxu0
        %v8744 = vadd.f32 0.0, %v8743
        %v8745 = vpop.f32.mrf.mxu0
        %8746 = vmatprep.mubr.f32.mxu0 %v8250
        %8747 = vmatmul.mubr.f32.gmra.mxu0 %v8249
        %v8748 = vpop.f32.mrf.mxu0
        %v8749 = vadd.f32 0.0, %v8748
        %v8750 = vpop.f32.mrf.mxu0
        %8751 = vmatprep.mubr.f32.mxu0 %v8252
        %8752 = vmatmul.mubr.f32.gmra.mxu0 %v8251
        %v8753 = vpop.f32.mrf.mxu0
        %v8754 = vadd.f32 0.0, %v8753
        %v8755 = vpop.f32.mrf.mxu0
        %8756 = vmatprep.mubr.f32.mxu0 %v8254
        %8757 = vmatmul.mubr.f32.gmra.mxu0 %v8253
        %v8758 = vpop.f32.mrf.mxu0
        %v8759 = vadd.f32 0.0, %v8758
        %v8760 = vpop.f32.mrf.mxu0
        %8761 = vmatprep.mubr.f32.mxu0 %v8256
        %8762 = vmatmul.mubr.f32.gmra.mxu0 %v8255
        %v8763 = vpop.f32.mrf.mxu0
        %v8764 = vadd.f32 0.0, %v8763
        %v8765 = vpop.f32.mrf.mxu0
        %8766 = vmatprep.mubr.f32.mxu0 %v8258
        %8767 = vmatmul.mubr.f32.gmra.mxu0 %v8257
        %v8768 = vpop.f32.mrf.mxu0
        %v8769 = vadd.f32 0.0, %v8768
        %v8770 = vpop.f32.mrf.mxu0
        %8771 = vmatprep.mubr.f32.mxu0 %v8260
        %8772 = vmatmul.mubr.f32.gmra.mxu0 %v8259
        %v8773 = vpop.f32.mrf.mxu0
        %v8774 = vadd.f32 0.0, %v8773
        %v8775 = vpop.f32.mrf.mxu0
        %8776 = vmatprep.mubr.f32.mxu0 %v8262
        %8777 = vmatmul.mubr.f32.gmra.mxu0 %v8261
        %v8778 = vpop.f32.mrf.mxu0
        %v8779 = vadd.f32 0.0, %v8778
        %v8780 = vpop.f32.mrf.mxu0
        %8781 = vmatprep.mubr.f32.mxu0 %v8264
        %8782 = vmatmul.mubr.f32.gmra.mxu0 %v8263
        %v8783 = vpop.f32.mrf.mxu0
        %v8784 = vadd.f32 0.0, %v8783
        %v8785 = vpop.f32.mrf.mxu0
        %8786 = vmatprep.mubr.f32.mxu0 %v8266
        %8787 = vmatmul.mubr.f32.gmra.mxu0 %v8265
        %v8788 = vpop.f32.mrf.mxu0
        %v8789 = vadd.f32 0.0, %v8788
        %v8790 = vpop.f32.mrf.mxu0
        %8791 = vmatprep.mubr.f32.mxu0 %v8268
        %8792 = vmatmul.mubr.f32.gmra.mxu0 %v8267
        %v8793 = vpop.f32.mrf.mxu0
        %v8794 = vadd.f32 0.0, %v8793
        %v8795 = vpop.f32.mrf.mxu0
        %8796 = vmatprep.mubr.f32.mxu0 %v8270
        %8797 = vmatmul.mubr.f32.gmra.mxu0 %v8269
        %v8798 = vpop.f32.mrf.mxu0
        %v8799 = vadd.f32 0.0, %v8798
        %v8800 = vpop.f32.mrf.mxu0
        %8801 = vmatprep.mubr.f32.mxu0 %v8272
        %8802 = vmatmul.mubr.f32.gmra.mxu0 %v8271
        %v8803 = vpop.f32.mrf.mxu0
        %v8804 = vadd.f32 0.0, %v8803
        %v8805 = vpop.f32.mrf.mxu0
        %8806 = vmatprep.mubr.f32.mxu0 %v8274
        %8807 = vmatmul.mubr.f32.gmra.mxu0 %v8273
        %v8808 = vpop.f32.mrf.mxu0
        %v8809 = vadd.f32 0.0, %v8808
        %v8810 = vpop.f32.mrf.mxu0
        %8811 = vmatprep.mubr.f32.mxu0 %v8276
        %8812 = vmatmul.mubr.f32.gmra.mxu0 %v8275
        %v8813 = vpop.f32.mrf.mxu0
        %v8814 = vadd.f32 0.0, %v8813
        %v8815 = vpop.f32.mrf.mxu0
        %8816 = vmatprep.mubr.f32.mxu0 %v8278
        %8817 = vmatmul.mubr.f32.gmra.mxu0 %v8277
        %v8818 = vpop.f32.mrf.mxu0
        %v8819 = vadd.f32 0.0, %v8818
        %v8820 = vpop.f32.mrf.mxu0
        %8821 = vmatprep.mubr.f32.mxu0 %v8280
        %8822 = vmatmul.mubr.f32.gmra.mxu0 %v8279
        %v8823 = vpop.f32.mrf.mxu0
        %v8824 = vadd.f32 0.0, %v8823
        %v8825 = vpop.f32.mrf.mxu0
        %8826 = vmatprep.mubr.f32.mxu0 %v8282
        %8827 = vmatmul.mubr.f32.gmra.mxu0 %v8281
        %v8828 = vpop.f32.mrf.mxu0
        %v8829 = vadd.f32 0.0, %v8828
        %v8830 = vpop.f32.mrf.mxu0
        %8831 = vmatprep.mubr.f32.mxu0 %v8284
        %8832 = vmatmul.mubr.f32.gmra.mxu0 %v8283
        %v8833 = vpop.f32.mrf.mxu0
        %v8834 = vadd.f32 0.0, %v8833
        %v8835 = vpop.f32.mrf.mxu0
        %8836 = vmatprep.mubr.f32.mxu0 %v8286
        %8837 = vmatmul.mubr.f32.gmra.mxu0 %v8285
        %v8838 = vpop.f32.mrf.mxu0
        %v8839 = vadd.f32 0.0, %v8838
        %v8840 = vpop.f32.mrf.mxu0
        %8841 = vmatprep.mubr.f32.mxu0 %v8288
        %8842 = vmatmul.mubr.f32.gmra.mxu0 %v8287
        %v8843 = vpop.f32.mrf.mxu0
        %v8844 = vadd.f32 0.0, %v8843
        %v8845 = vpop.f32.mrf.mxu0
        %8846 = vmatprep.mubr.f32.mxu0 %v8290
        %8847 = vmatmul.mubr.f32.gmra.mxu0 %v8289
        %v8848 = vpop.f32.mrf.mxu0
        %v8849 = vadd.f32 0.0, %v8848
        %v8850 = vpop.f32.mrf.mxu0
        %8851 = vmatprep.mubr.f32.mxu0 %v8292
        %8852 = vmatmul.mubr.f32.gmra.mxu0 %v8291
        %v8853 = vpop.f32.mrf.mxu0
        %v8854 = vadd.f32 0.0, %v8853
        %v8855 = vpop.f32.mrf.mxu0
        %8856 = vmatprep.mubr.f32.mxu0 %v8294
        %8857 = vmatmul.mubr.f32.gmra.mxu0 %v8293
        %v8858 = vpop.f32.mrf.mxu0
        %v8859 = vadd.f32 0.0, %v8858
        %v8860 = vpop.f32.mrf.mxu0
        %8861 = vmatprep.mubr.f32.mxu0 %v8296
        %8862 = vmatmul.mubr.f32.gmra.mxu0 %v8295
        %v8863 = vpop.f32.mrf.mxu0
        %v8864 = vadd.f32 0.0, %v8863
        %v8865 = vpop.f32.mrf.mxu0
        %8866 = vmatprep.mubr.f32.mxu0 %v8298
        %8867 = vmatmul.mubr.f32.gmra.mxu0 %v8297
        %v8868 = vpop.f32.mrf.mxu0
        %v8869 = vadd.f32 0.0, %v8868
        %v8870 = vpop.f32.mrf.mxu0
        %8871 = vmatprep.mubr.f32.mxu0 %v8300
        %8872 = vmatmul.mubr.f32.gmra.mxu0 %v8299
        %v8873 = vpop.f32.mrf.mxu0
        %v8874 = vadd.f32 0.0, %v8873
        %v8875 = vpop.f32.mrf.mxu0
        %8876 = vmatprep.mubr.f32.mxu0 %v8302
        %8877 = vmatmul.mubr.f32.gmra.mxu0 %v8301
        %v8878 = vpop.f32.mrf.mxu0
        %v8879 = vadd.f32 0.0, %v8878
        %v8880 = vpop.f32.mrf.mxu0
        %8881 = vmatprep.mubr.f32.mxu0 %v8304
        %8882 = vmatmul.mubr.f32.gmra.mxu0 %v8303
        %v8883 = vpop.f32.mrf.mxu0
        %v8884 = vadd.f32 0.0, %v8883
        %v8885 = vpop.f32.mrf.mxu0
        %8886 = vmatprep.mubr.f32.mxu0 %v8306
        %8887 = vmatmul.mubr.f32.gmra.mxu0 %v8305
        %v8888 = vpop.f32.mrf.mxu0
        %v8889 = vadd.f32 0.0, %v8888
        %v8890 = vpop.f32.mrf.mxu0
        %8891 = vmatprep.mubr.f32.mxu0 %v8308
        %8892 = vmatmul.mubr.f32.gmra.mxu0 %v8307
        %v8893 = vpop.f32.mrf.mxu0
        %v8894 = vadd.f32 0.0, %v8893
        %v8895 = vpop.f32.mrf.mxu0
        %8896 = vmatprep.mubr.f32.mxu0 %v8310
        %8897 = vmatmul.mubr.f32.gmra.mxu0 %v8309
        %v8898 = vpop.f32.mrf.mxu0
        %v8899 = vadd.f32 0.0, %v8898
        %v8900 = vpop.f32.mrf.mxu0
        %8901 = vmatprep.mubr.f32.mxu0 %v8312
        %8902 = vmatmul.mubr.f32.gmra.mxu0 %v8311
        %v8903 = vpop.f32.mrf.mxu0
        %v8904 = vadd.f32 0.0, %v8903
        %v8905 = vpop.f32.mrf.mxu0
        %8906 = vmatprep.mubr.f32.mxu0 %v8314
        %8907 = vmatmul.mubr.f32.gmra.mxu0 %v8313
        %v8908 = vpop.f32.mrf.mxu0
        %v8909 = vadd.f32 0.0, %v8908
        %v8910 = vpop.f32.mrf.mxu0
        %8911 = vmatprep.mubr.f32.mxu0 %v8316
        %8912 = vmatmul.mubr.f32.gmra.mxu0 %v8315
        %v8913 = vpop.f32.mrf.mxu0
        %v8914 = vadd.f32 0.0, %v8913
        %v8915 = vpop.f32.mrf.mxu0
        %8916 = vmatprep.mubr.f32.mxu0 %v8318
        %8917 = vmatmul.mubr.f32.gmra.mxu0 %v8317
        %v8918 = vpop.f32.mrf.mxu0
        %v8919 = vadd.f32 0.0, %v8918
        %v8920 = vpop.f32.mrf.mxu0
        %8921 = vmatprep.mubr.f32.mxu0 %v8320
        %8922 = vmatmul.mubr.f32.gmra.mxu0 %v8319
        %v8923 = vpop.f32.mrf.mxu0
        %v8924 = vadd.f32 0.0, %v8923
        %v8925 = vpop.f32.mrf.mxu0
        %8926 = vmatprep.mubr.f32.mxu0 %v8322
        %8927 = vmatmul.mubr.f32.gmra.mxu0 %v8321
        %v8928 = vpop.f32.mrf.mxu0
        %v8929 = vadd.f32 0.0, %v8928
        %v8930 = vpop.f32.mrf.mxu0
        %8931 = vmatprep.mubr.f32.mxu0 %v8324
        %8932 = vmatmul.mubr.f32.gmra.mxu0 %v8323
        %v8933 = vpop.f32.mrf.mxu0
        %v8934 = vadd.f32 0.0, %v8933
        %v8935 = vpop.f32.mrf.mxu0
        %8936 = vmatprep.mubr.f32.mxu0 %v8326
        %8937 = vmatmul.mubr.f32.gmra.mxu0 %v8325
        %v8938 = vpop.f32.mrf.mxu0
        %v8939 = vadd.f32 0.0, %v8938
        %v8940 = vpop.f32.mrf.mxu0
        %8941 = vmatprep.mubr.f32.mxu0 %v8328
        %8942 = vmatmul.mubr.f32.gmra.mxu0 %v8327
        %v8943 = vpop.f32.mrf.mxu0
        %v8944 = vadd.f32 0.0, %v8943
        %v8945 = vpop.f32.mrf.mxu0
        %8946 = vmatprep.mubr.f32.mxu0 %v8330
        %8947 = vmatmul.mubr.f32.gmra.mxu0 %v8329
        %v8948 = vpop.f32.mrf.mxu0
        %v8949 = vadd.f32 0.0, %v8948
        %v8950 = vpop.f32.mrf.mxu0
        %8951 = vmatprep.mubr.f32.mxu0 %v8332
        %8952 = vmatmul.mubr.f32.gmra.mxu0 %v8331
        %v8953 = vpop.f32.mrf.mxu0
        %v8954 = vadd.f32 0.0, %v8953
        %v8955 = vpop.f32.mrf.mxu0
        %8956 = vmatprep.mubr.f32.mxu0 %v8334
        %8957 = vmatmul.mubr.f32.gmra.mxu0 %v8333
        %v8958 = vpop.f32.mrf.mxu0
        %v8959 = vadd.f32 0.0, %v8958
        %v8960 = vpop.f32.mrf.mxu0
        %8961 = vmatprep.mubr.f32.mxu0 %v8336
        %8962 = vmatmul.mubr.f32.gmra.mxu0 %v8335
        %v8963 = vpop.f32.mrf.mxu0
        %v8964 = vadd.f32 0.0, %v8963
        %v8965 = vpop.f32.mrf.mxu0
        %8966 = vmatprep.mubr.f32.mxu0 %v8338
        %8967 = vmatmul.mubr.f32.gmra.mxu0 %v8337
        %v8968 = vpop.f32.mrf.mxu0
        %v8969 = vadd.f32 0.0, %v8968
        %v8970 = vpop.f32.mrf.mxu0
        %8971 = vmatprep.mubr.f32.mxu0 %v8340
        %8972 = vmatmul.mubr.f32.gmra.mxu0 %v8339
        %v8973 = vpop.f32.mrf.mxu0
        %v8974 = vadd.f32 0.0, %v8973
        %v8975 = vpop.f32.mrf.mxu0
        %8976 = vmatprep.mubr.f32.mxu0 %v8342
        %8977 = vmatmul.mubr.f32.gmra.mxu0 %v8341
        %v8978 = vpop.f32.mrf.mxu0
        %v8979 = vadd.f32 0.0, %v8978
        %v8980 = vpop.f32.mrf.mxu0
        %8981 = vmatprep.mubr.f32.mxu0 %v8344
        %8982 = vmatmul.mubr.f32.gmra.mxu0 %v8343
        %v8983 = vpop.f32.mrf.mxu0
        %v8984 = vadd.f32 0.0, %v8983
        %v8985 = vpop.f32.mrf.mxu0
        %8986 = vmatprep.mubr.f32.mxu0 %v8346
        %8987 = vmatmul.mubr.f32.gmra.mxu0 %v8345
        %v8988 = vpop.f32.mrf.mxu0
        %v8989 = vadd.f32 0.0, %v8988
        %v8990 = vpop.f32.mrf.mxu0
        %8991 = vmatprep.mubr.f32.mxu0 %v8348
        %8992 = vmatmul.mubr.f32.gmra.mxu0 %v8347
        %v8993 = vpop.f32.mrf.mxu0
        %v8994 = vadd.f32 0.0, %v8993
        %v8995 = vpop.f32.mrf.mxu0
        %8996 = vmatprep.mubr.f32.mxu0 %v8350
        %8997 = vmatmul.mubr.f32.gmra.mxu0 %v8349
        %v8998 = vpop.f32.mrf.mxu0
        %v8999 = vadd.f32 0.0, %v8998
        %v9000 = vpop.f32.mrf.mxu0
        %9001 = vmatprep.mubr.f32.mxu0 %v8352
        %9002 = vmatmul.mubr.f32.gmra.mxu0 %v8351
        %v9003 = vpop.f32.mrf.mxu0
        %v9004 = vadd.f32 0.0, %v9003
        %v9005 = vpop.f32.mrf.mxu0
        %9006 = vmatprep.mubr.f32.mxu0 %v8354
        %9007 = vmatmul.mubr.f32.gmra.mxu0 %v8353
        %v9008 = vpop.f32.mrf.mxu0
        %v9009 = vadd.f32 0.0, %v9008
        %v9010 = vpop.f32.mrf.mxu0
        %9011 = vmatprep.mubr.f32.mxu0 %v8356
        %9012 = vmatmul.mubr.f32.gmra.mxu0 %v8355
        %v9013 = vpop.f32.mrf.mxu0
        %v9014 = vadd.f32 0.0, %v9013
        %v9015 = vpop.f32.mrf.mxu0
        %9016 = vmatprep.mubr.f32.mxu0 %v8358
        %9017 = vmatmul.mubr.f32.gmra.mxu0 %v8357
        %v9018 = vpop.f32.mrf.mxu0
        %v9019 = vadd.f32 0.0, %v9018
        %v9020 = vpop.f32.mrf.mxu0
        %9021 = vmatprep.mubr.f32.mxu0 %v8360
        %9022 = vmatmul.mubr.f32.gmra.mxu0 %v8359
        %v9023 = vpop.f32.mrf.mxu0
        %v9024 = vadd.f32 0.0, %v9023
        %v9025 = vpop.f32.mrf.mxu0
        %9026 = vmatprep.mubr.f32.mxu0 %v8362
        %9027 = vmatmul.mubr.f32.gmra.mxu0 %v8361
        %v9028 = vpop.f32.mrf.mxu0
        %v9029 = vadd.f32 0.0, %v9028
        %v9030 = vpop.f32.mrf.mxu0
        %9031 = vmatprep.mubr.f32.mxu0 %v8364
        %9032 = vmatmul.mubr.f32.gmra.mxu0 %v8363
        %v9033 = vpop.f32.mrf.mxu0
        %v9034 = vadd.f32 0.0, %v9033
        %v9035 = vpop.f32.mrf.mxu0
        %9036 = vmatprep.mubr.f32.mxu0 %v8366
        %9037 = vmatmul.mubr.f32.gmra.mxu0 %v8365
        %v9038 = vpop.f32.mrf.mxu0
        %v9039 = vadd.f32 0.0, %v9038
        %v9040 = vpop.f32.mrf.mxu0
        %9041 = vmatprep.mubr.f32.mxu0 %v8368
        %9042 = vmatmul.mubr.f32.gmra.mxu0 %v8367
        %v9043 = vpop.f32.mrf.mxu0
        %v9044 = vadd.f32 0.0, %v9043
        %v9045 = vpop.f32.mrf.mxu0
        %9046 = vmatprep.mubr.f32.mxu0 %v8370
        %9047 = vmatmul.mubr.f32.gmra.mxu0 %v8369
        %v9048 = vpop.f32.mrf.mxu0
        %v9049 = vadd.f32 0.0, %v9048
        %v9050 = vpop.f32.mrf.mxu0
        %9051 = vmatprep.mubr.f32.mxu0 %v8372
        %9052 = vmatmul.mubr.f32.gmra.mxu0 %v8371
        %v9053 = vpop.f32.mrf.mxu0
        %v9054 = vadd.f32 0.0, %v9053
        %v9055 = vpop.f32.mrf.mxu0
        %9056 = vmatprep.mubr.f32.mxu0 %v8374
        %9057 = vmatmul.mubr.f32.gmra.mxu0 %v8373
        %v9058 = vpop.f32.mrf.mxu0
        %v9059 = vadd.f32 0.0, %v9058
        %v9060 = vpop.f32.mrf.mxu0
        %9061 = vmatprep.mubr.f32.mxu0 %v8376
        %9062 = vmatmul.mubr.f32.gmra.mxu0 %v8375
        %v9063 = vpop.f32.mrf.mxu0
        %v9064 = vadd.f32 0.0, %v9063
        %v9065 = vpop.f32.mrf.mxu0
        %9066 = vmatprep.mubr.f32.mxu0 %v8378
        %9067 = vmatmul.mubr.f32.gmra.mxu0 %v8377
        %v9068 = vpop.f32.mrf.mxu0
        %v9069 = vadd.f32 0.0, %v9068
        %v9070 = vpop.f32.mrf.mxu0
        %9071 = vmatprep.mubr.f32.mxu0 %v8380
        %9072 = vmatmul.mubr.f32.gmra.mxu0 %v8379
        %v9073 = vpop.f32.mrf.mxu0
        %v9074 = vadd.f32 0.0, %v9073
        %v9075 = vpop.f32.mrf.mxu0
        %9076 = vmatprep.mubr.f32.mxu0 %v8382
        %9077 = vmatmul.mubr.f32.gmra.mxu0 %v8381
        %v9078 = vpop.f32.mrf.mxu0
        %v9079 = vadd.f32 0.0, %v9078
        %v9080 = vpop.f32.mrf.mxu0
        %9081 = vmatprep.mubr.f32.mxu0 %v8384
        %9082 = vmatmul.mubr.f32.gmra.mxu0 %v8383
        %v9083 = vpop.f32.mrf.mxu0
        %v9084 = vadd.f32 0.0, %v9083
        %v9085 = vpop.f32.mrf.mxu0
        %9086 = vmatprep.mubr.f32.mxu0 %v8386
        %9087 = vmatmul.mubr.f32.gmra.mxu0 %v8385
        %v9088 = vpop.f32.mrf.mxu0
        %v9089 = vadd.f32 0.0, %v9088
        %v9090 = vpop.f32.mrf.mxu0
        %9091 = vdwg.mxu0
        %9092 = vst.msk [vmem:[%s475] sm:$0xff] %vm476, %v8454
        %9093 = vst.msk [vmem:[%s475 + $0x8] sm:$0xff] %vm476, %v8459
        %9094 = vst.msk [vmem:[%s475 + $0x10] sm:$0xff] %vm476, %v8464
        %9095 = vst.msk [vmem:[%s475 + $0x18] sm:$0xff] %vm476, %v8469
        %9096 = vst.msk [vmem:[%s475 + $0x20] sm:$0xff] %vm476, %v8474
        %9097 = vst.msk [vmem:[%s475 + $0x28] sm:$0xff] %vm476, %v8479
        %9098 = vst.msk [vmem:[%s475 + $0x30] sm:$0xff] %vm476, %v8484
        %9099 = vst.msk [vmem:[%s475 + $0x38] sm:$0xff] %vm476, %v8489
        %9100 = vst.msk [vmem:[%s475 + $0x40] sm:$0xff] %vm476, %v8494
        %9101 = vst.msk [vmem:[%s475 + $0x48] sm:$0xff] %vm476, %v8499
        %9102 = vst.msk [vmem:[%s475 + $0x50] sm:$0xff] %vm476, %v8504
        %9103 = vst.msk [vmem:[%s475 + $0x58] sm:$0xff] %vm476, %v8509
        %9104 = vst.msk [vmem:[%s475 + $0x60] sm:$0xff] %vm476, %v8514
        %9105 = vst.msk [vmem:[%s475 + $0x68] sm:$0xff] %vm476, %v8519
        %9106 = vst.msk [vmem:[%s475 + $0x70] sm:$0xff] %vm476, %v8524
        %9107 = vst.msk [vmem:[%s475 + $0x78] sm:$0xff] %vm476, %v8529
        %9108 = vst.msk [vmem:[%s475 + $0x80] sm:$0xff] %vm476, %v8534
        %9109 = vst.msk [vmem:[%s475 + $0x88] sm:$0xff] %vm476, %v8539
        %9110 = vst.msk [vmem:[%s475 + $0x90] sm:$0xff] %vm476, %v8544
        %9111 = vst.msk [vmem:[%s475 + $0x98] sm:$0xff] %vm476, %v8549
        %9112 = vst.msk [vmem:[%s475 + $0xa0] sm:$0xff] %vm476, %v8554
        %9113 = vst.msk [vmem:[%s475 + $0xa8] sm:$0xff] %vm476, %v8559
        %9114 = vst.msk [vmem:[%s475 + $0xb0] sm:$0xff] %vm476, %v8564
        %9115 = vst.msk [vmem:[%s475 + $0xb8] sm:$0xff] %vm476, %v8569
        %9116 = vst.msk [vmem:[%s475 + $0xc0] sm:$0xff] %vm476, %v8574
        %9117 = vst.msk [vmem:[%s475 + $0xc8] sm:$0xff] %vm476, %v8579
        %9118 = vst.msk [vmem:[%s475 + $0xd0] sm:$0xff] %vm476, %v8584
        %9119 = vst.msk [vmem:[%s475 + $0xd8] sm:$0xff] %vm476, %v8589
        %9120 = vst.msk [vmem:[%s475 + $0xe0] sm:$0xff] %vm476, %v8594
        %9121 = vst.msk [vmem:[%s475 + $0xe8] sm:$0xff] %vm476, %v8599
        %9122 = vst.msk [vmem:[%s475 + $0xf0] sm:$0xff] %vm476, %v8604
        %9123 = vst.msk [vmem:[%s475 + $0xf8] sm:$0xff] %vm476, %v8609
        %9124 = vst.msk [vmem:[%s475 + $0x100] sm:$0xff] %vm476, %v8614
        %9125 = vst.msk [vmem:[%s475 + $0x108] sm:$0xff] %vm476, %v8619
        %9126 = vst.msk [vmem:[%s475 + $0x110] sm:$0xff] %vm476, %v8624
        %9127 = vst.msk [vmem:[%s475 + $0x118] sm:$0xff] %vm476, %v8629
        %9128 = vst.msk [vmem:[%s475 + $0x120] sm:$0xff] %vm476, %v8634
        %9129 = vst.msk [vmem:[%s475 + $0x128] sm:$0xff] %vm476, %v8639
        %9130 = vst.msk [vmem:[%s475 + $0x130] sm:$0xff] %vm476, %v8644
        %9131 = vst.msk [vmem:[%s475 + $0x138] sm:$0xff] %vm476, %v8649
        %9132 = vst.msk [vmem:[%s475 + $0x140] sm:$0xff] %vm476, %v8654
        %9133 = vst.msk [vmem:[%s475 + $0x148] sm:$0xff] %vm476, %v8659
        %9134 = vst.msk [vmem:[%s475 + $0x150] sm:$0xff] %vm476, %v8664
        %9135 = vst.msk [vmem:[%s475 + $0x158] sm:$0xff] %vm476, %v8669
        %9136 = vst.msk [vmem:[%s475 + $0x160] sm:$0xff] %vm476, %v8674
        %9137 = vst.msk [vmem:[%s475 + $0x168] sm:$0xff] %vm476, %v8679
        %9138 = vst.msk [vmem:[%s475 + $0x170] sm:$0xff] %vm476, %v8684
        %9139 = vst.msk [vmem:[%s475 + $0x178] sm:$0xff] %vm476, %v8689
        %9140 = vst.msk [vmem:[%s475 + $0x180] sm:$0xff] %vm476, %v8694
        %9141 = vst.msk [vmem:[%s475 + $0x188] sm:$0xff] %vm476, %v8699
        %9142 = vst.msk [vmem:[%s475 + $0x190] sm:$0xff] %vm476, %v8704
        %9143 = vst.msk [vmem:[%s475 + $0x198] sm:$0xff] %vm476, %v8709
        %9144 = vst.msk [vmem:[%s475 + $0x1a0] sm:$0xff] %vm476, %v8714
        %9145 = vst.msk [vmem:[%s475 + $0x1a8] sm:$0xff] %vm476, %v8719
        %9146 = vst.msk [vmem:[%s475 + $0x1b0] sm:$0xff] %vm476, %v8724
        %9147 = vst.msk [vmem:[%s475 + $0x1b8] sm:$0xff] %vm476, %v8729
        %9148 = vst.msk [vmem:[%s475 + $0x1c0] sm:$0xff] %vm476, %v8734
        %9149 = vst.msk [vmem:[%s475 + $0x1c8] sm:$0xff] %vm476, %v8739
        %9150 = vst.msk [vmem:[%s475 + $0x1d0] sm:$0xff] %vm476, %v8744
        %9151 = vst.msk [vmem:[%s475 + $0x1d8] sm:$0xff] %vm476, %v8749
        %9152 = vst.msk [vmem:[%s475 + $0x1e0] sm:$0xff] %vm476, %v8754
        %9153 = vst.msk [vmem:[%s475 + $0x1e8] sm:$0xff] %vm476, %v8759
        %9154 = vst.msk [vmem:[%s475 + $0x1f0] sm:$0xff] %vm476, %v8764
        %9155 = vst.msk [vmem:[%s475 + $0x1f8] sm:$0xff] %vm476, %v8769
        %9156 = vst.msk [vmem:[%s475 + $0x200] sm:$0xff] %vm476, %v8774
        %9157 = vst.msk [vmem:[%s475 + $0x208] sm:$0xff] %vm476, %v8779
        %9158 = vst.msk [vmem:[%s475 + $0x210] sm:$0xff] %vm476, %v8784
        %9159 = vst.msk [vmem:[%s475 + $0x218] sm:$0xff] %vm476, %v8789
        %9160 = vst.msk [vmem:[%s475 + $0x220] sm:$0xff] %vm476, %v8794
        %9161 = vst.msk [vmem:[%s475 + $0x228] sm:$0xff] %vm476, %v8799
        %9162 = vst.msk [vmem:[%s475 + $0x230] sm:$0xff] %vm476, %v8804
        %9163 = vst.msk [vmem:[%s475 + $0x238] sm:$0xff] %vm476, %v8809
        %9164 = vst.msk [vmem:[%s475 + $0x240] sm:$0xff] %vm476, %v8814
        %9165 = vst.msk [vmem:[%s475 + $0x248] sm:$0xff] %vm476, %v8819
        %9166 = vst.msk [vmem:[%s475 + $0x250] sm:$0xff] %vm476, %v8824
        %9167 = vst.msk [vmem:[%s475 + $0x258] sm:$0xff] %vm476, %v8829
        %9168 = vst.msk [vmem:[%s475 + $0x260] sm:$0xff] %vm476, %v8834
        %9169 = vst.msk [vmem:[%s475 + $0x268] sm:$0xff] %vm476, %v8839
        %9170 = vst.msk [vmem:[%s475 + $0x270] sm:$0xff] %vm476, %v8844
        %9171 = vst.msk [vmem:[%s475 + $0x278] sm:$0xff] %vm476, %v8849
        %9172 = vst.msk [vmem:[%s475 + $0x280] sm:$0xff] %vm476, %v8854
        %9173 = vst.msk [vmem:[%s475 + $0x288] sm:$0xff] %vm476, %v8859
        %9174 = vst.msk [vmem:[%s475 + $0x290] sm:$0xff] %vm476, %v8864
        %9175 = vst.msk [vmem:[%s475 + $0x298] sm:$0xff] %vm476, %v8869
        %9176 = vst.msk [vmem:[%s475 + $0x2a0] sm:$0xff] %vm476, %v8874
        %9177 = vst.msk [vmem:[%s475 + $0x2a8] sm:$0xff] %vm476, %v8879
        %9178 = vst.msk [vmem:[%s475 + $0x2b0] sm:$0xff] %vm476, %v8884
        %9179 = vst.msk [vmem:[%s475 + $0x2b8] sm:$0xff] %vm476, %v8889
        %9180 = vst.msk [vmem:[%s475 + $0x2c0] sm:$0xff] %vm476, %v8894
        %9181 = vst.msk [vmem:[%s475 + $0x2c8] sm:$0xff] %vm476, %v8899
        %9182 = vst.msk [vmem:[%s475 + $0x2d0] sm:$0xff] %vm476, %v8904
        %9183 = vst.msk [vmem:[%s475 + $0x2d8] sm:$0xff] %vm476, %v8909
        %9184 = vst.msk [vmem:[%s475 + $0x2e0] sm:$0xff] %vm476, %v8914
        %9185 = vst.msk [vmem:[%s475 + $0x2e8] sm:$0xff] %vm476, %v8919
        %9186 = vst.msk [vmem:[%s475 + $0x2f0] sm:$0xff] %vm476, %v8924
        %9187 = vst.msk [vmem:[%s475 + $0x2f8] sm:$0xff] %vm476, %v8929
        %9188 = vst.msk [vmem:[%s475 + $0x300] sm:$0xff] %vm476, %v8934
        %9189 = vst.msk [vmem:[%s475 + $0x308] sm:$0xff] %vm476, %v8939
        %9190 = vst.msk [vmem:[%s475 + $0x310] sm:$0xff] %vm476, %v8944
        %9191 = vst.msk [vmem:[%s475 + $0x318] sm:$0xff] %vm476, %v8949
        %9192 = vst.msk [vmem:[%s475 + $0x320] sm:$0xff] %vm476, %v8954
        %9193 = vst.msk [vmem:[%s475 + $0x328] sm:$0xff] %vm476, %v8959
        %9194 = vst.msk [vmem:[%s475 + $0x330] sm:$0xff] %vm476, %v8964
        %9195 = vst.msk [vmem:[%s475 + $0x338] sm:$0xff] %vm476, %v8969
        %9196 = vst.msk [vmem:[%s475 + $0x340] sm:$0xff] %vm476, %v8974
        %9197 = vst.msk [vmem:[%s475 + $0x348] sm:$0xff] %vm476, %v8979
        %9198 = vst.msk [vmem:[%s475 + $0x350] sm:$0xff] %vm476, %v8984
        %9199 = vst.msk [vmem:[%s475 + $0x358] sm:$0xff] %vm476, %v8989
        %9200 = vst.msk [vmem:[%s475 + $0x360] sm:$0xff] %vm476, %v8994
        %9201 = vst.msk [vmem:[%s475 + $0x368] sm:$0xff] %vm476, %v8999
        %9202 = vst.msk [vmem:[%s475 + $0x370] sm:$0xff] %vm476, %v9004
        %9203 = vst.msk [vmem:[%s475 + $0x378] sm:$0xff] %vm476, %v9009
        %9204 = vst.msk [vmem:[%s475 + $0x380] sm:$0xff] %vm476, %v9014
        %9205 = vst.msk [vmem:[%s475 + $0x388] sm:$0xff] %vm476, %v9019
        %9206 = vst.msk [vmem:[%s475 + $0x390] sm:$0xff] %vm476, %v9024
        %9207 = vst.msk [vmem:[%s475 + $0x398] sm:$0xff] %vm476, %v9029
        %9208 = vst.msk [vmem:[%s475 + $0x3a0] sm:$0xff] %vm476, %v9034
        %9209 = vst.msk [vmem:[%s475 + $0x3a8] sm:$0xff] %vm476, %v9039
        %9210 = vst.msk [vmem:[%s475 + $0x3b0] sm:$0xff] %vm476, %v9044
        %9211 = vst.msk [vmem:[%s475 + $0x3b8] sm:$0xff] %vm476, %v9049
        %9212 = vst.msk [vmem:[%s475 + $0x3c0] sm:$0xff] %vm476, %v9054
        %9213 = vst.msk [vmem:[%s475 + $0x3c8] sm:$0xff] %vm476, %v9059
        %9214 = vst.msk [vmem:[%s475 + $0x3d0] sm:$0xff] %vm476, %v9064
        %9215 = vst.msk [vmem:[%s475 + $0x3d8] sm:$0xff] %vm476, %v9069
        %9216 = vst.msk [vmem:[%s475 + $0x3e0] sm:$0xff] %vm476, %v9074
        %9217 = vst.msk [vmem:[%s475 + $0x3e8] sm:$0xff] %vm476, %v9079
        %9218 = vst.msk [vmem:[%s475 + $0x3f0] sm:$0xff] %vm476, %v9084
        %9219 = vst.msk [vmem:[%s475 + $0x3f8] sm:$0xff] %vm476, %v9089
        %p9220 = scmp.lt.s32.totalorder %s25, 1
        %s9221 = scalar_select %p9220, %s25, 1
        %s9222 = smul.addr %s9221, 128
        %s9223 = smul.addr %s9222, 8
        %s9224 = scalar_lea.vmem %s13, %s9223
        // Predicated region
        $region77: #{tpu_custom_call.1} parent=71 // pred_check
          %p9225 = pneg %p326
        $region78: #{tpu_custom_call.1} parent=71 // pred_check_branch
          %9227 = sbr.rel (%p9225) target = $region80
        $region79: #{tpu_custom_call.1} parent=71 // pred_region
          _
        $region80: #{tpu_custom_call.1} parent=71 // pred_fallthru
          _
      $region72: #{tpu_custom_call.1} parent=5 // pred_fallthru
        _
      %p9228 = scmp.le.s32.totalorder 2, %s20
      // Predicated region
      $region81: #{tpu_custom_call.1} parent=5 // pred_check
        %p9229 = pneg %p9228
      $region82: #{tpu_custom_call.1} parent=5 // pred_check_branch
        %9231 = sbr.rel (%p9229) target = $region84
      $region83: #{tpu_custom_call.1} parent=5 // pred_region
        %s9232 = ssub.s32 %s20, 2
        // Predicated region
        $region85: #{tpu_custom_call.1} parent=83 // pred_check
          %p9233 = pneg %p332
        $region86: #{tpu_custom_call.1} parent=83 // pred_check_branch
          %9235 = sbr.rel (%p9233) target = $region88
        $region87: #{tpu_custom_call.1} parent=83 // pred_region
          %p9236 = scmp.lt.s32.totalorder %s26, 1
          %s9237 = scalar_select %p9236, %s26, 1
          %s9238 = smul.addr %s9237, 128
          %s9239 = smul.addr %s9238, 8
          %s9240 = scalar_lea.vmem %s13, %s9239
        $region88: #{tpu_custom_call.1} parent=83 // pred_fallthru
          _
      $region84: #{tpu_custom_call.1} parent=5 // pred_fallthru
        _
    $region6: #{tpu_custom_call.1} parent=1 // loop_footer
      %s24 = sadd.s32 1, %s20
    $region7: #{tpu_custom_call.1} parent=1 // loop_footer_branch
      %19 = sbr.rel target = $region3
    $region8: #{tpu_custom_call.1} parent=1 // loop_exit
      _
    %9241 = vsyncpa [#allocation5], 1
    %s9242 = scalar_lea.sflag [#allocation5], 1
    %9243 = vsyncpa %s9242, 1

</llo_original>
